<compile_context>
chip_gen: v7x
topology: tpu7x:2x2x1
jax: 0.10.0
libtpu: 0.0.40
codegen_flags: <defaults>
</compile_context>

<pallas_src>
import functools

import jax
import jax.numpy as jnp
import numpy as np
from jax.experimental import pallas as pl
from jax.experimental.pallas import tpu as pltpu

EPS = 1e-5
CP = 128  # padded channel count (lane-dense)


# ---------------------------------------------------------------------------
# Kernel
# ---------------------------------------------------------------------------
def _resblock_kernel(xh_ref,
                     w1_ref, b1_ref, g1_ref, be1_ref,
                     w2_ref, b2_ref, g2_ref, be2_ref,
                     wsc_ref, bsc_ref, gsc_ref, besc_ref,
                     out_ref, y1h_ref,
                     *, B, H, W, mxu_dtype):
    Hp = H + 2
    n_src = B * Hp * W          # rows of an H-padded conv source
    n_out = B * H * W           # rows of a conv output

    def mxu_dot(a, b):
        if mxu_dtype != jnp.float32:
            a = a.astype(mxu_dtype)
            b = b.astype(mxu_dtype)
        return jnp.dot(a, b, preferred_element_type=jnp.float32)

    # w-index of each flattened source row (w is innermost) -> W-boundary
    # masks.  Shared by both convs (same flat layout).
    w_idx = jax.lax.broadcasted_iota(jnp.int32, (n_src, 1), 0) % W
    not_first_w = w_idx != 0          # valid for a (w-1) neighbour
    not_last_w = w_idx != (W - 1)     # valid for a (w+1) neighbour

    def taps(src2d):
        """src2d: (B*Hp*W, CP) H-padded flat source -> 9 (n_out, CP) taps."""
        shifted = (
            jnp.where(not_first_w, jnp.roll(src2d, 1, axis=0), 0.0),   # dw = -1
            src2d,                                                     # dw =  0
            jnp.where(not_last_w, jnp.roll(src2d, -1, axis=0), 0.0),   # dw = +1
        )
        v4 = [s.reshape(B, Hp, W, CP) for s in shifted]
        # H-shifts: tile-aligned leading-axis slices of the H-padded source.
        return [v4[dw][:, dh:dh + H].reshape(n_out, CP)
                for dh in range(3) for dw in range(3)]

    def batchnorm(y, g_ref, be_ref):
        # Fused single-pass stats: sum and sum-of-squares together.
        s1 = jnp.sum(y, axis=0, keepdims=True)
        s2 = jnp.sum(y * y, axis=0, keepdims=True)
        mean = s1 * (1.0 / n_out)
        var = jnp.maximum(s2 * (1.0 / n_out) - mean * mean, 0.0)
        scale = jax.lax.rsqrt(var + EPS) * g_ref[...]
        return (y - mean) * scale + be_ref[...]

    # --- conv1 taps (centre tap == un-padded x, reused by the shortcut) -----
    cols1 = taps(xh_ref[...])

    # --- shortcut: 1x1 conv + bn ---------------------------------------------
    sc = mxu_dot(cols1[4], wsc_ref[...]) + bsc_ref[...]
    sc = batchnorm(sc, gsc_ref, besc_ref)

    # --- conv1 + bn1 + ReLU: one im2col MXU matmul ----------------------------
    y1 = mxu_dot(jnp.concatenate(cols1, axis=1), w1_ref[...]) + b1_ref[...]
    y1 = jnp.maximum(batchnorm(y1, g1_ref, be1_ref), 0.0)

    # --- H-pad y1 in scratch: zero only the 1-row halos; tile-aligned stores --
    y1h_ref[:, 0:1, :, :] = jnp.zeros((B, 1, W, CP), jnp.float32)
    y1h_ref[:, Hp - 1:Hp, :, :] = jnp.zeros((B, 1, W, CP), jnp.float32)
    y1h_ref[:, 1:H + 1, :, :] = y1.reshape(B, H, W, CP)

    # --- conv2 + bn2 ----------------------------------------------------------
    cols2 = taps(y1h_ref[...].reshape(n_src, CP))
    y2 = mxu_dot(jnp.concatenate(cols2, axis=1), w2_ref[...]) + b2_ref[...]
    y2 = batchnorm(y2, g2_ref, be2_ref)

    # --- residual add + ReLU: lane-dense (n_out, 128) unmasked store ---------
    out_ref[...] = jnp.maximum(y2 + sc, 0.0)


# ---------------------------------------------------------------------------
# Wrapper (layout plumbing: NCHW<->NHWC, channel padding, H padding, weights)
# ---------------------------------------------------------------------------
def _pad_conv_weight(w_oihw):
    """PyTorch (co, ci, 3, 3) -> (9*CP, CP), tap-major rows (dh, dw, ci)."""
    co, ci, kh, kw = w_oihw.shape
    w_hwio = jnp.transpose(w_oihw, (2, 3, 1, 0))           # (dh, dw, ci, co)
    wp = jnp.zeros((kh, kw, CP, CP), jnp.float32).at[:, :, :ci, :co].set(w_hwio)
    return wp.reshape(kh * kw * CP, CP)


def _pad_row(v):          # (c,) -> (1, CP)
    return jnp.zeros((1, CP), jnp.float32).at[0, :v.shape[0]].set(v)


def residual_block(x_nchw, params, *, mxu_dtype=jnp.float32):
    """x_nchw: (B, Cin, H, W) float32, PyTorch-layout params. stride=1 only."""
    B, Cin, H, W = x_nchw.shape
    Cout = params["w1"].shape[0]
    assert Cin <= CP and Cout <= CP
    assert W % 8 == 0, "W must be a sublane multiple for tile-aligned H slices"
    Hp = H + 2
    n_src, n_out = B * Hp * W, B * H * W

    # NHWC, H-padded, channel-padded flat conv source.
    x = jnp.transpose(x_nchw, (0, 2, 3, 1)).astype(jnp.float32)
    xh = (jnp.zeros((B, Hp, W, CP), jnp.float32)
          .at[:, 1:H + 1, :, :Cin].set(x).reshape(n_src, CP))

    wsc = params["wsc"].reshape(Cout, Cin).T                 # (ci, co)
    wscp = jnp.zeros((CP, CP), jnp.float32).at[:Cin, :Cout].set(wsc)

    args = (xh,
            _pad_conv_weight(params["w1"]), _pad_row(params["b1"]),
            _pad_row(params["g1"]), _pad_row(params["beta1"]),
            _pad_conv_weight(params["w2"]), _pad_row(params["b2"]),
            _pad_row(params["g2"]), _pad_row(params["beta2"]),
            wscp, _pad_row(params["bsc"]),
            _pad_row(params["gsc"]), _pad_row(params["betasc"]))

    flops = (2 * n_out * (9 * CP) * CP * 2          # conv1 + conv2 im2col matmuls
             + 2 * n_out * CP * CP                  # shortcut matmul
             + 30 * n_out * CP)                     # BN / ReLU / add elementwise
    bytes_accessed = 4 * (n_src * CP + 2 * 9 * CP * CP + CP * CP
                          + 12 * CP + n_out * CP)

    vmem = pl.BlockSpec(memory_space=pltpu.MemorySpace.VMEM)
    kernel = functools.partial(_resblock_kernel, B=B, H=H, W=W, mxu_dtype=mxu_dtype)

    out = pl.pallas_call(
        kernel,
        out_shape=jax.ShapeDtypeStruct((n_out, CP), jnp.float32),
        in_specs=[vmem] * len(args),
        out_specs=vmem,
        scratch_shapes=[pltpu.VMEM((B, Hp, W, CP), jnp.float32)],
        compiler_params=pltpu.CompilerParams(vmem_limit_bytes=32 * 1024 * 1024),
        cost_estimate=pl.CostEstimate(flops=flops, transcendentals=3 * CP,
                                      bytes_accessed=bytes_accessed),
    )(*args)

    out = out.reshape(B, H, W, CP)[..., :Cout]
    return jnp.transpose(out, (0, 3, 1, 2))                  # back to NCHW


# ---------------------------------------------------------------------------
# Pure-JAX reference (same semantics as the PyTorch forward, NCHW / OIHW)
# ---------------------------------------------------------------------------
def residual_block_ref(x, params):
    dn = ("NCHW", "OIHW", "NCHW")

    def conv(x, w, b, pad):
        y = jax.lax.conv_general_dilated(x, w, (1, 1), pad, dimension_numbers=dn)
        return y + b.reshape(1, -1, 1, 1)

    def bn(y, g, beta):
        mean = jnp.mean(y, axis=(0, 2, 3), keepdims=True)
        var = jnp.mean((y - mean) ** 2, axis=(0, 2, 3), keepdims=True)
        return ((y - mean) * jax.lax.rsqrt(var + EPS) * g.reshape(1, -1, 1, 1)
                + beta.reshape(1, -1, 1, 1))

    sc = bn(conv(x, params["wsc"], params["bsc"], "VALID"),
            params["gsc"], params["betasc"])
    y = jax.nn.relu(bn(conv(x, params["w1"], params["b1"], "SAME"),
                       params["g1"], params["beta1"]))
    y = bn(conv(y, params["w2"], params["b2"], "SAME"),
           params["g2"], params["beta2"])
    return jax.nn.relu(y + sc)


# ---------------------------------------------------------------------------
if __name__ == "__main__":
    B, H, W = 2, 16, 16
    Cin, Cout = 4, 8  # Cin != Cout -> projection shortcut path is exercised

    keys = jax.random.split(jax.random.PRNGKey(0), 16)
    x = jax.random.normal(keys[0], (B, Cin, H, W), jnp.float32)

    params = {
        "w1": jax.random.normal(keys[1], (Cout, Cin, 3, 3), jnp.float32) * 0.2,
        "b1": jax.random.normal(keys[2], (Cout,), jnp.float32) * 0.1,
        "g1": 1.0 + jax.random.normal(keys[3], (Cout,), jnp.float32) * 0.1,
        "beta1": jax.random.normal(keys[4], (Cout,), jnp.float32) * 0.1,
        "w2": jax.random.normal(keys[5], (Cout, Cout, 3, 3), jnp.float32) * 0.2,
        "b2": jax.random.normal(keys[6], (Cout,), jnp.float32) * 0.1,
        "g2": 1.0 + jax.random.normal(keys[7], (Cout,), jnp.float32) * 0.1,
        "beta2": jax.random.normal(keys[8], (Cout,), jnp.float32) * 0.1,
        "wsc": jax.random.normal(keys[9], (Cout, Cin, 1, 1), jnp.float32) * 0.3,
        "bsc": jax.random.normal(keys[10], (Cout,), jnp.float32) * 0.1,
        "gsc": 1.0 + jax.random.normal(keys[11], (Cout,), jnp.float32) * 0.1,
        "betasc": jax.random.normal(keys[12], (Cout,), jnp.float32) * 0.1,
    }

    out = jax.block_until_ready(residual_block(x, params))
    ref = jax.block_until_ready(residual_block_ref(x, params))

    assert out.shape == (B, Cout, H, W)
    err = float(np.max(np.abs(np.asarray(out) - np.asarray(ref))))
    assert np.allclose(np.asarray(out), np.asarray(ref), atol=2e-3, rtol=2e-3), (
        "max abs err = %g" % err)

    print("KERNEL_OK")
</pallas_src>

<mosaic_0001>
module attributes {stable_mosaic.version = 11 : i64} {
  func.func @_resblock_kernel(%arg0: memref<576x128xf32, #tpu.memory_space<vmem>>, %arg1: memref<1152x128xf32, #tpu.memory_space<vmem>>, %arg2: memref<1x128xf32, #tpu.memory_space<vmem>>, %arg3: memref<1x128xf32, #tpu.memory_space<vmem>>, %arg4: memref<1x128xf32, #tpu.memory_space<vmem>>, %arg5: memref<1152x128xf32, #tpu.memory_space<vmem>>, %arg6: memref<1x128xf32, #tpu.memory_space<vmem>>, %arg7: memref<1x128xf32, #tpu.memory_space<vmem>>, %arg8: memref<1x128xf32, #tpu.memory_space<vmem>>, %arg9: memref<128x128xf32, #tpu.memory_space<vmem>>, %arg10: memref<1x128xf32, #tpu.memory_space<vmem>>, %arg11: memref<1x128xf32, #tpu.memory_space<vmem>>, %arg12: memref<1x128xf32, #tpu.memory_space<vmem>>, %arg13: memref<512x128xf32, #tpu.memory_space<vmem>>, %arg14: memref<2x18x16x128xf32, #tpu.memory_space<vmem>>) attributes {dimension_semantics = [], scalar_prefetch = 0 : i64, scratch_operands = 1 : i64, tpu.core_type = #tpu.core_type<tc>} {
    %0 = tpu.iota {dimensions = array<i32: 0>} : vector<576x1xi32>
    %c16_i32 = arith.constant 16 : i32
    %c0_i32 = arith.constant 0 : i32
    %1 = arith.cmpi eq, %c16_i32, %c0_i32 : i32
    %c1_i32 = arith.constant 1 : i32
    %2 = arith.select %1, %c1_i32, %c16_i32 : i32
    %3 = vector.broadcast %2 : i32 to vector<576x1xi32>
    %4 = arith.remsi %0, %3 : vector<576x1xi32>
    %c0_i32_0 = arith.constant 0 : i32
    %5 = vector.broadcast %c0_i32_0 : i32 to vector<576x1xi32>
    %6 = arith.cmpi ne, %4, %5 : vector<576x1xi32>
    %c0_i32_1 = arith.constant 0 : i32
    %7 = vector.broadcast %c0_i32_1 : i32 to vector<576x1xi32>
    %8 = arith.cmpi slt, %4, %7 : vector<576x1xi32>
    %c0_i32_2 = arith.constant 0 : i32
    %9 = arith.cmpi slt, %2, %c0_i32_2 : i32
    %10 = vector.broadcast %9 : i1 to vector<576x1xi1>
    %11 = vector.broadcast %10 : vector<576x1xi1> to vector<576x1xi1>
    %12 = arith.xori %8, %11 : vector<576x1xi1>
    %13 = arith.andi %12, %6 : vector<576x1xi1>
    %14 = vector.broadcast %2 : i32 to vector<576x1xi32>
    %15 = arith.addi %4, %14 : vector<576x1xi32>
    %16 = arith.select %13, %15, %4 : vector<576x1xi1>, vector<576x1xi32>
    %c0_i32_3 = arith.constant 0 : i32
    %17 = vector.broadcast %c0_i32_3 : i32 to vector<576x1xi32>
    %18 = arith.cmpi ne, %16, %17 : vector<576x1xi32>
    %c15_i32 = arith.constant 15 : i32
    %19 = vector.broadcast %c15_i32 : i32 to vector<576x1xi32>
    %20 = arith.cmpi ne, %16, %19 : vector<576x1xi32>
    %c0 = arith.constant 0 : index
    %c0_4 = arith.constant 0 : index
    %21 = vector.load %arg0[%c0, %c0_4] : memref<576x128xf32, #tpu.memory_space<vmem>>, vector<576x128xf32>
    %22 = vector.extract_strided_slice %21 {offsets = [575, 0], sizes = [1, 128], strides = [1, 1]} : vector<576x128xf32> to vector<1x128xf32>
    %23 = vector.extract_strided_slice %21 {offsets = [0, 0], sizes = [575, 128], strides = [1, 1]} : vector<576x128xf32> to vector<575x128xf32>
    %24 = tpu.concatenate %22, %23 in 0 : vector<1x128xf32>, vector<575x128xf32> -> vector<576x128xf32>
    %cst = arith.constant 0.000000e+00 : f32
    %25 = vector.shape_cast %18 : vector<576x1xi1> to vector<576x1xi1>
    %26 = vector.broadcast %25 : vector<576x1xi1> to vector<576x128xi1>
    %27 = vector.broadcast %cst : f32 to vector<576x128xf32>
    %28 = arith.select %26, %24, %27 : vector<576x128xi1>, vector<576x128xf32>
    %29 = vector.extract_strided_slice %21 {offsets = [1, 0], sizes = [575, 128], strides = [1, 1]} : vector<576x128xf32> to vector<575x128xf32>
    %30 = vector.extract_strided_slice %21 {offsets = [0, 0], sizes = [1, 128], strides = [1, 1]} : vector<576x128xf32> to vector<1x128xf32>
    %31 = tpu.concatenate %29, %30 in 0 : vector<575x128xf32>, vector<1x128xf32> -> vector<576x128xf32>
    %cst_5 = arith.constant 0.000000e+00 : f32
    %32 = vector.shape_cast %20 : vector<576x1xi1> to vector<576x1xi1>
    %33 = vector.broadcast %32 : vector<576x1xi1> to vector<576x128xi1>
    %34 = vector.broadcast %cst_5 : f32 to vector<576x128xf32>
    %35 = arith.select %33, %31, %34 : vector<576x128xi1>, vector<576x128xf32>
    %36 = vector.shape_cast %28 : vector<576x128xf32> to vector<2x18x16x128xf32>
    %37 = vector.shape_cast %21 : vector<576x128xf32> to vector<2x18x16x128xf32>
    %38 = vector.shape_cast %35 : vector<576x128xf32> to vector<2x18x16x128xf32>
    %39 = vector.extract_strided_slice %36 {offsets = [0, 0, 0, 0], sizes = [2, 16, 16, 128], strides = [1, 1, 1, 1]} : vector<2x18x16x128xf32> to vector<2x16x16x128xf32>
    %40 = vector.shape_cast %39 : vector<2x16x16x128xf32> to vector<512x128xf32>
    %41 = vector.extract_strided_slice %37 {offsets = [0, 0, 0, 0], sizes = [2, 16, 16, 128], strides = [1, 1, 1, 1]} : vector<2x18x16x128xf32> to vector<2x16x16x128xf32>
    %42 = vector.shape_cast %41 : vector<2x16x16x128xf32> to vector<512x128xf32>
    %43 = vector.extract_strided_slice %38 {offsets = [0, 0, 0, 0], sizes = [2, 16, 16, 128], strides = [1, 1, 1, 1]} : vector<2x18x16x128xf32> to vector<2x16x16x128xf32>
    %44 = vector.shape_cast %43 : vector<2x16x16x128xf32> to vector<512x128xf32>
    %45 = vector.extract_strided_slice %36 {offsets = [0, 1, 0, 0], sizes = [2, 16, 16, 128], strides = [1, 1, 1, 1]} : vector<2x18x16x128xf32> to vector<2x16x16x128xf32>
    %46 = vector.shape_cast %45 : vector<2x16x16x128xf32> to vector<512x128xf32>
    %47 = vector.extract_strided_slice %37 {offsets = [0, 1, 0, 0], sizes = [2, 16, 16, 128], strides = [1, 1, 1, 1]} : vector<2x18x16x128xf32> to vector<2x16x16x128xf32>
    %48 = vector.shape_cast %47 : vector<2x16x16x128xf32> to vector<512x128xf32>
    %49 = vector.extract_strided_slice %38 {offsets = [0, 1, 0, 0], sizes = [2, 16, 16, 128], strides = [1, 1, 1, 1]} : vector<2x18x16x128xf32> to vector<2x16x16x128xf32>
    %50 = vector.shape_cast %49 : vector<2x16x16x128xf32> to vector<512x128xf32>
    %51 = vector.extract_strided_slice %36 {offsets = [0, 2, 0, 0], sizes = [2, 16, 16, 128], strides = [1, 1, 1, 1]} : vector<2x18x16x128xf32> to vector<2x16x16x128xf32>
    %52 = vector.shape_cast %51 : vector<2x16x16x128xf32> to vector<512x128xf32>
    %53 = vector.extract_strided_slice %37 {offsets = [0, 2, 0, 0], sizes = [2, 16, 16, 128], strides = [1, 1, 1, 1]} : vector<2x18x16x128xf32> to vector<2x16x16x128xf32>
    %54 = vector.shape_cast %53 : vector<2x16x16x128xf32> to vector<512x128xf32>
    %55 = vector.extract_strided_slice %38 {offsets = [0, 2, 0, 0], sizes = [2, 16, 16, 128], strides = [1, 1, 1, 1]} : vector<2x18x16x128xf32> to vector<2x16x16x128xf32>
    %56 = vector.shape_cast %55 : vector<2x16x16x128xf32> to vector<512x128xf32>
    %c0_6 = arith.constant 0 : index
    %c0_7 = arith.constant 0 : index
    %57 = vector.load %arg9[%c0_6, %c0_7] : memref<128x128xf32, #tpu.memory_space<vmem>>, vector<128x128xf32>
    %cst_8 = arith.constant dense<0.000000e+00> : vector<512x128xf32>
    %58 = tpu.matmul %48, %57, %cst_8 {dimension_numbers = #tpu.dot_dimension_numbers<[1], [0], [0], [1], [0, 0, 1, 1], [], []>} : vector<512x128xf32>, vector<128x128xf32>, vector<512x128xf32> -> vector<512x128xf32>
    %c0_9 = arith.constant 0 : index
    %c0_10 = arith.constant 0 : index
    %59 = vector.load %arg10[%c0_9, %c0_10] : memref<1x128xf32, #tpu.memory_space<vmem>>, vector<1x128xf32>
    %60 = vector.broadcast %59 : vector<1x128xf32> to vector<512x128xf32>
    %61 = arith.addf %58, %60 : vector<512x128xf32>
    %cst_11 = arith.constant dense<0.000000e+00> : vector<128xf32>
    %62 = vector.multi_reduction <add>, %61, %cst_11 [0] : vector<512x128xf32> to vector<128xf32>
    %63 = vector.shape_cast %62 : vector<128xf32> to vector<1x128xf32>
    %64 = arith.mulf %61, %61 : vector<512x128xf32>
    %cst_12 = arith.constant dense<0.000000e+00> : vector<128xf32>
    %65 = vector.multi_reduction <add>, %64, %cst_12 [0] : vector<512x128xf32> to vector<128xf32>
    %66 = vector.shape_cast %65 : vector<128xf32> to vector<1x128xf32>
    %cst_13 = arith.constant 0.001953125 : f32
    %67 = vector.broadcast %cst_13 : f32 to vector<1x128xf32>
    %68 = arith.mulf %63, %67 : vector<1x128xf32>
    %cst_14 = arith.constant 0.001953125 : f32
    %69 = vector.broadcast %cst_14 : f32 to vector<1x128xf32>
    %70 = arith.mulf %66, %69 : vector<1x128xf32>
    %71 = arith.mulf %68, %68 : vector<1x128xf32>
    %72 = arith.subf %70, %71 : vector<1x128xf32>
    %cst_15 = arith.constant 0.000000e+00 : f32
    %73 = vector.broadcast %cst_15 : f32 to vector<1x128xf32>
    %74 = arith.maximumf %72, %73 : vector<1x128xf32>
    %cst_16 = arith.constant 9.99999974E-6 : f32
    %75 = vector.broadcast %cst_16 : f32 to vector<1x128xf32>
    %76 = arith.addf %74, %75 : vector<1x128xf32>
    %77 = math.rsqrt %76 : vector<1x128xf32>
    %c0_17 = arith.constant 0 : index
    %c0_18 = arith.constant 0 : index
    %78 = vector.load %arg11[%c0_17, %c0_18] : memref<1x128xf32, #tpu.memory_space<vmem>>, vector<1x128xf32>
    %79 = arith.mulf %77, %78 : vector<1x128xf32>
    %80 = vector.broadcast %68 : vector<1x128xf32> to vector<512x128xf32>
    %81 = arith.subf %61, %80 : vector<512x128xf32>
    %82 = vector.broadcast %79 : vector<1x128xf32> to vector<512x128xf32>
    %83 = arith.mulf %81, %82 : vector<512x128xf32>
    %c0_19 = arith.constant 0 : index
    %c0_20 = arith.constant 0 : index
    %84 = vector.load %arg12[%c0_19, %c0_20] : memref<1x128xf32, #tpu.memory_space<vmem>>, vector<1x128xf32>
    %85 = vector.broadcast %84 : vector<1x128xf32> to vector<512x128xf32>
    %86 = arith.addf %83, %85 : vector<512x128xf32>
    %87 = tpu.concatenate %40, %42, %44, %46, %48, %50, %52, %54, %56 in 1 : vector<512x128xf32>, vector<512x128xf32>, vector<512x128xf32>, vector<512x128xf32>, vector<512x128xf32>, vector<512x128xf32>, vector<512x128xf32>, vector<512x128xf32>, vector<512x128xf32> -> vector<512x1152xf32>
    %c0_21 = arith.constant 0 : index
    %c0_22 = arith.constant 0 : index
    %88 = vector.load %arg1[%c0_21, %c0_22] : memref<1152x128xf32, #tpu.memory_space<vmem>>, vector<1152x128xf32>
    %cst_23 = arith.constant dense<0.000000e+00> : vector<512x128xf32>
    %89 = tpu.matmul %87, %88, %cst_23 {dimension_numbers = #tpu.dot_dimension_numbers<[1], [0], [0], [1], [0, 0, 1, 1], [], []>} : vector<512x1152xf32>, vector<1152x128xf32>, vector<512x128xf32> -> vector<512x128xf32>
    %c0_24 = arith.constant 0 : index
    %c0_25 = arith.constant 0 : index
    %90 = vector.load %arg2[%c0_24, %c0_25] : memref<1x128xf32, #tpu.memory_space<vmem>>, vector<1x128xf32>
    %91 = vector.broadcast %90 : vector<1x128xf32> to vector<512x128xf32>
    %92 = arith.addf %89, %91 : vector<512x128xf32>
    %cst_26 = arith.constant dense<0.000000e+00> : vector<128xf32>
    %93 = vector.multi_reduction <add>, %92, %cst_26 [0] : vector<512x128xf32> to vector<128xf32>
    %94 = vector.shape_cast %93 : vector<128xf32> to vector<1x128xf32>
    %95 = arith.mulf %92, %92 : vector<512x128xf32>
    %cst_27 = arith.constant dense<0.000000e+00> : vector<128xf32>
    %96 = vector.multi_reduction <add>, %95, %cst_27 [0] : vector<512x128xf32> to vector<128xf32>
    %97 = vector.shape_cast %96 : vector<128xf32> to vector<1x128xf32>
    %cst_28 = arith.constant 0.001953125 : f32
    %98 = vector.broadcast %cst_28 : f32 to vector<1x128xf32>
    %99 = arith.mulf %94, %98 : vector<1x128xf32>
    %cst_29 = arith.constant 0.001953125 : f32
    %100 = vector.broadcast %cst_29 : f32 to vector<1x128xf32>
    %101 = arith.mulf %97, %100 : vector<1x128xf32>
    %102 = arith.mulf %99, %99 : vector<1x128xf32>
    %103 = arith.subf %101, %102 : vector<1x128xf32>
    %cst_30 = arith.constant 0.000000e+00 : f32
    %104 = vector.broadcast %cst_30 : f32 to vector<1x128xf32>
    %105 = arith.maximumf %103, %104 : vector<1x128xf32>
    %cst_31 = arith.constant 9.99999974E-6 : f32
    %106 = vector.broadcast %cst_31 : f32 to vector<1x128xf32>
    %107 = arith.addf %105, %106 : vector<1x128xf32>
    %108 = math.rsqrt %107 : vector<1x128xf32>
    %c0_32 = arith.constant 0 : index
    %c0_33 = arith.constant 0 : index
    %109 = vector.load %arg3[%c0_32, %c0_33] : memref<1x128xf32, #tpu.memory_space<vmem>>, vector<1x128xf32>
    %110 = arith.mulf %108, %109 : vector<1x128xf32>
    %111 = vector.broadcast %99 : vector<1x128xf32> to vector<512x128xf32>
    %112 = arith.subf %92, %111 : vector<512x128xf32>
    %113 = vector.broadcast %110 : vector<1x128xf32> to vector<512x128xf32>
    %114 = arith.mulf %112, %113 : vector<512x128xf32>
    %c0_34 = arith.constant 0 : index
    %c0_35 = arith.constant 0 : index
    %115 = vector.load %arg4[%c0_34, %c0_35] : memref<1x128xf32, #tpu.memory_space<vmem>>, vector<1x128xf32>
    %116 = vector.broadcast %115 : vector<1x128xf32> to vector<512x128xf32>
    %117 = arith.addf %114, %116 : vector<512x128xf32>
    %cst_36 = arith.constant 0.000000e+00 : f32
    %118 = vector.broadcast %cst_36 : f32 to vector<512x128xf32>
    %119 = arith.maximumf %117, %118 : vector<512x128xf32>
    %cst_37 = arith.constant 0.000000e+00 : f32
    %120 = vector.broadcast %cst_37 : f32 to vector<2x1x16x128xf32>
    %c0_38 = arith.constant 0 : index
    %c0_39 = arith.constant 0 : index
    %c0_40 = arith.constant 0 : index
    %c0_41 = arith.constant 0 : index
    %121 = vector.load %arg14[%c0_38, %c0_39, %c0_40, %c0_41] : memref<2x18x16x128xf32, #tpu.memory_space<vmem>>, vector<2x1x16x128xf32>
    tpu.vector_store %arg14[%c0_38, %c0_39, %c0_40, %c0_41], %120 {strides = array<i32>} : memref<2x18x16x128xf32, #tpu.memory_space<vmem>>, vector<2x1x16x128xf32>,
    %cst_42 = arith.constant 0.000000e+00 : f32
    %122 = vector.broadcast %cst_42 : f32 to vector<2x1x16x128xf32>
    %c0_43 = arith.constant 0 : index
    %c17 = arith.constant 17 : index
    %c0_44 = arith.constant 0 : index
    %c0_45 = arith.constant 0 : index
    %123 = vector.load %arg14[%c0_43, %c17, %c0_44, %c0_45] : memref<2x18x16x128xf32, #tpu.memory_space<vmem>>, vector<2x1x16x128xf32>
    tpu.vector_store %arg14[%c0_43, %c17, %c0_44, %c0_45], %122 {strides = array<i32>} : memref<2x18x16x128xf32, #tpu.memory_space<vmem>>, vector<2x1x16x128xf32>,
    %124 = vector.shape_cast %119 : vector<512x128xf32> to vector<2x16x16x128xf32>
    %c0_46 = arith.constant 0 : index
    %c1 = arith.constant 1 : index
    %c0_47 = arith.constant 0 : index
    %c0_48 = arith.constant 0 : index
    %125 = vector.load %arg14[%c0_46, %c1, %c0_47, %c0_48] : memref<2x18x16x128xf32, #tpu.memory_space<vmem>>, vector<2x16x16x128xf32>
    tpu.vector_store %arg14[%c0_46, %c1, %c0_47, %c0_48], %124 {strides = array<i32>} : memref<2x18x16x128xf32, #tpu.memory_space<vmem>>, vector<2x16x16x128xf32>,
    %c0_49 = arith.constant 0 : index
    %c0_50 = arith.constant 0 : index
    %c0_51 = arith.constant 0 : index
    %c0_52 = arith.constant 0 : index
    %126 = vector.load %arg14[%c0_49, %c0_50, %c0_51, %c0_52] : memref<2x18x16x128xf32, #tpu.memory_space<vmem>>, vector<2x18x16x128xf32>
    %127 = vector.shape_cast %126 : vector<2x18x16x128xf32> to vector<576x128xf32>
    %128 = vector.extract_strided_slice %127 {offsets = [575, 0], sizes = [1, 128], strides = [1, 1]} : vector<576x128xf32> to vector<1x128xf32>
    %129 = vector.extract_strided_slice %127 {offsets = [0, 0], sizes = [575, 128], strides = [1, 1]} : vector<576x128xf32> to vector<575x128xf32>
    %130 = tpu.concatenate %128, %129 in 0 : vector<1x128xf32>, vector<575x128xf32> -> vector<576x128xf32>
    %cst_53 = arith.constant 0.000000e+00 : f32
    %131 = vector.shape_cast %18 : vector<576x1xi1> to vector<576x1xi1>
    %132 = vector.broadcast %131 : vector<576x1xi1> to vector<576x128xi1>
    %133 = vector.broadcast %cst_53 : f32 to vector<576x128xf32>
    %134 = arith.select %132, %130, %133 : vector<576x128xi1>, vector<576x128xf32>
    %135 = vector.extract_strided_slice %127 {offsets = [1, 0], sizes = [575, 128], strides = [1, 1]} : vector<576x128xf32> to vector<575x128xf32>
    %136 = vector.extract_strided_slice %127 {offsets = [0, 0], sizes = [1, 128], strides = [1, 1]} : vector<576x128xf32> to vector<1x128xf32>
    %137 = tpu.concatenate %135, %136 in 0 : vector<575x128xf32>, vector<1x128xf32> -> vector<576x128xf32>
    %cst_54 = arith.constant 0.000000e+00 : f32
    %138 = vector.shape_cast %20 : vector<576x1xi1> to vector<576x1xi1>
    %139 = vector.broadcast %138 : vector<576x1xi1> to vector<576x128xi1>
    %140 = vector.broadcast %cst_54 : f32 to vector<576x128xf32>
    %141 = arith.select %139, %137, %140 : vector<576x128xi1>, vector<576x128xf32>
    %142 = vector.shape_cast %134 : vector<576x128xf32> to vector<2x18x16x128xf32>
    %143 = vector.shape_cast %127 : vector<576x128xf32> to vector<2x18x16x128xf32>
    %144 = vector.shape_cast %141 : vector<576x128xf32> to vector<2x18x16x128xf32>
    %145 = vector.extract_strided_slice %142 {offsets = [0, 0, 0, 0], sizes = [2, 16, 16, 128], strides = [1, 1, 1, 1]} : vector<2x18x16x128xf32> to vector<2x16x16x128xf32>
    %146 = vector.shape_cast %145 : vector<2x16x16x128xf32> to vector<512x128xf32>
    %147 = vector.extract_strided_slice %143 {offsets = [0, 0, 0, 0], sizes = [2, 16, 16, 128], strides = [1, 1, 1, 1]} : vector<2x18x16x128xf32> to vector<2x16x16x128xf32>
    %148 = vector.shape_cast %147 : vector<2x16x16x128xf32> to vector<512x128xf32>
    %149 = vector.extract_strided_slice %144 {offsets = [0, 0, 0, 0], sizes = [2, 16, 16, 128], strides = [1, 1, 1, 1]} : vector<2x18x16x128xf32> to vector<2x16x16x128xf32>
    %150 = vector.shape_cast %149 : vector<2x16x16x128xf32> to vector<512x128xf32>
    %151 = vector.extract_strided_slice %142 {offsets = [0, 1, 0, 0], sizes = [2, 16, 16, 128], strides = [1, 1, 1, 1]} : vector<2x18x16x128xf32> to vector<2x16x16x128xf32>
    %152 = vector.shape_cast %151 : vector<2x16x16x128xf32> to vector<512x128xf32>
    %153 = vector.extract_strided_slice %143 {offsets = [0, 1, 0, 0], sizes = [2, 16, 16, 128], strides = [1, 1, 1, 1]} : vector<2x18x16x128xf32> to vector<2x16x16x128xf32>
    %154 = vector.shape_cast %153 : vector<2x16x16x128xf32> to vector<512x128xf32>
    %155 = vector.extract_strided_slice %144 {offsets = [0, 1, 0, 0], sizes = [2, 16, 16, 128], strides = [1, 1, 1, 1]} : vector<2x18x16x128xf32> to vector<2x16x16x128xf32>
    %156 = vector.shape_cast %155 : vector<2x16x16x128xf32> to vector<512x128xf32>
    %157 = vector.extract_strided_slice %142 {offsets = [0, 2, 0, 0], sizes = [2, 16, 16, 128], strides = [1, 1, 1, 1]} : vector<2x18x16x128xf32> to vector<2x16x16x128xf32>
    %158 = vector.shape_cast %157 : vector<2x16x16x128xf32> to vector<512x128xf32>
    %159 = vector.extract_strided_slice %143 {offsets = [0, 2, 0, 0], sizes = [2, 16, 16, 128], strides = [1, 1, 1, 1]} : vector<2x18x16x128xf32> to vector<2x16x16x128xf32>
    %160 = vector.shape_cast %159 : vector<2x16x16x128xf32> to vector<512x128xf32>
    %161 = vector.extract_strided_slice %144 {offsets = [0, 2, 0, 0], sizes = [2, 16, 16, 128], strides = [1, 1, 1, 1]} : vector<2x18x16x128xf32> to vector<2x16x16x128xf32>
    %162 = vector.shape_cast %161 : vector<2x16x16x128xf32> to vector<512x128xf32>
    %163 = tpu.concatenate %146, %148, %150, %152, %154, %156, %158, %160, %162 in 1 : vector<512x128xf32>, vector<512x128xf32>, vector<512x128xf32>, vector<512x128xf32>, vector<512x128xf32>, vector<512x128xf32>, vector<512x128xf32>, vector<512x128xf32>, vector<512x128xf32> -> vector<512x1152xf32>
    %c0_55 = arith.constant 0 : index
    %c0_56 = arith.constant 0 : index
    %164 = vector.load %arg5[%c0_55, %c0_56] : memref<1152x128xf32, #tpu.memory_space<vmem>>, vector<1152x128xf32>
    %cst_57 = arith.constant dense<0.000000e+00> : vector<512x128xf32>
    %165 = tpu.matmul %163, %164, %cst_57 {dimension_numbers = #tpu.dot_dimension_numbers<[1], [0], [0], [1], [0, 0, 1, 1], [], []>} : vector<512x1152xf32>, vector<1152x128xf32>, vector<512x128xf32> -> vector<512x128xf32>
    %c0_58 = arith.constant 0 : index
    %c0_59 = arith.constant 0 : index
    %166 = vector.load %arg6[%c0_58, %c0_59] : memref<1x128xf32, #tpu.memory_space<vmem>>, vector<1x128xf32>
    %167 = vector.broadcast %166 : vector<1x128xf32> to vector<512x128xf32>
    %168 = arith.addf %165, %167 : vector<512x128xf32>
    %cst_60 = arith.constant dense<0.000000e+00> : vector<128xf32>
    %169 = vector.multi_reduction <add>, %168, %cst_60 [0] : vector<512x128xf32> to vector<128xf32>
    %170 = vector.shape_cast %169 : vector<128xf32> to vector<1x128xf32>
    %171 = arith.mulf %168, %168 : vector<512x128xf32>
    %cst_61 = arith.constant dense<0.000000e+00> : vector<128xf32>
    %172 = vector.multi_reduction <add>, %171, %cst_61 [0] : vector<512x128xf32> to vector<128xf32>
    %173 = vector.shape_cast %172 : vector<128xf32> to vector<1x128xf32>
    %cst_62 = arith.constant 0.001953125 : f32
    %174 = vector.broadcast %cst_62 : f32 to vector<1x128xf32>
    %175 = arith.mulf %170, %174 : vector<1x128xf32>
    %cst_63 = arith.constant 0.001953125 : f32
    %176 = vector.broadcast %cst_63 : f32 to vector<1x128xf32>
    %177 = arith.mulf %173, %176 : vector<1x128xf32>
    %178 = arith.mulf %175, %175 : vector<1x128xf32>
    %179 = arith.subf %177, %178 : vector<1x128xf32>
    %cst_64 = arith.constant 0.000000e+00 : f32
    %180 = vector.broadcast %cst_64 : f32 to vector<1x128xf32>
    %181 = arith.maximumf %179, %180 : vector<1x128xf32>
    %cst_65 = arith.constant 9.99999974E-6 : f32
    %182 = vector.broadcast %cst_65 : f32 to vector<1x128xf32>
    %183 = arith.addf %181, %182 : vector<1x128xf32>
    %184 = math.rsqrt %183 : vector<1x128xf32>
    %c0_66 = arith.constant 0 : index
    %c0_67 = arith.constant 0 : index
    %185 = vector.load %arg7[%c0_66, %c0_67] : memref<1x128xf32, #tpu.memory_space<vmem>>, vector<1x128xf32>
    %186 = arith.mulf %184, %185 : vector<1x128xf32>
    %187 = vector.broadcast %175 : vector<1x128xf32> to vector<512x128xf32>
    %188 = arith.subf %168, %187 : vector<512x128xf32>
    %189 = vector.broadcast %186 : vector<1x128xf32> to vector<512x128xf32>
    %190 = arith.mulf %188, %189 : vector<512x128xf32>
    %c0_68 = arith.constant 0 : index
    %c0_69 = arith.constant 0 : index
    %191 = vector.load %arg8[%c0_68, %c0_69] : memref<1x128xf32, #tpu.memory_space<vmem>>, vector<1x128xf32>
    %192 = vector.broadcast %191 : vector<1x128xf32> to vector<512x128xf32>
    %193 = arith.addf %190, %192 : vector<512x128xf32>
    %194 = arith.addf %193, %86 : vector<512x128xf32>
    %cst_70 = arith.constant 0.000000e+00 : f32
    %195 = vector.broadcast %cst_70 : f32 to vector<512x128xf32>
    %196 = arith.maximumf %194, %195 : vector<512x128xf32>
    %c0_71 = arith.constant 0 : index
    %c0_72 = arith.constant 0 : index
    %197 = vector.load %arg13[%c0_71, %c0_72] : memref<512x128xf32, #tpu.memory_space<vmem>>, vector<512x128xf32>
    tpu.vector_store %arg13[%c0_71, %c0_72], %196 {strides = array<i32>} : memref<512x128xf32, #tpu.memory_space<vmem>>, vector<512x128xf32>,
    return
  }
}

</mosaic_0001>

<llo_original>
// kernel: tpu_custom_call.1
$region0: #{tpu_custom_call.1}
  #allocation0 [shape = 'u32[]', space=smem, size = 0x4, offset = 0x4, fixed_abs, tag = 'smem constant byte address 0x4 - core index']
  #allocation1 [shape = 'u32[144,128]{1,0:T(1,128)}', space=vmem, size = 0x12000, scoped, tag = 'internal scratch']
  #allocation2 [shape = 'f32[2,18,16,128]{3,2,1,0:T(8,128)}', space=vmem, size = 0x48000, scoped, tag = 'scratch operand']
  %s0 = inlined_call_operand.hbm [shape: f32[576,128], index: 0, kind: input, shape index: {}]
  %s1 = inlined_call_operand.hbm [shape: f32[1152,128], index: 1, kind: input, shape index: {}]
  %s2 = inlined_call_operand.vmem [shape: f32[1,128], index: 2, kind: input, shape index: {}]
  %s3 = inlined_call_operand.vmem [shape: f32[1,128], index: 3, kind: input, shape index: {}]
  %s4 = inlined_call_operand.vmem [shape: f32[1,128], index: 4, kind: input, shape index: {}]
  %s5 = inlined_call_operand.hbm [shape: f32[1152,128], index: 5, kind: input, shape index: {}]
  %s6 = inlined_call_operand.vmem [shape: f32[1,128], index: 6, kind: input, shape index: {}]
  %s7 = inlined_call_operand.vmem [shape: f32[1,128], index: 7, kind: input, shape index: {}]
  %s8 = inlined_call_operand.vmem [shape: f32[1,128], index: 8, kind: input, shape index: {}]
  %s9 = inlined_call_operand.hbm [shape: f32[128,128], index: 9, kind: input, shape index: {}]
  %s10 = inlined_call_operand.vmem [shape: f32[1,128], index: 10, kind: input, shape index: {}]
  %s11 = inlined_call_operand.vmem [shape: f32[1,128], index: 11, kind: input, shape index: {}]
  %s12 = inlined_call_operand.vmem [shape: f32[1,128], index: 12, kind: input, shape index: {}]
  %s13 = inlined_call_operand.hbm [shape: f32[512,128], index: 13, kind: output, shape index: {}]
  %s14 = sld [smem:[#allocation0]]
  $region78: #{tpu_custom_call.1} parent=0
    _
  %s16 = ssub.s32 1, %s14
  %s17 = scalar_select 0, %s16, %s14
  $region1: #{tpu_custom_call.1} parent=0
    #allocation3 [shape = 'u8[294912]{0}', space=vmem, size = 0x48000, scoped, tag = 'input window, operand 0, single buffered']
    #allocation4 [shape = 's32[1]{0}', space=sflag, size = 0x4, scoped, tag = 'scoped memory for tpu_custom_call.1']
    #allocation5 [shape = 's32[1]{0}', space=sflag, size = 0x4, scoped, tag = 'scoped memory for tpu_custom_call.1']
    #allocation6 [shape = 'u8[589824]{0}', space=vmem, size = 0x90000, scoped, tag = 'input window, operand 1, single buffered']
    #allocation7 [shape = 's32[1]{0}', space=sflag, size = 0x4, scoped, tag = 'scoped memory for tpu_custom_call.1']
    #allocation8 [shape = 'u8[589824]{0}', space=vmem, size = 0x90000, scoped, tag = 'input window, operand 5, single buffered']
    #allocation9 [shape = 'u8[65536]{0}', space=vmem, size = 0x10000, scoped, tag = 'input window, operand 9, single buffered']
    #allocation10 [shape = 's32[1]{0}', space=sflag, size = 0x4, scoped, tag = 'scoped memory for tpu_custom_call.1']
    #allocation11 [shape = 'u8[262144]{0}', space=vmem, size = 0x40000, scoped, tag = 'output window, operand 0, single buffered']
    %18 = vsyncpa [#allocation4], 0
    %19 = vsyncpa [#allocation7], 0
    %20 = vsyncpa [#allocation10], 0
    %21 = vsyncpa [#allocation5], 0
    // Predicated region
    $region2: #{tpu_custom_call.1} parent=1 // pred_check
      _
    $region3: #{tpu_custom_call.1} parent=1 // pred_check_branch
      %23 = sbr.rel (0) target = $region5
    $region4: #{tpu_custom_call.1} parent=1 // pred_region
      %s25 = ssub.s32 9216, 9216
      %26 = vsyncadd [#allocation4], %s25
      %s27 = sshll.u32 [#allocation3], 4
      %s28 = int_to_ptr.vmem [resolvable:$true] %s27
      %33 = dma.hbm_to_vmem [thread:$0]  %s0, 9216, %s28, [#allocation4], 128, 128, 8
    $region5: #{tpu_custom_call.1} parent=1 // pred_fallthru
      _
    // Predicated region
    $region6: #{tpu_custom_call.1} parent=1 // pred_check
      _
    $region7: #{tpu_custom_call.1} parent=1 // pred_check_branch
      %35 = sbr.rel (0) target = $region9
    $region8: #{tpu_custom_call.1} parent=1 // pred_region
      %s37 = ssub.s32 18432, 18432
      %38 = vsyncadd [#allocation7], %s37
      %s39 = sshll.u32 [#allocation6], 4
      %s40 = int_to_ptr.vmem [resolvable:$true] %s39
      %45 = dma.hbm_to_vmem [thread:$0]  %s1, 18432, %s40, [#allocation7], 128, 128, 8
    $region9: #{tpu_custom_call.1} parent=1 // pred_fallthru
      _
    // Predicated region
    $region10: #{tpu_custom_call.1} parent=1 // pred_check
      _
    $region11: #{tpu_custom_call.1} parent=1 // pred_check_branch
      %47 = sbr.rel (0) target = $region13
    $region12: #{tpu_custom_call.1} parent=1 // pred_region
      _
    $region13: #{tpu_custom_call.1} parent=1 // pred_fallthru
      _
    // Predicated region
    $region14: #{tpu_custom_call.1} parent=1 // pred_check
      _
    $region15: #{tpu_custom_call.1} parent=1 // pred_check_branch
      %49 = sbr.rel (0) target = $region17
    $region16: #{tpu_custom_call.1} parent=1 // pred_region
      _
    $region17: #{tpu_custom_call.1} parent=1 // pred_fallthru
      _
    // Predicated region
    $region18: #{tpu_custom_call.1} parent=1 // pred_check
      _
    $region19: #{tpu_custom_call.1} parent=1 // pred_check_branch
      %51 = sbr.rel (0) target = $region21
    $region20: #{tpu_custom_call.1} parent=1 // pred_region
      _
    $region21: #{tpu_custom_call.1} parent=1 // pred_fallthru
      _
    // Predicated region
    $region22: #{tpu_custom_call.1} parent=1 // pred_check
      _
    $region23: #{tpu_custom_call.1} parent=1 // pred_check_branch
      %53 = sbr.rel (0) target = $region25
    $region24: #{tpu_custom_call.1} parent=1 // pred_region
      %s55 = ssub.s32 18432, 18432
      %56 = vsyncadd [#allocation7], %s55
      %s57 = sshll.u32 [#allocation8], 4
      %s58 = int_to_ptr.vmem [resolvable:$true] %s57
      %63 = dma.hbm_to_vmem [thread:$0]  %s5, 18432, %s58, [#allocation7], 128, 128, 8
    $region25: #{tpu_custom_call.1} parent=1 // pred_fallthru
      _
    // Predicated region
    $region26: #{tpu_custom_call.1} parent=1 // pred_check
      _
    $region27: #{tpu_custom_call.1} parent=1 // pred_check_branch
      %65 = sbr.rel (0) target = $region29
    $region28: #{tpu_custom_call.1} parent=1 // pred_region
      _
    $region29: #{tpu_custom_call.1} parent=1 // pred_fallthru
      _
    // Predicated region
    $region30: #{tpu_custom_call.1} parent=1 // pred_check
      _
    $region31: #{tpu_custom_call.1} parent=1 // pred_check_branch
      %67 = sbr.rel (0) target = $region33
    $region32: #{tpu_custom_call.1} parent=1 // pred_region
      _
    $region33: #{tpu_custom_call.1} parent=1 // pred_fallthru
      _
    // Predicated region
    $region34: #{tpu_custom_call.1} parent=1 // pred_check
      _
    $region35: #{tpu_custom_call.1} parent=1 // pred_check_branch
      %69 = sbr.rel (0) target = $region37
    $region36: #{tpu_custom_call.1} parent=1 // pred_region
      _
    $region37: #{tpu_custom_call.1} parent=1 // pred_fallthru
      _
    // Predicated region
    $region38: #{tpu_custom_call.1} parent=1 // pred_check
      _
    $region39: #{tpu_custom_call.1} parent=1 // pred_check_branch
      %71 = sbr.rel (0) target = $region41
    $region40: #{tpu_custom_call.1} parent=1 // pred_region
      %s73 = ssub.s32 2048, 2048
      %74 = vsyncadd [#allocation10], %s73
      %s75 = sshll.u32 [#allocation9], 4
      %s76 = int_to_ptr.vmem [resolvable:$true] %s75
      %81 = dma.hbm_to_vmem [thread:$0]  %s9, 2048, %s76, [#allocation10], 128, 128, 8
    $region41: #{tpu_custom_call.1} parent=1 // pred_fallthru
      _
    // Predicated region
    $region42: #{tpu_custom_call.1} parent=1 // pred_check
      _
    $region43: #{tpu_custom_call.1} parent=1 // pred_check_branch
      %83 = sbr.rel (0) target = $region45
    $region44: #{tpu_custom_call.1} parent=1 // pred_region
      _
    $region45: #{tpu_custom_call.1} parent=1 // pred_fallthru
      _
    // Predicated region
    $region46: #{tpu_custom_call.1} parent=1 // pred_check
      _
    $region47: #{tpu_custom_call.1} parent=1 // pred_check_branch
      %85 = sbr.rel (0) target = $region49
    $region48: #{tpu_custom_call.1} parent=1 // pred_region
      _
    $region49: #{tpu_custom_call.1} parent=1 // pred_fallthru
      _
    // Predicated region
    $region50: #{tpu_custom_call.1} parent=1 // pred_check
      _
    $region51: #{tpu_custom_call.1} parent=1 // pred_check_branch
      %87 = sbr.rel (0) target = $region53
    $region52: #{tpu_custom_call.1} parent=1 // pred_region
      _
    $region53: #{tpu_custom_call.1} parent=1 // pred_fallthru
      _
    // Predicated region
    $region54: #{tpu_custom_call.1} parent=1 // pred_check
      _
    $region55: #{tpu_custom_call.1} parent=1 // pred_check_branch
      %89 = sbr.rel (0) target = $region57
    $region56: #{tpu_custom_call.1} parent=1 // pred_region
      %90 = dma.done [#allocation4], 9216
    $region57: #{tpu_custom_call.1} parent=1 // pred_fallthru
      _
    // Predicated region
    $region58: #{tpu_custom_call.1} parent=1 // pred_check
      _
    $region59: #{tpu_custom_call.1} parent=1 // pred_check_branch
      %92 = sbr.rel (0) target = $region61
    $region60: #{tpu_custom_call.1} parent=1 // pred_region
      %93 = dma.done [#allocation7], 18432
    $region61: #{tpu_custom_call.1} parent=1 // pred_fallthru
      _
    // Predicated region
    $region62: #{tpu_custom_call.1} parent=1 // pred_check
      _
    $region63: #{tpu_custom_call.1} parent=1 // pred_check_branch
      %95 = sbr.rel (0) target = $region65
    $region64: #{tpu_custom_call.1} parent=1 // pred_region
      %96 = dma.done [#allocation7], 18432
    $region65: #{tpu_custom_call.1} parent=1 // pred_fallthru
      _
    // Predicated region
    $region66: #{tpu_custom_call.1} parent=1 // pred_check
      _
    $region67: #{tpu_custom_call.1} parent=1 // pred_check_branch
      %98 = sbr.rel (0) target = $region69
    $region68: #{tpu_custom_call.1} parent=1 // pred_region
      %99 = dma.done [#allocation10], 2048
    $region69: #{tpu_custom_call.1} parent=1 // pred_fallthru
      _
    %v100 = vlaneseq
    %v101 = vshrl.u32 %v100, 7
    %v102 = vadd.s32 %v101, 8
    %v103 = vadd.s32 %v101, 16
    %v104 = vadd.s32 %v101, 24
    %v105 = vadd.s32 %v101, 32
    %v106 = vadd.s32 %v101, 40
    %v107 = vadd.s32 %v101, 48
    %v108 = vadd.s32 %v101, 56
    %v109 = vadd.s32 %v101, 64
    %v110 = vadd.s32 %v101, 72
    %v111 = vadd.s32 %v101, 80
    %v112 = vadd.s32 %v101, 88
    %v113 = vadd.s32 %v101, 96
    %v114 = vadd.s32 %v101, 104
    %v115 = vadd.s32 %v101, 112
    %v116 = vadd.s32 %v101, 120
    %v117 = vadd.s32 %v101, 128
    %v118 = vadd.s32 %v101, 136
    %v119 = vadd.s32 %v101, 144
    %v120 = vadd.s32 %v101, 152
    %v121 = vadd.s32 %v101, 160
    %v122 = vadd.s32 %v101, 168
    %v123 = vadd.s32 %v101, 176
    %v124 = vadd.s32 %v101, 184
    %v125 = vadd.s32 %v101, 192
    %v126 = vadd.s32 %v101, 200
    %v127 = vadd.s32 %v101, 208
    %v128 = vadd.s32 %v101, 216
    %v129 = vadd.s32 %v101, 224
    %v130 = vadd.s32 %v101, 232
    %v131 = vadd.s32 %v101, 240
    %v132 = vadd.s32 %v101, 248
    %v133 = vadd.s32 %v101, 256
    %v134 = vadd.s32 %v101, 264
    %v135 = vadd.s32 %v101, 272
    %v136 = vadd.s32 %v101, 280
    %v137 = vadd.s32 %v101, 288
    %v138 = vadd.s32 %v101, 296
    %v139 = vadd.s32 %v101, 304
    %v140 = vadd.s32 %v101, 312
    %v141 = vadd.s32 %v101, 320
    %v142 = vadd.s32 %v101, 328
    %v143 = vadd.s32 %v101, 336
    %v144 = vadd.s32 %v101, 344
    %v145 = vadd.s32 %v101, 352
    %v146 = vadd.s32 %v101, 360
    %v147 = vadd.s32 %v101, 368
    %v148 = vadd.s32 %v101, 376
    %v149 = vadd.s32 %v101, 384
    %v150 = vadd.s32 %v101, 392
    %v151 = vadd.s32 %v101, 400
    %v152 = vadd.s32 %v101, 408
    %v153 = vadd.s32 %v101, 416
    %v154 = vadd.s32 %v101, 424
    %v155 = vadd.s32 %v101, 432
    %v156 = vadd.s32 %v101, 440
    %v157 = vadd.s32 %v101, 448
    %v158 = vadd.s32 %v101, 456
    %v159 = vadd.s32 %v101, 464
    %v160 = vadd.s32 %v101, 472
    %v161 = vadd.s32 %v101, 480
    %v162 = vadd.s32 %v101, 488
    %v163 = vadd.s32 %v101, 496
    %v164 = vadd.s32 %v101, 504
    %v165 = vadd.s32 %v101, 512
    %v166 = vadd.s32 %v101, 520
    %v167 = vadd.s32 %v101, 528
    %v168 = vadd.s32 %v101, 536
    %v169 = vadd.s32 %v101, 544
    %v170 = vadd.s32 %v101, 552
    %v171 = vadd.s32 %v101, 560
    %v172 = vadd.s32 %v101, 568
    %vm173 = vcmp.lt.s32.totalorder %v101, 0
    %v174 = vsub.s32 0, %v101
    %v175 = vsel %vm173, %v174, %v101
    %v176 = vshrl.u32 %v175, 4
    %v177 = vand.u32 %v175, 15
    %v178 = vsub.s32 0, %v177
    %v179 = vsel %vm173, %v178, %v177
    %vm180 = vcmp.lt.s32.totalorder %v102, 0
    %v181 = vsub.s32 0, %v102
    %v182 = vsel %vm180, %v181, %v102
    %v183 = vshrl.u32 %v182, 4
    %v184 = vand.u32 %v182, 15
    %v185 = vsub.s32 0, %v184
    %v186 = vsel %vm180, %v185, %v184
    %vm187 = vcmp.lt.s32.totalorder %v103, 0
    %v188 = vsub.s32 0, %v103
    %v189 = vsel %vm187, %v188, %v103
    %v190 = vshrl.u32 %v189, 4
    %v191 = vand.u32 %v189, 15
    %v192 = vsub.s32 0, %v191
    %v193 = vsel %vm187, %v192, %v191
    %vm194 = vcmp.lt.s32.totalorder %v104, 0
    %v195 = vsub.s32 0, %v104
    %v196 = vsel %vm194, %v195, %v104
    %v197 = vshrl.u32 %v196, 4
    %v198 = vand.u32 %v196, 15
    %v199 = vsub.s32 0, %v198
    %v200 = vsel %vm194, %v199, %v198
    %vm201 = vcmp.lt.s32.totalorder %v105, 0
    %v202 = vsub.s32 0, %v105
    %v203 = vsel %vm201, %v202, %v105
    %v204 = vshrl.u32 %v203, 4
    %v205 = vand.u32 %v203, 15
    %v206 = vsub.s32 0, %v205
    %v207 = vsel %vm201, %v206, %v205
    %vm208 = vcmp.lt.s32.totalorder %v106, 0
    %v209 = vsub.s32 0, %v106
    %v210 = vsel %vm208, %v209, %v106
    %v211 = vshrl.u32 %v210, 4
    %v212 = vand.u32 %v210, 15
    %v213 = vsub.s32 0, %v212
    %v214 = vsel %vm208, %v213, %v212
    %vm215 = vcmp.lt.s32.totalorder %v107, 0
    %v216 = vsub.s32 0, %v107
    %v217 = vsel %vm215, %v216, %v107
    %v218 = vshrl.u32 %v217, 4
    %v219 = vand.u32 %v217, 15
    %v220 = vsub.s32 0, %v219
    %v221 = vsel %vm215, %v220, %v219
    %vm222 = vcmp.lt.s32.totalorder %v108, 0
    %v223 = vsub.s32 0, %v108
    %v224 = vsel %vm222, %v223, %v108
    %v225 = vshrl.u32 %v224, 4
    %v226 = vand.u32 %v224, 15
    %v227 = vsub.s32 0, %v226
    %v228 = vsel %vm222, %v227, %v226
    %vm229 = vcmp.lt.s32.totalorder %v109, 0
    %v230 = vsub.s32 0, %v109
    %v231 = vsel %vm229, %v230, %v109
    %v232 = vshrl.u32 %v231, 4
    %v233 = vand.u32 %v231, 15
    %v234 = vsub.s32 0, %v233
    %v235 = vsel %vm229, %v234, %v233
    %vm236 = vcmp.lt.s32.totalorder %v110, 0
    %v237 = vsub.s32 0, %v110
    %v238 = vsel %vm236, %v237, %v110
    %v239 = vshrl.u32 %v238, 4
    %v240 = vand.u32 %v238, 15
    %v241 = vsub.s32 0, %v240
    %v242 = vsel %vm236, %v241, %v240
    %vm243 = vcmp.lt.s32.totalorder %v111, 0
    %v244 = vsub.s32 0, %v111
    %v245 = vsel %vm243, %v244, %v111
    %v246 = vshrl.u32 %v245, 4
    %v247 = vand.u32 %v245, 15
    %v248 = vsub.s32 0, %v247
    %v249 = vsel %vm243, %v248, %v247
    %vm250 = vcmp.lt.s32.totalorder %v112, 0
    %v251 = vsub.s32 0, %v112
    %v252 = vsel %vm250, %v251, %v112
    %v253 = vshrl.u32 %v252, 4
    %v254 = vand.u32 %v252, 15
    %v255 = vsub.s32 0, %v254
    %v256 = vsel %vm250, %v255, %v254
    %vm257 = vcmp.lt.s32.totalorder %v113, 0
    %v258 = vsub.s32 0, %v113
    %v259 = vsel %vm257, %v258, %v113
    %v260 = vshrl.u32 %v259, 4
    %v261 = vand.u32 %v259, 15
    %v262 = vsub.s32 0, %v261
    %v263 = vsel %vm257, %v262, %v261
    %vm264 = vcmp.lt.s32.totalorder %v114, 0
    %v265 = vsub.s32 0, %v114
    %v266 = vsel %vm264, %v265, %v114
    %v267 = vshrl.u32 %v266, 4
    %v268 = vand.u32 %v266, 15
    %v269 = vsub.s32 0, %v268
    %v270 = vsel %vm264, %v269, %v268
    %vm271 = vcmp.lt.s32.totalorder %v115, 0
    %v272 = vsub.s32 0, %v115
    %v273 = vsel %vm271, %v272, %v115
    %v274 = vshrl.u32 %v273, 4
    %v275 = vand.u32 %v273, 15
    %v276 = vsub.s32 0, %v275
    %v277 = vsel %vm271, %v276, %v275
    %vm278 = vcmp.lt.s32.totalorder %v116, 0
    %v279 = vsub.s32 0, %v116
    %v280 = vsel %vm278, %v279, %v116
    %v281 = vshrl.u32 %v280, 4
    %v282 = vand.u32 %v280, 15
    %v283 = vsub.s32 0, %v282
    %v284 = vsel %vm278, %v283, %v282
    %vm285 = vcmp.lt.s32.totalorder %v117, 0
    %v286 = vsub.s32 0, %v117
    %v287 = vsel %vm285, %v286, %v117
    %v288 = vshrl.u32 %v287, 4
    %v289 = vand.u32 %v287, 15
    %v290 = vsub.s32 0, %v289
    %v291 = vsel %vm285, %v290, %v289
    %vm292 = vcmp.lt.s32.totalorder %v118, 0
    %v293 = vsub.s32 0, %v118
    %v294 = vsel %vm292, %v293, %v118
    %v295 = vshrl.u32 %v294, 4
    %v296 = vand.u32 %v294, 15
    %v297 = vsub.s32 0, %v296
    %v298 = vsel %vm292, %v297, %v296
    %vm299 = vcmp.lt.s32.totalorder %v119, 0
    %v300 = vsub.s32 0, %v119
    %v301 = vsel %vm299, %v300, %v119
    %v302 = vshrl.u32 %v301, 4
    %v303 = vand.u32 %v301, 15
    %v304 = vsub.s32 0, %v303
    %v305 = vsel %vm299, %v304, %v303
    %vm306 = vcmp.lt.s32.totalorder %v120, 0
    %v307 = vsub.s32 0, %v120
    %v308 = vsel %vm306, %v307, %v120
    %v309 = vshrl.u32 %v308, 4
    %v310 = vand.u32 %v308, 15
    %v311 = vsub.s32 0, %v310
    %v312 = vsel %vm306, %v311, %v310
    %vm313 = vcmp.lt.s32.totalorder %v121, 0
    %v314 = vsub.s32 0, %v121
    %v315 = vsel %vm313, %v314, %v121
    %v316 = vshrl.u32 %v315, 4
    %v317 = vand.u32 %v315, 15
    %v318 = vsub.s32 0, %v317
    %v319 = vsel %vm313, %v318, %v317
    %vm320 = vcmp.lt.s32.totalorder %v122, 0
    %v321 = vsub.s32 0, %v122
    %v322 = vsel %vm320, %v321, %v122
    %v323 = vshrl.u32 %v322, 4
    %v324 = vand.u32 %v322, 15
    %v325 = vsub.s32 0, %v324
    %v326 = vsel %vm320, %v325, %v324
    %vm327 = vcmp.lt.s32.totalorder %v123, 0
    %v328 = vsub.s32 0, %v123
    %v329 = vsel %vm327, %v328, %v123
    %v330 = vshrl.u32 %v329, 4
    %v331 = vand.u32 %v329, 15
    %v332 = vsub.s32 0, %v331
    %v333 = vsel %vm327, %v332, %v331
    %vm334 = vcmp.lt.s32.totalorder %v124, 0
    %v335 = vsub.s32 0, %v124
    %v336 = vsel %vm334, %v335, %v124
    %v337 = vshrl.u32 %v336, 4
    %v338 = vand.u32 %v336, 15
    %v339 = vsub.s32 0, %v338
    %v340 = vsel %vm334, %v339, %v338
    %vm341 = vcmp.lt.s32.totalorder %v125, 0
    %v342 = vsub.s32 0, %v125
    %v343 = vsel %vm341, %v342, %v125
    %v344 = vshrl.u32 %v343, 4
    %v345 = vand.u32 %v343, 15
    %v346 = vsub.s32 0, %v345
    %v347 = vsel %vm341, %v346, %v345
    %vm348 = vcmp.lt.s32.totalorder %v126, 0
    %v349 = vsub.s32 0, %v126
    %v350 = vsel %vm348, %v349, %v126
    %v351 = vshrl.u32 %v350, 4
    %v352 = vand.u32 %v350, 15
    %v353 = vsub.s32 0, %v352
    %v354 = vsel %vm348, %v353, %v352
    %vm355 = vcmp.lt.s32.totalorder %v127, 0
    %v356 = vsub.s32 0, %v127
    %v357 = vsel %vm355, %v356, %v127
    %v358 = vshrl.u32 %v357, 4
    %v359 = vand.u32 %v357, 15
    %v360 = vsub.s32 0, %v359
    %v361 = vsel %vm355, %v360, %v359
    %vm362 = vcmp.lt.s32.totalorder %v128, 0
    %v363 = vsub.s32 0, %v128
    %v364 = vsel %vm362, %v363, %v128
    %v365 = vshrl.u32 %v364, 4
    %v366 = vand.u32 %v364, 15
    %v367 = vsub.s32 0, %v366
    %v368 = vsel %vm362, %v367, %v366
    %vm369 = vcmp.lt.s32.totalorder %v129, 0
    %v370 = vsub.s32 0, %v129
    %v371 = vsel %vm369, %v370, %v129
    %v372 = vshrl.u32 %v371, 4
    %v373 = vand.u32 %v371, 15
    %v374 = vsub.s32 0, %v373
    %v375 = vsel %vm369, %v374, %v373
    %vm376 = vcmp.lt.s32.totalorder %v130, 0
    %v377 = vsub.s32 0, %v130
    %v378 = vsel %vm376, %v377, %v130
    %v379 = vshrl.u32 %v378, 4
    %v380 = vand.u32 %v378, 15
    %v381 = vsub.s32 0, %v380
    %v382 = vsel %vm376, %v381, %v380
    %vm383 = vcmp.lt.s32.totalorder %v131, 0
    %v384 = vsub.s32 0, %v131
    %v385 = vsel %vm383, %v384, %v131
    %v386 = vshrl.u32 %v385, 4
    %v387 = vand.u32 %v385, 15
    %v388 = vsub.s32 0, %v387
    %v389 = vsel %vm383, %v388, %v387
    %vm390 = vcmp.lt.s32.totalorder %v132, 0
    %v391 = vsub.s32 0, %v132
    %v392 = vsel %vm390, %v391, %v132
    %v393 = vshrl.u32 %v392, 4
    %v394 = vand.u32 %v392, 15
    %v395 = vsub.s32 0, %v394
    %v396 = vsel %vm390, %v395, %v394
    %vm397 = vcmp.lt.s32.totalorder %v133, 0
    %v398 = vsub.s32 0, %v133
    %v399 = vsel %vm397, %v398, %v133
    %v400 = vshrl.u32 %v399, 4
    %v401 = vand.u32 %v399, 15
    %v402 = vsub.s32 0, %v401
    %v403 = vsel %vm397, %v402, %v401
    %vm404 = vcmp.lt.s32.totalorder %v134, 0
    %v405 = vsub.s32 0, %v134
    %v406 = vsel %vm404, %v405, %v134
    %v407 = vshrl.u32 %v406, 4
    %v408 = vand.u32 %v406, 15
    %v409 = vsub.s32 0, %v408
    %v410 = vsel %vm404, %v409, %v408
    %vm411 = vcmp.lt.s32.totalorder %v135, 0
    %v412 = vsub.s32 0, %v135
    %v413 = vsel %vm411, %v412, %v135
    %v414 = vshrl.u32 %v413, 4
    %v415 = vand.u32 %v413, 15
    %v416 = vsub.s32 0, %v415
    %v417 = vsel %vm411, %v416, %v415
    %vm418 = vcmp.lt.s32.totalorder %v136, 0
    %v419 = vsub.s32 0, %v136
    %v420 = vsel %vm418, %v419, %v136
    %v421 = vshrl.u32 %v420, 4
    %v422 = vand.u32 %v420, 15
    %v423 = vsub.s32 0, %v422
    %v424 = vsel %vm418, %v423, %v422
    %vm425 = vcmp.lt.s32.totalorder %v137, 0
    %v426 = vsub.s32 0, %v137
    %v427 = vsel %vm425, %v426, %v137
    %v428 = vshrl.u32 %v427, 4
    %v429 = vand.u32 %v427, 15
    %v430 = vsub.s32 0, %v429
    %v431 = vsel %vm425, %v430, %v429
    %vm432 = vcmp.lt.s32.totalorder %v138, 0
    %v433 = vsub.s32 0, %v138
    %v434 = vsel %vm432, %v433, %v138
    %v435 = vshrl.u32 %v434, 4
    %v436 = vand.u32 %v434, 15
    %v437 = vsub.s32 0, %v436
    %v438 = vsel %vm432, %v437, %v436
    %vm439 = vcmp.lt.s32.totalorder %v139, 0
    %v440 = vsub.s32 0, %v139
    %v441 = vsel %vm439, %v440, %v139
    %v442 = vshrl.u32 %v441, 4
    %v443 = vand.u32 %v441, 15
    %v444 = vsub.s32 0, %v443
    %v445 = vsel %vm439, %v444, %v443
    %vm446 = vcmp.lt.s32.totalorder %v140, 0
    %v447 = vsub.s32 0, %v140
    %v448 = vsel %vm446, %v447, %v140
    %v449 = vshrl.u32 %v448, 4
    %v450 = vand.u32 %v448, 15
    %v451 = vsub.s32 0, %v450
    %v452 = vsel %vm446, %v451, %v450
    %vm453 = vcmp.lt.s32.totalorder %v141, 0
    %v454 = vsub.s32 0, %v141
    %v455 = vsel %vm453, %v454, %v141
    %v456 = vshrl.u32 %v455, 4
    %v457 = vand.u32 %v455, 15
    %v458 = vsub.s32 0, %v457
    %v459 = vsel %vm453, %v458, %v457
    %vm460 = vcmp.lt.s32.totalorder %v142, 0
    %v461 = vsub.s32 0, %v142
    %v462 = vsel %vm460, %v461, %v142
    %v463 = vshrl.u32 %v462, 4
    %v464 = vand.u32 %v462, 15
    %v465 = vsub.s32 0, %v464
    %v466 = vsel %vm460, %v465, %v464
    %vm467 = vcmp.lt.s32.totalorder %v143, 0
    %v468 = vsub.s32 0, %v143
    %v469 = vsel %vm467, %v468, %v143
    %v470 = vshrl.u32 %v469, 4
    %v471 = vand.u32 %v469, 15
    %v472 = vsub.s32 0, %v471
    %v473 = vsel %vm467, %v472, %v471
    %vm474 = vcmp.lt.s32.totalorder %v144, 0
    %v475 = vsub.s32 0, %v144
    %v476 = vsel %vm474, %v475, %v144
    %v477 = vshrl.u32 %v476, 4
    %v478 = vand.u32 %v476, 15
    %v479 = vsub.s32 0, %v478
    %v480 = vsel %vm474, %v479, %v478
    %vm481 = vcmp.lt.s32.totalorder %v145, 0
    %v482 = vsub.s32 0, %v145
    %v483 = vsel %vm481, %v482, %v145
    %v484 = vshrl.u32 %v483, 4
    %v485 = vand.u32 %v483, 15
    %v486 = vsub.s32 0, %v485
    %v487 = vsel %vm481, %v486, %v485
    %vm488 = vcmp.lt.s32.totalorder %v146, 0
    %v489 = vsub.s32 0, %v146
    %v490 = vsel %vm488, %v489, %v146
    %v491 = vshrl.u32 %v490, 4
    %v492 = vand.u32 %v490, 15
    %v493 = vsub.s32 0, %v492
    %v494 = vsel %vm488, %v493, %v492
    %vm495 = vcmp.lt.s32.totalorder %v147, 0
    %v496 = vsub.s32 0, %v147
    %v497 = vsel %vm495, %v496, %v147
    %v498 = vshrl.u32 %v497, 4
    %v499 = vand.u32 %v497, 15
    %v500 = vsub.s32 0, %v499
    %v501 = vsel %vm495, %v500, %v499
    %vm502 = vcmp.lt.s32.totalorder %v148, 0
    %v503 = vsub.s32 0, %v148
    %v504 = vsel %vm502, %v503, %v148
    %v505 = vshrl.u32 %v504, 4
    %v506 = vand.u32 %v504, 15
    %v507 = vsub.s32 0, %v506
    %v508 = vsel %vm502, %v507, %v506
    %vm509 = vcmp.lt.s32.totalorder %v149, 0
    %v510 = vsub.s32 0, %v149
    %v511 = vsel %vm509, %v510, %v149
    %v512 = vshrl.u32 %v511, 4
    %v513 = vand.u32 %v511, 15
    %v514 = vsub.s32 0, %v513
    %v515 = vsel %vm509, %v514, %v513
    %vm516 = vcmp.lt.s32.totalorder %v150, 0
    %v517 = vsub.s32 0, %v150
    %v518 = vsel %vm516, %v517, %v150
    %v519 = vshrl.u32 %v518, 4
    %v520 = vand.u32 %v518, 15
    %v521 = vsub.s32 0, %v520
    %v522 = vsel %vm516, %v521, %v520
    %vm523 = vcmp.lt.s32.totalorder %v151, 0
    %v524 = vsub.s32 0, %v151
    %v525 = vsel %vm523, %v524, %v151
    %v526 = vshrl.u32 %v525, 4
    %v527 = vand.u32 %v525, 15
    %v528 = vsub.s32 0, %v527
    %v529 = vsel %vm523, %v528, %v527
    %vm530 = vcmp.lt.s32.totalorder %v152, 0
    %v531 = vsub.s32 0, %v152
    %v532 = vsel %vm530, %v531, %v152
    %v533 = vshrl.u32 %v532, 4
    %v534 = vand.u32 %v532, 15
    %v535 = vsub.s32 0, %v534
    %v536 = vsel %vm530, %v535, %v534
    %vm537 = vcmp.lt.s32.totalorder %v153, 0
    %v538 = vsub.s32 0, %v153
    %v539 = vsel %vm537, %v538, %v153
    %v540 = vshrl.u32 %v539, 4
    %v541 = vand.u32 %v539, 15
    %v542 = vsub.s32 0, %v541
    %v543 = vsel %vm537, %v542, %v541
    %vm544 = vcmp.lt.s32.totalorder %v154, 0
    %v545 = vsub.s32 0, %v154
    %v546 = vsel %vm544, %v545, %v154
    %v547 = vshrl.u32 %v546, 4
    %v548 = vand.u32 %v546, 15
    %v549 = vsub.s32 0, %v548
    %v550 = vsel %vm544, %v549, %v548
    %vm551 = vcmp.lt.s32.totalorder %v155, 0
    %v552 = vsub.s32 0, %v155
    %v553 = vsel %vm551, %v552, %v155
    %v554 = vshrl.u32 %v553, 4
    %v555 = vand.u32 %v553, 15
    %v556 = vsub.s32 0, %v555
    %v557 = vsel %vm551, %v556, %v555
    %vm558 = vcmp.lt.s32.totalorder %v156, 0
    %v559 = vsub.s32 0, %v156
    %v560 = vsel %vm558, %v559, %v156
    %v561 = vshrl.u32 %v560, 4
    %v562 = vand.u32 %v560, 15
    %v563 = vsub.s32 0, %v562
    %v564 = vsel %vm558, %v563, %v562
    %vm565 = vcmp.lt.s32.totalorder %v157, 0
    %v566 = vsub.s32 0, %v157
    %v567 = vsel %vm565, %v566, %v157
    %v568 = vshrl.u32 %v567, 4
    %v569 = vand.u32 %v567, 15
    %v570 = vsub.s32 0, %v569
    %v571 = vsel %vm565, %v570, %v569
    %vm572 = vcmp.lt.s32.totalorder %v158, 0
    %v573 = vsub.s32 0, %v158
    %v574 = vsel %vm572, %v573, %v158
    %v575 = vshrl.u32 %v574, 4
    %v576 = vand.u32 %v574, 15
    %v577 = vsub.s32 0, %v576
    %v578 = vsel %vm572, %v577, %v576
    %vm579 = vcmp.lt.s32.totalorder %v159, 0
    %v580 = vsub.s32 0, %v159
    %v581 = vsel %vm579, %v580, %v159
    %v582 = vshrl.u32 %v581, 4
    %v583 = vand.u32 %v581, 15
    %v584 = vsub.s32 0, %v583
    %v585 = vsel %vm579, %v584, %v583
    %vm586 = vcmp.lt.s32.totalorder %v160, 0
    %v587 = vsub.s32 0, %v160
    %v588 = vsel %vm586, %v587, %v160
    %v589 = vshrl.u32 %v588, 4
    %v590 = vand.u32 %v588, 15
    %v591 = vsub.s32 0, %v590
    %v592 = vsel %vm586, %v591, %v590
    %vm593 = vcmp.lt.s32.totalorder %v161, 0
    %v594 = vsub.s32 0, %v161
    %v595 = vsel %vm593, %v594, %v161
    %v596 = vshrl.u32 %v595, 4
    %v597 = vand.u32 %v595, 15
    %v598 = vsub.s32 0, %v597
    %v599 = vsel %vm593, %v598, %v597
    %vm600 = vcmp.lt.s32.totalorder %v162, 0
    %v601 = vsub.s32 0, %v162
    %v602 = vsel %vm600, %v601, %v162
    %v603 = vshrl.u32 %v602, 4
    %v604 = vand.u32 %v602, 15
    %v605 = vsub.s32 0, %v604
    %v606 = vsel %vm600, %v605, %v604
    %vm607 = vcmp.lt.s32.totalorder %v163, 0
    %v608 = vsub.s32 0, %v163
    %v609 = vsel %vm607, %v608, %v163
    %v610 = vshrl.u32 %v609, 4
    %v611 = vand.u32 %v609, 15
    %v612 = vsub.s32 0, %v611
    %v613 = vsel %vm607, %v612, %v611
    %vm614 = vcmp.lt.s32.totalorder %v164, 0
    %v615 = vsub.s32 0, %v164
    %v616 = vsel %vm614, %v615, %v164
    %v617 = vshrl.u32 %v616, 4
    %v618 = vand.u32 %v616, 15
    %v619 = vsub.s32 0, %v618
    %v620 = vsel %vm614, %v619, %v618
    %vm621 = vcmp.lt.s32.totalorder %v165, 0
    %v622 = vsub.s32 0, %v165
    %v623 = vsel %vm621, %v622, %v165
    %v624 = vshrl.u32 %v623, 4
    %v625 = vand.u32 %v623, 15
    %v626 = vsub.s32 0, %v625
    %v627 = vsel %vm621, %v626, %v625
    %vm628 = vcmp.lt.s32.totalorder %v166, 0
    %v629 = vsub.s32 0, %v166
    %v630 = vsel %vm628, %v629, %v166
    %v631 = vshrl.u32 %v630, 4
    %v632 = vand.u32 %v630, 15
    %v633 = vsub.s32 0, %v632
    %v634 = vsel %vm628, %v633, %v632
    %vm635 = vcmp.lt.s32.totalorder %v167, 0
    %v636 = vsub.s32 0, %v167
    %v637 = vsel %vm635, %v636, %v167
    %v638 = vshrl.u32 %v637, 4
    %v639 = vand.u32 %v637, 15
    %v640 = vsub.s32 0, %v639
    %v641 = vsel %vm635, %v640, %v639
    %vm642 = vcmp.lt.s32.totalorder %v168, 0
    %v643 = vsub.s32 0, %v168
    %v644 = vsel %vm642, %v643, %v168
    %v645 = vshrl.u32 %v644, 4
    %v646 = vand.u32 %v644, 15
    %v647 = vsub.s32 0, %v646
    %v648 = vsel %vm642, %v647, %v646
    %vm649 = vcmp.lt.s32.totalorder %v169, 0
    %v650 = vsub.s32 0, %v169
    %v651 = vsel %vm649, %v650, %v169
    %v652 = vshrl.u32 %v651, 4
    %v653 = vand.u32 %v651, 15
    %v654 = vsub.s32 0, %v653
    %v655 = vsel %vm649, %v654, %v653
    %vm656 = vcmp.lt.s32.totalorder %v170, 0
    %v657 = vsub.s32 0, %v170
    %v658 = vsel %vm656, %v657, %v170
    %v659 = vshrl.u32 %v658, 4
    %v660 = vand.u32 %v658, 15
    %v661 = vsub.s32 0, %v660
    %v662 = vsel %vm656, %v661, %v660
    %vm663 = vcmp.lt.s32.totalorder %v171, 0
    %v664 = vsub.s32 0, %v171
    %v665 = vsel %vm663, %v664, %v171
    %v666 = vshrl.u32 %v665, 4
    %v667 = vand.u32 %v665, 15
    %v668 = vsub.s32 0, %v667
    %v669 = vsel %vm663, %v668, %v667
    %vm670 = vcmp.lt.s32.totalorder %v172, 0
    %v671 = vsub.s32 0, %v172
    %v672 = vsel %vm670, %v671, %v172
    %v673 = vshrl.u32 %v672, 4
    %v674 = vand.u32 %v672, 15
    %v675 = vsub.s32 0, %v674
    %v676 = vsel %vm670, %v675, %v674
    %vm677 = vcmp.ne.s32.totalorder %v179, 0
    %vm678 = vcmp.ne.s32.totalorder %v186, 0
    %vm679 = vcmp.ne.s32.totalorder %v193, 0
    %vm680 = vcmp.ne.s32.totalorder %v200, 0
    %vm681 = vcmp.ne.s32.totalorder %v207, 0
    %vm682 = vcmp.ne.s32.totalorder %v214, 0
    %vm683 = vcmp.ne.s32.totalorder %v221, 0
    %vm684 = vcmp.ne.s32.totalorder %v228, 0
    %vm685 = vcmp.ne.s32.totalorder %v235, 0
    %vm686 = vcmp.ne.s32.totalorder %v242, 0
    %vm687 = vcmp.ne.s32.totalorder %v249, 0
    %vm688 = vcmp.ne.s32.totalorder %v256, 0
    %vm689 = vcmp.ne.s32.totalorder %v263, 0
    %vm690 = vcmp.ne.s32.totalorder %v270, 0
    %vm691 = vcmp.ne.s32.totalorder %v277, 0
    %vm692 = vcmp.ne.s32.totalorder %v284, 0
    %vm693 = vcmp.ne.s32.totalorder %v291, 0
    %vm694 = vcmp.ne.s32.totalorder %v298, 0
    %vm695 = vcmp.ne.s32.totalorder %v305, 0
    %vm696 = vcmp.ne.s32.totalorder %v312, 0
    %vm697 = vcmp.ne.s32.totalorder %v319, 0
    %vm698 = vcmp.ne.s32.totalorder %v326, 0
    %vm699 = vcmp.ne.s32.totalorder %v333, 0
    %vm700 = vcmp.ne.s32.totalorder %v340, 0
    %vm701 = vcmp.ne.s32.totalorder %v347, 0
    %vm702 = vcmp.ne.s32.totalorder %v354, 0
    %vm703 = vcmp.ne.s32.totalorder %v361, 0
    %vm704 = vcmp.ne.s32.totalorder %v368, 0
    %vm705 = vcmp.ne.s32.totalorder %v375, 0
    %vm706 = vcmp.ne.s32.totalorder %v382, 0
    %vm707 = vcmp.ne.s32.totalorder %v389, 0
    %vm708 = vcmp.ne.s32.totalorder %v396, 0
    %vm709 = vcmp.ne.s32.totalorder %v403, 0
    %vm710 = vcmp.ne.s32.totalorder %v410, 0
    %vm711 = vcmp.ne.s32.totalorder %v417, 0
    %vm712 = vcmp.ne.s32.totalorder %v424, 0
    %vm713 = vcmp.ne.s32.totalorder %v431, 0
    %vm714 = vcmp.ne.s32.totalorder %v438, 0
    %vm715 = vcmp.ne.s32.totalorder %v445, 0
    %vm716 = vcmp.ne.s32.totalorder %v452, 0
    %vm717 = vcmp.ne.s32.totalorder %v459, 0
    %vm718 = vcmp.ne.s32.totalorder %v466, 0
    %vm719 = vcmp.ne.s32.totalorder %v473, 0
    %vm720 = vcmp.ne.s32.totalorder %v480, 0
    %vm721 = vcmp.ne.s32.totalorder %v487, 0
    %vm722 = vcmp.ne.s32.totalorder %v494, 0
    %vm723 = vcmp.ne.s32.totalorder %v501, 0
    %vm724 = vcmp.ne.s32.totalorder %v508, 0
    %vm725 = vcmp.ne.s32.totalorder %v515, 0
    %vm726 = vcmp.ne.s32.totalorder %v522, 0
    %vm727 = vcmp.ne.s32.totalorder %v529, 0
    %vm728 = vcmp.ne.s32.totalorder %v536, 0
    %vm729 = vcmp.ne.s32.totalorder %v543, 0
    %vm730 = vcmp.ne.s32.totalorder %v550, 0
    %vm731 = vcmp.ne.s32.totalorder %v557, 0
    %vm732 = vcmp.ne.s32.totalorder %v564, 0
    %vm733 = vcmp.ne.s32.totalorder %v571, 0
    %vm734 = vcmp.ne.s32.totalorder %v578, 0
    %vm735 = vcmp.ne.s32.totalorder %v585, 0
    %vm736 = vcmp.ne.s32.totalorder %v592, 0
    %vm737 = vcmp.ne.s32.totalorder %v599, 0
    %vm738 = vcmp.ne.s32.totalorder %v606, 0
    %vm739 = vcmp.ne.s32.totalorder %v613, 0
    %vm740 = vcmp.ne.s32.totalorder %v620, 0
    %vm741 = vcmp.ne.s32.totalorder %v627, 0
    %vm742 = vcmp.ne.s32.totalorder %v634, 0
    %vm743 = vcmp.ne.s32.totalorder %v641, 0
    %vm744 = vcmp.ne.s32.totalorder %v648, 0
    %vm745 = vcmp.ne.s32.totalorder %v655, 0
    %vm746 = vcmp.ne.s32.totalorder %v662, 0
    %vm747 = vcmp.ne.s32.totalorder %v669, 0
    %vm748 = vcmp.ne.s32.totalorder %v676, 0
    %vm749 = vcmp.lt.s32.totalorder %v179, 0
    %vm750 = vcmp.lt.s32.totalorder %v186, 0
    %vm751 = vcmp.lt.s32.totalorder %v193, 0
    %vm752 = vcmp.lt.s32.totalorder %v200, 0
    %vm753 = vcmp.lt.s32.totalorder %v207, 0
    %vm754 = vcmp.lt.s32.totalorder %v214, 0
    %vm755 = vcmp.lt.s32.totalorder %v221, 0
    %vm756 = vcmp.lt.s32.totalorder %v228, 0
    %vm757 = vcmp.lt.s32.totalorder %v235, 0
    %vm758 = vcmp.lt.s32.totalorder %v242, 0
    %vm759 = vcmp.lt.s32.totalorder %v249, 0
    %vm760 = vcmp.lt.s32.totalorder %v256, 0
    %vm761 = vcmp.lt.s32.totalorder %v263, 0
    %vm762 = vcmp.lt.s32.totalorder %v270, 0
    %vm763 = vcmp.lt.s32.totalorder %v277, 0
    %vm764 = vcmp.lt.s32.totalorder %v284, 0
    %vm765 = vcmp.lt.s32.totalorder %v291, 0
    %vm766 = vcmp.lt.s32.totalorder %v298, 0
    %vm767 = vcmp.lt.s32.totalorder %v305, 0
    %vm768 = vcmp.lt.s32.totalorder %v312, 0
    %vm769 = vcmp.lt.s32.totalorder %v319, 0
    %vm770 = vcmp.lt.s32.totalorder %v326, 0
    %vm771 = vcmp.lt.s32.totalorder %v333, 0
    %vm772 = vcmp.lt.s32.totalorder %v340, 0
    %vm773 = vcmp.lt.s32.totalorder %v347, 0
    %vm774 = vcmp.lt.s32.totalorder %v354, 0
    %vm775 = vcmp.lt.s32.totalorder %v361, 0
    %vm776 = vcmp.lt.s32.totalorder %v368, 0
    %vm777 = vcmp.lt.s32.totalorder %v375, 0
    %vm778 = vcmp.lt.s32.totalorder %v382, 0
    %vm779 = vcmp.lt.s32.totalorder %v389, 0
    %vm780 = vcmp.lt.s32.totalorder %v396, 0
    %vm781 = vcmp.lt.s32.totalorder %v403, 0
    %vm782 = vcmp.lt.s32.totalorder %v410, 0
    %vm783 = vcmp.lt.s32.totalorder %v417, 0
    %vm784 = vcmp.lt.s32.totalorder %v424, 0
    %vm785 = vcmp.lt.s32.totalorder %v431, 0
    %vm786 = vcmp.lt.s32.totalorder %v438, 0
    %vm787 = vcmp.lt.s32.totalorder %v445, 0
    %vm788 = vcmp.lt.s32.totalorder %v452, 0
    %vm789 = vcmp.lt.s32.totalorder %v459, 0
    %vm790 = vcmp.lt.s32.totalorder %v466, 0
    %vm791 = vcmp.lt.s32.totalorder %v473, 0
    %vm792 = vcmp.lt.s32.totalorder %v480, 0
    %vm793 = vcmp.lt.s32.totalorder %v487, 0
    %vm794 = vcmp.lt.s32.totalorder %v494, 0
    %vm795 = vcmp.lt.s32.totalorder %v501, 0
    %vm796 = vcmp.lt.s32.totalorder %v508, 0
    %vm797 = vcmp.lt.s32.totalorder %v515, 0
    %vm798 = vcmp.lt.s32.totalorder %v522, 0
    %vm799 = vcmp.lt.s32.totalorder %v529, 0
    %vm800 = vcmp.lt.s32.totalorder %v536, 0
    %vm801 = vcmp.lt.s32.totalorder %v543, 0
    %vm802 = vcmp.lt.s32.totalorder %v550, 0
    %vm803 = vcmp.lt.s32.totalorder %v557, 0
    %vm804 = vcmp.lt.s32.totalorder %v564, 0
    %vm805 = vcmp.lt.s32.totalorder %v571, 0
    %vm806 = vcmp.lt.s32.totalorder %v578, 0
    %vm807 = vcmp.lt.s32.totalorder %v585, 0
    %vm808 = vcmp.lt.s32.totalorder %v592, 0
    %vm809 = vcmp.lt.s32.totalorder %v599, 0
    %vm810 = vcmp.lt.s32.totalorder %v606, 0
    %vm811 = vcmp.lt.s32.totalorder %v613, 0
    %vm812 = vcmp.lt.s32.totalorder %v620, 0
    %vm813 = vcmp.lt.s32.totalorder %v627, 0
    %vm814 = vcmp.lt.s32.totalorder %v634, 0
    %vm815 = vcmp.lt.s32.totalorder %v641, 0
    %vm816 = vcmp.lt.s32.totalorder %v648, 0
    %vm817 = vcmp.lt.s32.totalorder %v655, 0
    %vm818 = vcmp.lt.s32.totalorder %v662, 0
    %vm819 = vcmp.lt.s32.totalorder %v669, 0
    %vm820 = vcmp.lt.s32.totalorder %v676, 0
    %vm821 = vmand %vm749, %vm677
    %vm822 = vmand %vm750, %vm678
    %vm823 = vmand %vm751, %vm679
    %vm824 = vmand %vm752, %vm680
    %vm825 = vmand %vm753, %vm681
    %vm826 = vmand %vm754, %vm682
    %vm827 = vmand %vm755, %vm683
    %vm828 = vmand %vm756, %vm684
    %vm829 = vmand %vm757, %vm685
    %vm830 = vmand %vm758, %vm686
    %vm831 = vmand %vm759, %vm687
    %vm832 = vmand %vm760, %vm688
    %vm833 = vmand %vm761, %vm689
    %vm834 = vmand %vm762, %vm690
    %vm835 = vmand %vm763, %vm691
    %vm836 = vmand %vm764, %vm692
    %vm837 = vmand %vm765, %vm693
    %vm838 = vmand %vm766, %vm694
    %vm839 = vmand %vm767, %vm695
    %vm840 = vmand %vm768, %vm696
    %vm841 = vmand %vm769, %vm697
    %vm842 = vmand %vm770, %vm698
    %vm843 = vmand %vm771, %vm699
    %vm844 = vmand %vm772, %vm700
    %vm845 = vmand %vm773, %vm701
    %vm846 = vmand %vm774, %vm702
    %vm847 = vmand %vm775, %vm703
    %vm848 = vmand %vm776, %vm704
    %vm849 = vmand %vm777, %vm705
    %vm850 = vmand %vm778, %vm706
    %vm851 = vmand %vm779, %vm707
    %vm852 = vmand %vm780, %vm708
    %vm853 = vmand %vm781, %vm709
    %vm854 = vmand %vm782, %vm710
    %vm855 = vmand %vm783, %vm711
    %vm856 = vmand %vm784, %vm712
    %vm857 = vmand %vm785, %vm713
    %vm858 = vmand %vm786, %vm714
    %vm859 = vmand %vm787, %vm715
    %vm860 = vmand %vm788, %vm716
    %vm861 = vmand %vm789, %vm717
    %vm862 = vmand %vm790, %vm718
    %vm863 = vmand %vm791, %vm719
    %vm864 = vmand %vm792, %vm720
    %vm865 = vmand %vm793, %vm721
    %vm866 = vmand %vm794, %vm722
    %vm867 = vmand %vm795, %vm723
    %vm868 = vmand %vm796, %vm724
    %vm869 = vmand %vm797, %vm725
    %vm870 = vmand %vm798, %vm726
    %vm871 = vmand %vm799, %vm727
    %vm872 = vmand %vm800, %vm728
    %vm873 = vmand %vm801, %vm729
    %vm874 = vmand %vm802, %vm730
    %vm875 = vmand %vm803, %vm731
    %vm876 = vmand %vm804, %vm732
    %vm877 = vmand %vm805, %vm733
    %vm878 = vmand %vm806, %vm734
    %vm879 = vmand %vm807, %vm735
    %vm880 = vmand %vm808, %vm736
    %vm881 = vmand %vm809, %vm737
    %vm882 = vmand %vm810, %vm738
    %vm883 = vmand %vm811, %vm739
    %vm884 = vmand %vm812, %vm740
    %vm885 = vmand %vm813, %vm741
    %vm886 = vmand %vm814, %vm742
    %vm887 = vmand %vm815, %vm743
    %vm888 = vmand %vm816, %vm744
    %vm889 = vmand %vm817, %vm745
    %vm890 = vmand %vm818, %vm746
    %vm891 = vmand %vm819, %vm747
    %vm892 = vmand %vm820, %vm748
    %v893 = vadd.s32 %v179, 16
    %v894 = vadd.s32 %v186, 16
    %v895 = vadd.s32 %v193, 16
    %v896 = vadd.s32 %v200, 16
    %v897 = vadd.s32 %v207, 16
    %v898 = vadd.s32 %v214, 16
    %v899 = vadd.s32 %v221, 16
    %v900 = vadd.s32 %v228, 16
    %v901 = vadd.s32 %v235, 16
    %v902 = vadd.s32 %v242, 16
    %v903 = vadd.s32 %v249, 16
    %v904 = vadd.s32 %v256, 16
    %v905 = vadd.s32 %v263, 16
    %v906 = vadd.s32 %v270, 16
    %v907 = vadd.s32 %v277, 16
    %v908 = vadd.s32 %v284, 16
    %v909 = vadd.s32 %v291, 16
    %v910 = vadd.s32 %v298, 16
    %v911 = vadd.s32 %v305, 16
    %v912 = vadd.s32 %v312, 16
    %v913 = vadd.s32 %v319, 16
    %v914 = vadd.s32 %v326, 16
    %v915 = vadd.s32 %v333, 16
    %v916 = vadd.s32 %v340, 16
    %v917 = vadd.s32 %v347, 16
    %v918 = vadd.s32 %v354, 16
    %v919 = vadd.s32 %v361, 16
    %v920 = vadd.s32 %v368, 16
    %v921 = vadd.s32 %v375, 16
    %v922 = vadd.s32 %v382, 16
    %v923 = vadd.s32 %v389, 16
    %v924 = vadd.s32 %v396, 16
    %v925 = vadd.s32 %v403, 16
    %v926 = vadd.s32 %v410, 16
    %v927 = vadd.s32 %v417, 16
    %v928 = vadd.s32 %v424, 16
    %v929 = vadd.s32 %v431, 16
    %v930 = vadd.s32 %v438, 16
    %v931 = vadd.s32 %v445, 16
    %v932 = vadd.s32 %v452, 16
    %v933 = vadd.s32 %v459, 16
    %v934 = vadd.s32 %v466, 16
    %v935 = vadd.s32 %v473, 16
    %v936 = vadd.s32 %v480, 16
    %v937 = vadd.s32 %v487, 16
    %v938 = vadd.s32 %v494, 16
    %v939 = vadd.s32 %v501, 16
    %v940 = vadd.s32 %v508, 16
    %v941 = vadd.s32 %v515, 16
    %v942 = vadd.s32 %v522, 16
    %v943 = vadd.s32 %v529, 16
    %v944 = vadd.s32 %v536, 16
    %v945 = vadd.s32 %v543, 16
    %v946 = vadd.s32 %v550, 16
    %v947 = vadd.s32 %v557, 16
    %v948 = vadd.s32 %v564, 16
    %v949 = vadd.s32 %v571, 16
    %v950 = vadd.s32 %v578, 16
    %v951 = vadd.s32 %v585, 16
    %v952 = vadd.s32 %v592, 16
    %v953 = vadd.s32 %v599, 16
    %v954 = vadd.s32 %v606, 16
    %v955 = vadd.s32 %v613, 16
    %v956 = vadd.s32 %v620, 16
    %v957 = vadd.s32 %v627, 16
    %v958 = vadd.s32 %v634, 16
    %v959 = vadd.s32 %v641, 16
    %v960 = vadd.s32 %v648, 16
    %v961 = vadd.s32 %v655, 16
    %v962 = vadd.s32 %v662, 16
    %v963 = vadd.s32 %v669, 16
    %v964 = vadd.s32 %v676, 16
    %v965 = vsel %vm821, %v893, %v179
    %v966 = vsel %vm822, %v894, %v186
    %v967 = vsel %vm823, %v895, %v193
    %v968 = vsel %vm824, %v896, %v200
    %v969 = vsel %vm825, %v897, %v207
    %v970 = vsel %vm826, %v898, %v214
    %v971 = vsel %vm827, %v899, %v221
    %v972 = vsel %vm828, %v900, %v228
    %v973 = vsel %vm829, %v901, %v235
    %v974 = vsel %vm830, %v902, %v242
    %v975 = vsel %vm831, %v903, %v249
    %v976 = vsel %vm832, %v904, %v256
    %v977 = vsel %vm833, %v905, %v263
    %v978 = vsel %vm834, %v906, %v270
    %v979 = vsel %vm835, %v907, %v277
    %v980 = vsel %vm836, %v908, %v284
    %v981 = vsel %vm837, %v909, %v291
    %v982 = vsel %vm838, %v910, %v298
    %v983 = vsel %vm839, %v911, %v305
    %v984 = vsel %vm840, %v912, %v312
    %v985 = vsel %vm841, %v913, %v319
    %v986 = vsel %vm842, %v914, %v326
    %v987 = vsel %vm843, %v915, %v333
    %v988 = vsel %vm844, %v916, %v340
    %v989 = vsel %vm845, %v917, %v347
    %v990 = vsel %vm846, %v918, %v354
    %v991 = vsel %vm847, %v919, %v361
    %v992 = vsel %vm848, %v920, %v368
    %v993 = vsel %vm849, %v921, %v375
    %v994 = vsel %vm850, %v922, %v382
    %v995 = vsel %vm851, %v923, %v389
    %v996 = vsel %vm852, %v924, %v396
    %v997 = vsel %vm853, %v925, %v403
    %v998 = vsel %vm854, %v926, %v410
    %v999 = vsel %vm855, %v927, %v417
    %v1000 = vsel %vm856, %v928, %v424
    %v1001 = vsel %vm857, %v929, %v431
    %v1002 = vsel %vm858, %v930, %v438
    %v1003 = vsel %vm859, %v931, %v445
    %v1004 = vsel %vm860, %v932, %v452
    %v1005 = vsel %vm861, %v933, %v459
    %v1006 = vsel %vm862, %v934, %v466
    %v1007 = vsel %vm863, %v935, %v473
    %v1008 = vsel %vm864, %v936, %v480
    %v1009 = vsel %vm865, %v937, %v487
    %v1010 = vsel %vm866, %v938, %v494
    %v1011 = vsel %vm867, %v939, %v501
    %v1012 = vsel %vm868, %v940, %v508
    %v1013 = vsel %vm869, %v941, %v515
    %v1014 = vsel %vm870, %v942, %v522
    %v1015 = vsel %vm871, %v943, %v529
    %v1016 = vsel %vm872, %v944, %v536
    %v1017 = vsel %vm873, %v945, %v543
    %v1018 = vsel %vm874, %v946, %v550
    %v1019 = vsel %vm875, %v947, %v557
    %v1020 = vsel %vm876, %v948, %v564
    %v1021 = vsel %vm877, %v949, %v571
    %v1022 = vsel %vm878, %v950, %v578
    %v1023 = vsel %vm879, %v951, %v585
    %v1024 = vsel %vm880, %v952, %v592
    %v1025 = vsel %vm881, %v953, %v599
    %v1026 = vsel %vm882, %v954, %v606
    %v1027 = vsel %vm883, %v955, %v613
    %v1028 = vsel %vm884, %v956, %v620
    %v1029 = vsel %vm885, %v957, %v627
    %v1030 = vsel %vm886, %v958, %v634
    %v1031 = vsel %vm887, %v959, %v641
    %v1032 = vsel %vm888, %v960, %v648
    %v1033 = vsel %vm889, %v961, %v655
    %v1034 = vsel %vm890, %v962, %v662
    %v1035 = vsel %vm891, %v963, %v669
    %v1036 = vsel %vm892, %v964, %v676
    %vm1037 = vcmp.ne.s32.totalorder %v965, 0
    %vm1038 = vcmp.ne.s32.totalorder %v966, 0
    %vm1039 = vcmp.ne.s32.totalorder %v967, 0
    %vm1040 = vcmp.ne.s32.totalorder %v968, 0
    %vm1041 = vcmp.ne.s32.totalorder %v969, 0
    %vm1042 = vcmp.ne.s32.totalorder %v970, 0
    %vm1043 = vcmp.ne.s32.totalorder %v971, 0
    %vm1044 = vcmp.ne.s32.totalorder %v972, 0
    %vm1045 = vcmp.ne.s32.totalorder %v973, 0
    %vm1046 = vcmp.ne.s32.totalorder %v974, 0
    %vm1047 = vcmp.ne.s32.totalorder %v975, 0
    %vm1048 = vcmp.ne.s32.totalorder %v976, 0
    %vm1049 = vcmp.ne.s32.totalorder %v977, 0
    %vm1050 = vcmp.ne.s32.totalorder %v978, 0
    %vm1051 = vcmp.ne.s32.totalorder %v979, 0
    %vm1052 = vcmp.ne.s32.totalorder %v980, 0
    %vm1053 = vcmp.ne.s32.totalorder %v981, 0
    %vm1054 = vcmp.ne.s32.totalorder %v982, 0
    %vm1055 = vcmp.ne.s32.totalorder %v983, 0
    %vm1056 = vcmp.ne.s32.totalorder %v984, 0
    %vm1057 = vcmp.ne.s32.totalorder %v985, 0
    %vm1058 = vcmp.ne.s32.totalorder %v986, 0
    %vm1059 = vcmp.ne.s32.totalorder %v987, 0
    %vm1060 = vcmp.ne.s32.totalorder %v988, 0
    %vm1061 = vcmp.ne.s32.totalorder %v989, 0
    %vm1062 = vcmp.ne.s32.totalorder %v990, 0
    %vm1063 = vcmp.ne.s32.totalorder %v991, 0
    %vm1064 = vcmp.ne.s32.totalorder %v992, 0
    %vm1065 = vcmp.ne.s32.totalorder %v993, 0
    %vm1066 = vcmp.ne.s32.totalorder %v994, 0
    %vm1067 = vcmp.ne.s32.totalorder %v995, 0
    %vm1068 = vcmp.ne.s32.totalorder %v996, 0
    %vm1069 = vcmp.ne.s32.totalorder %v997, 0
    %vm1070 = vcmp.ne.s32.totalorder %v998, 0
    %vm1071 = vcmp.ne.s32.totalorder %v999, 0
    %vm1072 = vcmp.ne.s32.totalorder %v1000, 0
    %vm1073 = vcmp.ne.s32.totalorder %v1001, 0
    %vm1074 = vcmp.ne.s32.totalorder %v1002, 0
    %vm1075 = vcmp.ne.s32.totalorder %v1003, 0
    %vm1076 = vcmp.ne.s32.totalorder %v1004, 0
    %vm1077 = vcmp.ne.s32.totalorder %v1005, 0
    %vm1078 = vcmp.ne.s32.totalorder %v1006, 0
    %vm1079 = vcmp.ne.s32.totalorder %v1007, 0
    %vm1080 = vcmp.ne.s32.totalorder %v1008, 0
    %vm1081 = vcmp.ne.s32.totalorder %v1009, 0
    %vm1082 = vcmp.ne.s32.totalorder %v1010, 0
    %vm1083 = vcmp.ne.s32.totalorder %v1011, 0
    %vm1084 = vcmp.ne.s32.totalorder %v1012, 0
    %vm1085 = vcmp.ne.s32.totalorder %v1013, 0
    %vm1086 = vcmp.ne.s32.totalorder %v1014, 0
    %vm1087 = vcmp.ne.s32.totalorder %v1015, 0
    %vm1088 = vcmp.ne.s32.totalorder %v1016, 0
    %vm1089 = vcmp.ne.s32.totalorder %v1017, 0
    %vm1090 = vcmp.ne.s32.totalorder %v1018, 0
    %vm1091 = vcmp.ne.s32.totalorder %v1019, 0
    %vm1092 = vcmp.ne.s32.totalorder %v1020, 0
    %vm1093 = vcmp.ne.s32.totalorder %v1021, 0
    %vm1094 = vcmp.ne.s32.totalorder %v1022, 0
    %vm1095 = vcmp.ne.s32.totalorder %v1023, 0
    %vm1096 = vcmp.ne.s32.totalorder %v1024, 0
    %vm1097 = vcmp.ne.s32.totalorder %v1025, 0
    %vm1098 = vcmp.ne.s32.totalorder %v1026, 0
    %vm1099 = vcmp.ne.s32.totalorder %v1027, 0
    %vm1100 = vcmp.ne.s32.totalorder %v1028, 0
    %vm1101 = vcmp.ne.s32.totalorder %v1029, 0
    %vm1102 = vcmp.ne.s32.totalorder %v1030, 0
    %vm1103 = vcmp.ne.s32.totalorder %v1031, 0
    %vm1104 = vcmp.ne.s32.totalorder %v1032, 0
    %vm1105 = vcmp.ne.s32.totalorder %v1033, 0
    %vm1106 = vcmp.ne.s32.totalorder %v1034, 0
    %vm1107 = vcmp.ne.s32.totalorder %v1035, 0
    %vm1108 = vcmp.ne.s32.totalorder %v1036, 0
    %vm1109 = vcmp.ne.s32.totalorder %v965, 15
    %vm1110 = vcmp.ne.s32.totalorder %v966, 15
    %vm1111 = vcmp.ne.s32.totalorder %v967, 15
    %vm1112 = vcmp.ne.s32.totalorder %v968, 15
    %vm1113 = vcmp.ne.s32.totalorder %v969, 15
    %vm1114 = vcmp.ne.s32.totalorder %v970, 15
    %vm1115 = vcmp.ne.s32.totalorder %v971, 15
    %vm1116 = vcmp.ne.s32.totalorder %v972, 15
    %vm1117 = vcmp.ne.s32.totalorder %v973, 15
    %vm1118 = vcmp.ne.s32.totalorder %v974, 15
    %vm1119 = vcmp.ne.s32.totalorder %v975, 15
    %vm1120 = vcmp.ne.s32.totalorder %v976, 15
    %vm1121 = vcmp.ne.s32.totalorder %v977, 15
    %vm1122 = vcmp.ne.s32.totalorder %v978, 15
    %vm1123 = vcmp.ne.s32.totalorder %v979, 15
    %vm1124 = vcmp.ne.s32.totalorder %v980, 15
    %vm1125 = vcmp.ne.s32.totalorder %v981, 15
    %vm1126 = vcmp.ne.s32.totalorder %v982, 15
    %vm1127 = vcmp.ne.s32.totalorder %v983, 15
    %vm1128 = vcmp.ne.s32.totalorder %v984, 15
    %vm1129 = vcmp.ne.s32.totalorder %v985, 15
    %vm1130 = vcmp.ne.s32.totalorder %v986, 15
    %vm1131 = vcmp.ne.s32.totalorder %v987, 15
    %vm1132 = vcmp.ne.s32.totalorder %v988, 15
    %vm1133 = vcmp.ne.s32.totalorder %v989, 15
    %vm1134 = vcmp.ne.s32.totalorder %v990, 15
    %vm1135 = vcmp.ne.s32.totalorder %v991, 15
    %vm1136 = vcmp.ne.s32.totalorder %v992, 15
    %vm1137 = vcmp.ne.s32.totalorder %v993, 15
    %vm1138 = vcmp.ne.s32.totalorder %v994, 15
    %vm1139 = vcmp.ne.s32.totalorder %v995, 15
    %vm1140 = vcmp.ne.s32.totalorder %v996, 15
    %vm1141 = vcmp.ne.s32.totalorder %v997, 15
    %vm1142 = vcmp.ne.s32.totalorder %v998, 15
    %vm1143 = vcmp.ne.s32.totalorder %v999, 15
    %vm1144 = vcmp.ne.s32.totalorder %v1000, 15
    %vm1145 = vcmp.ne.s32.totalorder %v1001, 15
    %vm1146 = vcmp.ne.s32.totalorder %v1002, 15
    %vm1147 = vcmp.ne.s32.totalorder %v1003, 15
    %vm1148 = vcmp.ne.s32.totalorder %v1004, 15
    %vm1149 = vcmp.ne.s32.totalorder %v1005, 15
    %vm1150 = vcmp.ne.s32.totalorder %v1006, 15
    %vm1151 = vcmp.ne.s32.totalorder %v1007, 15
    %vm1152 = vcmp.ne.s32.totalorder %v1008, 15
    %vm1153 = vcmp.ne.s32.totalorder %v1009, 15
    %vm1154 = vcmp.ne.s32.totalorder %v1010, 15
    %vm1155 = vcmp.ne.s32.totalorder %v1011, 15
    %vm1156 = vcmp.ne.s32.totalorder %v1012, 15
    %vm1157 = vcmp.ne.s32.totalorder %v1013, 15
    %vm1158 = vcmp.ne.s32.totalorder %v1014, 15
    %vm1159 = vcmp.ne.s32.totalorder %v1015, 15
    %vm1160 = vcmp.ne.s32.totalorder %v1016, 15
    %vm1161 = vcmp.ne.s32.totalorder %v1017, 15
    %vm1162 = vcmp.ne.s32.totalorder %v1018, 15
    %vm1163 = vcmp.ne.s32.totalorder %v1019, 15
    %vm1164 = vcmp.ne.s32.totalorder %v1020, 15
    %vm1165 = vcmp.ne.s32.totalorder %v1021, 15
    %vm1166 = vcmp.ne.s32.totalorder %v1022, 15
    %vm1167 = vcmp.ne.s32.totalorder %v1023, 15
    %vm1168 = vcmp.ne.s32.totalorder %v1024, 15
    %vm1169 = vcmp.ne.s32.totalorder %v1025, 15
    %vm1170 = vcmp.ne.s32.totalorder %v1026, 15
    %vm1171 = vcmp.ne.s32.totalorder %v1027, 15
    %vm1172 = vcmp.ne.s32.totalorder %v1028, 15
    %vm1173 = vcmp.ne.s32.totalorder %v1029, 15
    %vm1174 = vcmp.ne.s32.totalorder %v1030, 15
    %vm1175 = vcmp.ne.s32.totalorder %v1031, 15
    %vm1176 = vcmp.ne.s32.totalorder %v1032, 15
    %vm1177 = vcmp.ne.s32.totalorder %v1033, 15
    %vm1178 = vcmp.ne.s32.totalorder %v1034, 15
    %vm1179 = vcmp.ne.s32.totalorder %v1035, 15
    %vm1180 = vcmp.ne.s32.totalorder %v1036, 15
    %v1181 = vld [vmem:[#allocation3] sm:$0xff]
    %v1182 = vld [vmem:[#allocation3 + $0x8] sm:$0xff]
    %v1183 = vld [vmem:[#allocation3 + $0x10] sm:$0xff]
    %v1184 = vld [vmem:[#allocation3 + $0x18] sm:$0xff]
    %v1185 = vld [vmem:[#allocation3 + $0x20] sm:$0xff]
    %v1186 = vld [vmem:[#allocation3 + $0x28] sm:$0xff]
    %v1187 = vld [vmem:[#allocation3 + $0x30] sm:$0xff]
    %v1188 = vld [vmem:[#allocation3 + $0x38] sm:$0xff]
    %v1189 = vld [vmem:[#allocation3 + $0x40] sm:$0xff]
    %v1190 = vld [vmem:[#allocation3 + $0x48] sm:$0xff]
    %v1191 = vld [vmem:[#allocation3 + $0x50] sm:$0xff]
    %v1192 = vld [vmem:[#allocation3 + $0x58] sm:$0xff]
    %v1193 = vld [vmem:[#allocation3 + $0x60] sm:$0xff]
    %v1194 = vld [vmem:[#allocation3 + $0x68] sm:$0xff]
    %v1195 = vld [vmem:[#allocation3 + $0x70] sm:$0xff]
    %v1196 = vld [vmem:[#allocation3 + $0x78] sm:$0xff]
    %v1197 = vld [vmem:[#allocation3 + $0x80] sm:$0xff]
    %v1198 = vld [vmem:[#allocation3 + $0x88] sm:$0xff]
    %v1199 = vld [vmem:[#allocation3 + $0x90] sm:$0xff]
    %v1200 = vld [vmem:[#allocation3 + $0x98] sm:$0xff]
    %v1201 = vld [vmem:[#allocation3 + $0xa0] sm:$0xff]
    %v1202 = vld [vmem:[#allocation3 + $0xa8] sm:$0xff]
    %v1203 = vld [vmem:[#allocation3 + $0xb0] sm:$0xff]
    %v1204 = vld [vmem:[#allocation3 + $0xb8] sm:$0xff]
    %v1205 = vld [vmem:[#allocation3 + $0xc0] sm:$0xff]
    %v1206 = vld [vmem:[#allocation3 + $0xc8] sm:$0xff]
    %v1207 = vld [vmem:[#allocation3 + $0xd0] sm:$0xff]
    %v1208 = vld [vmem:[#allocation3 + $0xd8] sm:$0xff]
    %v1209 = vld [vmem:[#allocation3 + $0xe0] sm:$0xff]
    %v1210 = vld [vmem:[#allocation3 + $0xe8] sm:$0xff]
    %v1211 = vld [vmem:[#allocation3 + $0xf0] sm:$0xff]
    %v1212 = vld [vmem:[#allocation3 + $0xf8] sm:$0xff]
    %v1213 = vld [vmem:[#allocation3 + $0x100] sm:$0xff]
    %v1214 = vld [vmem:[#allocation3 + $0x108] sm:$0xff]
    %v1215 = vld [vmem:[#allocation3 + $0x110] sm:$0xff]
    %v1216 = vld [vmem:[#allocation3 + $0x118] sm:$0xff]
    %v1217 = vld [vmem:[#allocation3 + $0x120] sm:$0xff]
    %v1218 = vld [vmem:[#allocation3 + $0x128] sm:$0xff]
    %v1219 = vld [vmem:[#allocation3 + $0x130] sm:$0xff]
    %v1220 = vld [vmem:[#allocation3 + $0x138] sm:$0xff]
    %v1221 = vld [vmem:[#allocation3 + $0x140] sm:$0xff]
    %v1222 = vld [vmem:[#allocation3 + $0x148] sm:$0xff]
    %v1223 = vld [vmem:[#allocation3 + $0x150] sm:$0xff]
    %v1224 = vld [vmem:[#allocation3 + $0x158] sm:$0xff]
    %v1225 = vld [vmem:[#allocation3 + $0x160] sm:$0xff]
    %v1226 = vld [vmem:[#allocation3 + $0x168] sm:$0xff]
    %v1227 = vld [vmem:[#allocation3 + $0x170] sm:$0xff]
    %v1228 = vld [vmem:[#allocation3 + $0x178] sm:$0xff]
    %v1229 = vld [vmem:[#allocation3 + $0x180] sm:$0xff]
    %v1230 = vld [vmem:[#allocation3 + $0x188] sm:$0xff]
    %v1231 = vld [vmem:[#allocation3 + $0x190] sm:$0xff]
    %v1232 = vld [vmem:[#allocation3 + $0x198] sm:$0xff]
    %v1233 = vld [vmem:[#allocation3 + $0x1a0] sm:$0xff]
    %v1234 = vld [vmem:[#allocation3 + $0x1a8] sm:$0xff]
    %v1235 = vld [vmem:[#allocation3 + $0x1b0] sm:$0xff]
    %v1236 = vld [vmem:[#allocation3 + $0x1b8] sm:$0xff]
    %v1237 = vld [vmem:[#allocation3 + $0x1c0] sm:$0xff]
    %v1238 = vld [vmem:[#allocation3 + $0x1c8] sm:$0xff]
    %v1239 = vld [vmem:[#allocation3 + $0x1d0] sm:$0xff]
    %v1240 = vld [vmem:[#allocation3 + $0x1d8] sm:$0xff]
    %v1241 = vld [vmem:[#allocation3 + $0x1e0] sm:$0xff]
    %v1242 = vld [vmem:[#allocation3 + $0x1e8] sm:$0xff]
    %v1243 = vld [vmem:[#allocation3 + $0x1f0] sm:$0xff]
    %v1244 = vld [vmem:[#allocation3 + $0x1f8] sm:$0xff]
    %v1245 = vld [vmem:[#allocation3 + $0x200] sm:$0xff]
    %v1246 = vld [vmem:[#allocation3 + $0x208] sm:$0xff]
    %v1247 = vld [vmem:[#allocation3 + $0x210] sm:$0xff]
    %v1248 = vld [vmem:[#allocation3 + $0x218] sm:$0xff]
    %v1249 = vld [vmem:[#allocation3 + $0x220] sm:$0xff]
    %v1250 = vld [vmem:[#allocation3 + $0x228] sm:$0xff]
    %v1251 = vld [vmem:[#allocation3 + $0x230] sm:$0xff]
    %v1252 = vld [vmem:[#allocation3 + $0x238] sm:$0xff]
    %v1254 = vrot.slane %v1252, 7
    %vm1327 = vcmask 1040384
    %v1328 = vrot.slane %v1181, 7
    %v1329 = vrot.slane %v1182, 7
    %v1330 = vsel %vm1327, %v1328, %v1329
    %v1331 = vrot.slane %v1183, 7
    %v1332 = vsel %vm1327, %v1329, %v1331
    %v1333 = vrot.slane %v1184, 7
    %v1334 = vsel %vm1327, %v1331, %v1333
    %v1335 = vrot.slane %v1185, 7
    %v1336 = vsel %vm1327, %v1333, %v1335
    %v1337 = vrot.slane %v1186, 7
    %v1338 = vsel %vm1327, %v1335, %v1337
    %v1339 = vrot.slane %v1187, 7
    %v1340 = vsel %vm1327, %v1337, %v1339
    %v1341 = vrot.slane %v1188, 7
    %v1342 = vsel %vm1327, %v1339, %v1341
    %v1343 = vrot.slane %v1189, 7
    %v1344 = vsel %vm1327, %v1341, %v1343
    %v1345 = vrot.slane %v1190, 7
    %v1346 = vsel %vm1327, %v1343, %v1345
    %v1347 = vrot.slane %v1191, 7
    %v1348 = vsel %vm1327, %v1345, %v1347
    %v1349 = vrot.slane %v1192, 7
    %v1350 = vsel %vm1327, %v1347, %v1349
    %v1351 = vrot.slane %v1193, 7
    %v1352 = vsel %vm1327, %v1349, %v1351
    %v1353 = vrot.slane %v1194, 7
    %v1354 = vsel %vm1327, %v1351, %v1353
    %v1355 = vrot.slane %v1195, 7
    %v1356 = vsel %vm1327, %v1353, %v1355
    %v1357 = vrot.slane %v1196, 7
    %v1358 = vsel %vm1327, %v1355, %v1357
    %v1359 = vrot.slane %v1197, 7
    %v1360 = vsel %vm1327, %v1357, %v1359
    %v1361 = vrot.slane %v1198, 7
    %v1362 = vsel %vm1327, %v1359, %v1361
    %v1363 = vrot.slane %v1199, 7
    %v1364 = vsel %vm1327, %v1361, %v1363
    %v1365 = vrot.slane %v1200, 7
    %v1366 = vsel %vm1327, %v1363, %v1365
    %v1367 = vrot.slane %v1201, 7
    %v1368 = vsel %vm1327, %v1365, %v1367
    %v1369 = vrot.slane %v1202, 7
    %v1370 = vsel %vm1327, %v1367, %v1369
    %v1371 = vrot.slane %v1203, 7
    %v1372 = vsel %vm1327, %v1369, %v1371
    %v1373 = vrot.slane %v1204, 7
    %v1374 = vsel %vm1327, %v1371, %v1373
    %v1375 = vrot.slane %v1205, 7
    %v1376 = vsel %vm1327, %v1373, %v1375
    %v1377 = vrot.slane %v1206, 7
    %v1378 = vsel %vm1327, %v1375, %v1377
    %v1379 = vrot.slane %v1207, 7
    %v1380 = vsel %vm1327, %v1377, %v1379
    %v1381 = vrot.slane %v1208, 7
    %v1382 = vsel %vm1327, %v1379, %v1381
    %v1383 = vrot.slane %v1209, 7
    %v1384 = vsel %vm1327, %v1381, %v1383
    %v1385 = vrot.slane %v1210, 7
    %v1386 = vsel %vm1327, %v1383, %v1385
    %v1387 = vrot.slane %v1211, 7
    %v1388 = vsel %vm1327, %v1385, %v1387
    %v1389 = vrot.slane %v1212, 7
    %v1390 = vsel %vm1327, %v1387, %v1389
    %v1391 = vrot.slane %v1213, 7
    %v1392 = vsel %vm1327, %v1389, %v1391
    %v1393 = vrot.slane %v1214, 7
    %v1394 = vsel %vm1327, %v1391, %v1393
    %v1395 = vrot.slane %v1215, 7
    %v1396 = vsel %vm1327, %v1393, %v1395
    %v1397 = vrot.slane %v1216, 7
    %v1398 = vsel %vm1327, %v1395, %v1397
    %v1399 = vrot.slane %v1217, 7
    %v1400 = vsel %vm1327, %v1397, %v1399
    %v1401 = vrot.slane %v1218, 7
    %v1402 = vsel %vm1327, %v1399, %v1401
    %v1403 = vrot.slane %v1219, 7
    %v1404 = vsel %vm1327, %v1401, %v1403
    %v1405 = vrot.slane %v1220, 7
    %v1406 = vsel %vm1327, %v1403, %v1405
    %v1407 = vrot.slane %v1221, 7
    %v1408 = vsel %vm1327, %v1405, %v1407
    %v1409 = vrot.slane %v1222, 7
    %v1410 = vsel %vm1327, %v1407, %v1409
    %v1411 = vrot.slane %v1223, 7
    %v1412 = vsel %vm1327, %v1409, %v1411
    %v1413 = vrot.slane %v1224, 7
    %v1414 = vsel %vm1327, %v1411, %v1413
    %v1415 = vrot.slane %v1225, 7
    %v1416 = vsel %vm1327, %v1413, %v1415
    %v1417 = vrot.slane %v1226, 7
    %v1418 = vsel %vm1327, %v1415, %v1417
    %v1419 = vrot.slane %v1227, 7
    %v1420 = vsel %vm1327, %v1417, %v1419
    %v1421 = vrot.slane %v1228, 7
    %v1422 = vsel %vm1327, %v1419, %v1421
    %v1423 = vrot.slane %v1229, 7
    %v1424 = vsel %vm1327, %v1421, %v1423
    %v1425 = vrot.slane %v1230, 7
    %v1426 = vsel %vm1327, %v1423, %v1425
    %v1427 = vrot.slane %v1231, 7
    %v1428 = vsel %vm1327, %v1425, %v1427
    %v1429 = vrot.slane %v1232, 7
    %v1430 = vsel %vm1327, %v1427, %v1429
    %v1431 = vrot.slane %v1233, 7
    %v1432 = vsel %vm1327, %v1429, %v1431
    %v1433 = vrot.slane %v1234, 7
    %v1434 = vsel %vm1327, %v1431, %v1433
    %v1435 = vrot.slane %v1235, 7
    %v1436 = vsel %vm1327, %v1433, %v1435
    %v1437 = vrot.slane %v1236, 7
    %v1438 = vsel %vm1327, %v1435, %v1437
    %v1439 = vrot.slane %v1237, 7
    %v1440 = vsel %vm1327, %v1437, %v1439
    %v1441 = vrot.slane %v1238, 7
    %v1442 = vsel %vm1327, %v1439, %v1441
    %v1443 = vrot.slane %v1239, 7
    %v1444 = vsel %vm1327, %v1441, %v1443
    %v1445 = vrot.slane %v1240, 7
    %v1446 = vsel %vm1327, %v1443, %v1445
    %v1447 = vrot.slane %v1241, 7
    %v1448 = vsel %vm1327, %v1445, %v1447
    %v1449 = vrot.slane %v1242, 7
    %v1450 = vsel %vm1327, %v1447, %v1449
    %v1451 = vrot.slane %v1243, 7
    %v1452 = vsel %vm1327, %v1449, %v1451
    %v1453 = vrot.slane %v1244, 7
    %v1454 = vsel %vm1327, %v1451, %v1453
    %v1455 = vrot.slane %v1245, 7
    %v1456 = vsel %vm1327, %v1453, %v1455
    %v1457 = vrot.slane %v1246, 7
    %v1458 = vsel %vm1327, %v1455, %v1457
    %v1459 = vrot.slane %v1247, 7
    %v1460 = vsel %vm1327, %v1457, %v1459
    %v1461 = vrot.slane %v1248, 7
    %v1462 = vsel %vm1327, %v1459, %v1461
    %v1463 = vrot.slane %v1249, 7
    %v1464 = vsel %vm1327, %v1461, %v1463
    %v1465 = vrot.slane %v1250, 7
    %v1466 = vsel %vm1327, %v1463, %v1465
    %v1467 = vrot.slane %v1251, 7
    %v1468 = vsel %vm1327, %v1465, %v1467
    %v1469 = vsel %vm1327, %v1467, %v1254
    %v1542 = vsel %vm1327, %v1254, %v1328
    %v1543 = vsel %vm1037, 1, 0
    %v1544 = vsel %vm1038, 1, 0
    %v1545 = vsel %vm1039, 1, 0
    %v1546 = vsel %vm1040, 1, 0
    %v1547 = vsel %vm1041, 1, 0
    %v1548 = vsel %vm1042, 1, 0
    %v1549 = vsel %vm1043, 1, 0
    %v1550 = vsel %vm1044, 1, 0
    %v1551 = vsel %vm1045, 1, 0
    %v1552 = vsel %vm1046, 1, 0
    %v1553 = vsel %vm1047, 1, 0
    %v1554 = vsel %vm1048, 1, 0
    %v1555 = vsel %vm1049, 1, 0
    %v1556 = vsel %vm1050, 1, 0
    %v1557 = vsel %vm1051, 1, 0
    %v1558 = vsel %vm1052, 1, 0
    %v1559 = vsel %vm1053, 1, 0
    %v1560 = vsel %vm1054, 1, 0
    %v1561 = vsel %vm1055, 1, 0
    %v1562 = vsel %vm1056, 1, 0
    %v1563 = vsel %vm1057, 1, 0
    %v1564 = vsel %vm1058, 1, 0
    %v1565 = vsel %vm1059, 1, 0
    %v1566 = vsel %vm1060, 1, 0
    %v1567 = vsel %vm1061, 1, 0
    %v1568 = vsel %vm1062, 1, 0
    %v1569 = vsel %vm1063, 1, 0
    %v1570 = vsel %vm1064, 1, 0
    %v1571 = vsel %vm1065, 1, 0
    %v1572 = vsel %vm1066, 1, 0
    %v1573 = vsel %vm1067, 1, 0
    %v1574 = vsel %vm1068, 1, 0
    %v1575 = vsel %vm1069, 1, 0
    %v1576 = vsel %vm1070, 1, 0
    %v1577 = vsel %vm1071, 1, 0
    %v1578 = vsel %vm1072, 1, 0
    %v1579 = vsel %vm1073, 1, 0
    %v1580 = vsel %vm1074, 1, 0
    %v1581 = vsel %vm1075, 1, 0
    %v1582 = vsel %vm1076, 1, 0
    %v1583 = vsel %vm1077, 1, 0
    %v1584 = vsel %vm1078, 1, 0
    %v1585 = vsel %vm1079, 1, 0
    %v1586 = vsel %vm1080, 1, 0
    %v1587 = vsel %vm1081, 1, 0
    %v1588 = vsel %vm1082, 1, 0
    %v1589 = vsel %vm1083, 1, 0
    %v1590 = vsel %vm1084, 1, 0
    %v1591 = vsel %vm1085, 1, 0
    %v1592 = vsel %vm1086, 1, 0
    %v1593 = vsel %vm1087, 1, 0
    %v1594 = vsel %vm1088, 1, 0
    %v1595 = vsel %vm1089, 1, 0
    %v1596 = vsel %vm1090, 1, 0
    %v1597 = vsel %vm1091, 1, 0
    %v1598 = vsel %vm1092, 1, 0
    %v1599 = vsel %vm1093, 1, 0
    %v1600 = vsel %vm1094, 1, 0
    %v1601 = vsel %vm1095, 1, 0
    %v1602 = vsel %vm1096, 1, 0
    %v1603 = vsel %vm1097, 1, 0
    %v1604 = vsel %vm1098, 1, 0
    %v1605 = vsel %vm1099, 1, 0
    %v1606 = vsel %vm1100, 1, 0
    %v1607 = vsel %vm1101, 1, 0
    %v1608 = vsel %vm1102, 1, 0
    %v1609 = vsel %vm1103, 1, 0
    %v1610 = vsel %vm1104, 1, 0
    %v1611 = vsel %vm1105, 1, 0
    %v1612 = vsel %vm1106, 1, 0
    %v1613 = vsel %vm1107, 1, 0
    %v1614 = vsel %vm1108, 1, 0
    %vm1615 = vcmp.eq.s32.totalorder %v1543, 1
    %vm1616 = vcmp.eq.s32.totalorder %v1544, 1
    %vm1617 = vcmp.eq.s32.totalorder %v1545, 1
    %vm1618 = vcmp.eq.s32.totalorder %v1546, 1
    %vm1619 = vcmp.eq.s32.totalorder %v1547, 1
    %vm1620 = vcmp.eq.s32.totalorder %v1548, 1
    %vm1621 = vcmp.eq.s32.totalorder %v1549, 1
    %vm1622 = vcmp.eq.s32.totalorder %v1550, 1
    %vm1623 = vcmp.eq.s32.totalorder %v1551, 1
    %vm1624 = vcmp.eq.s32.totalorder %v1552, 1
    %vm1625 = vcmp.eq.s32.totalorder %v1553, 1
    %vm1626 = vcmp.eq.s32.totalorder %v1554, 1
    %vm1627 = vcmp.eq.s32.totalorder %v1555, 1
    %vm1628 = vcmp.eq.s32.totalorder %v1556, 1
    %vm1629 = vcmp.eq.s32.totalorder %v1557, 1
    %vm1630 = vcmp.eq.s32.totalorder %v1558, 1
    %vm1631 = vcmp.eq.s32.totalorder %v1559, 1
    %vm1632 = vcmp.eq.s32.totalorder %v1560, 1
    %vm1633 = vcmp.eq.s32.totalorder %v1561, 1
    %vm1634 = vcmp.eq.s32.totalorder %v1562, 1
    %vm1635 = vcmp.eq.s32.totalorder %v1563, 1
    %vm1636 = vcmp.eq.s32.totalorder %v1564, 1
    %vm1637 = vcmp.eq.s32.totalorder %v1565, 1
    %vm1638 = vcmp.eq.s32.totalorder %v1566, 1
    %vm1639 = vcmp.eq.s32.totalorder %v1567, 1
    %vm1640 = vcmp.eq.s32.totalorder %v1568, 1
    %vm1641 = vcmp.eq.s32.totalorder %v1569, 1
    %vm1642 = vcmp.eq.s32.totalorder %v1570, 1
    %vm1643 = vcmp.eq.s32.totalorder %v1571, 1
    %vm1644 = vcmp.eq.s32.totalorder %v1572, 1
    %vm1645 = vcmp.eq.s32.totalorder %v1573, 1
    %vm1646 = vcmp.eq.s32.totalorder %v1574, 1
    %vm1647 = vcmp.eq.s32.totalorder %v1575, 1
    %vm1648 = vcmp.eq.s32.totalorder %v1576, 1
    %vm1649 = vcmp.eq.s32.totalorder %v1577, 1
    %vm1650 = vcmp.eq.s32.totalorder %v1578, 1
    %vm1651 = vcmp.eq.s32.totalorder %v1579, 1
    %vm1652 = vcmp.eq.s32.totalorder %v1580, 1
    %vm1653 = vcmp.eq.s32.totalorder %v1581, 1
    %vm1654 = vcmp.eq.s32.totalorder %v1582, 1
    %vm1655 = vcmp.eq.s32.totalorder %v1583, 1
    %vm1656 = vcmp.eq.s32.totalorder %v1584, 1
    %vm1657 = vcmp.eq.s32.totalorder %v1585, 1
    %vm1658 = vcmp.eq.s32.totalorder %v1586, 1
    %vm1659 = vcmp.eq.s32.totalorder %v1587, 1
    %vm1660 = vcmp.eq.s32.totalorder %v1588, 1
    %vm1661 = vcmp.eq.s32.totalorder %v1589, 1
    %vm1662 = vcmp.eq.s32.totalorder %v1590, 1
    %vm1663 = vcmp.eq.s32.totalorder %v1591, 1
    %vm1664 = vcmp.eq.s32.totalorder %v1592, 1
    %vm1665 = vcmp.eq.s32.totalorder %v1593, 1
    %vm1666 = vcmp.eq.s32.totalorder %v1594, 1
    %vm1667 = vcmp.eq.s32.totalorder %v1595, 1
    %vm1668 = vcmp.eq.s32.totalorder %v1596, 1
    %vm1669 = vcmp.eq.s32.totalorder %v1597, 1
    %vm1670 = vcmp.eq.s32.totalorder %v1598, 1
    %vm1671 = vcmp.eq.s32.totalorder %v1599, 1
    %vm1672 = vcmp.eq.s32.totalorder %v1600, 1
    %vm1673 = vcmp.eq.s32.totalorder %v1601, 1
    %vm1674 = vcmp.eq.s32.totalorder %v1602, 1
    %vm1675 = vcmp.eq.s32.totalorder %v1603, 1
    %vm1676 = vcmp.eq.s32.totalorder %v1604, 1
    %vm1677 = vcmp.eq.s32.totalorder %v1605, 1
    %vm1678 = vcmp.eq.s32.totalorder %v1606, 1
    %vm1679 = vcmp.eq.s32.totalorder %v1607, 1
    %vm1680 = vcmp.eq.s32.totalorder %v1608, 1
    %vm1681 = vcmp.eq.s32.totalorder %v1609, 1
    %vm1682 = vcmp.eq.s32.totalorder %v1610, 1
    %vm1683 = vcmp.eq.s32.totalorder %v1611, 1
    %vm1684 = vcmp.eq.s32.totalorder %v1612, 1
    %vm1685 = vcmp.eq.s32.totalorder %v1613, 1
    %vm1686 = vcmp.eq.s32.totalorder %v1614, 1
    %v1687 = vsel %vm1615, %v1542, 0.0
    %v1688 = vsel %vm1616, %v1330, 0.0
    %v1689 = vsel %vm1617, %v1332, 0.0
    %v1690 = vsel %vm1618, %v1334, 0.0
    %v1691 = vsel %vm1619, %v1336, 0.0
    %v1692 = vsel %vm1620, %v1338, 0.0
    %v1693 = vsel %vm1621, %v1340, 0.0
    %v1694 = vsel %vm1622, %v1342, 0.0
    %v1695 = vsel %vm1623, %v1344, 0.0
    %v1696 = vsel %vm1624, %v1346, 0.0
    %v1697 = vsel %vm1625, %v1348, 0.0
    %v1698 = vsel %vm1626, %v1350, 0.0
    %v1699 = vsel %vm1627, %v1352, 0.0
    %v1700 = vsel %vm1628, %v1354, 0.0
    %v1701 = vsel %vm1629, %v1356, 0.0
    %v1702 = vsel %vm1630, %v1358, 0.0
    %v1703 = vsel %vm1631, %v1360, 0.0
    %v1704 = vsel %vm1632, %v1362, 0.0
    %v1705 = vsel %vm1633, %v1364, 0.0
    %v1706 = vsel %vm1634, %v1366, 0.0
    %v1707 = vsel %vm1635, %v1368, 0.0
    %v1708 = vsel %vm1636, %v1370, 0.0
    %v1709 = vsel %vm1637, %v1372, 0.0
    %v1710 = vsel %vm1638, %v1374, 0.0
    %v1711 = vsel %vm1639, %v1376, 0.0
    %v1712 = vsel %vm1640, %v1378, 0.0
    %v1713 = vsel %vm1641, %v1380, 0.0
    %v1714 = vsel %vm1642, %v1382, 0.0
    %v1715 = vsel %vm1643, %v1384, 0.0
    %v1716 = vsel %vm1644, %v1386, 0.0
    %v1717 = vsel %vm1645, %v1388, 0.0
    %v1718 = vsel %vm1646, %v1390, 0.0
    %v1719 = vsel %vm1647, %v1392, 0.0
    %v1720 = vsel %vm1648, %v1394, 0.0
    %v1721 = vsel %vm1649, %v1396, 0.0
    %v1722 = vsel %vm1650, %v1398, 0.0
    %v1723 = vsel %vm1651, %v1400, 0.0
    %v1724 = vsel %vm1652, %v1402, 0.0
    %v1725 = vsel %vm1653, %v1404, 0.0
    %v1726 = vsel %vm1654, %v1406, 0.0
    %v1727 = vsel %vm1655, %v1408, 0.0
    %v1728 = vsel %vm1656, %v1410, 0.0
    %v1729 = vsel %vm1657, %v1412, 0.0
    %v1730 = vsel %vm1658, %v1414, 0.0
    %v1731 = vsel %vm1659, %v1416, 0.0
    %v1732 = vsel %vm1660, %v1418, 0.0
    %v1733 = vsel %vm1661, %v1420, 0.0
    %v1734 = vsel %vm1662, %v1422, 0.0
    %v1735 = vsel %vm1663, %v1424, 0.0
    %v1736 = vsel %vm1664, %v1426, 0.0
    %v1737 = vsel %vm1665, %v1428, 0.0
    %v1738 = vsel %vm1666, %v1430, 0.0
    %v1739 = vsel %vm1667, %v1432, 0.0
    %v1740 = vsel %vm1668, %v1434, 0.0
    %v1741 = vsel %vm1669, %v1436, 0.0
    %v1742 = vsel %vm1670, %v1438, 0.0
    %v1743 = vsel %vm1671, %v1440, 0.0
    %v1744 = vsel %vm1672, %v1442, 0.0
    %v1745 = vsel %vm1673, %v1444, 0.0
    %v1746 = vsel %vm1674, %v1446, 0.0
    %v1747 = vsel %vm1675, %v1448, 0.0
    %v1748 = vsel %vm1676, %v1450, 0.0
    %v1749 = vsel %vm1677, %v1452, 0.0
    %v1750 = vsel %vm1678, %v1454, 0.0
    %v1751 = vsel %vm1679, %v1456, 0.0
    %v1752 = vsel %vm1680, %v1458, 0.0
    %v1753 = vsel %vm1681, %v1460, 0.0
    %v1754 = vsel %vm1682, %v1462, 0.0
    %v1755 = vsel %vm1683, %v1464, 0.0
    %v1756 = vsel %vm1684, %v1466, 0.0
    %v1757 = vsel %vm1685, %v1468, 0.0
    %v1758 = vsel %vm1686, %v1469, 0.0
    %vm1759 = vcmask 1046528
    %v1760 = vrot.slane %v1181, 1
    %v1761 = vrot.slane %v1182, 1
    %v1762 = vsel %vm1759, %v1760, %v1761
    %v1763 = vrot.slane %v1183, 1
    %v1764 = vsel %vm1759, %v1761, %v1763
    %v1765 = vrot.slane %v1184, 1
    %v1766 = vsel %vm1759, %v1763, %v1765
    %v1767 = vrot.slane %v1185, 1
    %v1768 = vsel %vm1759, %v1765, %v1767
    %v1769 = vrot.slane %v1186, 1
    %v1770 = vsel %vm1759, %v1767, %v1769
    %v1771 = vrot.slane %v1187, 1
    %v1772 = vsel %vm1759, %v1769, %v1771
    %v1773 = vrot.slane %v1188, 1
    %v1774 = vsel %vm1759, %v1771, %v1773
    %v1775 = vrot.slane %v1189, 1
    %v1776 = vsel %vm1759, %v1773, %v1775
    %v1777 = vrot.slane %v1190, 1
    %v1778 = vsel %vm1759, %v1775, %v1777
    %v1779 = vrot.slane %v1191, 1
    %v1780 = vsel %vm1759, %v1777, %v1779
    %v1781 = vrot.slane %v1192, 1
    %v1782 = vsel %vm1759, %v1779, %v1781
    %v1783 = vrot.slane %v1193, 1
    %v1784 = vsel %vm1759, %v1781, %v1783
    %v1785 = vrot.slane %v1194, 1
    %v1786 = vsel %vm1759, %v1783, %v1785
    %v1787 = vrot.slane %v1195, 1
    %v1788 = vsel %vm1759, %v1785, %v1787
    %v1789 = vrot.slane %v1196, 1
    %v1790 = vsel %vm1759, %v1787, %v1789
    %v1791 = vrot.slane %v1197, 1
    %v1792 = vsel %vm1759, %v1789, %v1791
    %v1793 = vrot.slane %v1198, 1
    %v1794 = vsel %vm1759, %v1791, %v1793
    %v1795 = vrot.slane %v1199, 1
    %v1796 = vsel %vm1759, %v1793, %v1795
    %v1797 = vrot.slane %v1200, 1
    %v1798 = vsel %vm1759, %v1795, %v1797
    %v1799 = vrot.slane %v1201, 1
    %v1800 = vsel %vm1759, %v1797, %v1799
    %v1801 = vrot.slane %v1202, 1
    %v1802 = vsel %vm1759, %v1799, %v1801
    %v1803 = vrot.slane %v1203, 1
    %v1804 = vsel %vm1759, %v1801, %v1803
    %v1805 = vrot.slane %v1204, 1
    %v1806 = vsel %vm1759, %v1803, %v1805
    %v1807 = vrot.slane %v1205, 1
    %v1808 = vsel %vm1759, %v1805, %v1807
    %v1809 = vrot.slane %v1206, 1
    %v1810 = vsel %vm1759, %v1807, %v1809
    %v1811 = vrot.slane %v1207, 1
    %v1812 = vsel %vm1759, %v1809, %v1811
    %v1813 = vrot.slane %v1208, 1
    %v1814 = vsel %vm1759, %v1811, %v1813
    %v1815 = vrot.slane %v1209, 1
    %v1816 = vsel %vm1759, %v1813, %v1815
    %v1817 = vrot.slane %v1210, 1
    %v1818 = vsel %vm1759, %v1815, %v1817
    %v1819 = vrot.slane %v1211, 1
    %v1820 = vsel %vm1759, %v1817, %v1819
    %v1821 = vrot.slane %v1212, 1
    %v1822 = vsel %vm1759, %v1819, %v1821
    %v1823 = vrot.slane %v1213, 1
    %v1824 = vsel %vm1759, %v1821, %v1823
    %v1825 = vrot.slane %v1214, 1
    %v1826 = vsel %vm1759, %v1823, %v1825
    %v1827 = vrot.slane %v1215, 1
    %v1828 = vsel %vm1759, %v1825, %v1827
    %v1829 = vrot.slane %v1216, 1
    %v1830 = vsel %vm1759, %v1827, %v1829
    %v1831 = vrot.slane %v1217, 1
    %v1832 = vsel %vm1759, %v1829, %v1831
    %v1833 = vrot.slane %v1218, 1
    %v1834 = vsel %vm1759, %v1831, %v1833
    %v1835 = vrot.slane %v1219, 1
    %v1836 = vsel %vm1759, %v1833, %v1835
    %v1837 = vrot.slane %v1220, 1
    %v1838 = vsel %vm1759, %v1835, %v1837
    %v1839 = vrot.slane %v1221, 1
    %v1840 = vsel %vm1759, %v1837, %v1839
    %v1841 = vrot.slane %v1222, 1
    %v1842 = vsel %vm1759, %v1839, %v1841
    %v1843 = vrot.slane %v1223, 1
    %v1844 = vsel %vm1759, %v1841, %v1843
    %v1845 = vrot.slane %v1224, 1
    %v1846 = vsel %vm1759, %v1843, %v1845
    %v1847 = vrot.slane %v1225, 1
    %v1848 = vsel %vm1759, %v1845, %v1847
    %v1849 = vrot.slane %v1226, 1
    %v1850 = vsel %vm1759, %v1847, %v1849
    %v1851 = vrot.slane %v1227, 1
    %v1852 = vsel %vm1759, %v1849, %v1851
    %v1853 = vrot.slane %v1228, 1
    %v1854 = vsel %vm1759, %v1851, %v1853
    %v1855 = vrot.slane %v1229, 1
    %v1856 = vsel %vm1759, %v1853, %v1855
    %v1857 = vrot.slane %v1230, 1
    %v1858 = vsel %vm1759, %v1855, %v1857
    %v1859 = vrot.slane %v1231, 1
    %v1860 = vsel %vm1759, %v1857, %v1859
    %v1861 = vrot.slane %v1232, 1
    %v1862 = vsel %vm1759, %v1859, %v1861
    %v1863 = vrot.slane %v1233, 1
    %v1864 = vsel %vm1759, %v1861, %v1863
    %v1865 = vrot.slane %v1234, 1
    %v1866 = vsel %vm1759, %v1863, %v1865
    %v1867 = vrot.slane %v1235, 1
    %v1868 = vsel %vm1759, %v1865, %v1867
    %v1869 = vrot.slane %v1236, 1
    %v1870 = vsel %vm1759, %v1867, %v1869
    %v1871 = vrot.slane %v1237, 1
    %v1872 = vsel %vm1759, %v1869, %v1871
    %v1873 = vrot.slane %v1238, 1
    %v1874 = vsel %vm1759, %v1871, %v1873
    %v1875 = vrot.slane %v1239, 1
    %v1876 = vsel %vm1759, %v1873, %v1875
    %v1877 = vrot.slane %v1240, 1
    %v1878 = vsel %vm1759, %v1875, %v1877
    %v1879 = vrot.slane %v1241, 1
    %v1880 = vsel %vm1759, %v1877, %v1879
    %v1881 = vrot.slane %v1242, 1
    %v1882 = vsel %vm1759, %v1879, %v1881
    %v1883 = vrot.slane %v1243, 1
    %v1884 = vsel %vm1759, %v1881, %v1883
    %v1885 = vrot.slane %v1244, 1
    %v1886 = vsel %vm1759, %v1883, %v1885
    %v1887 = vrot.slane %v1245, 1
    %v1888 = vsel %vm1759, %v1885, %v1887
    %v1889 = vrot.slane %v1246, 1
    %v1890 = vsel %vm1759, %v1887, %v1889
    %v1891 = vrot.slane %v1247, 1
    %v1892 = vsel %vm1759, %v1889, %v1891
    %v1893 = vrot.slane %v1248, 1
    %v1894 = vsel %vm1759, %v1891, %v1893
    %v1895 = vrot.slane %v1249, 1
    %v1896 = vsel %vm1759, %v1893, %v1895
    %v1897 = vrot.slane %v1250, 1
    %v1898 = vsel %vm1759, %v1895, %v1897
    %v1899 = vrot.slane %v1251, 1
    %v1900 = vsel %vm1759, %v1897, %v1899
    %v1901 = vrot.slane %v1252, 1
    %v1902 = vsel %vm1759, %v1899, %v1901
    %v1976 = vsel %vm1759, %v1901, %v1760
    %v1977 = vsel %vm1109, 1, 0
    %v1978 = vsel %vm1110, 1, 0
    %v1979 = vsel %vm1111, 1, 0
    %v1980 = vsel %vm1112, 1, 0
    %v1981 = vsel %vm1113, 1, 0
    %v1982 = vsel %vm1114, 1, 0
    %v1983 = vsel %vm1115, 1, 0
    %v1984 = vsel %vm1116, 1, 0
    %v1985 = vsel %vm1117, 1, 0
    %v1986 = vsel %vm1118, 1, 0
    %v1987 = vsel %vm1119, 1, 0
    %v1988 = vsel %vm1120, 1, 0
    %v1989 = vsel %vm1121, 1, 0
    %v1990 = vsel %vm1122, 1, 0
    %v1991 = vsel %vm1123, 1, 0
    %v1992 = vsel %vm1124, 1, 0
    %v1993 = vsel %vm1125, 1, 0
    %v1994 = vsel %vm1126, 1, 0
    %v1995 = vsel %vm1127, 1, 0
    %v1996 = vsel %vm1128, 1, 0
    %v1997 = vsel %vm1129, 1, 0
    %v1998 = vsel %vm1130, 1, 0
    %v1999 = vsel %vm1131, 1, 0
    %v2000 = vsel %vm1132, 1, 0
    %v2001 = vsel %vm1133, 1, 0
    %v2002 = vsel %vm1134, 1, 0
    %v2003 = vsel %vm1135, 1, 0
    %v2004 = vsel %vm1136, 1, 0
    %v2005 = vsel %vm1137, 1, 0
    %v2006 = vsel %vm1138, 1, 0
    %v2007 = vsel %vm1139, 1, 0
    %v2008 = vsel %vm1140, 1, 0
    %v2009 = vsel %vm1141, 1, 0
    %v2010 = vsel %vm1142, 1, 0
    %v2011 = vsel %vm1143, 1, 0
    %v2012 = vsel %vm1144, 1, 0
    %v2013 = vsel %vm1145, 1, 0
    %v2014 = vsel %vm1146, 1, 0
    %v2015 = vsel %vm1147, 1, 0
    %v2016 = vsel %vm1148, 1, 0
    %v2017 = vsel %vm1149, 1, 0
    %v2018 = vsel %vm1150, 1, 0
    %v2019 = vsel %vm1151, 1, 0
    %v2020 = vsel %vm1152, 1, 0
    %v2021 = vsel %vm1153, 1, 0
    %v2022 = vsel %vm1154, 1, 0
    %v2023 = vsel %vm1155, 1, 0
    %v2024 = vsel %vm1156, 1, 0
    %v2025 = vsel %vm1157, 1, 0
    %v2026 = vsel %vm1158, 1, 0
    %v2027 = vsel %vm1159, 1, 0
    %v2028 = vsel %vm1160, 1, 0
    %v2029 = vsel %vm1161, 1, 0
    %v2030 = vsel %vm1162, 1, 0
    %v2031 = vsel %vm1163, 1, 0
    %v2032 = vsel %vm1164, 1, 0
    %v2033 = vsel %vm1165, 1, 0
    %v2034 = vsel %vm1166, 1, 0
    %v2035 = vsel %vm1167, 1, 0
    %v2036 = vsel %vm1168, 1, 0
    %v2037 = vsel %vm1169, 1, 0
    %v2038 = vsel %vm1170, 1, 0
    %v2039 = vsel %vm1171, 1, 0
    %v2040 = vsel %vm1172, 1, 0
    %v2041 = vsel %vm1173, 1, 0
    %v2042 = vsel %vm1174, 1, 0
    %v2043 = vsel %vm1175, 1, 0
    %v2044 = vsel %vm1176, 1, 0
    %v2045 = vsel %vm1177, 1, 0
    %v2046 = vsel %vm1178, 1, 0
    %v2047 = vsel %vm1179, 1, 0
    %v2048 = vsel %vm1180, 1, 0
    %vm2049 = vcmp.eq.s32.totalorder %v1977, 1
    %vm2050 = vcmp.eq.s32.totalorder %v1978, 1
    %vm2051 = vcmp.eq.s32.totalorder %v1979, 1
    %vm2052 = vcmp.eq.s32.totalorder %v1980, 1
    %vm2053 = vcmp.eq.s32.totalorder %v1981, 1
    %vm2054 = vcmp.eq.s32.totalorder %v1982, 1
    %vm2055 = vcmp.eq.s32.totalorder %v1983, 1
    %vm2056 = vcmp.eq.s32.totalorder %v1984, 1
    %vm2057 = vcmp.eq.s32.totalorder %v1985, 1
    %vm2058 = vcmp.eq.s32.totalorder %v1986, 1
    %vm2059 = vcmp.eq.s32.totalorder %v1987, 1
    %vm2060 = vcmp.eq.s32.totalorder %v1988, 1
    %vm2061 = vcmp.eq.s32.totalorder %v1989, 1
    %vm2062 = vcmp.eq.s32.totalorder %v1990, 1
    %vm2063 = vcmp.eq.s32.totalorder %v1991, 1
    %vm2064 = vcmp.eq.s32.totalorder %v1992, 1
    %vm2065 = vcmp.eq.s32.totalorder %v1993, 1
    %vm2066 = vcmp.eq.s32.totalorder %v1994, 1
    %vm2067 = vcmp.eq.s32.totalorder %v1995, 1
    %vm2068 = vcmp.eq.s32.totalorder %v1996, 1
    %vm2069 = vcmp.eq.s32.totalorder %v1997, 1
    %vm2070 = vcmp.eq.s32.totalorder %v1998, 1
    %vm2071 = vcmp.eq.s32.totalorder %v1999, 1
    %vm2072 = vcmp.eq.s32.totalorder %v2000, 1
    %vm2073 = vcmp.eq.s32.totalorder %v2001, 1
    %vm2074 = vcmp.eq.s32.totalorder %v2002, 1
    %vm2075 = vcmp.eq.s32.totalorder %v2003, 1
    %vm2076 = vcmp.eq.s32.totalorder %v2004, 1
    %vm2077 = vcmp.eq.s32.totalorder %v2005, 1
    %vm2078 = vcmp.eq.s32.totalorder %v2006, 1
    %vm2079 = vcmp.eq.s32.totalorder %v2007, 1
    %vm2080 = vcmp.eq.s32.totalorder %v2008, 1
    %vm2081 = vcmp.eq.s32.totalorder %v2009, 1
    %vm2082 = vcmp.eq.s32.totalorder %v2010, 1
    %vm2083 = vcmp.eq.s32.totalorder %v2011, 1
    %vm2084 = vcmp.eq.s32.totalorder %v2012, 1
    %vm2085 = vcmp.eq.s32.totalorder %v2013, 1
    %vm2086 = vcmp.eq.s32.totalorder %v2014, 1
    %vm2087 = vcmp.eq.s32.totalorder %v2015, 1
    %vm2088 = vcmp.eq.s32.totalorder %v2016, 1
    %vm2089 = vcmp.eq.s32.totalorder %v2017, 1
    %vm2090 = vcmp.eq.s32.totalorder %v2018, 1
    %vm2091 = vcmp.eq.s32.totalorder %v2019, 1
    %vm2092 = vcmp.eq.s32.totalorder %v2020, 1
    %vm2093 = vcmp.eq.s32.totalorder %v2021, 1
    %vm2094 = vcmp.eq.s32.totalorder %v2022, 1
    %vm2095 = vcmp.eq.s32.totalorder %v2023, 1
    %vm2096 = vcmp.eq.s32.totalorder %v2024, 1
    %vm2097 = vcmp.eq.s32.totalorder %v2025, 1
    %vm2098 = vcmp.eq.s32.totalorder %v2026, 1
    %vm2099 = vcmp.eq.s32.totalorder %v2027, 1
    %vm2100 = vcmp.eq.s32.totalorder %v2028, 1
    %vm2101 = vcmp.eq.s32.totalorder %v2029, 1
    %vm2102 = vcmp.eq.s32.totalorder %v2030, 1
    %vm2103 = vcmp.eq.s32.totalorder %v2031, 1
    %vm2104 = vcmp.eq.s32.totalorder %v2032, 1
    %vm2105 = vcmp.eq.s32.totalorder %v2033, 1
    %vm2106 = vcmp.eq.s32.totalorder %v2034, 1
    %vm2107 = vcmp.eq.s32.totalorder %v2035, 1
    %vm2108 = vcmp.eq.s32.totalorder %v2036, 1
    %vm2109 = vcmp.eq.s32.totalorder %v2037, 1
    %vm2110 = vcmp.eq.s32.totalorder %v2038, 1
    %vm2111 = vcmp.eq.s32.totalorder %v2039, 1
    %vm2112 = vcmp.eq.s32.totalorder %v2040, 1
    %vm2113 = vcmp.eq.s32.totalorder %v2041, 1
    %vm2114 = vcmp.eq.s32.totalorder %v2042, 1
    %vm2115 = vcmp.eq.s32.totalorder %v2043, 1
    %vm2116 = vcmp.eq.s32.totalorder %v2044, 1
    %vm2117 = vcmp.eq.s32.totalorder %v2045, 1
    %vm2118 = vcmp.eq.s32.totalorder %v2046, 1
    %vm2119 = vcmp.eq.s32.totalorder %v2047, 1
    %vm2120 = vcmp.eq.s32.totalorder %v2048, 1
    %v2121 = vsel %vm2049, %v1762, 0.0
    %v2122 = vsel %vm2050, %v1764, 0.0
    %v2123 = vsel %vm2051, %v1766, 0.0
    %v2124 = vsel %vm2052, %v1768, 0.0
    %v2125 = vsel %vm2053, %v1770, 0.0
    %v2126 = vsel %vm2054, %v1772, 0.0
    %v2127 = vsel %vm2055, %v1774, 0.0
    %v2128 = vsel %vm2056, %v1776, 0.0
    %v2129 = vsel %vm2057, %v1778, 0.0
    %v2130 = vsel %vm2058, %v1780, 0.0
    %v2131 = vsel %vm2059, %v1782, 0.0
    %v2132 = vsel %vm2060, %v1784, 0.0
    %v2133 = vsel %vm2061, %v1786, 0.0
    %v2134 = vsel %vm2062, %v1788, 0.0
    %v2135 = vsel %vm2063, %v1790, 0.0
    %v2136 = vsel %vm2064, %v1792, 0.0
    %v2137 = vsel %vm2065, %v1794, 0.0
    %v2138 = vsel %vm2066, %v1796, 0.0
    %v2139 = vsel %vm2067, %v1798, 0.0
    %v2140 = vsel %vm2068, %v1800, 0.0
    %v2141 = vsel %vm2069, %v1802, 0.0
    %v2142 = vsel %vm2070, %v1804, 0.0
    %v2143 = vsel %vm2071, %v1806, 0.0
    %v2144 = vsel %vm2072, %v1808, 0.0
    %v2145 = vsel %vm2073, %v1810, 0.0
    %v2146 = vsel %vm2074, %v1812, 0.0
    %v2147 = vsel %vm2075, %v1814, 0.0
    %v2148 = vsel %vm2076, %v1816, 0.0
    %v2149 = vsel %vm2077, %v1818, 0.0
    %v2150 = vsel %vm2078, %v1820, 0.0
    %v2151 = vsel %vm2079, %v1822, 0.0
    %v2152 = vsel %vm2080, %v1824, 0.0
    %v2153 = vsel %vm2081, %v1826, 0.0
    %v2154 = vsel %vm2082, %v1828, 0.0
    %v2155 = vsel %vm2083, %v1830, 0.0
    %v2156 = vsel %vm2084, %v1832, 0.0
    %v2157 = vsel %vm2085, %v1834, 0.0
    %v2158 = vsel %vm2086, %v1836, 0.0
    %v2159 = vsel %vm2087, %v1838, 0.0
    %v2160 = vsel %vm2088, %v1840, 0.0
    %v2161 = vsel %vm2089, %v1842, 0.0
    %v2162 = vsel %vm2090, %v1844, 0.0
    %v2163 = vsel %vm2091, %v1846, 0.0
    %v2164 = vsel %vm2092, %v1848, 0.0
    %v2165 = vsel %vm2093, %v1850, 0.0
    %v2166 = vsel %vm2094, %v1852, 0.0
    %v2167 = vsel %vm2095, %v1854, 0.0
    %v2168 = vsel %vm2096, %v1856, 0.0
    %v2169 = vsel %vm2097, %v1858, 0.0
    %v2170 = vsel %vm2098, %v1860, 0.0
    %v2171 = vsel %vm2099, %v1862, 0.0
    %v2172 = vsel %vm2100, %v1864, 0.0
    %v2173 = vsel %vm2101, %v1866, 0.0
    %v2174 = vsel %vm2102, %v1868, 0.0
    %v2175 = vsel %vm2103, %v1870, 0.0
    %v2176 = vsel %vm2104, %v1872, 0.0
    %v2177 = vsel %vm2105, %v1874, 0.0
    %v2178 = vsel %vm2106, %v1876, 0.0
    %v2179 = vsel %vm2107, %v1878, 0.0
    %v2180 = vsel %vm2108, %v1880, 0.0
    %v2181 = vsel %vm2109, %v1882, 0.0
    %v2182 = vsel %vm2110, %v1884, 0.0
    %v2183 = vsel %vm2111, %v1886, 0.0
    %v2184 = vsel %vm2112, %v1888, 0.0
    %v2185 = vsel %vm2113, %v1890, 0.0
    %v2186 = vsel %vm2114, %v1892, 0.0
    %v2187 = vsel %vm2115, %v1894, 0.0
    %v2188 = vsel %vm2116, %v1896, 0.0
    %v2189 = vsel %vm2117, %v1898, 0.0
    %v2190 = vsel %vm2118, %v1900, 0.0
    %v2191 = vsel %vm2119, %v1902, 0.0
    %v2192 = vsel %vm2120, %v1976, 0.0
    %v2193 = vld [vmem:[#allocation9] sm:$0xff]
    %v2194 = vld [vmem:[#allocation9 + $0x8] sm:$0xff]
    %v2195 = vld [vmem:[#allocation9 + $0x10] sm:$0xff]
    %v2196 = vld [vmem:[#allocation9 + $0x18] sm:$0xff]
    %v2197 = vld [vmem:[#allocation9 + $0x20] sm:$0xff]
    %v2198 = vld [vmem:[#allocation9 + $0x28] sm:$0xff]
    %v2199 = vld [vmem:[#allocation9 + $0x30] sm:$0xff]
    %v2200 = vld [vmem:[#allocation9 + $0x38] sm:$0xff]
    %v2201 = vld [vmem:[#allocation9 + $0x40] sm:$0xff]
    %v2202 = vld [vmem:[#allocation9 + $0x48] sm:$0xff]
    %v2203 = vld [vmem:[#allocation9 + $0x50] sm:$0xff]
    %v2204 = vld [vmem:[#allocation9 + $0x58] sm:$0xff]
    %v2205 = vld [vmem:[#allocation9 + $0x60] sm:$0xff]
    %v2206 = vld [vmem:[#allocation9 + $0x68] sm:$0xff]
    %v2207 = vld [vmem:[#allocation9 + $0x70] sm:$0xff]
    %v2208 = vld [vmem:[#allocation9 + $0x78] sm:$0xff]
    %v2209 = vld [vmem:[%s10] sm:$0x1]
    %v2211 = vlaneseq
    %v2212 = vshrl.u32 %v2211, 7
    %v2213 = vsub.s32 0, %v2212
    %v2214 = vrot.slane %v2209, %v2213
    %2216 = vmatprep.subr.mxu0 0.0
    %2217 = vmatpush1.msra.mxu0 %v2193
    %2218 = vmatprep.subr.mxu0 0.0
    %2219 = vmatpush1.msra.mxu0 %v2194
    %2220 = vmatprep.subr.mxu0 0.0
    %2221 = vmatpush1.msra.mxu0 %v2195
    %2222 = vmatprep.subr.mxu0 0.0
    %2223 = vmatpush1.msra.mxu0 %v2196
    %2224 = vmatprep.subr.mxu0 0.0
    %2225 = vmatpush1.msra.mxu0 %v2197
    %2226 = vmatprep.subr.mxu0 0.0
    %2227 = vmatpush1.msra.mxu0 %v2198
    %2228 = vmatprep.subr.mxu0 0.0
    %2229 = vmatpush1.msra.mxu0 %v2199
    %2230 = vmatprep.subr.mxu0 0.0
    %2231 = vmatpush1.msra.mxu0 %v2200
    %2232 = vmatprep.subr.mxu0 0.0
    %2233 = vmatpush1.msra.mxu0 %v2201
    %2234 = vmatprep.subr.mxu0 0.0
    %2235 = vmatpush1.msra.mxu0 %v2202
    %2236 = vmatprep.subr.mxu0 0.0
    %2237 = vmatpush1.msra.mxu0 %v2203
    %2238 = vmatprep.subr.mxu0 0.0
    %2239 = vmatpush1.msra.mxu0 %v2204
    %2240 = vmatprep.subr.mxu0 0.0
    %2241 = vmatpush1.msra.mxu0 %v2205
    %2242 = vmatprep.subr.mxu0 0.0
    %2243 = vmatpush1.msra.mxu0 %v2206
    %2244 = vmatprep.subr.mxu0 0.0
    %2245 = vmatpush1.msra.mxu0 %v2207
    %2246 = vmatprep.subr.mxu0 0.0
    %2247 = vmatpush1.msra.mxu0 %v2208
    %2248 = vmatprep.subr.mxu0 0.0
    %2249 = vmatpush1.msra.mxu0 0.0
    %2250 = vmatprep.subr.mxu0 0.0
    %2251 = vmatpush1.msra.mxu0 0.0
    %2252 = vmatprep.subr.mxu0 0.0
    %2253 = vmatpush1.msra.mxu0 0.0
    %2254 = vmatprep.subr.mxu0 0.0
    %2255 = vmatpush1.msra.mxu0 0.0
    %2256 = vmatprep.subr.mxu0 0.0
    %2257 = vmatpush1.msra.mxu0 0.0
    %2258 = vmatprep.subr.mxu0 0.0
    %2259 = vmatpush1.msra.mxu0 0.0
    %2260 = vmatprep.subr.mxu0 0.0
    %2261 = vmatpush1.msra.mxu0 0.0
    %2262 = vmatprep.subr.mxu0 0.0
    %2263 = vmatpush1.msra.mxu0 0.0
    %2264 = vmatprep.subr.mxu0 0.0
    %2265 = vmatpush1.msra.mxu0 0.0
    %2266 = vmatprep.subr.mxu0 0.0
    %2267 = vmatpush1.msra.mxu0 0.0
    %2268 = vmatprep.subr.mxu0 0.0
    %2269 = vmatpush1.msra.mxu0 0.0
    %2270 = vmatprep.subr.mxu0 0.0
    %2271 = vmatpush1.msra.mxu0 0.0
    %2272 = vmatprep.subr.mxu0 0.0
    %2273 = vmatpush1.msra.mxu0 0.0
    %2274 = vmatprep.subr.mxu0 0.0
    %2275 = vmatpush1.msra.mxu0 0.0
    %2276 = vmatprep.subr.mxu0 0.0
    %2277 = vmatpush1.msra.mxu0 0.0
    %2278 = vmatprep.subr.mxu0 0.0
    %2279 = vmatpush1.msra.mxu0 0.0
    %2280 = vmatprep.mubr.f32.mxu0 0.0
    %2281 = vmatmul.mubr.f32.gmra.mrb[0].mxu0 %v1183
    %v2282 = vpop.f32.mrb[0].mxu0
    %v2283 = vadd.f32 %v2214, %v2282
    %v2284 = vpop.f32.mrb[0].mxu0
    %2285 = vmatprep.mubr.f32.mxu0 0.0
    %2286 = vmatmul.mubr.f32.gmra.mrb[0].mxu0 %v1184
    %v2287 = vpop.f32.mrb[0].mxu0
    %v2288 = vadd.f32 %v2214, %v2287
    %v2289 = vpop.f32.mrb[0].mxu0
    %2290 = vmatprep.mubr.f32.mxu0 0.0
    %2291 = vmatmul.mubr.f32.gmra.mrb[0].mxu0 %v1185
    %v2292 = vpop.f32.mrb[0].mxu0
    %v2293 = vadd.f32 %v2214, %v2292
    %v2294 = vpop.f32.mrb[0].mxu0
    %2295 = vmatprep.mubr.f32.mxu0 0.0
    %2296 = vmatmul.mubr.f32.gmra.mrb[0].mxu0 %v1186
    %v2297 = vpop.f32.mrb[0].mxu0
    %v2298 = vadd.f32 %v2214, %v2297
    %v2299 = vpop.f32.mrb[0].mxu0
    %2300 = vmatprep.mubr.f32.mxu0 0.0
    %2301 = vmatmul.mubr.f32.gmra.mrb[0].mxu0 %v1187
    %v2302 = vpop.f32.mrb[0].mxu0
    %v2303 = vadd.f32 %v2214, %v2302
    %v2304 = vpop.f32.mrb[0].mxu0
    %2305 = vmatprep.mubr.f32.mxu0 0.0
    %2306 = vmatmul.mubr.f32.gmra.mrb[0].mxu0 %v1188
    %v2307 = vpop.f32.mrb[0].mxu0
    %v2308 = vadd.f32 %v2214, %v2307
    %v2309 = vpop.f32.mrb[0].mxu0
    %2310 = vmatprep.mubr.f32.mxu0 0.0
    %2311 = vmatmul.mubr.f32.gmra.mrb[0].mxu0 %v1189
    %v2312 = vpop.f32.mrb[0].mxu0
    %v2313 = vadd.f32 %v2214, %v2312
    %v2314 = vpop.f32.mrb[0].mxu0
    %2315 = vmatprep.mubr.f32.mxu0 0.0
    %2316 = vmatmul.mubr.f32.gmra.mrb[0].mxu0 %v1190
    %v2317 = vpop.f32.mrb[0].mxu0
    %v2318 = vadd.f32 %v2214, %v2317
    %v2319 = vpop.f32.mrb[0].mxu0
    %2320 = vmatprep.mubr.f32.mxu0 0.0
    %2321 = vmatmul.mubr.f32.gmra.mrb[0].mxu0 %v1191
    %v2322 = vpop.f32.mrb[0].mxu0
    %v2323 = vadd.f32 %v2214, %v2322
    %v2324 = vpop.f32.mrb[0].mxu0
    %2325 = vmatprep.mubr.f32.mxu0 0.0
    %2326 = vmatmul.mubr.f32.gmra.mrb[0].mxu0 %v1192
    %v2327 = vpop.f32.mrb[0].mxu0
    %v2328 = vadd.f32 %v2214, %v2327
    %v2329 = vpop.f32.mrb[0].mxu0
    %2330 = vmatprep.mubr.f32.mxu0 0.0
    %2331 = vmatmul.mubr.f32.gmra.mrb[0].mxu0 %v1193
    %v2332 = vpop.f32.mrb[0].mxu0
    %v2333 = vadd.f32 %v2214, %v2332
    %v2334 = vpop.f32.mrb[0].mxu0
    %2335 = vmatprep.mubr.f32.mxu0 0.0
    %2336 = vmatmul.mubr.f32.gmra.mrb[0].mxu0 %v1194
    %v2337 = vpop.f32.mrb[0].mxu0
    %v2338 = vadd.f32 %v2214, %v2337
    %v2339 = vpop.f32.mrb[0].mxu0
    %2340 = vmatprep.mubr.f32.mxu0 0.0
    %2341 = vmatmul.mubr.f32.gmra.mrb[0].mxu0 %v1195
    %v2342 = vpop.f32.mrb[0].mxu0
    %v2343 = vadd.f32 %v2214, %v2342
    %v2344 = vpop.f32.mrb[0].mxu0
    %2345 = vmatprep.mubr.f32.mxu0 0.0
    %2346 = vmatmul.mubr.f32.gmra.mrb[0].mxu0 %v1196
    %v2347 = vpop.f32.mrb[0].mxu0
    %v2348 = vadd.f32 %v2214, %v2347
    %v2349 = vpop.f32.mrb[0].mxu0
    %2350 = vmatprep.mubr.f32.mxu0 0.0
    %2351 = vmatmul.mubr.f32.gmra.mrb[0].mxu0 %v1197
    %v2352 = vpop.f32.mrb[0].mxu0
    %v2353 = vadd.f32 %v2214, %v2352
    %v2354 = vpop.f32.mrb[0].mxu0
    %2355 = vmatprep.mubr.f32.mxu0 0.0
    %2356 = vmatmul.mubr.f32.gmra.mrb[0].mxu0 %v1198
    %v2357 = vpop.f32.mrb[0].mxu0
    %v2358 = vadd.f32 %v2214, %v2357
    %v2359 = vpop.f32.mrb[0].mxu0
    %2360 = vmatprep.mubr.f32.mxu0 0.0
    %2361 = vmatmul.mubr.f32.gmra.mrb[0].mxu0 %v1199
    %v2362 = vpop.f32.mrb[0].mxu0
    %v2363 = vadd.f32 %v2214, %v2362
    %v2364 = vpop.f32.mrb[0].mxu0
    %2365 = vmatprep.mubr.f32.mxu0 0.0
    %2366 = vmatmul.mubr.f32.gmra.mrb[0].mxu0 %v1200
    %v2367 = vpop.f32.mrb[0].mxu0
    %v2368 = vadd.f32 %v2214, %v2367
    %v2369 = vpop.f32.mrb[0].mxu0
    %2370 = vmatprep.mubr.f32.mxu0 0.0
    %2371 = vmatmul.mubr.f32.gmra.mrb[0].mxu0 %v1201
    %v2372 = vpop.f32.mrb[0].mxu0
    %v2373 = vadd.f32 %v2214, %v2372
    %v2374 = vpop.f32.mrb[0].mxu0
    %2375 = vmatprep.mubr.f32.mxu0 0.0
    %2376 = vmatmul.mubr.f32.gmra.mrb[0].mxu0 %v1202
    %v2377 = vpop.f32.mrb[0].mxu0
    %v2378 = vadd.f32 %v2214, %v2377
    %v2379 = vpop.f32.mrb[0].mxu0
    %2380 = vmatprep.mubr.f32.mxu0 0.0
    %2381 = vmatmul.mubr.f32.gmra.mrb[0].mxu0 %v1203
    %v2382 = vpop.f32.mrb[0].mxu0
    %v2383 = vadd.f32 %v2214, %v2382
    %v2384 = vpop.f32.mrb[0].mxu0
    %2385 = vmatprep.mubr.f32.mxu0 0.0
    %2386 = vmatmul.mubr.f32.gmra.mrb[0].mxu0 %v1204
    %v2387 = vpop.f32.mrb[0].mxu0
    %v2388 = vadd.f32 %v2214, %v2387
    %v2389 = vpop.f32.mrb[0].mxu0
    %2390 = vmatprep.mubr.f32.mxu0 0.0
    %2391 = vmatmul.mubr.f32.gmra.mrb[0].mxu0 %v1205
    %v2392 = vpop.f32.mrb[0].mxu0
    %v2393 = vadd.f32 %v2214, %v2392
    %v2394 = vpop.f32.mrb[0].mxu0
    %2395 = vmatprep.mubr.f32.mxu0 0.0
    %2396 = vmatmul.mubr.f32.gmra.mrb[0].mxu0 %v1206
    %v2397 = vpop.f32.mrb[0].mxu0
    %v2398 = vadd.f32 %v2214, %v2397
    %v2399 = vpop.f32.mrb[0].mxu0
    %2400 = vmatprep.mubr.f32.mxu0 0.0
    %2401 = vmatmul.mubr.f32.gmra.mrb[0].mxu0 %v1207
    %v2402 = vpop.f32.mrb[0].mxu0
    %v2403 = vadd.f32 %v2214, %v2402
    %v2404 = vpop.f32.mrb[0].mxu0
    %2405 = vmatprep.mubr.f32.mxu0 0.0
    %2406 = vmatmul.mubr.f32.gmra.mrb[0].mxu0 %v1208
    %v2407 = vpop.f32.mrb[0].mxu0
    %v2408 = vadd.f32 %v2214, %v2407
    %v2409 = vpop.f32.mrb[0].mxu0
    %2410 = vmatprep.mubr.f32.mxu0 0.0
    %2411 = vmatmul.mubr.f32.gmra.mrb[0].mxu0 %v1209
    %v2412 = vpop.f32.mrb[0].mxu0
    %v2413 = vadd.f32 %v2214, %v2412
    %v2414 = vpop.f32.mrb[0].mxu0
    %2415 = vmatprep.mubr.f32.mxu0 0.0
    %2416 = vmatmul.mubr.f32.gmra.mrb[0].mxu0 %v1210
    %v2417 = vpop.f32.mrb[0].mxu0
    %v2418 = vadd.f32 %v2214, %v2417
    %v2419 = vpop.f32.mrb[0].mxu0
    %2420 = vmatprep.mubr.f32.mxu0 0.0
    %2421 = vmatmul.mubr.f32.gmra.mrb[0].mxu0 %v1211
    %v2422 = vpop.f32.mrb[0].mxu0
    %v2423 = vadd.f32 %v2214, %v2422
    %v2424 = vpop.f32.mrb[0].mxu0
    %2425 = vmatprep.mubr.f32.mxu0 0.0
    %2426 = vmatmul.mubr.f32.gmra.mrb[0].mxu0 %v1212
    %v2427 = vpop.f32.mrb[0].mxu0
    %v2428 = vadd.f32 %v2214, %v2427
    %v2429 = vpop.f32.mrb[0].mxu0
    %2430 = vmatprep.mubr.f32.mxu0 0.0
    %2431 = vmatmul.mubr.f32.gmra.mrb[0].mxu0 %v1213
    %v2432 = vpop.f32.mrb[0].mxu0
    %v2433 = vadd.f32 %v2214, %v2432
    %v2434 = vpop.f32.mrb[0].mxu0
    %2435 = vmatprep.mubr.f32.mxu0 0.0
    %2436 = vmatmul.mubr.f32.gmra.mrb[0].mxu0 %v1214
    %v2437 = vpop.f32.mrb[0].mxu0
    %v2438 = vadd.f32 %v2214, %v2437
    %v2439 = vpop.f32.mrb[0].mxu0
    %2440 = vmatprep.mubr.f32.mxu0 0.0
    %2441 = vmatmul.mubr.f32.gmra.mrb[0].mxu0 %v1219
    %v2442 = vpop.f32.mrb[0].mxu0
    %v2443 = vadd.f32 %v2214, %v2442
    %v2444 = vpop.f32.mrb[0].mxu0
    %2445 = vmatprep.mubr.f32.mxu0 0.0
    %2446 = vmatmul.mubr.f32.gmra.mrb[0].mxu0 %v1220
    %v2447 = vpop.f32.mrb[0].mxu0
    %v2448 = vadd.f32 %v2214, %v2447
    %v2449 = vpop.f32.mrb[0].mxu0
    %2450 = vmatprep.mubr.f32.mxu0 0.0
    %2451 = vmatmul.mubr.f32.gmra.mrb[0].mxu0 %v1221
    %v2452 = vpop.f32.mrb[0].mxu0
    %v2453 = vadd.f32 %v2214, %v2452
    %v2454 = vpop.f32.mrb[0].mxu0
    %2455 = vmatprep.mubr.f32.mxu0 0.0
    %2456 = vmatmul.mubr.f32.gmra.mrb[0].mxu0 %v1222
    %v2457 = vpop.f32.mrb[0].mxu0
    %v2458 = vadd.f32 %v2214, %v2457
    %v2459 = vpop.f32.mrb[0].mxu0
    %2460 = vmatprep.mubr.f32.mxu0 0.0
    %2461 = vmatmul.mubr.f32.gmra.mrb[0].mxu0 %v1223
    %v2462 = vpop.f32.mrb[0].mxu0
    %v2463 = vadd.f32 %v2214, %v2462
    %v2464 = vpop.f32.mrb[0].mxu0
    %2465 = vmatprep.mubr.f32.mxu0 0.0
    %2466 = vmatmul.mubr.f32.gmra.mrb[0].mxu0 %v1224
    %v2467 = vpop.f32.mrb[0].mxu0
    %v2468 = vadd.f32 %v2214, %v2467
    %v2469 = vpop.f32.mrb[0].mxu0
    %2470 = vmatprep.mubr.f32.mxu0 0.0
    %2471 = vmatmul.mubr.f32.gmra.mrb[0].mxu0 %v1225
    %v2472 = vpop.f32.mrb[0].mxu0
    %v2473 = vadd.f32 %v2214, %v2472
    %v2474 = vpop.f32.mrb[0].mxu0
    %2475 = vmatprep.mubr.f32.mxu0 0.0
    %2476 = vmatmul.mubr.f32.gmra.mrb[0].mxu0 %v1226
    %v2477 = vpop.f32.mrb[0].mxu0
    %v2478 = vadd.f32 %v2214, %v2477
    %v2479 = vpop.f32.mrb[0].mxu0
    %2480 = vmatprep.mubr.f32.mxu0 0.0
    %2481 = vmatmul.mubr.f32.gmra.mrb[0].mxu0 %v1227
    %v2482 = vpop.f32.mrb[0].mxu0
    %v2483 = vadd.f32 %v2214, %v2482
    %v2484 = vpop.f32.mrb[0].mxu0
    %2485 = vmatprep.mubr.f32.mxu0 0.0
    %2486 = vmatmul.mubr.f32.gmra.mrb[0].mxu0 %v1228
    %v2487 = vpop.f32.mrb[0].mxu0
    %v2488 = vadd.f32 %v2214, %v2487
    %v2489 = vpop.f32.mrb[0].mxu0
    %2490 = vmatprep.mubr.f32.mxu0 0.0
    %2491 = vmatmul.mubr.f32.gmra.mrb[0].mxu0 %v1229
    %v2492 = vpop.f32.mrb[0].mxu0
    %v2493 = vadd.f32 %v2214, %v2492
    %v2494 = vpop.f32.mrb[0].mxu0
    %2495 = vmatprep.mubr.f32.mxu0 0.0
    %2496 = vmatmul.mubr.f32.gmra.mrb[0].mxu0 %v1230
    %v2497 = vpop.f32.mrb[0].mxu0
    %v2498 = vadd.f32 %v2214, %v2497
    %v2499 = vpop.f32.mrb[0].mxu0
    %2500 = vmatprep.mubr.f32.mxu0 0.0
    %2501 = vmatmul.mubr.f32.gmra.mrb[0].mxu0 %v1231
    %v2502 = vpop.f32.mrb[0].mxu0
    %v2503 = vadd.f32 %v2214, %v2502
    %v2504 = vpop.f32.mrb[0].mxu0
    %2505 = vmatprep.mubr.f32.mxu0 0.0
    %2506 = vmatmul.mubr.f32.gmra.mrb[0].mxu0 %v1232
    %v2507 = vpop.f32.mrb[0].mxu0
    %v2508 = vadd.f32 %v2214, %v2507
    %v2509 = vpop.f32.mrb[0].mxu0
    %2510 = vmatprep.mubr.f32.mxu0 0.0
    %2511 = vmatmul.mubr.f32.gmra.mrb[0].mxu0 %v1233
    %v2512 = vpop.f32.mrb[0].mxu0
    %v2513 = vadd.f32 %v2214, %v2512
    %v2514 = vpop.f32.mrb[0].mxu0
    %2515 = vmatprep.mubr.f32.mxu0 0.0
    %2516 = vmatmul.mubr.f32.gmra.mrb[0].mxu0 %v1234
    %v2517 = vpop.f32.mrb[0].mxu0
    %v2518 = vadd.f32 %v2214, %v2517
    %v2519 = vpop.f32.mrb[0].mxu0
    %2520 = vmatprep.mubr.f32.mxu0 0.0
    %2521 = vmatmul.mubr.f32.gmra.mrb[0].mxu0 %v1235
    %v2522 = vpop.f32.mrb[0].mxu0
    %v2523 = vadd.f32 %v2214, %v2522
    %v2524 = vpop.f32.mrb[0].mxu0
    %2525 = vmatprep.mubr.f32.mxu0 0.0
    %2526 = vmatmul.mubr.f32.gmra.mrb[0].mxu0 %v1236
    %v2527 = vpop.f32.mrb[0].mxu0
    %v2528 = vadd.f32 %v2214, %v2527
    %v2529 = vpop.f32.mrb[0].mxu0
    %2530 = vmatprep.mubr.f32.mxu0 0.0
    %2531 = vmatmul.mubr.f32.gmra.mrb[0].mxu0 %v1237
    %v2532 = vpop.f32.mrb[0].mxu0
    %v2533 = vadd.f32 %v2214, %v2532
    %v2534 = vpop.f32.mrb[0].mxu0
    %2535 = vmatprep.mubr.f32.mxu0 0.0
    %2536 = vmatmul.mubr.f32.gmra.mrb[0].mxu0 %v1238
    %v2537 = vpop.f32.mrb[0].mxu0
    %v2538 = vadd.f32 %v2214, %v2537
    %v2539 = vpop.f32.mrb[0].mxu0
    %2540 = vmatprep.mubr.f32.mxu0 0.0
    %2541 = vmatmul.mubr.f32.gmra.mrb[0].mxu0 %v1239
    %v2542 = vpop.f32.mrb[0].mxu0
    %v2543 = vadd.f32 %v2214, %v2542
    %v2544 = vpop.f32.mrb[0].mxu0
    %2545 = vmatprep.mubr.f32.mxu0 0.0
    %2546 = vmatmul.mubr.f32.gmra.mrb[0].mxu0 %v1240
    %v2547 = vpop.f32.mrb[0].mxu0
    %v2548 = vadd.f32 %v2214, %v2547
    %v2549 = vpop.f32.mrb[0].mxu0
    %2550 = vmatprep.mubr.f32.mxu0 0.0
    %2551 = vmatmul.mubr.f32.gmra.mrb[0].mxu0 %v1241
    %v2552 = vpop.f32.mrb[0].mxu0
    %v2553 = vadd.f32 %v2214, %v2552
    %v2554 = vpop.f32.mrb[0].mxu0
    %2555 = vmatprep.mubr.f32.mxu0 0.0
    %2556 = vmatmul.mubr.f32.gmra.mrb[0].mxu0 %v1242
    %v2557 = vpop.f32.mrb[0].mxu0
    %v2558 = vadd.f32 %v2214, %v2557
    %v2559 = vpop.f32.mrb[0].mxu0
    %2560 = vmatprep.mubr.f32.mxu0 0.0
    %2561 = vmatmul.mubr.f32.gmra.mrb[0].mxu0 %v1243
    %v2562 = vpop.f32.mrb[0].mxu0
    %v2563 = vadd.f32 %v2214, %v2562
    %v2564 = vpop.f32.mrb[0].mxu0
    %2565 = vmatprep.mubr.f32.mxu0 0.0
    %2566 = vmatmul.mubr.f32.gmra.mrb[0].mxu0 %v1244
    %v2567 = vpop.f32.mrb[0].mxu0
    %v2568 = vadd.f32 %v2214, %v2567
    %v2569 = vpop.f32.mrb[0].mxu0
    %2570 = vmatprep.mubr.f32.mxu0 0.0
    %2571 = vmatmul.mubr.f32.gmra.mrb[0].mxu0 %v1245
    %v2572 = vpop.f32.mrb[0].mxu0
    %v2573 = vadd.f32 %v2214, %v2572
    %v2574 = vpop.f32.mrb[0].mxu0
    %2575 = vmatprep.mubr.f32.mxu0 0.0
    %2576 = vmatmul.mubr.f32.gmra.mrb[0].mxu0 %v1246
    %v2577 = vpop.f32.mrb[0].mxu0
    %v2578 = vadd.f32 %v2214, %v2577
    %v2579 = vpop.f32.mrb[0].mxu0
    %2580 = vmatprep.mubr.f32.mxu0 0.0
    %2581 = vmatmul.mubr.f32.gmra.mrb[0].mxu0 %v1247
    %v2582 = vpop.f32.mrb[0].mxu0
    %v2583 = vadd.f32 %v2214, %v2582
    %v2584 = vpop.f32.mrb[0].mxu0
    %2585 = vmatprep.mubr.f32.mxu0 0.0
    %2586 = vmatmul.mubr.f32.gmra.mrb[0].mxu0 %v1248
    %v2587 = vpop.f32.mrb[0].mxu0
    %v2588 = vadd.f32 %v2214, %v2587
    %v2589 = vpop.f32.mrb[0].mxu0
    %2590 = vmatprep.mubr.f32.mxu0 0.0
    %2591 = vmatmul.mubr.f32.gmra.mrb[0].mxu0 %v1249
    %v2592 = vpop.f32.mrb[0].mxu0
    %v2593 = vadd.f32 %v2214, %v2592
    %v2594 = vpop.f32.mrb[0].mxu0
    %2595 = vmatprep.mubr.f32.mxu0 0.0
    %2596 = vmatmul.mubr.f32.gmra.mrb[0].mxu0 %v1250
    %v2597 = vpop.f32.mrb[0].mxu0
    %v2598 = vadd.f32 %v2214, %v2597
    %v2599 = vpop.f32.mrb[0].mxu0
    %2600 = vdwg.mxu0
    %v2601 = vadd.f32 %v2283, %v2288
    %v2602 = vadd.f32 %v2601, %v2293
    %v2603 = vadd.f32 %v2602, %v2298
    %v2604 = vadd.f32 %v2603, %v2303
    %v2605 = vadd.f32 %v2604, %v2308
    %v2606 = vadd.f32 %v2605, %v2313
    %v2607 = vadd.f32 %v2606, %v2318
    %v2608 = vadd.f32 %v2607, %v2323
    %v2609 = vadd.f32 %v2608, %v2328
    %v2610 = vadd.f32 %v2609, %v2333
    %v2611 = vadd.f32 %v2610, %v2338
    %v2612 = vadd.f32 %v2611, %v2343
    %v2613 = vadd.f32 %v2612, %v2348
    %v2614 = vadd.f32 %v2613, %v2353
    %v2615 = vadd.f32 %v2614, %v2358
    %v2616 = vadd.f32 %v2615, %v2363
    %v2617 = vadd.f32 %v2616, %v2368
    %v2618 = vadd.f32 %v2617, %v2373
    %v2619 = vadd.f32 %v2618, %v2378
    %v2620 = vadd.f32 %v2619, %v2383
    %v2621 = vadd.f32 %v2620, %v2388
    %v2622 = vadd.f32 %v2621, %v2393
    %v2623 = vadd.f32 %v2622, %v2398
    %v2624 = vadd.f32 %v2623, %v2403
    %v2625 = vadd.f32 %v2624, %v2408
    %v2626 = vadd.f32 %v2625, %v2413
    %v2627 = vadd.f32 %v2626, %v2418
    %v2628 = vadd.f32 %v2627, %v2423
    %v2629 = vadd.f32 %v2628, %v2428
    %v2630 = vadd.f32 %v2629, %v2433
    %v2631 = vadd.f32 %v2630, %v2438
    %v2632 = vadd.f32 %v2631, %v2443
    %v2633 = vadd.f32 %v2632, %v2448
    %v2634 = vadd.f32 %v2633, %v2453
    %v2635 = vadd.f32 %v2634, %v2458
    %v2636 = vadd.f32 %v2635, %v2463
    %v2637 = vadd.f32 %v2636, %v2468
    %v2638 = vadd.f32 %v2637, %v2473
    %v2639 = vadd.f32 %v2638, %v2478
    %v2640 = vadd.f32 %v2639, %v2483
    %v2641 = vadd.f32 %v2640, %v2488
    %v2642 = vadd.f32 %v2641, %v2493
    %v2643 = vadd.f32 %v2642, %v2498
    %v2644 = vadd.f32 %v2643, %v2503
    %v2645 = vadd.f32 %v2644, %v2508
    %v2646 = vadd.f32 %v2645, %v2513
    %v2647 = vadd.f32 %v2646, %v2518
    %v2648 = vadd.f32 %v2647, %v2523
    %v2649 = vadd.f32 %v2648, %v2528
    %v2650 = vadd.f32 %v2649, %v2533
    %v2651 = vadd.f32 %v2650, %v2538
    %v2652 = vadd.f32 %v2651, %v2543
    %v2653 = vadd.f32 %v2652, %v2548
    %v2654 = vadd.f32 %v2653, %v2553
    %v2655 = vadd.f32 %v2654, %v2558
    %v2656 = vadd.f32 %v2655, %v2563
    %v2657 = vadd.f32 %v2656, %v2568
    %v2658 = vadd.f32 %v2657, %v2573
    %v2659 = vadd.f32 %v2658, %v2578
    %v2660 = vadd.f32 %v2659, %v2583
    %v2661 = vadd.f32 %v2660, %v2588
    %v2662 = vadd.f32 %v2661, %v2593
    %v2663 = vadd.f32 %v2662, %v2598
    %v2664 = vrot.slane %v2663, 4
    %v2665 = vadd.f32 %v2663, %v2664
    %v2666 = vrot.slane %v2665, 2
    %v2667 = vadd.f32 %v2665, %v2666
    %v2668 = vrot.slane %v2667, 1
    %v2669 = vadd.f32 %v2667, %v2668
    %v2670 = vmul.f32 %v2283, %v2283
    %v2671 = vmul.f32 %v2288, %v2288
    %v2672 = vmul.f32 %v2293, %v2293
    %v2673 = vmul.f32 %v2298, %v2298
    %v2674 = vmul.f32 %v2303, %v2303
    %v2675 = vmul.f32 %v2308, %v2308
    %v2676 = vmul.f32 %v2313, %v2313
    %v2677 = vmul.f32 %v2318, %v2318
    %v2678 = vmul.f32 %v2323, %v2323
    %v2679 = vmul.f32 %v2328, %v2328
    %v2680 = vmul.f32 %v2333, %v2333
    %v2681 = vmul.f32 %v2338, %v2338
    %v2682 = vmul.f32 %v2343, %v2343
    %v2683 = vmul.f32 %v2348, %v2348
    %v2684 = vmul.f32 %v2353, %v2353
    %v2685 = vmul.f32 %v2358, %v2358
    %v2686 = vmul.f32 %v2363, %v2363
    %v2687 = vmul.f32 %v2368, %v2368
    %v2688 = vmul.f32 %v2373, %v2373
    %v2689 = vmul.f32 %v2378, %v2378
    %v2690 = vmul.f32 %v2383, %v2383
    %v2691 = vmul.f32 %v2388, %v2388
    %v2692 = vmul.f32 %v2393, %v2393
    %v2693 = vmul.f32 %v2398, %v2398
    %v2694 = vmul.f32 %v2403, %v2403
    %v2695 = vmul.f32 %v2408, %v2408
    %v2696 = vmul.f32 %v2413, %v2413
    %v2697 = vmul.f32 %v2418, %v2418
    %v2698 = vmul.f32 %v2423, %v2423
    %v2699 = vmul.f32 %v2428, %v2428
    %v2700 = vmul.f32 %v2433, %v2433
    %v2701 = vmul.f32 %v2438, %v2438
    %v2702 = vmul.f32 %v2443, %v2443
    %v2703 = vmul.f32 %v2448, %v2448
    %v2704 = vmul.f32 %v2453, %v2453
    %v2705 = vmul.f32 %v2458, %v2458
    %v2706 = vmul.f32 %v2463, %v2463
    %v2707 = vmul.f32 %v2468, %v2468
    %v2708 = vmul.f32 %v2473, %v2473
    %v2709 = vmul.f32 %v2478, %v2478
    %v2710 = vmul.f32 %v2483, %v2483
    %v2711 = vmul.f32 %v2488, %v2488
    %v2712 = vmul.f32 %v2493, %v2493
    %v2713 = vmul.f32 %v2498, %v2498
    %v2714 = vmul.f32 %v2503, %v2503
    %v2715 = vmul.f32 %v2508, %v2508
    %v2716 = vmul.f32 %v2513, %v2513
    %v2717 = vmul.f32 %v2518, %v2518
    %v2718 = vmul.f32 %v2523, %v2523
    %v2719 = vmul.f32 %v2528, %v2528
    %v2720 = vmul.f32 %v2533, %v2533
    %v2721 = vmul.f32 %v2538, %v2538
    %v2722 = vmul.f32 %v2543, %v2543
    %v2723 = vmul.f32 %v2548, %v2548
    %v2724 = vmul.f32 %v2553, %v2553
    %v2725 = vmul.f32 %v2558, %v2558
    %v2726 = vmul.f32 %v2563, %v2563
    %v2727 = vmul.f32 %v2568, %v2568
    %v2728 = vmul.f32 %v2573, %v2573
    %v2729 = vmul.f32 %v2578, %v2578
    %v2730 = vmul.f32 %v2583, %v2583
    %v2731 = vmul.f32 %v2588, %v2588
    %v2732 = vmul.f32 %v2593, %v2593
    %v2733 = vmul.f32 %v2598, %v2598
    %v2734 = vadd.f32 %v2670, %v2671
    %v2735 = vadd.f32 %v2734, %v2672
    %v2736 = vadd.f32 %v2735, %v2673
    %v2737 = vadd.f32 %v2736, %v2674
    %v2738 = vadd.f32 %v2737, %v2675
    %v2739 = vadd.f32 %v2738, %v2676
    %v2740 = vadd.f32 %v2739, %v2677
    %v2741 = vadd.f32 %v2740, %v2678
    %v2742 = vadd.f32 %v2741, %v2679
    %v2743 = vadd.f32 %v2742, %v2680
    %v2744 = vadd.f32 %v2743, %v2681
    %v2745 = vadd.f32 %v2744, %v2682
    %v2746 = vadd.f32 %v2745, %v2683
    %v2747 = vadd.f32 %v2746, %v2684
    %v2748 = vadd.f32 %v2747, %v2685
    %v2749 = vadd.f32 %v2748, %v2686
    %v2750 = vadd.f32 %v2749, %v2687
    %v2751 = vadd.f32 %v2750, %v2688
    %v2752 = vadd.f32 %v2751, %v2689
    %v2753 = vadd.f32 %v2752, %v2690
    %v2754 = vadd.f32 %v2753, %v2691
    %v2755 = vadd.f32 %v2754, %v2692
    %v2756 = vadd.f32 %v2755, %v2693
    %v2757 = vadd.f32 %v2756, %v2694
    %v2758 = vadd.f32 %v2757, %v2695
    %v2759 = vadd.f32 %v2758, %v2696
    %v2760 = vadd.f32 %v2759, %v2697
    %v2761 = vadd.f32 %v2760, %v2698
    %v2762 = vadd.f32 %v2761, %v2699
    %v2763 = vadd.f32 %v2762, %v2700
    %v2764 = vadd.f32 %v2763, %v2701
    %v2765 = vadd.f32 %v2764, %v2702
    %v2766 = vadd.f32 %v2765, %v2703
    %v2767 = vadd.f32 %v2766, %v2704
    %v2768 = vadd.f32 %v2767, %v2705
    %v2769 = vadd.f32 %v2768, %v2706
    %v2770 = vadd.f32 %v2769, %v2707
    %v2771 = vadd.f32 %v2770, %v2708
    %v2772 = vadd.f32 %v2771, %v2709
    %v2773 = vadd.f32 %v2772, %v2710
    %v2774 = vadd.f32 %v2773, %v2711
    %v2775 = vadd.f32 %v2774, %v2712
    %v2776 = vadd.f32 %v2775, %v2713
    %v2777 = vadd.f32 %v2776, %v2714
    %v2778 = vadd.f32 %v2777, %v2715
    %v2779 = vadd.f32 %v2778, %v2716
    %v2780 = vadd.f32 %v2779, %v2717
    %v2781 = vadd.f32 %v2780, %v2718
    %v2782 = vadd.f32 %v2781, %v2719
    %v2783 = vadd.f32 %v2782, %v2720
    %v2784 = vadd.f32 %v2783, %v2721
    %v2785 = vadd.f32 %v2784, %v2722
    %v2786 = vadd.f32 %v2785, %v2723
    %v2787 = vadd.f32 %v2786, %v2724
    %v2788 = vadd.f32 %v2787, %v2725
    %v2789 = vadd.f32 %v2788, %v2726
    %v2790 = vadd.f32 %v2789, %v2727
    %v2791 = vadd.f32 %v2790, %v2728
    %v2792 = vadd.f32 %v2791, %v2729
    %v2793 = vadd.f32 %v2792, %v2730
    %v2794 = vadd.f32 %v2793, %v2731
    %v2795 = vadd.f32 %v2794, %v2732
    %v2796 = vadd.f32 %v2795, %v2733
    %v2797 = vrot.slane %v2796, 4
    %v2798 = vadd.f32 %v2796, %v2797
    %v2799 = vrot.slane %v2798, 2
    %v2800 = vadd.f32 %v2798, %v2799
    %v2801 = vrot.slane %v2800, 1
    %v2802 = vadd.f32 %v2800, %v2801
    %v2803 = vmul.f32 %v2669, 0.001953125
    %v2804 = vmul.f32 %v2802, 0.001953125
    %v2805 = vmul.f32 %v2803, %v2803
    %v2806 = vsub.f32 %v2804, %v2805
    %v2807 = vmax.f32 %v2806, 0.0
    %v2808 = vadd.f32 %v2807, 1e-05
    %v2809 = vrsqrt.pop %v2808
    %v2810 = vld [vmem:[%s11] sm:$0x1]
    %v2811 = vmul.f32 %v2809, %v2810
    %v2812 = vsub.f32 %v2283, %v2803
    %v2813 = vsub.f32 %v2288, %v2803
    %v2814 = vsub.f32 %v2293, %v2803
    %v2815 = vsub.f32 %v2298, %v2803
    %v2816 = vsub.f32 %v2303, %v2803
    %v2817 = vsub.f32 %v2308, %v2803
    %v2818 = vsub.f32 %v2313, %v2803
    %v2819 = vsub.f32 %v2318, %v2803
    %v2820 = vsub.f32 %v2323, %v2803
    %v2821 = vsub.f32 %v2328, %v2803
    %v2822 = vsub.f32 %v2333, %v2803
    %v2823 = vsub.f32 %v2338, %v2803
    %v2824 = vsub.f32 %v2343, %v2803
    %v2825 = vsub.f32 %v2348, %v2803
    %v2826 = vsub.f32 %v2353, %v2803
    %v2827 = vsub.f32 %v2358, %v2803
    %v2828 = vsub.f32 %v2363, %v2803
    %v2829 = vsub.f32 %v2368, %v2803
    %v2830 = vsub.f32 %v2373, %v2803
    %v2831 = vsub.f32 %v2378, %v2803
    %v2832 = vsub.f32 %v2383, %v2803
    %v2833 = vsub.f32 %v2388, %v2803
    %v2834 = vsub.f32 %v2393, %v2803
    %v2835 = vsub.f32 %v2398, %v2803
    %v2836 = vsub.f32 %v2403, %v2803
    %v2837 = vsub.f32 %v2408, %v2803
    %v2838 = vsub.f32 %v2413, %v2803
    %v2839 = vsub.f32 %v2418, %v2803
    %v2840 = vsub.f32 %v2423, %v2803
    %v2841 = vsub.f32 %v2428, %v2803
    %v2842 = vsub.f32 %v2433, %v2803
    %v2843 = vsub.f32 %v2438, %v2803
    %v2844 = vsub.f32 %v2443, %v2803
    %v2845 = vsub.f32 %v2448, %v2803
    %v2846 = vsub.f32 %v2453, %v2803
    %v2847 = vsub.f32 %v2458, %v2803
    %v2848 = vsub.f32 %v2463, %v2803
    %v2849 = vsub.f32 %v2468, %v2803
    %v2850 = vsub.f32 %v2473, %v2803
    %v2851 = vsub.f32 %v2478, %v2803
    %v2852 = vsub.f32 %v2483, %v2803
    %v2853 = vsub.f32 %v2488, %v2803
    %v2854 = vsub.f32 %v2493, %v2803
    %v2855 = vsub.f32 %v2498, %v2803
    %v2856 = vsub.f32 %v2503, %v2803
    %v2857 = vsub.f32 %v2508, %v2803
    %v2858 = vsub.f32 %v2513, %v2803
    %v2859 = vsub.f32 %v2518, %v2803
    %v2860 = vsub.f32 %v2523, %v2803
    %v2861 = vsub.f32 %v2528, %v2803
    %v2862 = vsub.f32 %v2533, %v2803
    %v2863 = vsub.f32 %v2538, %v2803
    %v2864 = vsub.f32 %v2543, %v2803
    %v2865 = vsub.f32 %v2548, %v2803
    %v2866 = vsub.f32 %v2553, %v2803
    %v2867 = vsub.f32 %v2558, %v2803
    %v2868 = vsub.f32 %v2563, %v2803
    %v2869 = vsub.f32 %v2568, %v2803
    %v2870 = vsub.f32 %v2573, %v2803
    %v2871 = vsub.f32 %v2578, %v2803
    %v2872 = vsub.f32 %v2583, %v2803
    %v2873 = vsub.f32 %v2588, %v2803
    %v2874 = vsub.f32 %v2593, %v2803
    %v2875 = vsub.f32 %v2598, %v2803
    %v2876 = vlaneseq
    %v2877 = vshrl.u32 %v2876, 7
    %v2878 = vsub.s32 0, %v2877
    %v2879 = vrot.slane %v2811, %v2878
    %v2880 = vmul.f32 %v2812, %v2879
    %v2881 = vmul.f32 %v2813, %v2879
    %v2882 = vmul.f32 %v2814, %v2879
    %v2883 = vmul.f32 %v2815, %v2879
    %v2884 = vmul.f32 %v2816, %v2879
    %v2885 = vmul.f32 %v2817, %v2879
    %v2886 = vmul.f32 %v2818, %v2879
    %v2887 = vmul.f32 %v2819, %v2879
    %v2888 = vmul.f32 %v2820, %v2879
    %v2889 = vmul.f32 %v2821, %v2879
    %v2890 = vmul.f32 %v2822, %v2879
    %v2891 = vmul.f32 %v2823, %v2879
    %v2892 = vmul.f32 %v2824, %v2879
    %v2893 = vmul.f32 %v2825, %v2879
    %v2894 = vmul.f32 %v2826, %v2879
    %v2895 = vmul.f32 %v2827, %v2879
    %v2896 = vmul.f32 %v2828, %v2879
    %v2897 = vmul.f32 %v2829, %v2879
    %v2898 = vmul.f32 %v2830, %v2879
    %v2899 = vmul.f32 %v2831, %v2879
    %v2900 = vmul.f32 %v2832, %v2879
    %v2901 = vmul.f32 %v2833, %v2879
    %v2902 = vmul.f32 %v2834, %v2879
    %v2903 = vmul.f32 %v2835, %v2879
    %v2904 = vmul.f32 %v2836, %v2879
    %v2905 = vmul.f32 %v2837, %v2879
    %v2906 = vmul.f32 %v2838, %v2879
    %v2907 = vmul.f32 %v2839, %v2879
    %v2908 = vmul.f32 %v2840, %v2879
    %v2909 = vmul.f32 %v2841, %v2879
    %v2910 = vmul.f32 %v2842, %v2879
    %v2911 = vmul.f32 %v2843, %v2879
    %v2912 = vmul.f32 %v2844, %v2879
    %v2913 = vmul.f32 %v2845, %v2879
    %v2914 = vmul.f32 %v2846, %v2879
    %v2915 = vmul.f32 %v2847, %v2879
    %v2916 = vmul.f32 %v2848, %v2879
    %v2917 = vmul.f32 %v2849, %v2879
    %v2918 = vmul.f32 %v2850, %v2879
    %v2919 = vmul.f32 %v2851, %v2879
    %v2920 = vmul.f32 %v2852, %v2879
    %v2921 = vmul.f32 %v2853, %v2879
    %v2922 = vmul.f32 %v2854, %v2879
    %v2923 = vmul.f32 %v2855, %v2879
    %v2924 = vmul.f32 %v2856, %v2879
    %v2925 = vmul.f32 %v2857, %v2879
    %v2926 = vmul.f32 %v2858, %v2879
    %v2927 = vmul.f32 %v2859, %v2879
    %v2928 = vmul.f32 %v2860, %v2879
    %v2929 = vmul.f32 %v2861, %v2879
    %v2930 = vmul.f32 %v2862, %v2879
    %v2931 = vmul.f32 %v2863, %v2879
    %v2932 = vmul.f32 %v2864, %v2879
    %v2933 = vmul.f32 %v2865, %v2879
    %v2934 = vmul.f32 %v2866, %v2879
    %v2935 = vmul.f32 %v2867, %v2879
    %v2936 = vmul.f32 %v2868, %v2879
    %v2937 = vmul.f32 %v2869, %v2879
    %v2938 = vmul.f32 %v2870, %v2879
    %v2939 = vmul.f32 %v2871, %v2879
    %v2940 = vmul.f32 %v2872, %v2879
    %v2941 = vmul.f32 %v2873, %v2879
    %v2942 = vmul.f32 %v2874, %v2879
    %v2943 = vmul.f32 %v2875, %v2879
    %v2944 = vld [vmem:[%s12] sm:$0x1]
    %v2946 = vlaneseq
    %v2947 = vshrl.u32 %v2946, 7
    %v2948 = vsub.s32 0, %v2947
    %v2949 = vrot.slane %v2944, %v2948
    %v2951 = vadd.f32 %v2880, %v2949
    %v2952 = vadd.f32 %v2881, %v2949
    %v2953 = vadd.f32 %v2882, %v2949
    %v2954 = vadd.f32 %v2883, %v2949
    %v2955 = vadd.f32 %v2884, %v2949
    %v2956 = vadd.f32 %v2885, %v2949
    %v2957 = vadd.f32 %v2886, %v2949
    %v2958 = vadd.f32 %v2887, %v2949
    %v2959 = vadd.f32 %v2888, %v2949
    %v2960 = vadd.f32 %v2889, %v2949
    %v2961 = vadd.f32 %v2890, %v2949
    %v2962 = vadd.f32 %v2891, %v2949
    %v2963 = vadd.f32 %v2892, %v2949
    %v2964 = vadd.f32 %v2893, %v2949
    %v2965 = vadd.f32 %v2894, %v2949
    %v2966 = vadd.f32 %v2895, %v2949
    %v2967 = vadd.f32 %v2896, %v2949
    %v2968 = vadd.f32 %v2897, %v2949
    %v2969 = vadd.f32 %v2898, %v2949
    %v2970 = vadd.f32 %v2899, %v2949
    %v2971 = vadd.f32 %v2900, %v2949
    %v2972 = vadd.f32 %v2901, %v2949
    %v2973 = vadd.f32 %v2902, %v2949
    %v2974 = vadd.f32 %v2903, %v2949
    %v2975 = vadd.f32 %v2904, %v2949
    %v2976 = vadd.f32 %v2905, %v2949
    %v2977 = vadd.f32 %v2906, %v2949
    %v2978 = vadd.f32 %v2907, %v2949
    %v2979 = vadd.f32 %v2908, %v2949
    %v2980 = vadd.f32 %v2909, %v2949
    %v2981 = vadd.f32 %v2910, %v2949
    %v2982 = vadd.f32 %v2911, %v2949
    %v2983 = vadd.f32 %v2912, %v2949
    %v2984 = vadd.f32 %v2913, %v2949
    %v2985 = vadd.f32 %v2914, %v2949
    %v2986 = vadd.f32 %v2915, %v2949
    %v2987 = vadd.f32 %v2916, %v2949
    %v2988 = vadd.f32 %v2917, %v2949
    %v2989 = vadd.f32 %v2918, %v2949
    %v2990 = vadd.f32 %v2919, %v2949
    %v2991 = vadd.f32 %v2920, %v2949
    %v2992 = vadd.f32 %v2921, %v2949
    %v2993 = vadd.f32 %v2922, %v2949
    %v2994 = vadd.f32 %v2923, %v2949
    %v2995 = vadd.f32 %v2924, %v2949
    %v2996 = vadd.f32 %v2925, %v2949
    %v2997 = vadd.f32 %v2926, %v2949
    %v2998 = vadd.f32 %v2927, %v2949
    %v2999 = vadd.f32 %v2928, %v2949
    %v3000 = vadd.f32 %v2929, %v2949
    %v3001 = vadd.f32 %v2930, %v2949
    %v3002 = vadd.f32 %v2931, %v2949
    %v3003 = vadd.f32 %v2932, %v2949
    %v3004 = vadd.f32 %v2933, %v2949
    %v3005 = vadd.f32 %v2934, %v2949
    %v3006 = vadd.f32 %v2935, %v2949
    %v3007 = vadd.f32 %v2936, %v2949
    %v3008 = vadd.f32 %v2937, %v2949
    %v3009 = vadd.f32 %v2938, %v2949
    %v3010 = vadd.f32 %v2939, %v2949
    %v3011 = vadd.f32 %v2940, %v2949
    %v3012 = vadd.f32 %v2941, %v2949
    %v3013 = vadd.f32 %v2942, %v2949
    %v3014 = vadd.f32 %v2943, %v2949
    %v3015 = vld [vmem:[#allocation6] sm:$0xff]
    %v3016 = vld [vmem:[#allocation6 + $0x8] sm:$0xff]
    %v3017 = vld [vmem:[#allocation6 + $0x10] sm:$0xff]
    %v3018 = vld [vmem:[#allocation6 + $0x18] sm:$0xff]
    %v3019 = vld [vmem:[#allocation6 + $0x20] sm:$0xff]
    %v3020 = vld [vmem:[#allocation6 + $0x28] sm:$0xff]
    %v3021 = vld [vmem:[#allocation6 + $0x30] sm:$0xff]
    %v3022 = vld [vmem:[#allocation6 + $0x38] sm:$0xff]
    %v3023 = vld [vmem:[#allocation6 + $0x40] sm:$0xff]
    %v3024 = vld [vmem:[#allocation6 + $0x48] sm:$0xff]
    %v3025 = vld [vmem:[#allocation6 + $0x50] sm:$0xff]
    %v3026 = vld [vmem:[#allocation6 + $0x58] sm:$0xff]
    %v3027 = vld [vmem:[#allocation6 + $0x60] sm:$0xff]
    %v3028 = vld [vmem:[#allocation6 + $0x68] sm:$0xff]
    %v3029 = vld [vmem:[#allocation6 + $0x70] sm:$0xff]
    %v3030 = vld [vmem:[#allocation6 + $0x78] sm:$0xff]
    %v3031 = vld [vmem:[#allocation6 + $0x80] sm:$0xff]
    %v3032 = vld [vmem:[#allocation6 + $0x88] sm:$0xff]
    %v3033 = vld [vmem:[#allocation6 + $0x90] sm:$0xff]
    %v3034 = vld [vmem:[#allocation6 + $0x98] sm:$0xff]
    %v3035 = vld [vmem:[#allocation6 + $0xa0] sm:$0xff]
    %v3036 = vld [vmem:[#allocation6 + $0xa8] sm:$0xff]
    %v3037 = vld [vmem:[#allocation6 + $0xb0] sm:$0xff]
    %v3038 = vld [vmem:[#allocation6 + $0xb8] sm:$0xff]
    %v3039 = vld [vmem:[#allocation6 + $0xc0] sm:$0xff]
    %v3040 = vld [vmem:[#allocation6 + $0xc8] sm:$0xff]
    %v3041 = vld [vmem:[#allocation6 + $0xd0] sm:$0xff]
    %v3042 = vld [vmem:[#allocation6 + $0xd8] sm:$0xff]
    %v3043 = vld [vmem:[#allocation6 + $0xe0] sm:$0xff]
    %v3044 = vld [vmem:[#allocation6 + $0xe8] sm:$0xff]
    %v3045 = vld [vmem:[#allocation6 + $0xf0] sm:$0xff]
    %v3046 = vld [vmem:[#allocation6 + $0xf8] sm:$0xff]
    %v3047 = vld [vmem:[#allocation6 + $0x100] sm:$0xff]
    %v3048 = vld [vmem:[#allocation6 + $0x108] sm:$0xff]
    %v3049 = vld [vmem:[#allocation6 + $0x110] sm:$0xff]
    %v3050 = vld [vmem:[#allocation6 + $0x118] sm:$0xff]
    %v3051 = vld [vmem:[#allocation6 + $0x120] sm:$0xff]
    %v3052 = vld [vmem:[#allocation6 + $0x128] sm:$0xff]
    %v3053 = vld [vmem:[#allocation6 + $0x130] sm:$0xff]
    %v3054 = vld [vmem:[#allocation6 + $0x138] sm:$0xff]
    %v3055 = vld [vmem:[#allocation6 + $0x140] sm:$0xff]
    %v3056 = vld [vmem:[#allocation6 + $0x148] sm:$0xff]
    %v3057 = vld [vmem:[#allocation6 + $0x150] sm:$0xff]
    %v3058 = vld [vmem:[#allocation6 + $0x158] sm:$0xff]
    %v3059 = vld [vmem:[#allocation6 + $0x160] sm:$0xff]
    %v3060 = vld [vmem:[#allocation6 + $0x168] sm:$0xff]
    %v3061 = vld [vmem:[#allocation6 + $0x170] sm:$0xff]
    %v3062 = vld [vmem:[#allocation6 + $0x178] sm:$0xff]
    %v3063 = vld [vmem:[#allocation6 + $0x180] sm:$0xff]
    %v3064 = vld [vmem:[#allocation6 + $0x188] sm:$0xff]
    %v3065 = vld [vmem:[#allocation6 + $0x190] sm:$0xff]
    %v3066 = vld [vmem:[#allocation6 + $0x198] sm:$0xff]
    %v3067 = vld [vmem:[#allocation6 + $0x1a0] sm:$0xff]
    %v3068 = vld [vmem:[#allocation6 + $0x1a8] sm:$0xff]
    %v3069 = vld [vmem:[#allocation6 + $0x1b0] sm:$0xff]
    %v3070 = vld [vmem:[#allocation6 + $0x1b8] sm:$0xff]
    %v3071 = vld [vmem:[#allocation6 + $0x1c0] sm:$0xff]
    %v3072 = vld [vmem:[#allocation6 + $0x1c8] sm:$0xff]
    %v3073 = vld [vmem:[#allocation6 + $0x1d0] sm:$0xff]
    %v3074 = vld [vmem:[#allocation6 + $0x1d8] sm:$0xff]
    %v3075 = vld [vmem:[#allocation6 + $0x1e0] sm:$0xff]
    %v3076 = vld [vmem:[#allocation6 + $0x1e8] sm:$0xff]
    %v3077 = vld [vmem:[#allocation6 + $0x1f0] sm:$0xff]
    %v3078 = vld [vmem:[#allocation6 + $0x1f8] sm:$0xff]
    %v3079 = vld [vmem:[#allocation6 + $0x200] sm:$0xff]
    %v3080 = vld [vmem:[#allocation6 + $0x208] sm:$0xff]
    %v3081 = vld [vmem:[#allocation6 + $0x210] sm:$0xff]
    %v3082 = vld [vmem:[#allocation6 + $0x218] sm:$0xff]
    %v3083 = vld [vmem:[#allocation6 + $0x220] sm:$0xff]
    %v3084 = vld [vmem:[#allocation6 + $0x228] sm:$0xff]
    %v3085 = vld [vmem:[#allocation6 + $0x230] sm:$0xff]
    %v3086 = vld [vmem:[#allocation6 + $0x238] sm:$0xff]
    %v3087 = vld [vmem:[#allocation6 + $0x240] sm:$0xff]
    %v3088 = vld [vmem:[#allocation6 + $0x248] sm:$0xff]
    %v3089 = vld [vmem:[#allocation6 + $0x250] sm:$0xff]
    %v3090 = vld [vmem:[#allocation6 + $0x258] sm:$0xff]
    %v3091 = vld [vmem:[#allocation6 + $0x260] sm:$0xff]
    %v3092 = vld [vmem:[#allocation6 + $0x268] sm:$0xff]
    %v3093 = vld [vmem:[#allocation6 + $0x270] sm:$0xff]
    %v3094 = vld [vmem:[#allocation6 + $0x278] sm:$0xff]
    %v3095 = vld [vmem:[#allocation6 + $0x280] sm:$0xff]
    %v3096 = vld [vmem:[#allocation6 + $0x288] sm:$0xff]
    %v3097 = vld [vmem:[#allocation6 + $0x290] sm:$0xff]
    %v3098 = vld [vmem:[#allocation6 + $0x298] sm:$0xff]
    %v3099 = vld [vmem:[#allocation6 + $0x2a0] sm:$0xff]
    %v3100 = vld [vmem:[#allocation6 + $0x2a8] sm:$0xff]
    %v3101 = vld [vmem:[#allocation6 + $0x2b0] sm:$0xff]
    %v3102 = vld [vmem:[#allocation6 + $0x2b8] sm:$0xff]
    %v3103 = vld [vmem:[#allocation6 + $0x2c0] sm:$0xff]
    %v3104 = vld [vmem:[#allocation6 + $0x2c8] sm:$0xff]
    %v3105 = vld [vmem:[#allocation6 + $0x2d0] sm:$0xff]
    %v3106 = vld [vmem:[#allocation6 + $0x2d8] sm:$0xff]
    %v3107 = vld [vmem:[#allocation6 + $0x2e0] sm:$0xff]
    %v3108 = vld [vmem:[#allocation6 + $0x2e8] sm:$0xff]
    %v3109 = vld [vmem:[#allocation6 + $0x2f0] sm:$0xff]
    %v3110 = vld [vmem:[#allocation6 + $0x2f8] sm:$0xff]
    %v3111 = vld [vmem:[#allocation6 + $0x300] sm:$0xff]
    %v3112 = vld [vmem:[#allocation6 + $0x308] sm:$0xff]
    %v3113 = vld [vmem:[#allocation6 + $0x310] sm:$0xff]
    %v3114 = vld [vmem:[#allocation6 + $0x318] sm:$0xff]
    %v3115 = vld [vmem:[#allocation6 + $0x320] sm:$0xff]
    %v3116 = vld [vmem:[#allocation6 + $0x328] sm:$0xff]
    %v3117 = vld [vmem:[#allocation6 + $0x330] sm:$0xff]
    %v3118 = vld [vmem:[#allocation6 + $0x338] sm:$0xff]
    %v3119 = vld [vmem:[#allocation6 + $0x340] sm:$0xff]
    %v3120 = vld [vmem:[#allocation6 + $0x348] sm:$0xff]
    %v3121 = vld [vmem:[#allocation6 + $0x350] sm:$0xff]
    %v3122 = vld [vmem:[#allocation6 + $0x358] sm:$0xff]
    %v3123 = vld [vmem:[#allocation6 + $0x360] sm:$0xff]
    %v3124 = vld [vmem:[#allocation6 + $0x368] sm:$0xff]
    %v3125 = vld [vmem:[#allocation6 + $0x370] sm:$0xff]
    %v3126 = vld [vmem:[#allocation6 + $0x378] sm:$0xff]
    %v3127 = vld [vmem:[#allocation6 + $0x380] sm:$0xff]
    %v3128 = vld [vmem:[#allocation6 + $0x388] sm:$0xff]
    %v3129 = vld [vmem:[#allocation6 + $0x390] sm:$0xff]
    %v3130 = vld [vmem:[#allocation6 + $0x398] sm:$0xff]
    %v3131 = vld [vmem:[#allocation6 + $0x3a0] sm:$0xff]
    %v3132 = vld [vmem:[#allocation6 + $0x3a8] sm:$0xff]
    %v3133 = vld [vmem:[#allocation6 + $0x3b0] sm:$0xff]
    %v3134 = vld [vmem:[#allocation6 + $0x3b8] sm:$0xff]
    %v3135 = vld [vmem:[#allocation6 + $0x3c0] sm:$0xff]
    %v3136 = vld [vmem:[#allocation6 + $0x3c8] sm:$0xff]
    %v3137 = vld [vmem:[#allocation6 + $0x3d0] sm:$0xff]
    %v3138 = vld [vmem:[#allocation6 + $0x3d8] sm:$0xff]
    %v3139 = vld [vmem:[#allocation6 + $0x3e0] sm:$0xff]
    %v3140 = vld [vmem:[#allocation6 + $0x3e8] sm:$0xff]
    %v3141 = vld [vmem:[#allocation6 + $0x3f0] sm:$0xff]
    %v3142 = vld [vmem:[#allocation6 + $0x3f8] sm:$0xff]
    %v3143 = vld [vmem:[#allocation6 + $0x400] sm:$0xff]
    %v3144 = vld [vmem:[#allocation6 + $0x408] sm:$0xff]
    %v3145 = vld [vmem:[#allocation6 + $0x410] sm:$0xff]
    %v3146 = vld [vmem:[#allocation6 + $0x418] sm:$0xff]
    %v3147 = vld [vmem:[#allocation6 + $0x420] sm:$0xff]
    %v3148 = vld [vmem:[#allocation6 + $0x428] sm:$0xff]
    %v3149 = vld [vmem:[#allocation6 + $0x430] sm:$0xff]
    %v3150 = vld [vmem:[#allocation6 + $0x438] sm:$0xff]
    %v3151 = vld [vmem:[#allocation6 + $0x440] sm:$0xff]
    %v3152 = vld [vmem:[#allocation6 + $0x448] sm:$0xff]
    %v3153 = vld [vmem:[#allocation6 + $0x450] sm:$0xff]
    %v3154 = vld [vmem:[#allocation6 + $0x458] sm:$0xff]
    %v3155 = vld [vmem:[#allocation6 + $0x460] sm:$0xff]
    %v3156 = vld [vmem:[#allocation6 + $0x468] sm:$0xff]
    %v3157 = vld [vmem:[#allocation6 + $0x470] sm:$0xff]
    %v3158 = vld [vmem:[#allocation6 + $0x478] sm:$0xff]
    %v3159 = vld [vmem:[%s2] sm:$0x1]
    %v3161 = vlaneseq
    %v3162 = vshrl.u32 %v3161, 7
    %v3163 = vsub.s32 0, %v3162
    %v3164 = vrot.slane %v3159, %v3163
    %3166 = vmatprep.subr.mxu0 0.0
    %3167 = vmatpush1.msra.mxu0 %v3015
    %3168 = vmatprep.subr.mxu0 0.0
    %3169 = vmatpush1.msra.mxu0 %v3016
    %3170 = vmatprep.subr.mxu0 0.0
    %3171 = vmatpush1.msra.mxu0 %v3017
    %3172 = vmatprep.subr.mxu0 0.0
    %3173 = vmatpush1.msra.mxu0 %v3018
    %3174 = vmatprep.subr.mxu0 0.0
    %3175 = vmatpush1.msra.mxu0 %v3019
    %3176 = vmatprep.subr.mxu0 0.0
    %3177 = vmatpush1.msra.mxu0 %v3020
    %3178 = vmatprep.subr.mxu0 0.0
    %3179 = vmatpush1.msra.mxu0 %v3021
    %3180 = vmatprep.subr.mxu0 0.0
    %3181 = vmatpush1.msra.mxu0 %v3022
    %3182 = vmatprep.subr.mxu0 0.0
    %3183 = vmatpush1.msra.mxu0 %v3023
    %3184 = vmatprep.subr.mxu0 0.0
    %3185 = vmatpush1.msra.mxu0 %v3024
    %3186 = vmatprep.subr.mxu0 0.0
    %3187 = vmatpush1.msra.mxu0 %v3025
    %3188 = vmatprep.subr.mxu0 0.0
    %3189 = vmatpush1.msra.mxu0 %v3026
    %3190 = vmatprep.subr.mxu0 0.0
    %3191 = vmatpush1.msra.mxu0 %v3027
    %3192 = vmatprep.subr.mxu0 0.0
    %3193 = vmatpush1.msra.mxu0 %v3028
    %3194 = vmatprep.subr.mxu0 0.0
    %3195 = vmatpush1.msra.mxu0 %v3029
    %3196 = vmatprep.subr.mxu0 0.0
    %3197 = vmatpush1.msra.mxu0 %v3030
    %3198 = vmatprep.subr.mxu0 0.0
    %3199 = vmatpush1.msra.mxu0 %v3031
    %3200 = vmatprep.subr.mxu0 0.0
    %3201 = vmatpush1.msra.mxu0 %v3032
    %3202 = vmatprep.subr.mxu0 0.0
    %3203 = vmatpush1.msra.mxu0 %v3033
    %3204 = vmatprep.subr.mxu0 0.0
    %3205 = vmatpush1.msra.mxu0 %v3034
    %3206 = vmatprep.subr.mxu0 0.0
    %3207 = vmatpush1.msra.mxu0 %v3035
    %3208 = vmatprep.subr.mxu0 0.0
    %3209 = vmatpush1.msra.mxu0 %v3036
    %3210 = vmatprep.subr.mxu0 0.0
    %3211 = vmatpush1.msra.mxu0 %v3037
    %3212 = vmatprep.subr.mxu0 0.0
    %3213 = vmatpush1.msra.mxu0 %v3038
    %3214 = vmatprep.subr.mxu0 0.0
    %3215 = vmatpush1.msra.mxu0 %v3039
    %3216 = vmatprep.subr.mxu0 0.0
    %3217 = vmatpush1.msra.mxu0 %v3040
    %3218 = vmatprep.subr.mxu0 0.0
    %3219 = vmatpush1.msra.mxu0 %v3041
    %3220 = vmatprep.subr.mxu0 0.0
    %3221 = vmatpush1.msra.mxu0 %v3042
    %3222 = vmatprep.subr.mxu0 0.0
    %3223 = vmatpush1.msra.mxu0 %v3043
    %3224 = vmatprep.subr.mxu0 0.0
    %3225 = vmatpush1.msra.mxu0 %v3044
    %3226 = vmatprep.subr.mxu0 0.0
    %3227 = vmatpush1.msra.mxu0 %v3045
    %3228 = vmatprep.subr.mxu0 0.0
    %3229 = vmatpush1.msra.mxu0 %v3046
    %3230 = vmatprep.mubr.f32.mxu0 %v1181
    %3231 = vmatmul.mubr.f32.gmra.mrb[0].mxu0 %v1687
    %v3232 = vpop.f32.mrb[0].mxu0
    %v3233 = vadd.f32 %v3164, %v3232
    %v3234 = vpop.f32.mrb[0].mxu0
    %3235 = vmatprep.mubr.f32.mxu0 %v1182
    %3236 = vmatmul.mubr.f32.gmra.mrb[0].mxu0 %v1688
    %v3237 = vpop.f32.mrb[0].mxu0
    %v3238 = vadd.f32 %v3164, %v3237
    %v3239 = vpop.f32.mrb[0].mxu0
    %3240 = vmatprep.mubr.f32.mxu0 %v1183
    %3241 = vmatmul.mubr.f32.gmra.mrb[0].mxu0 %v1689
    %v3242 = vpop.f32.mrb[0].mxu0
    %v3243 = vadd.f32 %v3164, %v3242
    %v3244 = vpop.f32.mrb[0].mxu0
    %3245 = vmatprep.mubr.f32.mxu0 %v1184
    %3246 = vmatmul.mubr.f32.gmra.mrb[0].mxu0 %v1690
    %v3247 = vpop.f32.mrb[0].mxu0
    %v3248 = vadd.f32 %v3164, %v3247
    %v3249 = vpop.f32.mrb[0].mxu0
    %3250 = vmatprep.mubr.f32.mxu0 %v1185
    %3251 = vmatmul.mubr.f32.gmra.mrb[0].mxu0 %v1691
    %v3252 = vpop.f32.mrb[0].mxu0
    %v3253 = vadd.f32 %v3164, %v3252
    %v3254 = vpop.f32.mrb[0].mxu0
    %3255 = vmatprep.mubr.f32.mxu0 %v1186
    %3256 = vmatmul.mubr.f32.gmra.mrb[0].mxu0 %v1692
    %v3257 = vpop.f32.mrb[0].mxu0
    %v3258 = vadd.f32 %v3164, %v3257
    %v3259 = vpop.f32.mrb[0].mxu0
    %3260 = vmatprep.mubr.f32.mxu0 %v1187
    %3261 = vmatmul.mubr.f32.gmra.mrb[0].mxu0 %v1693
    %v3262 = vpop.f32.mrb[0].mxu0
    %v3263 = vadd.f32 %v3164, %v3262
    %v3264 = vpop.f32.mrb[0].mxu0
    %3265 = vmatprep.mubr.f32.mxu0 %v1188
    %3266 = vmatmul.mubr.f32.gmra.mrb[0].mxu0 %v1694
    %v3267 = vpop.f32.mrb[0].mxu0
    %v3268 = vadd.f32 %v3164, %v3267
    %v3269 = vpop.f32.mrb[0].mxu0
    %3270 = vmatprep.mubr.f32.mxu0 %v1189
    %3271 = vmatmul.mubr.f32.gmra.mrb[0].mxu0 %v1695
    %v3272 = vpop.f32.mrb[0].mxu0
    %v3273 = vadd.f32 %v3164, %v3272
    %v3274 = vpop.f32.mrb[0].mxu0
    %3275 = vmatprep.mubr.f32.mxu0 %v1190
    %3276 = vmatmul.mubr.f32.gmra.mrb[0].mxu0 %v1696
    %v3277 = vpop.f32.mrb[0].mxu0
    %v3278 = vadd.f32 %v3164, %v3277
    %v3279 = vpop.f32.mrb[0].mxu0
    %3280 = vmatprep.mubr.f32.mxu0 %v1191
    %3281 = vmatmul.mubr.f32.gmra.mrb[0].mxu0 %v1697
    %v3282 = vpop.f32.mrb[0].mxu0
    %v3283 = vadd.f32 %v3164, %v3282
    %v3284 = vpop.f32.mrb[0].mxu0
    %3285 = vmatprep.mubr.f32.mxu0 %v1192
    %3286 = vmatmul.mubr.f32.gmra.mrb[0].mxu0 %v1698
    %v3287 = vpop.f32.mrb[0].mxu0
    %v3288 = vadd.f32 %v3164, %v3287
    %v3289 = vpop.f32.mrb[0].mxu0
    %3290 = vmatprep.mubr.f32.mxu0 %v1193
    %3291 = vmatmul.mubr.f32.gmra.mrb[0].mxu0 %v1699
    %v3292 = vpop.f32.mrb[0].mxu0
    %v3293 = vadd.f32 %v3164, %v3292
    %v3294 = vpop.f32.mrb[0].mxu0
    %3295 = vmatprep.mubr.f32.mxu0 %v1194
    %3296 = vmatmul.mubr.f32.gmra.mrb[0].mxu0 %v1700
    %v3297 = vpop.f32.mrb[0].mxu0
    %v3298 = vadd.f32 %v3164, %v3297
    %v3299 = vpop.f32.mrb[0].mxu0
    %3300 = vmatprep.mubr.f32.mxu0 %v1195
    %3301 = vmatmul.mubr.f32.gmra.mrb[0].mxu0 %v1701
    %v3302 = vpop.f32.mrb[0].mxu0
    %v3303 = vadd.f32 %v3164, %v3302
    %v3304 = vpop.f32.mrb[0].mxu0
    %3305 = vmatprep.mubr.f32.mxu0 %v1196
    %3306 = vmatmul.mubr.f32.gmra.mrb[0].mxu0 %v1702
    %v3307 = vpop.f32.mrb[0].mxu0
    %v3308 = vadd.f32 %v3164, %v3307
    %v3309 = vpop.f32.mrb[0].mxu0
    %3310 = vmatprep.mubr.f32.mxu0 %v1197
    %3311 = vmatmul.mubr.f32.gmra.mrb[0].mxu0 %v1703
    %v3312 = vpop.f32.mrb[0].mxu0
    %v3313 = vadd.f32 %v3164, %v3312
    %v3314 = vpop.f32.mrb[0].mxu0
    %3315 = vmatprep.mubr.f32.mxu0 %v1198
    %3316 = vmatmul.mubr.f32.gmra.mrb[0].mxu0 %v1704
    %v3317 = vpop.f32.mrb[0].mxu0
    %v3318 = vadd.f32 %v3164, %v3317
    %v3319 = vpop.f32.mrb[0].mxu0
    %3320 = vmatprep.mubr.f32.mxu0 %v1199
    %3321 = vmatmul.mubr.f32.gmra.mrb[0].mxu0 %v1705
    %v3322 = vpop.f32.mrb[0].mxu0
    %v3323 = vadd.f32 %v3164, %v3322
    %v3324 = vpop.f32.mrb[0].mxu0
    %3325 = vmatprep.mubr.f32.mxu0 %v1200
    %3326 = vmatmul.mubr.f32.gmra.mrb[0].mxu0 %v1706
    %v3327 = vpop.f32.mrb[0].mxu0
    %v3328 = vadd.f32 %v3164, %v3327
    %v3329 = vpop.f32.mrb[0].mxu0
    %3330 = vmatprep.mubr.f32.mxu0 %v1201
    %3331 = vmatmul.mubr.f32.gmra.mrb[0].mxu0 %v1707
    %v3332 = vpop.f32.mrb[0].mxu0
    %v3333 = vadd.f32 %v3164, %v3332
    %v3334 = vpop.f32.mrb[0].mxu0
    %3335 = vmatprep.mubr.f32.mxu0 %v1202
    %3336 = vmatmul.mubr.f32.gmra.mrb[0].mxu0 %v1708
    %v3337 = vpop.f32.mrb[0].mxu0
    %v3338 = vadd.f32 %v3164, %v3337
    %v3339 = vpop.f32.mrb[0].mxu0
    %3340 = vmatprep.mubr.f32.mxu0 %v1203
    %3341 = vmatmul.mubr.f32.gmra.mrb[0].mxu0 %v1709
    %v3342 = vpop.f32.mrb[0].mxu0
    %v3343 = vadd.f32 %v3164, %v3342
    %v3344 = vpop.f32.mrb[0].mxu0
    %3345 = vmatprep.mubr.f32.mxu0 %v1204
    %3346 = vmatmul.mubr.f32.gmra.mrb[0].mxu0 %v1710
    %v3347 = vpop.f32.mrb[0].mxu0
    %v3348 = vadd.f32 %v3164, %v3347
    %v3349 = vpop.f32.mrb[0].mxu0
    %3350 = vmatprep.mubr.f32.mxu0 %v1205
    %3351 = vmatmul.mubr.f32.gmra.mrb[0].mxu0 %v1711
    %v3352 = vpop.f32.mrb[0].mxu0
    %v3353 = vadd.f32 %v3164, %v3352
    %v3354 = vpop.f32.mrb[0].mxu0
    %3355 = vmatprep.mubr.f32.mxu0 %v1206
    %3356 = vmatmul.mubr.f32.gmra.mrb[0].mxu0 %v1712
    %v3357 = vpop.f32.mrb[0].mxu0
    %v3358 = vadd.f32 %v3164, %v3357
    %v3359 = vpop.f32.mrb[0].mxu0
    %3360 = vmatprep.mubr.f32.mxu0 %v1207
    %3361 = vmatmul.mubr.f32.gmra.mrb[0].mxu0 %v1713
    %v3362 = vpop.f32.mrb[0].mxu0
    %v3363 = vadd.f32 %v3164, %v3362
    %v3364 = vpop.f32.mrb[0].mxu0
    %3365 = vmatprep.mubr.f32.mxu0 %v1208
    %3366 = vmatmul.mubr.f32.gmra.mrb[0].mxu0 %v1714
    %v3367 = vpop.f32.mrb[0].mxu0
    %v3368 = vadd.f32 %v3164, %v3367
    %v3369 = vpop.f32.mrb[0].mxu0
    %3370 = vmatprep.mubr.f32.mxu0 %v1209
    %3371 = vmatmul.mubr.f32.gmra.mrb[0].mxu0 %v1715
    %v3372 = vpop.f32.mrb[0].mxu0
    %v3373 = vadd.f32 %v3164, %v3372
    %v3374 = vpop.f32.mrb[0].mxu0
    %3375 = vmatprep.mubr.f32.mxu0 %v1210
    %3376 = vmatmul.mubr.f32.gmra.mrb[0].mxu0 %v1716
    %v3377 = vpop.f32.mrb[0].mxu0
    %v3378 = vadd.f32 %v3164, %v3377
    %v3379 = vpop.f32.mrb[0].mxu0
    %3380 = vmatprep.mubr.f32.mxu0 %v1211
    %3381 = vmatmul.mubr.f32.gmra.mrb[0].mxu0 %v1717
    %v3382 = vpop.f32.mrb[0].mxu0
    %v3383 = vadd.f32 %v3164, %v3382
    %v3384 = vpop.f32.mrb[0].mxu0
    %3385 = vmatprep.mubr.f32.mxu0 %v1212
    %3386 = vmatmul.mubr.f32.gmra.mrb[0].mxu0 %v1718
    %v3387 = vpop.f32.mrb[0].mxu0
    %v3388 = vadd.f32 %v3164, %v3387
    %v3389 = vpop.f32.mrb[0].mxu0
    %3390 = vmatprep.mubr.f32.mxu0 %v1217
    %3391 = vmatmul.mubr.f32.gmra.mrb[0].mxu0 %v1723
    %v3392 = vpop.f32.mrb[0].mxu0
    %v3393 = vadd.f32 %v3164, %v3392
    %v3394 = vpop.f32.mrb[0].mxu0
    %3395 = vmatprep.mubr.f32.mxu0 %v1218
    %3396 = vmatmul.mubr.f32.gmra.mrb[0].mxu0 %v1724
    %v3397 = vpop.f32.mrb[0].mxu0
    %v3398 = vadd.f32 %v3164, %v3397
    %v3399 = vpop.f32.mrb[0].mxu0
    %3400 = vmatprep.mubr.f32.mxu0 %v1219
    %3401 = vmatmul.mubr.f32.gmra.mrb[0].mxu0 %v1725
    %v3402 = vpop.f32.mrb[0].mxu0
    %v3403 = vadd.f32 %v3164, %v3402
    %v3404 = vpop.f32.mrb[0].mxu0
    %3405 = vmatprep.mubr.f32.mxu0 %v1220
    %3406 = vmatmul.mubr.f32.gmra.mrb[0].mxu0 %v1726
    %v3407 = vpop.f32.mrb[0].mxu0
    %v3408 = vadd.f32 %v3164, %v3407
    %v3409 = vpop.f32.mrb[0].mxu0
    %3410 = vmatprep.mubr.f32.mxu0 %v1221
    %3411 = vmatmul.mubr.f32.gmra.mrb[0].mxu0 %v1727
    %v3412 = vpop.f32.mrb[0].mxu0
    %v3413 = vadd.f32 %v3164, %v3412
    %v3414 = vpop.f32.mrb[0].mxu0
    %3415 = vmatprep.mubr.f32.mxu0 %v1222
    %3416 = vmatmul.mubr.f32.gmra.mrb[0].mxu0 %v1728
    %v3417 = vpop.f32.mrb[0].mxu0
    %v3418 = vadd.f32 %v3164, %v3417
    %v3419 = vpop.f32.mrb[0].mxu0
    %3420 = vmatprep.mubr.f32.mxu0 %v1223
    %3421 = vmatmul.mubr.f32.gmra.mrb[0].mxu0 %v1729
    %v3422 = vpop.f32.mrb[0].mxu0
    %v3423 = vadd.f32 %v3164, %v3422
    %v3424 = vpop.f32.mrb[0].mxu0
    %3425 = vmatprep.mubr.f32.mxu0 %v1224
    %3426 = vmatmul.mubr.f32.gmra.mrb[0].mxu0 %v1730
    %v3427 = vpop.f32.mrb[0].mxu0
    %v3428 = vadd.f32 %v3164, %v3427
    %v3429 = vpop.f32.mrb[0].mxu0
    %3430 = vmatprep.mubr.f32.mxu0 %v1225
    %3431 = vmatmul.mubr.f32.gmra.mrb[0].mxu0 %v1731
    %v3432 = vpop.f32.mrb[0].mxu0
    %v3433 = vadd.f32 %v3164, %v3432
    %v3434 = vpop.f32.mrb[0].mxu0
    %3435 = vmatprep.mubr.f32.mxu0 %v1226
    %3436 = vmatmul.mubr.f32.gmra.mrb[0].mxu0 %v1732
    %v3437 = vpop.f32.mrb[0].mxu0
    %v3438 = vadd.f32 %v3164, %v3437
    %v3439 = vpop.f32.mrb[0].mxu0
    %3440 = vmatprep.mubr.f32.mxu0 %v1227
    %3441 = vmatmul.mubr.f32.gmra.mrb[0].mxu0 %v1733
    %v3442 = vpop.f32.mrb[0].mxu0
    %v3443 = vadd.f32 %v3164, %v3442
    %v3444 = vpop.f32.mrb[0].mxu0
    %3445 = vmatprep.mubr.f32.mxu0 %v1228
    %3446 = vmatmul.mubr.f32.gmra.mrb[0].mxu0 %v1734
    %v3447 = vpop.f32.mrb[0].mxu0
    %v3448 = vadd.f32 %v3164, %v3447
    %v3449 = vpop.f32.mrb[0].mxu0
    %3450 = vmatprep.mubr.f32.mxu0 %v1229
    %3451 = vmatmul.mubr.f32.gmra.mrb[0].mxu0 %v1735
    %v3452 = vpop.f32.mrb[0].mxu0
    %v3453 = vadd.f32 %v3164, %v3452
    %v3454 = vpop.f32.mrb[0].mxu0
    %3455 = vmatprep.mubr.f32.mxu0 %v1230
    %3456 = vmatmul.mubr.f32.gmra.mrb[0].mxu0 %v1736
    %v3457 = vpop.f32.mrb[0].mxu0
    %v3458 = vadd.f32 %v3164, %v3457
    %v3459 = vpop.f32.mrb[0].mxu0
    %3460 = vmatprep.mubr.f32.mxu0 %v1231
    %3461 = vmatmul.mubr.f32.gmra.mrb[0].mxu0 %v1737
    %v3462 = vpop.f32.mrb[0].mxu0
    %v3463 = vadd.f32 %v3164, %v3462
    %v3464 = vpop.f32.mrb[0].mxu0
    %3465 = vmatprep.mubr.f32.mxu0 %v1232
    %3466 = vmatmul.mubr.f32.gmra.mrb[0].mxu0 %v1738
    %v3467 = vpop.f32.mrb[0].mxu0
    %v3468 = vadd.f32 %v3164, %v3467
    %v3469 = vpop.f32.mrb[0].mxu0
    %3470 = vmatprep.mubr.f32.mxu0 %v1233
    %3471 = vmatmul.mubr.f32.gmra.mrb[0].mxu0 %v1739
    %v3472 = vpop.f32.mrb[0].mxu0
    %v3473 = vadd.f32 %v3164, %v3472
    %v3474 = vpop.f32.mrb[0].mxu0
    %3475 = vmatprep.mubr.f32.mxu0 %v1234
    %3476 = vmatmul.mubr.f32.gmra.mrb[0].mxu0 %v1740
    %v3477 = vpop.f32.mrb[0].mxu0
    %v3478 = vadd.f32 %v3164, %v3477
    %v3479 = vpop.f32.mrb[0].mxu0
    %3480 = vmatprep.mubr.f32.mxu0 %v1235
    %3481 = vmatmul.mubr.f32.gmra.mrb[0].mxu0 %v1741
    %v3482 = vpop.f32.mrb[0].mxu0
    %v3483 = vadd.f32 %v3164, %v3482
    %v3484 = vpop.f32.mrb[0].mxu0
    %3485 = vmatprep.mubr.f32.mxu0 %v1236
    %3486 = vmatmul.mubr.f32.gmra.mrb[0].mxu0 %v1742
    %v3487 = vpop.f32.mrb[0].mxu0
    %v3488 = vadd.f32 %v3164, %v3487
    %v3489 = vpop.f32.mrb[0].mxu0
    %3490 = vmatprep.mubr.f32.mxu0 %v1237
    %3491 = vmatmul.mubr.f32.gmra.mrb[0].mxu0 %v1743
    %v3492 = vpop.f32.mrb[0].mxu0
    %v3493 = vadd.f32 %v3164, %v3492
    %v3494 = vpop.f32.mrb[0].mxu0
    %3495 = vmatprep.mubr.f32.mxu0 %v1238
    %3496 = vmatmul.mubr.f32.gmra.mrb[0].mxu0 %v1744
    %v3497 = vpop.f32.mrb[0].mxu0
    %v3498 = vadd.f32 %v3164, %v3497
    %v3499 = vpop.f32.mrb[0].mxu0
    %3500 = vmatprep.mubr.f32.mxu0 %v1239
    %3501 = vmatmul.mubr.f32.gmra.mrb[0].mxu0 %v1745
    %v3502 = vpop.f32.mrb[0].mxu0
    %v3503 = vadd.f32 %v3164, %v3502
    %v3504 = vpop.f32.mrb[0].mxu0
    %3505 = vmatprep.mubr.f32.mxu0 %v1240
    %3506 = vmatmul.mubr.f32.gmra.mrb[0].mxu0 %v1746
    %v3507 = vpop.f32.mrb[0].mxu0
    %v3508 = vadd.f32 %v3164, %v3507
    %v3509 = vpop.f32.mrb[0].mxu0
    %3510 = vmatprep.mubr.f32.mxu0 %v1241
    %3511 = vmatmul.mubr.f32.gmra.mrb[0].mxu0 %v1747
    %v3512 = vpop.f32.mrb[0].mxu0
    %v3513 = vadd.f32 %v3164, %v3512
    %v3514 = vpop.f32.mrb[0].mxu0
    %3515 = vmatprep.mubr.f32.mxu0 %v1242
    %3516 = vmatmul.mubr.f32.gmra.mrb[0].mxu0 %v1748
    %v3517 = vpop.f32.mrb[0].mxu0
    %v3518 = vadd.f32 %v3164, %v3517
    %v3519 = vpop.f32.mrb[0].mxu0
    %3520 = vmatprep.mubr.f32.mxu0 %v1243
    %3521 = vmatmul.mubr.f32.gmra.mrb[0].mxu0 %v1749
    %v3522 = vpop.f32.mrb[0].mxu0
    %v3523 = vadd.f32 %v3164, %v3522
    %v3524 = vpop.f32.mrb[0].mxu0
    %3525 = vmatprep.mubr.f32.mxu0 %v1244
    %3526 = vmatmul.mubr.f32.gmra.mrb[0].mxu0 %v1750
    %v3527 = vpop.f32.mrb[0].mxu0
    %v3528 = vadd.f32 %v3164, %v3527
    %v3529 = vpop.f32.mrb[0].mxu0
    %3530 = vmatprep.mubr.f32.mxu0 %v1245
    %3531 = vmatmul.mubr.f32.gmra.mrb[0].mxu0 %v1751
    %v3532 = vpop.f32.mrb[0].mxu0
    %v3533 = vadd.f32 %v3164, %v3532
    %v3534 = vpop.f32.mrb[0].mxu0
    %3535 = vmatprep.mubr.f32.mxu0 %v1246
    %3536 = vmatmul.mubr.f32.gmra.mrb[0].mxu0 %v1752
    %v3537 = vpop.f32.mrb[0].mxu0
    %v3538 = vadd.f32 %v3164, %v3537
    %v3539 = vpop.f32.mrb[0].mxu0
    %3540 = vmatprep.mubr.f32.mxu0 %v1247
    %3541 = vmatmul.mubr.f32.gmra.mrb[0].mxu0 %v1753
    %v3542 = vpop.f32.mrb[0].mxu0
    %v3543 = vadd.f32 %v3164, %v3542
    %v3544 = vpop.f32.mrb[0].mxu0
    %3545 = vmatprep.mubr.f32.mxu0 %v1248
    %3546 = vmatmul.mubr.f32.gmra.mrb[0].mxu0 %v1754
    %v3547 = vpop.f32.mrb[0].mxu0
    %v3548 = vadd.f32 %v3164, %v3547
    %v3549 = vpop.f32.mrb[0].mxu0
    %3550 = vdwg.mxu0
    %3551 = vmatprep.subr.mxu0 0.0
    %3552 = vmatpush1.msra.mxu0 %v3047
    %3553 = vmatprep.subr.mxu0 0.0
    %3554 = vmatpush1.msra.mxu0 %v3048
    %3555 = vmatprep.subr.mxu0 0.0
    %3556 = vmatpush1.msra.mxu0 %v3049
    %3557 = vmatprep.subr.mxu0 0.0
    %3558 = vmatpush1.msra.mxu0 %v3050
    %3559 = vmatprep.subr.mxu0 0.0
    %3560 = vmatpush1.msra.mxu0 %v3051
    %3561 = vmatprep.subr.mxu0 0.0
    %3562 = vmatpush1.msra.mxu0 %v3052
    %3563 = vmatprep.subr.mxu0 0.0
    %3564 = vmatpush1.msra.mxu0 %v3053
    %3565 = vmatprep.subr.mxu0 0.0
    %3566 = vmatpush1.msra.mxu0 %v3054
    %3567 = vmatprep.subr.mxu0 0.0
    %3568 = vmatpush1.msra.mxu0 %v3055
    %3569 = vmatprep.subr.mxu0 0.0
    %3570 = vmatpush1.msra.mxu0 %v3056
    %3571 = vmatprep.subr.mxu0 0.0
    %3572 = vmatpush1.msra.mxu0 %v3057
    %3573 = vmatprep.subr.mxu0 0.0
    %3574 = vmatpush1.msra.mxu0 %v3058
    %3575 = vmatprep.subr.mxu0 0.0
    %3576 = vmatpush1.msra.mxu0 %v3059
    %3577 = vmatprep.subr.mxu0 0.0
    %3578 = vmatpush1.msra.mxu0 %v3060
    %3579 = vmatprep.subr.mxu0 0.0
    %3580 = vmatpush1.msra.mxu0 %v3061
    %3581 = vmatprep.subr.mxu0 0.0
    %3582 = vmatpush1.msra.mxu0 %v3062
    %3583 = vmatprep.subr.mxu0 0.0
    %3584 = vmatpush1.msra.mxu0 %v3063
    %3585 = vmatprep.subr.mxu0 0.0
    %3586 = vmatpush1.msra.mxu0 %v3064
    %3587 = vmatprep.subr.mxu0 0.0
    %3588 = vmatpush1.msra.mxu0 %v3065
    %3589 = vmatprep.subr.mxu0 0.0
    %3590 = vmatpush1.msra.mxu0 %v3066
    %3591 = vmatprep.subr.mxu0 0.0
    %3592 = vmatpush1.msra.mxu0 %v3067
    %3593 = vmatprep.subr.mxu0 0.0
    %3594 = vmatpush1.msra.mxu0 %v3068
    %3595 = vmatprep.subr.mxu0 0.0
    %3596 = vmatpush1.msra.mxu0 %v3069
    %3597 = vmatprep.subr.mxu0 0.0
    %3598 = vmatpush1.msra.mxu0 %v3070
    %3599 = vmatprep.subr.mxu0 0.0
    %3600 = vmatpush1.msra.mxu0 %v3071
    %3601 = vmatprep.subr.mxu0 0.0
    %3602 = vmatpush1.msra.mxu0 %v3072
    %3603 = vmatprep.subr.mxu0 0.0
    %3604 = vmatpush1.msra.mxu0 %v3073
    %3605 = vmatprep.subr.mxu0 0.0
    %3606 = vmatpush1.msra.mxu0 %v3074
    %3607 = vmatprep.subr.mxu0 0.0
    %3608 = vmatpush1.msra.mxu0 %v3075
    %3609 = vmatprep.subr.mxu0 0.0
    %3610 = vmatpush1.msra.mxu0 %v3076
    %3611 = vmatprep.subr.mxu0 0.0
    %3612 = vmatpush1.msra.mxu0 %v3077
    %3613 = vmatprep.subr.mxu0 0.0
    %3614 = vmatpush1.msra.mxu0 %v3078
    %3615 = vmatprep.mubr.f32.mxu0 %v1689
    %3616 = vmatmul.mubr.f32.gmra.mrb[0].mxu0 %v2121
    %v3617 = vpop.f32.mrb[0].mxu0
    %v3618 = vadd.f32 %v3233, %v3617
    %v3619 = vpop.f32.mrb[0].mxu0
    %3620 = vmatprep.mubr.f32.mxu0 %v1690
    %3621 = vmatmul.mubr.f32.gmra.mrb[0].mxu0 %v2122
    %v3622 = vpop.f32.mrb[0].mxu0
    %v3623 = vadd.f32 %v3238, %v3622
    %v3624 = vpop.f32.mrb[0].mxu0
    %3625 = vmatprep.mubr.f32.mxu0 %v1691
    %3626 = vmatmul.mubr.f32.gmra.mrb[0].mxu0 %v2123
    %v3627 = vpop.f32.mrb[0].mxu0
    %v3628 = vadd.f32 %v3243, %v3627
    %v3629 = vpop.f32.mrb[0].mxu0
    %3630 = vmatprep.mubr.f32.mxu0 %v1692
    %3631 = vmatmul.mubr.f32.gmra.mrb[0].mxu0 %v2124
    %v3632 = vpop.f32.mrb[0].mxu0
    %v3633 = vadd.f32 %v3248, %v3632
    %v3634 = vpop.f32.mrb[0].mxu0
    %3635 = vmatprep.mubr.f32.mxu0 %v1693
    %3636 = vmatmul.mubr.f32.gmra.mrb[0].mxu0 %v2125
    %v3637 = vpop.f32.mrb[0].mxu0
    %v3638 = vadd.f32 %v3253, %v3637
    %v3639 = vpop.f32.mrb[0].mxu0
    %3640 = vmatprep.mubr.f32.mxu0 %v1694
    %3641 = vmatmul.mubr.f32.gmra.mrb[0].mxu0 %v2126
    %v3642 = vpop.f32.mrb[0].mxu0
    %v3643 = vadd.f32 %v3258, %v3642
    %v3644 = vpop.f32.mrb[0].mxu0
    %3645 = vmatprep.mubr.f32.mxu0 %v1695
    %3646 = vmatmul.mubr.f32.gmra.mrb[0].mxu0 %v2127
    %v3647 = vpop.f32.mrb[0].mxu0
    %v3648 = vadd.f32 %v3263, %v3647
    %v3649 = vpop.f32.mrb[0].mxu0
    %3650 = vmatprep.mubr.f32.mxu0 %v1696
    %3651 = vmatmul.mubr.f32.gmra.mrb[0].mxu0 %v2128
    %v3652 = vpop.f32.mrb[0].mxu0
    %v3653 = vadd.f32 %v3268, %v3652
    %v3654 = vpop.f32.mrb[0].mxu0
    %3655 = vmatprep.mubr.f32.mxu0 %v1697
    %3656 = vmatmul.mubr.f32.gmra.mrb[0].mxu0 %v2129
    %v3657 = vpop.f32.mrb[0].mxu0
    %v3658 = vadd.f32 %v3273, %v3657
    %v3659 = vpop.f32.mrb[0].mxu0
    %3660 = vmatprep.mubr.f32.mxu0 %v1698
    %3661 = vmatmul.mubr.f32.gmra.mrb[0].mxu0 %v2130
    %v3662 = vpop.f32.mrb[0].mxu0
    %v3663 = vadd.f32 %v3278, %v3662
    %v3664 = vpop.f32.mrb[0].mxu0
    %3665 = vmatprep.mubr.f32.mxu0 %v1699
    %3666 = vmatmul.mubr.f32.gmra.mrb[0].mxu0 %v2131
    %v3667 = vpop.f32.mrb[0].mxu0
    %v3668 = vadd.f32 %v3283, %v3667
    %v3669 = vpop.f32.mrb[0].mxu0
    %3670 = vmatprep.mubr.f32.mxu0 %v1700
    %3671 = vmatmul.mubr.f32.gmra.mrb[0].mxu0 %v2132
    %v3672 = vpop.f32.mrb[0].mxu0
    %v3673 = vadd.f32 %v3288, %v3672
    %v3674 = vpop.f32.mrb[0].mxu0
    %3675 = vmatprep.mubr.f32.mxu0 %v1701
    %3676 = vmatmul.mubr.f32.gmra.mrb[0].mxu0 %v2133
    %v3677 = vpop.f32.mrb[0].mxu0
    %v3678 = vadd.f32 %v3293, %v3677
    %v3679 = vpop.f32.mrb[0].mxu0
    %3680 = vmatprep.mubr.f32.mxu0 %v1702
    %3681 = vmatmul.mubr.f32.gmra.mrb[0].mxu0 %v2134
    %v3682 = vpop.f32.mrb[0].mxu0
    %v3683 = vadd.f32 %v3298, %v3682
    %v3684 = vpop.f32.mrb[0].mxu0
    %3685 = vmatprep.mubr.f32.mxu0 %v1703
    %3686 = vmatmul.mubr.f32.gmra.mrb[0].mxu0 %v2135
    %v3687 = vpop.f32.mrb[0].mxu0
    %v3688 = vadd.f32 %v3303, %v3687
    %v3689 = vpop.f32.mrb[0].mxu0
    %3690 = vmatprep.mubr.f32.mxu0 %v1704
    %3691 = vmatmul.mubr.f32.gmra.mrb[0].mxu0 %v2136
    %v3692 = vpop.f32.mrb[0].mxu0
    %v3693 = vadd.f32 %v3308, %v3692
    %v3694 = vpop.f32.mrb[0].mxu0
    %3695 = vmatprep.mubr.f32.mxu0 %v1705
    %3696 = vmatmul.mubr.f32.gmra.mrb[0].mxu0 %v2137
    %v3697 = vpop.f32.mrb[0].mxu0
    %v3698 = vadd.f32 %v3313, %v3697
    %v3699 = vpop.f32.mrb[0].mxu0
    %3700 = vmatprep.mubr.f32.mxu0 %v1706
    %3701 = vmatmul.mubr.f32.gmra.mrb[0].mxu0 %v2138
    %v3702 = vpop.f32.mrb[0].mxu0
    %v3703 = vadd.f32 %v3318, %v3702
    %v3704 = vpop.f32.mrb[0].mxu0
    %3705 = vmatprep.mubr.f32.mxu0 %v1707
    %3706 = vmatmul.mubr.f32.gmra.mrb[0].mxu0 %v2139
    %v3707 = vpop.f32.mrb[0].mxu0
    %v3708 = vadd.f32 %v3323, %v3707
    %v3709 = vpop.f32.mrb[0].mxu0
    %3710 = vmatprep.mubr.f32.mxu0 %v1708
    %3711 = vmatmul.mubr.f32.gmra.mrb[0].mxu0 %v2140
    %v3712 = vpop.f32.mrb[0].mxu0
    %v3713 = vadd.f32 %v3328, %v3712
    %v3714 = vpop.f32.mrb[0].mxu0
    %3715 = vmatprep.mubr.f32.mxu0 %v1709
    %3716 = vmatmul.mubr.f32.gmra.mrb[0].mxu0 %v2141
    %v3717 = vpop.f32.mrb[0].mxu0
    %v3718 = vadd.f32 %v3333, %v3717
    %v3719 = vpop.f32.mrb[0].mxu0
    %3720 = vmatprep.mubr.f32.mxu0 %v1710
    %3721 = vmatmul.mubr.f32.gmra.mrb[0].mxu0 %v2142
    %v3722 = vpop.f32.mrb[0].mxu0
    %v3723 = vadd.f32 %v3338, %v3722
    %v3724 = vpop.f32.mrb[0].mxu0
    %3725 = vmatprep.mubr.f32.mxu0 %v1711
    %3726 = vmatmul.mubr.f32.gmra.mrb[0].mxu0 %v2143
    %v3727 = vpop.f32.mrb[0].mxu0
    %v3728 = vadd.f32 %v3343, %v3727
    %v3729 = vpop.f32.mrb[0].mxu0
    %3730 = vmatprep.mubr.f32.mxu0 %v1712
    %3731 = vmatmul.mubr.f32.gmra.mrb[0].mxu0 %v2144
    %v3732 = vpop.f32.mrb[0].mxu0
    %v3733 = vadd.f32 %v3348, %v3732
    %v3734 = vpop.f32.mrb[0].mxu0
    %3735 = vmatprep.mubr.f32.mxu0 %v1713
    %3736 = vmatmul.mubr.f32.gmra.mrb[0].mxu0 %v2145
    %v3737 = vpop.f32.mrb[0].mxu0
    %v3738 = vadd.f32 %v3353, %v3737
    %v3739 = vpop.f32.mrb[0].mxu0
    %3740 = vmatprep.mubr.f32.mxu0 %v1714
    %3741 = vmatmul.mubr.f32.gmra.mrb[0].mxu0 %v2146
    %v3742 = vpop.f32.mrb[0].mxu0
    %v3743 = vadd.f32 %v3358, %v3742
    %v3744 = vpop.f32.mrb[0].mxu0
    %3745 = vmatprep.mubr.f32.mxu0 %v1715
    %3746 = vmatmul.mubr.f32.gmra.mrb[0].mxu0 %v2147
    %v3747 = vpop.f32.mrb[0].mxu0
    %v3748 = vadd.f32 %v3363, %v3747
    %v3749 = vpop.f32.mrb[0].mxu0
    %3750 = vmatprep.mubr.f32.mxu0 %v1716
    %3751 = vmatmul.mubr.f32.gmra.mrb[0].mxu0 %v2148
    %v3752 = vpop.f32.mrb[0].mxu0
    %v3753 = vadd.f32 %v3368, %v3752
    %v3754 = vpop.f32.mrb[0].mxu0
    %3755 = vmatprep.mubr.f32.mxu0 %v1717
    %3756 = vmatmul.mubr.f32.gmra.mrb[0].mxu0 %v2149
    %v3757 = vpop.f32.mrb[0].mxu0
    %v3758 = vadd.f32 %v3373, %v3757
    %v3759 = vpop.f32.mrb[0].mxu0
    %3760 = vmatprep.mubr.f32.mxu0 %v1718
    %3761 = vmatmul.mubr.f32.gmra.mrb[0].mxu0 %v2150
    %v3762 = vpop.f32.mrb[0].mxu0
    %v3763 = vadd.f32 %v3378, %v3762
    %v3764 = vpop.f32.mrb[0].mxu0
    %3765 = vmatprep.mubr.f32.mxu0 %v1719
    %3766 = vmatmul.mubr.f32.gmra.mrb[0].mxu0 %v2151
    %v3767 = vpop.f32.mrb[0].mxu0
    %v3768 = vadd.f32 %v3383, %v3767
    %v3769 = vpop.f32.mrb[0].mxu0
    %3770 = vmatprep.mubr.f32.mxu0 %v1720
    %3771 = vmatmul.mubr.f32.gmra.mrb[0].mxu0 %v2152
    %v3772 = vpop.f32.mrb[0].mxu0
    %v3773 = vadd.f32 %v3388, %v3772
    %v3774 = vpop.f32.mrb[0].mxu0
    %3775 = vmatprep.mubr.f32.mxu0 %v1725
    %3776 = vmatmul.mubr.f32.gmra.mrb[0].mxu0 %v2157
    %v3777 = vpop.f32.mrb[0].mxu0
    %v3778 = vadd.f32 %v3393, %v3777
    %v3779 = vpop.f32.mrb[0].mxu0
    %3780 = vmatprep.mubr.f32.mxu0 %v1726
    %3781 = vmatmul.mubr.f32.gmra.mrb[0].mxu0 %v2158
    %v3782 = vpop.f32.mrb[0].mxu0
    %v3783 = vadd.f32 %v3398, %v3782
    %v3784 = vpop.f32.mrb[0].mxu0
    %3785 = vmatprep.mubr.f32.mxu0 %v1727
    %3786 = vmatmul.mubr.f32.gmra.mrb[0].mxu0 %v2159
    %v3787 = vpop.f32.mrb[0].mxu0
    %v3788 = vadd.f32 %v3403, %v3787
    %v3789 = vpop.f32.mrb[0].mxu0
    %3790 = vmatprep.mubr.f32.mxu0 %v1728
    %3791 = vmatmul.mubr.f32.gmra.mrb[0].mxu0 %v2160
    %v3792 = vpop.f32.mrb[0].mxu0
    %v3793 = vadd.f32 %v3408, %v3792
    %v3794 = vpop.f32.mrb[0].mxu0
    %3795 = vmatprep.mubr.f32.mxu0 %v1729
    %3796 = vmatmul.mubr.f32.gmra.mrb[0].mxu0 %v2161
    %v3797 = vpop.f32.mrb[0].mxu0
    %v3798 = vadd.f32 %v3413, %v3797
    %v3799 = vpop.f32.mrb[0].mxu0
    %3800 = vmatprep.mubr.f32.mxu0 %v1730
    %3801 = vmatmul.mubr.f32.gmra.mrb[0].mxu0 %v2162
    %v3802 = vpop.f32.mrb[0].mxu0
    %v3803 = vadd.f32 %v3418, %v3802
    %v3804 = vpop.f32.mrb[0].mxu0
    %3805 = vmatprep.mubr.f32.mxu0 %v1731
    %3806 = vmatmul.mubr.f32.gmra.mrb[0].mxu0 %v2163
    %v3807 = vpop.f32.mrb[0].mxu0
    %v3808 = vadd.f32 %v3423, %v3807
    %v3809 = vpop.f32.mrb[0].mxu0
    %3810 = vmatprep.mubr.f32.mxu0 %v1732
    %3811 = vmatmul.mubr.f32.gmra.mrb[0].mxu0 %v2164
    %v3812 = vpop.f32.mrb[0].mxu0
    %v3813 = vadd.f32 %v3428, %v3812
    %v3814 = vpop.f32.mrb[0].mxu0
    %3815 = vmatprep.mubr.f32.mxu0 %v1733
    %3816 = vmatmul.mubr.f32.gmra.mrb[0].mxu0 %v2165
    %v3817 = vpop.f32.mrb[0].mxu0
    %v3818 = vadd.f32 %v3433, %v3817
    %v3819 = vpop.f32.mrb[0].mxu0
    %3820 = vmatprep.mubr.f32.mxu0 %v1734
    %3821 = vmatmul.mubr.f32.gmra.mrb[0].mxu0 %v2166
    %v3822 = vpop.f32.mrb[0].mxu0
    %v3823 = vadd.f32 %v3438, %v3822
    %v3824 = vpop.f32.mrb[0].mxu0
    %3825 = vmatprep.mubr.f32.mxu0 %v1735
    %3826 = vmatmul.mubr.f32.gmra.mrb[0].mxu0 %v2167
    %v3827 = vpop.f32.mrb[0].mxu0
    %v3828 = vadd.f32 %v3443, %v3827
    %v3829 = vpop.f32.mrb[0].mxu0
    %3830 = vmatprep.mubr.f32.mxu0 %v1736
    %3831 = vmatmul.mubr.f32.gmra.mrb[0].mxu0 %v2168
    %v3832 = vpop.f32.mrb[0].mxu0
    %v3833 = vadd.f32 %v3448, %v3832
    %v3834 = vpop.f32.mrb[0].mxu0
    %3835 = vmatprep.mubr.f32.mxu0 %v1737
    %3836 = vmatmul.mubr.f32.gmra.mrb[0].mxu0 %v2169
    %v3837 = vpop.f32.mrb[0].mxu0
    %v3838 = vadd.f32 %v3453, %v3837
    %v3839 = vpop.f32.mrb[0].mxu0
    %3840 = vmatprep.mubr.f32.mxu0 %v1738
    %3841 = vmatmul.mubr.f32.gmra.mrb[0].mxu0 %v2170
    %v3842 = vpop.f32.mrb[0].mxu0
    %v3843 = vadd.f32 %v3458, %v3842
    %v3844 = vpop.f32.mrb[0].mxu0
    %3845 = vmatprep.mubr.f32.mxu0 %v1739
    %3846 = vmatmul.mubr.f32.gmra.mrb[0].mxu0 %v2171
    %v3847 = vpop.f32.mrb[0].mxu0
    %v3848 = vadd.f32 %v3463, %v3847
    %v3849 = vpop.f32.mrb[0].mxu0
    %3850 = vmatprep.mubr.f32.mxu0 %v1740
    %3851 = vmatmul.mubr.f32.gmra.mrb[0].mxu0 %v2172
    %v3852 = vpop.f32.mrb[0].mxu0
    %v3853 = vadd.f32 %v3468, %v3852
    %v3854 = vpop.f32.mrb[0].mxu0
    %3855 = vmatprep.mubr.f32.mxu0 %v1741
    %3856 = vmatmul.mubr.f32.gmra.mrb[0].mxu0 %v2173
    %v3857 = vpop.f32.mrb[0].mxu0
    %v3858 = vadd.f32 %v3473, %v3857
    %v3859 = vpop.f32.mrb[0].mxu0
    %3860 = vmatprep.mubr.f32.mxu0 %v1742
    %3861 = vmatmul.mubr.f32.gmra.mrb[0].mxu0 %v2174
    %v3862 = vpop.f32.mrb[0].mxu0
    %v3863 = vadd.f32 %v3478, %v3862
    %v3864 = vpop.f32.mrb[0].mxu0
    %3865 = vmatprep.mubr.f32.mxu0 %v1743
    %3866 = vmatmul.mubr.f32.gmra.mrb[0].mxu0 %v2175
    %v3867 = vpop.f32.mrb[0].mxu0
    %v3868 = vadd.f32 %v3483, %v3867
    %v3869 = vpop.f32.mrb[0].mxu0
    %3870 = vmatprep.mubr.f32.mxu0 %v1744
    %3871 = vmatmul.mubr.f32.gmra.mrb[0].mxu0 %v2176
    %v3872 = vpop.f32.mrb[0].mxu0
    %v3873 = vadd.f32 %v3488, %v3872
    %v3874 = vpop.f32.mrb[0].mxu0
    %3875 = vmatprep.mubr.f32.mxu0 %v1745
    %3876 = vmatmul.mubr.f32.gmra.mrb[0].mxu0 %v2177
    %v3877 = vpop.f32.mrb[0].mxu0
    %v3878 = vadd.f32 %v3493, %v3877
    %v3879 = vpop.f32.mrb[0].mxu0
    %3880 = vmatprep.mubr.f32.mxu0 %v1746
    %3881 = vmatmul.mubr.f32.gmra.mrb[0].mxu0 %v2178
    %v3882 = vpop.f32.mrb[0].mxu0
    %v3883 = vadd.f32 %v3498, %v3882
    %v3884 = vpop.f32.mrb[0].mxu0
    %3885 = vmatprep.mubr.f32.mxu0 %v1747
    %3886 = vmatmul.mubr.f32.gmra.mrb[0].mxu0 %v2179
    %v3887 = vpop.f32.mrb[0].mxu0
    %v3888 = vadd.f32 %v3503, %v3887
    %v3889 = vpop.f32.mrb[0].mxu0
    %3890 = vmatprep.mubr.f32.mxu0 %v1748
    %3891 = vmatmul.mubr.f32.gmra.mrb[0].mxu0 %v2180
    %v3892 = vpop.f32.mrb[0].mxu0
    %v3893 = vadd.f32 %v3508, %v3892
    %v3894 = vpop.f32.mrb[0].mxu0
    %3895 = vmatprep.mubr.f32.mxu0 %v1749
    %3896 = vmatmul.mubr.f32.gmra.mrb[0].mxu0 %v2181
    %v3897 = vpop.f32.mrb[0].mxu0
    %v3898 = vadd.f32 %v3513, %v3897
    %v3899 = vpop.f32.mrb[0].mxu0
    %3900 = vmatprep.mubr.f32.mxu0 %v1750
    %3901 = vmatmul.mubr.f32.gmra.mrb[0].mxu0 %v2182
    %v3902 = vpop.f32.mrb[0].mxu0
    %v3903 = vadd.f32 %v3518, %v3902
    %v3904 = vpop.f32.mrb[0].mxu0
    %3905 = vmatprep.mubr.f32.mxu0 %v1751
    %3906 = vmatmul.mubr.f32.gmra.mrb[0].mxu0 %v2183
    %v3907 = vpop.f32.mrb[0].mxu0
    %v3908 = vadd.f32 %v3523, %v3907
    %v3909 = vpop.f32.mrb[0].mxu0
    %3910 = vmatprep.mubr.f32.mxu0 %v1752
    %3911 = vmatmul.mubr.f32.gmra.mrb[0].mxu0 %v2184
    %v3912 = vpop.f32.mrb[0].mxu0
    %v3913 = vadd.f32 %v3528, %v3912
    %v3914 = vpop.f32.mrb[0].mxu0
    %3915 = vmatprep.mubr.f32.mxu0 %v1753
    %3916 = vmatmul.mubr.f32.gmra.mrb[0].mxu0 %v2185
    %v3917 = vpop.f32.mrb[0].mxu0
    %v3918 = vadd.f32 %v3533, %v3917
    %v3919 = vpop.f32.mrb[0].mxu0
    %3920 = vmatprep.mubr.f32.mxu0 %v1754
    %3921 = vmatmul.mubr.f32.gmra.mrb[0].mxu0 %v2186
    %v3922 = vpop.f32.mrb[0].mxu0
    %v3923 = vadd.f32 %v3538, %v3922
    %v3924 = vpop.f32.mrb[0].mxu0
    %3925 = vmatprep.mubr.f32.mxu0 %v1755
    %3926 = vmatmul.mubr.f32.gmra.mrb[0].mxu0 %v2187
    %v3927 = vpop.f32.mrb[0].mxu0
    %v3928 = vadd.f32 %v3543, %v3927
    %v3929 = vpop.f32.mrb[0].mxu0
    %3930 = vmatprep.mubr.f32.mxu0 %v1756
    %3931 = vmatmul.mubr.f32.gmra.mrb[0].mxu0 %v2188
    %v3932 = vpop.f32.mrb[0].mxu0
    %v3933 = vadd.f32 %v3548, %v3932
    %v3934 = vpop.f32.mrb[0].mxu0
    %3935 = vdwg.mxu0
    %3936 = vmatprep.subr.mxu0 0.0
    %3937 = vmatpush1.msra.mxu0 %v3079
    %3938 = vmatprep.subr.mxu0 0.0
    %3939 = vmatpush1.msra.mxu0 %v3080
    %3940 = vmatprep.subr.mxu0 0.0
    %3941 = vmatpush1.msra.mxu0 %v3081
    %3942 = vmatprep.subr.mxu0 0.0
    %3943 = vmatpush1.msra.mxu0 %v3082
    %3944 = vmatprep.subr.mxu0 0.0
    %3945 = vmatpush1.msra.mxu0 %v3083
    %3946 = vmatprep.subr.mxu0 0.0
    %3947 = vmatpush1.msra.mxu0 %v3084
    %3948 = vmatprep.subr.mxu0 0.0
    %3949 = vmatpush1.msra.mxu0 %v3085
    %3950 = vmatprep.subr.mxu0 0.0
    %3951 = vmatpush1.msra.mxu0 %v3086
    %3952 = vmatprep.subr.mxu0 0.0
    %3953 = vmatpush1.msra.mxu0 %v3087
    %3954 = vmatprep.subr.mxu0 0.0
    %3955 = vmatpush1.msra.mxu0 %v3088
    %3956 = vmatprep.subr.mxu0 0.0
    %3957 = vmatpush1.msra.mxu0 %v3089
    %3958 = vmatprep.subr.mxu0 0.0
    %3959 = vmatpush1.msra.mxu0 %v3090
    %3960 = vmatprep.subr.mxu0 0.0
    %3961 = vmatpush1.msra.mxu0 %v3091
    %3962 = vmatprep.subr.mxu0 0.0
    %3963 = vmatpush1.msra.mxu0 %v3092
    %3964 = vmatprep.subr.mxu0 0.0
    %3965 = vmatpush1.msra.mxu0 %v3093
    %3966 = vmatprep.subr.mxu0 0.0
    %3967 = vmatpush1.msra.mxu0 %v3094
    %3968 = vmatprep.subr.mxu0 0.0
    %3969 = vmatpush1.msra.mxu0 %v3095
    %3970 = vmatprep.subr.mxu0 0.0
    %3971 = vmatpush1.msra.mxu0 %v3096
    %3972 = vmatprep.subr.mxu0 0.0
    %3973 = vmatpush1.msra.mxu0 %v3097
    %3974 = vmatprep.subr.mxu0 0.0
    %3975 = vmatpush1.msra.mxu0 %v3098
    %3976 = vmatprep.subr.mxu0 0.0
    %3977 = vmatpush1.msra.mxu0 %v3099
    %3978 = vmatprep.subr.mxu0 0.0
    %3979 = vmatpush1.msra.mxu0 %v3100
    %3980 = vmatprep.subr.mxu0 0.0
    %3981 = vmatpush1.msra.mxu0 %v3101
    %3982 = vmatprep.subr.mxu0 0.0
    %3983 = vmatpush1.msra.mxu0 %v3102
    %3984 = vmatprep.subr.mxu0 0.0
    %3985 = vmatpush1.msra.mxu0 %v3103
    %3986 = vmatprep.subr.mxu0 0.0
    %3987 = vmatpush1.msra.mxu0 %v3104
    %3988 = vmatprep.subr.mxu0 0.0
    %3989 = vmatpush1.msra.mxu0 %v3105
    %3990 = vmatprep.subr.mxu0 0.0
    %3991 = vmatpush1.msra.mxu0 %v3106
    %3992 = vmatprep.subr.mxu0 0.0
    %3993 = vmatpush1.msra.mxu0 %v3107
    %3994 = vmatprep.subr.mxu0 0.0
    %3995 = vmatpush1.msra.mxu0 %v3108
    %3996 = vmatprep.subr.mxu0 0.0
    %3997 = vmatpush1.msra.mxu0 %v3109
    %3998 = vmatprep.subr.mxu0 0.0
    %3999 = vmatpush1.msra.mxu0 %v3110
    %4000 = vmatprep.mubr.f32.mxu0 %v2123
    %4001 = vmatmul.mubr.f32.gmra.mrb[0].mxu0 %v1183
    %v4002 = vpop.f32.mrb[0].mxu0
    %v4003 = vadd.f32 %v3618, %v4002
    %v4004 = vpop.f32.mrb[0].mxu0
    %4005 = vmatprep.mubr.f32.mxu0 %v2124
    %4006 = vmatmul.mubr.f32.gmra.mrb[0].mxu0 %v1184
    %v4007 = vpop.f32.mrb[0].mxu0
    %v4008 = vadd.f32 %v3623, %v4007
    %v4009 = vpop.f32.mrb[0].mxu0
    %4010 = vmatprep.mubr.f32.mxu0 %v2125
    %4011 = vmatmul.mubr.f32.gmra.mrb[0].mxu0 %v1185
    %v4012 = vpop.f32.mrb[0].mxu0
    %v4013 = vadd.f32 %v3628, %v4012
    %v4014 = vpop.f32.mrb[0].mxu0
    %4015 = vmatprep.mubr.f32.mxu0 %v2126
    %4016 = vmatmul.mubr.f32.gmra.mrb[0].mxu0 %v1186
    %v4017 = vpop.f32.mrb[0].mxu0
    %v4018 = vadd.f32 %v3633, %v4017
    %v4019 = vpop.f32.mrb[0].mxu0
    %4020 = vmatprep.mubr.f32.mxu0 %v2127
    %4021 = vmatmul.mubr.f32.gmra.mrb[0].mxu0 %v1187
    %v4022 = vpop.f32.mrb[0].mxu0
    %v4023 = vadd.f32 %v3638, %v4022
    %v4024 = vpop.f32.mrb[0].mxu0
    %4025 = vmatprep.mubr.f32.mxu0 %v2128
    %4026 = vmatmul.mubr.f32.gmra.mrb[0].mxu0 %v1188
    %v4027 = vpop.f32.mrb[0].mxu0
    %v4028 = vadd.f32 %v3643, %v4027
    %v4029 = vpop.f32.mrb[0].mxu0
    %4030 = vmatprep.mubr.f32.mxu0 %v2129
    %4031 = vmatmul.mubr.f32.gmra.mrb[0].mxu0 %v1189
    %v4032 = vpop.f32.mrb[0].mxu0
    %v4033 = vadd.f32 %v3648, %v4032
    %v4034 = vpop.f32.mrb[0].mxu0
    %4035 = vmatprep.mubr.f32.mxu0 %v2130
    %4036 = vmatmul.mubr.f32.gmra.mrb[0].mxu0 %v1190
    %v4037 = vpop.f32.mrb[0].mxu0
    %v4038 = vadd.f32 %v3653, %v4037
    %v4039 = vpop.f32.mrb[0].mxu0
    %4040 = vmatprep.mubr.f32.mxu0 %v2131
    %4041 = vmatmul.mubr.f32.gmra.mrb[0].mxu0 %v1191
    %v4042 = vpop.f32.mrb[0].mxu0
    %v4043 = vadd.f32 %v3658, %v4042
    %v4044 = vpop.f32.mrb[0].mxu0
    %4045 = vmatprep.mubr.f32.mxu0 %v2132
    %4046 = vmatmul.mubr.f32.gmra.mrb[0].mxu0 %v1192
    %v4047 = vpop.f32.mrb[0].mxu0
    %v4048 = vadd.f32 %v3663, %v4047
    %v4049 = vpop.f32.mrb[0].mxu0
    %4050 = vmatprep.mubr.f32.mxu0 %v2133
    %4051 = vmatmul.mubr.f32.gmra.mrb[0].mxu0 %v1193
    %v4052 = vpop.f32.mrb[0].mxu0
    %v4053 = vadd.f32 %v3668, %v4052
    %v4054 = vpop.f32.mrb[0].mxu0
    %4055 = vmatprep.mubr.f32.mxu0 %v2134
    %4056 = vmatmul.mubr.f32.gmra.mrb[0].mxu0 %v1194
    %v4057 = vpop.f32.mrb[0].mxu0
    %v4058 = vadd.f32 %v3673, %v4057
    %v4059 = vpop.f32.mrb[0].mxu0
    %4060 = vmatprep.mubr.f32.mxu0 %v2135
    %4061 = vmatmul.mubr.f32.gmra.mrb[0].mxu0 %v1195
    %v4062 = vpop.f32.mrb[0].mxu0
    %v4063 = vadd.f32 %v3678, %v4062
    %v4064 = vpop.f32.mrb[0].mxu0
    %4065 = vmatprep.mubr.f32.mxu0 %v2136
    %4066 = vmatmul.mubr.f32.gmra.mrb[0].mxu0 %v1196
    %v4067 = vpop.f32.mrb[0].mxu0
    %v4068 = vadd.f32 %v3683, %v4067
    %v4069 = vpop.f32.mrb[0].mxu0
    %4070 = vmatprep.mubr.f32.mxu0 %v2137
    %4071 = vmatmul.mubr.f32.gmra.mrb[0].mxu0 %v1197
    %v4072 = vpop.f32.mrb[0].mxu0
    %v4073 = vadd.f32 %v3688, %v4072
    %v4074 = vpop.f32.mrb[0].mxu0
    %4075 = vmatprep.mubr.f32.mxu0 %v2138
    %4076 = vmatmul.mubr.f32.gmra.mrb[0].mxu0 %v1198
    %v4077 = vpop.f32.mrb[0].mxu0
    %v4078 = vadd.f32 %v3693, %v4077
    %v4079 = vpop.f32.mrb[0].mxu0
    %4080 = vmatprep.mubr.f32.mxu0 %v2139
    %4081 = vmatmul.mubr.f32.gmra.mrb[0].mxu0 %v1199
    %v4082 = vpop.f32.mrb[0].mxu0
    %v4083 = vadd.f32 %v3698, %v4082
    %v4084 = vpop.f32.mrb[0].mxu0
    %4085 = vmatprep.mubr.f32.mxu0 %v2140
    %4086 = vmatmul.mubr.f32.gmra.mrb[0].mxu0 %v1200
    %v4087 = vpop.f32.mrb[0].mxu0
    %v4088 = vadd.f32 %v3703, %v4087
    %v4089 = vpop.f32.mrb[0].mxu0
    %4090 = vmatprep.mubr.f32.mxu0 %v2141
    %4091 = vmatmul.mubr.f32.gmra.mrb[0].mxu0 %v1201
    %v4092 = vpop.f32.mrb[0].mxu0
    %v4093 = vadd.f32 %v3708, %v4092
    %v4094 = vpop.f32.mrb[0].mxu0
    %4095 = vmatprep.mubr.f32.mxu0 %v2142
    %4096 = vmatmul.mubr.f32.gmra.mrb[0].mxu0 %v1202
    %v4097 = vpop.f32.mrb[0].mxu0
    %v4098 = vadd.f32 %v3713, %v4097
    %v4099 = vpop.f32.mrb[0].mxu0
    %4100 = vmatprep.mubr.f32.mxu0 %v2143
    %4101 = vmatmul.mubr.f32.gmra.mrb[0].mxu0 %v1203
    %v4102 = vpop.f32.mrb[0].mxu0
    %v4103 = vadd.f32 %v3718, %v4102
    %v4104 = vpop.f32.mrb[0].mxu0
    %4105 = vmatprep.mubr.f32.mxu0 %v2144
    %4106 = vmatmul.mubr.f32.gmra.mrb[0].mxu0 %v1204
    %v4107 = vpop.f32.mrb[0].mxu0
    %v4108 = vadd.f32 %v3723, %v4107
    %v4109 = vpop.f32.mrb[0].mxu0
    %4110 = vmatprep.mubr.f32.mxu0 %v2145
    %4111 = vmatmul.mubr.f32.gmra.mrb[0].mxu0 %v1205
    %v4112 = vpop.f32.mrb[0].mxu0
    %v4113 = vadd.f32 %v3728, %v4112
    %v4114 = vpop.f32.mrb[0].mxu0
    %4115 = vmatprep.mubr.f32.mxu0 %v2146
    %4116 = vmatmul.mubr.f32.gmra.mrb[0].mxu0 %v1206
    %v4117 = vpop.f32.mrb[0].mxu0
    %v4118 = vadd.f32 %v3733, %v4117
    %v4119 = vpop.f32.mrb[0].mxu0
    %4120 = vmatprep.mubr.f32.mxu0 %v2147
    %4121 = vmatmul.mubr.f32.gmra.mrb[0].mxu0 %v1207
    %v4122 = vpop.f32.mrb[0].mxu0
    %v4123 = vadd.f32 %v3738, %v4122
    %v4124 = vpop.f32.mrb[0].mxu0
    %4125 = vmatprep.mubr.f32.mxu0 %v2148
    %4126 = vmatmul.mubr.f32.gmra.mrb[0].mxu0 %v1208
    %v4127 = vpop.f32.mrb[0].mxu0
    %v4128 = vadd.f32 %v3743, %v4127
    %v4129 = vpop.f32.mrb[0].mxu0
    %4130 = vmatprep.mubr.f32.mxu0 %v2149
    %4131 = vmatmul.mubr.f32.gmra.mrb[0].mxu0 %v1209
    %v4132 = vpop.f32.mrb[0].mxu0
    %v4133 = vadd.f32 %v3748, %v4132
    %v4134 = vpop.f32.mrb[0].mxu0
    %4135 = vmatprep.mubr.f32.mxu0 %v2150
    %4136 = vmatmul.mubr.f32.gmra.mrb[0].mxu0 %v1210
    %v4137 = vpop.f32.mrb[0].mxu0
    %v4138 = vadd.f32 %v3753, %v4137
    %v4139 = vpop.f32.mrb[0].mxu0
    %4140 = vmatprep.mubr.f32.mxu0 %v2151
    %4141 = vmatmul.mubr.f32.gmra.mrb[0].mxu0 %v1211
    %v4142 = vpop.f32.mrb[0].mxu0
    %v4143 = vadd.f32 %v3758, %v4142
    %v4144 = vpop.f32.mrb[0].mxu0
    %4145 = vmatprep.mubr.f32.mxu0 %v2152
    %4146 = vmatmul.mubr.f32.gmra.mrb[0].mxu0 %v1212
    %v4147 = vpop.f32.mrb[0].mxu0
    %v4148 = vadd.f32 %v3763, %v4147
    %v4149 = vpop.f32.mrb[0].mxu0
    %4150 = vmatprep.mubr.f32.mxu0 %v2153
    %4151 = vmatmul.mubr.f32.gmra.mrb[0].mxu0 %v1213
    %v4152 = vpop.f32.mrb[0].mxu0
    %v4153 = vadd.f32 %v3768, %v4152
    %v4154 = vpop.f32.mrb[0].mxu0
    %4155 = vmatprep.mubr.f32.mxu0 %v2154
    %4156 = vmatmul.mubr.f32.gmra.mrb[0].mxu0 %v1214
    %v4157 = vpop.f32.mrb[0].mxu0
    %v4158 = vadd.f32 %v3773, %v4157
    %v4159 = vpop.f32.mrb[0].mxu0
    %4160 = vmatprep.mubr.f32.mxu0 %v2159
    %4161 = vmatmul.mubr.f32.gmra.mrb[0].mxu0 %v1219
    %v4162 = vpop.f32.mrb[0].mxu0
    %v4163 = vadd.f32 %v3778, %v4162
    %v4164 = vpop.f32.mrb[0].mxu0
    %4165 = vmatprep.mubr.f32.mxu0 %v2160
    %4166 = vmatmul.mubr.f32.gmra.mrb[0].mxu0 %v1220
    %v4167 = vpop.f32.mrb[0].mxu0
    %v4168 = vadd.f32 %v3783, %v4167
    %v4169 = vpop.f32.mrb[0].mxu0
    %4170 = vmatprep.mubr.f32.mxu0 %v2161
    %4171 = vmatmul.mubr.f32.gmra.mrb[0].mxu0 %v1221
    %v4172 = vpop.f32.mrb[0].mxu0
    %v4173 = vadd.f32 %v3788, %v4172
    %v4174 = vpop.f32.mrb[0].mxu0
    %4175 = vmatprep.mubr.f32.mxu0 %v2162
    %4176 = vmatmul.mubr.f32.gmra.mrb[0].mxu0 %v1222
    %v4177 = vpop.f32.mrb[0].mxu0
    %v4178 = vadd.f32 %v3793, %v4177
    %v4179 = vpop.f32.mrb[0].mxu0
    %4180 = vmatprep.mubr.f32.mxu0 %v2163
    %4181 = vmatmul.mubr.f32.gmra.mrb[0].mxu0 %v1223
    %v4182 = vpop.f32.mrb[0].mxu0
    %v4183 = vadd.f32 %v3798, %v4182
    %v4184 = vpop.f32.mrb[0].mxu0
    %4185 = vmatprep.mubr.f32.mxu0 %v2164
    %4186 = vmatmul.mubr.f32.gmra.mrb[0].mxu0 %v1224
    %v4187 = vpop.f32.mrb[0].mxu0
    %v4188 = vadd.f32 %v3803, %v4187
    %v4189 = vpop.f32.mrb[0].mxu0
    %4190 = vmatprep.mubr.f32.mxu0 %v2165
    %4191 = vmatmul.mubr.f32.gmra.mrb[0].mxu0 %v1225
    %v4192 = vpop.f32.mrb[0].mxu0
    %v4193 = vadd.f32 %v3808, %v4192
    %v4194 = vpop.f32.mrb[0].mxu0
    %4195 = vmatprep.mubr.f32.mxu0 %v2166
    %4196 = vmatmul.mubr.f32.gmra.mrb[0].mxu0 %v1226
    %v4197 = vpop.f32.mrb[0].mxu0
    %v4198 = vadd.f32 %v3813, %v4197
    %v4199 = vpop.f32.mrb[0].mxu0
    %4200 = vmatprep.mubr.f32.mxu0 %v2167
    %4201 = vmatmul.mubr.f32.gmra.mrb[0].mxu0 %v1227
    %v4202 = vpop.f32.mrb[0].mxu0
    %v4203 = vadd.f32 %v3818, %v4202
    %v4204 = vpop.f32.mrb[0].mxu0
    %4205 = vmatprep.mubr.f32.mxu0 %v2168
    %4206 = vmatmul.mubr.f32.gmra.mrb[0].mxu0 %v1228
    %v4207 = vpop.f32.mrb[0].mxu0
    %v4208 = vadd.f32 %v3823, %v4207
    %v4209 = vpop.f32.mrb[0].mxu0
    %4210 = vmatprep.mubr.f32.mxu0 %v2169
    %4211 = vmatmul.mubr.f32.gmra.mrb[0].mxu0 %v1229
    %v4212 = vpop.f32.mrb[0].mxu0
    %v4213 = vadd.f32 %v3828, %v4212
    %v4214 = vpop.f32.mrb[0].mxu0
    %4215 = vmatprep.mubr.f32.mxu0 %v2170
    %4216 = vmatmul.mubr.f32.gmra.mrb[0].mxu0 %v1230
    %v4217 = vpop.f32.mrb[0].mxu0
    %v4218 = vadd.f32 %v3833, %v4217
    %v4219 = vpop.f32.mrb[0].mxu0
    %4220 = vmatprep.mubr.f32.mxu0 %v2171
    %4221 = vmatmul.mubr.f32.gmra.mrb[0].mxu0 %v1231
    %v4222 = vpop.f32.mrb[0].mxu0
    %v4223 = vadd.f32 %v3838, %v4222
    %v4224 = vpop.f32.mrb[0].mxu0
    %4225 = vmatprep.mubr.f32.mxu0 %v2172
    %4226 = vmatmul.mubr.f32.gmra.mrb[0].mxu0 %v1232
    %v4227 = vpop.f32.mrb[0].mxu0
    %v4228 = vadd.f32 %v3843, %v4227
    %v4229 = vpop.f32.mrb[0].mxu0
    %4230 = vmatprep.mubr.f32.mxu0 %v2173
    %4231 = vmatmul.mubr.f32.gmra.mrb[0].mxu0 %v1233
    %v4232 = vpop.f32.mrb[0].mxu0
    %v4233 = vadd.f32 %v3848, %v4232
    %v4234 = vpop.f32.mrb[0].mxu0
    %4235 = vmatprep.mubr.f32.mxu0 %v2174
    %4236 = vmatmul.mubr.f32.gmra.mrb[0].mxu0 %v1234
    %v4237 = vpop.f32.mrb[0].mxu0
    %v4238 = vadd.f32 %v3853, %v4237
    %v4239 = vpop.f32.mrb[0].mxu0
    %4240 = vmatprep.mubr.f32.mxu0 %v2175
    %4241 = vmatmul.mubr.f32.gmra.mrb[0].mxu0 %v1235
    %v4242 = vpop.f32.mrb[0].mxu0
    %v4243 = vadd.f32 %v3858, %v4242
    %v4244 = vpop.f32.mrb[0].mxu0
    %4245 = vmatprep.mubr.f32.mxu0 %v2176
    %4246 = vmatmul.mubr.f32.gmra.mrb[0].mxu0 %v1236
    %v4247 = vpop.f32.mrb[0].mxu0
    %v4248 = vadd.f32 %v3863, %v4247
    %v4249 = vpop.f32.mrb[0].mxu0
    %4250 = vmatprep.mubr.f32.mxu0 %v2177
    %4251 = vmatmul.mubr.f32.gmra.mrb[0].mxu0 %v1237
    %v4252 = vpop.f32.mrb[0].mxu0
    %v4253 = vadd.f32 %v3868, %v4252
    %v4254 = vpop.f32.mrb[0].mxu0
    %4255 = vmatprep.mubr.f32.mxu0 %v2178
    %4256 = vmatmul.mubr.f32.gmra.mrb[0].mxu0 %v1238
    %v4257 = vpop.f32.mrb[0].mxu0
    %v4258 = vadd.f32 %v3873, %v4257
    %v4259 = vpop.f32.mrb[0].mxu0
    %4260 = vmatprep.mubr.f32.mxu0 %v2179
    %4261 = vmatmul.mubr.f32.gmra.mrb[0].mxu0 %v1239
    %v4262 = vpop.f32.mrb[0].mxu0
    %v4263 = vadd.f32 %v3878, %v4262
    %v4264 = vpop.f32.mrb[0].mxu0
    %4265 = vmatprep.mubr.f32.mxu0 %v2180
    %4266 = vmatmul.mubr.f32.gmra.mrb[0].mxu0 %v1240
    %v4267 = vpop.f32.mrb[0].mxu0
    %v4268 = vadd.f32 %v3883, %v4267
    %v4269 = vpop.f32.mrb[0].mxu0
    %4270 = vmatprep.mubr.f32.mxu0 %v2181
    %4271 = vmatmul.mubr.f32.gmra.mrb[0].mxu0 %v1241
    %v4272 = vpop.f32.mrb[0].mxu0
    %v4273 = vadd.f32 %v3888, %v4272
    %v4274 = vpop.f32.mrb[0].mxu0
    %4275 = vmatprep.mubr.f32.mxu0 %v2182
    %4276 = vmatmul.mubr.f32.gmra.mrb[0].mxu0 %v1242
    %v4277 = vpop.f32.mrb[0].mxu0
    %v4278 = vadd.f32 %v3893, %v4277
    %v4279 = vpop.f32.mrb[0].mxu0
    %4280 = vmatprep.mubr.f32.mxu0 %v2183
    %4281 = vmatmul.mubr.f32.gmra.mrb[0].mxu0 %v1243
    %v4282 = vpop.f32.mrb[0].mxu0
    %v4283 = vadd.f32 %v3898, %v4282
    %v4284 = vpop.f32.mrb[0].mxu0
    %4285 = vmatprep.mubr.f32.mxu0 %v2184
    %4286 = vmatmul.mubr.f32.gmra.mrb[0].mxu0 %v1244
    %v4287 = vpop.f32.mrb[0].mxu0
    %v4288 = vadd.f32 %v3903, %v4287
    %v4289 = vpop.f32.mrb[0].mxu0
    %4290 = vmatprep.mubr.f32.mxu0 %v2185
    %4291 = vmatmul.mubr.f32.gmra.mrb[0].mxu0 %v1245
    %v4292 = vpop.f32.mrb[0].mxu0
    %v4293 = vadd.f32 %v3908, %v4292
    %v4294 = vpop.f32.mrb[0].mxu0
    %4295 = vmatprep.mubr.f32.mxu0 %v2186
    %4296 = vmatmul.mubr.f32.gmra.mrb[0].mxu0 %v1246
    %v4297 = vpop.f32.mrb[0].mxu0
    %v4298 = vadd.f32 %v3913, %v4297
    %v4299 = vpop.f32.mrb[0].mxu0
    %4300 = vmatprep.mubr.f32.mxu0 %v2187
    %4301 = vmatmul.mubr.f32.gmra.mrb[0].mxu0 %v1247
    %v4302 = vpop.f32.mrb[0].mxu0
    %v4303 = vadd.f32 %v3918, %v4302
    %v4304 = vpop.f32.mrb[0].mxu0
    %4305 = vmatprep.mubr.f32.mxu0 %v2188
    %4306 = vmatmul.mubr.f32.gmra.mrb[0].mxu0 %v1248
    %v4307 = vpop.f32.mrb[0].mxu0
    %v4308 = vadd.f32 %v3923, %v4307
    %v4309 = vpop.f32.mrb[0].mxu0
    %4310 = vmatprep.mubr.f32.mxu0 %v2189
    %4311 = vmatmul.mubr.f32.gmra.mrb[0].mxu0 %v1249
    %v4312 = vpop.f32.mrb[0].mxu0
    %v4313 = vadd.f32 %v3928, %v4312
    %v4314 = vpop.f32.mrb[0].mxu0
    %4315 = vmatprep.mubr.f32.mxu0 %v2190
    %4316 = vmatmul.mubr.f32.gmra.mrb[0].mxu0 %v1250
    %v4317 = vpop.f32.mrb[0].mxu0
    %v4318 = vadd.f32 %v3933, %v4317
    %v4319 = vpop.f32.mrb[0].mxu0
    %4320 = vdwg.mxu0
    %4321 = vmatprep.subr.mxu0 0.0
    %4322 = vmatpush1.msra.mxu0 %v3111
    %4323 = vmatprep.subr.mxu0 0.0
    %4324 = vmatpush1.msra.mxu0 %v3112
    %4325 = vmatprep.subr.mxu0 0.0
    %4326 = vmatpush1.msra.mxu0 %v3113
    %4327 = vmatprep.subr.mxu0 0.0
    %4328 = vmatpush1.msra.mxu0 %v3114
    %4329 = vmatprep.subr.mxu0 0.0
    %4330 = vmatpush1.msra.mxu0 %v3115
    %4331 = vmatprep.subr.mxu0 0.0
    %4332 = vmatpush1.msra.mxu0 %v3116
    %4333 = vmatprep.subr.mxu0 0.0
    %4334 = vmatpush1.msra.mxu0 %v3117
    %4335 = vmatprep.subr.mxu0 0.0
    %4336 = vmatpush1.msra.mxu0 %v3118
    %4337 = vmatprep.subr.mxu0 0.0
    %4338 = vmatpush1.msra.mxu0 %v3119
    %4339 = vmatprep.subr.mxu0 0.0
    %4340 = vmatpush1.msra.mxu0 %v3120
    %4341 = vmatprep.subr.mxu0 0.0
    %4342 = vmatpush1.msra.mxu0 %v3121
    %4343 = vmatprep.subr.mxu0 0.0
    %4344 = vmatpush1.msra.mxu0 %v3122
    %4345 = vmatprep.subr.mxu0 0.0
    %4346 = vmatpush1.msra.mxu0 %v3123
    %4347 = vmatprep.subr.mxu0 0.0
    %4348 = vmatpush1.msra.mxu0 %v3124
    %4349 = vmatprep.subr.mxu0 0.0
    %4350 = vmatpush1.msra.mxu0 %v3125
    %4351 = vmatprep.subr.mxu0 0.0
    %4352 = vmatpush1.msra.mxu0 %v3126
    %4353 = vmatprep.subr.mxu0 0.0
    %4354 = vmatpush1.msra.mxu0 %v3127
    %4355 = vmatprep.subr.mxu0 0.0
    %4356 = vmatpush1.msra.mxu0 %v3128
    %4357 = vmatprep.subr.mxu0 0.0
    %4358 = vmatpush1.msra.mxu0 %v3129
    %4359 = vmatprep.subr.mxu0 0.0
    %4360 = vmatpush1.msra.mxu0 %v3130
    %4361 = vmatprep.subr.mxu0 0.0
    %4362 = vmatpush1.msra.mxu0 %v3131
    %4363 = vmatprep.subr.mxu0 0.0
    %4364 = vmatpush1.msra.mxu0 %v3132
    %4365 = vmatprep.subr.mxu0 0.0
    %4366 = vmatpush1.msra.mxu0 %v3133
    %4367 = vmatprep.subr.mxu0 0.0
    %4368 = vmatpush1.msra.mxu0 %v3134
    %4369 = vmatprep.subr.mxu0 0.0
    %4370 = vmatpush1.msra.mxu0 %v3135
    %4371 = vmatprep.subr.mxu0 0.0
    %4372 = vmatpush1.msra.mxu0 %v3136
    %4373 = vmatprep.subr.mxu0 0.0
    %4374 = vmatpush1.msra.mxu0 %v3137
    %4375 = vmatprep.subr.mxu0 0.0
    %4376 = vmatpush1.msra.mxu0 %v3138
    %4377 = vmatprep.subr.mxu0 0.0
    %4378 = vmatpush1.msra.mxu0 %v3139
    %4379 = vmatprep.subr.mxu0 0.0
    %4380 = vmatpush1.msra.mxu0 %v3140
    %4381 = vmatprep.subr.mxu0 0.0
    %4382 = vmatpush1.msra.mxu0 %v3141
    %4383 = vmatprep.subr.mxu0 0.0
    %4384 = vmatpush1.msra.mxu0 %v3142
    %4385 = vmatprep.mubr.f32.mxu0 %v1185
    %4386 = vmatmul.mubr.f32.gmra.mrb[0].mxu0 %v1691
    %v4387 = vpop.f32.mrb[0].mxu0
    %v4388 = vadd.f32 %v4003, %v4387
    %v4389 = vpop.f32.mrb[0].mxu0
    %4390 = vmatprep.mubr.f32.mxu0 %v1186
    %4391 = vmatmul.mubr.f32.gmra.mrb[0].mxu0 %v1692
    %v4392 = vpop.f32.mrb[0].mxu0
    %v4393 = vadd.f32 %v4008, %v4392
    %v4394 = vpop.f32.mrb[0].mxu0
    %4395 = vmatprep.mubr.f32.mxu0 %v1187
    %4396 = vmatmul.mubr.f32.gmra.mrb[0].mxu0 %v1693
    %v4397 = vpop.f32.mrb[0].mxu0
    %v4398 = vadd.f32 %v4013, %v4397
    %v4399 = vpop.f32.mrb[0].mxu0
    %4400 = vmatprep.mubr.f32.mxu0 %v1188
    %4401 = vmatmul.mubr.f32.gmra.mrb[0].mxu0 %v1694
    %v4402 = vpop.f32.mrb[0].mxu0
    %v4403 = vadd.f32 %v4018, %v4402
    %v4404 = vpop.f32.mrb[0].mxu0
    %4405 = vmatprep.mubr.f32.mxu0 %v1189
    %4406 = vmatmul.mubr.f32.gmra.mrb[0].mxu0 %v1695
    %v4407 = vpop.f32.mrb[0].mxu0
    %v4408 = vadd.f32 %v4023, %v4407
    %v4409 = vpop.f32.mrb[0].mxu0
    %4410 = vmatprep.mubr.f32.mxu0 %v1190
    %4411 = vmatmul.mubr.f32.gmra.mrb[0].mxu0 %v1696
    %v4412 = vpop.f32.mrb[0].mxu0
    %v4413 = vadd.f32 %v4028, %v4412
    %v4414 = vpop.f32.mrb[0].mxu0
    %4415 = vmatprep.mubr.f32.mxu0 %v1191
    %4416 = vmatmul.mubr.f32.gmra.mrb[0].mxu0 %v1697
    %v4417 = vpop.f32.mrb[0].mxu0
    %v4418 = vadd.f32 %v4033, %v4417
    %v4419 = vpop.f32.mrb[0].mxu0
    %4420 = vmatprep.mubr.f32.mxu0 %v1192
    %4421 = vmatmul.mubr.f32.gmra.mrb[0].mxu0 %v1698
    %v4422 = vpop.f32.mrb[0].mxu0
    %v4423 = vadd.f32 %v4038, %v4422
    %v4424 = vpop.f32.mrb[0].mxu0
    %4425 = vmatprep.mubr.f32.mxu0 %v1193
    %4426 = vmatmul.mubr.f32.gmra.mrb[0].mxu0 %v1699
    %v4427 = vpop.f32.mrb[0].mxu0
    %v4428 = vadd.f32 %v4043, %v4427
    %v4429 = vpop.f32.mrb[0].mxu0
    %4430 = vmatprep.mubr.f32.mxu0 %v1194
    %4431 = vmatmul.mubr.f32.gmra.mrb[0].mxu0 %v1700
    %v4432 = vpop.f32.mrb[0].mxu0
    %v4433 = vadd.f32 %v4048, %v4432
    %v4434 = vpop.f32.mrb[0].mxu0
    %4435 = vmatprep.mubr.f32.mxu0 %v1195
    %4436 = vmatmul.mubr.f32.gmra.mrb[0].mxu0 %v1701
    %v4437 = vpop.f32.mrb[0].mxu0
    %v4438 = vadd.f32 %v4053, %v4437
    %v4439 = vpop.f32.mrb[0].mxu0
    %4440 = vmatprep.mubr.f32.mxu0 %v1196
    %4441 = vmatmul.mubr.f32.gmra.mrb[0].mxu0 %v1702
    %v4442 = vpop.f32.mrb[0].mxu0
    %v4443 = vadd.f32 %v4058, %v4442
    %v4444 = vpop.f32.mrb[0].mxu0
    %4445 = vmatprep.mubr.f32.mxu0 %v1197
    %4446 = vmatmul.mubr.f32.gmra.mrb[0].mxu0 %v1703
    %v4447 = vpop.f32.mrb[0].mxu0
    %v4448 = vadd.f32 %v4063, %v4447
    %v4449 = vpop.f32.mrb[0].mxu0
    %4450 = vmatprep.mubr.f32.mxu0 %v1198
    %4451 = vmatmul.mubr.f32.gmra.mrb[0].mxu0 %v1704
    %v4452 = vpop.f32.mrb[0].mxu0
    %v4453 = vadd.f32 %v4068, %v4452
    %v4454 = vpop.f32.mrb[0].mxu0
    %4455 = vmatprep.mubr.f32.mxu0 %v1199
    %4456 = vmatmul.mubr.f32.gmra.mrb[0].mxu0 %v1705
    %v4457 = vpop.f32.mrb[0].mxu0
    %v4458 = vadd.f32 %v4073, %v4457
    %v4459 = vpop.f32.mrb[0].mxu0
    %4460 = vmatprep.mubr.f32.mxu0 %v1200
    %4461 = vmatmul.mubr.f32.gmra.mrb[0].mxu0 %v1706
    %v4462 = vpop.f32.mrb[0].mxu0
    %v4463 = vadd.f32 %v4078, %v4462
    %v4464 = vpop.f32.mrb[0].mxu0
    %4465 = vmatprep.mubr.f32.mxu0 %v1201
    %4466 = vmatmul.mubr.f32.gmra.mrb[0].mxu0 %v1707
    %v4467 = vpop.f32.mrb[0].mxu0
    %v4468 = vadd.f32 %v4083, %v4467
    %v4469 = vpop.f32.mrb[0].mxu0
    %4470 = vmatprep.mubr.f32.mxu0 %v1202
    %4471 = vmatmul.mubr.f32.gmra.mrb[0].mxu0 %v1708
    %v4472 = vpop.f32.mrb[0].mxu0
    %v4473 = vadd.f32 %v4088, %v4472
    %v4474 = vpop.f32.mrb[0].mxu0
    %4475 = vmatprep.mubr.f32.mxu0 %v1203
    %4476 = vmatmul.mubr.f32.gmra.mrb[0].mxu0 %v1709
    %v4477 = vpop.f32.mrb[0].mxu0
    %v4478 = vadd.f32 %v4093, %v4477
    %v4479 = vpop.f32.mrb[0].mxu0
    %4480 = vmatprep.mubr.f32.mxu0 %v1204
    %4481 = vmatmul.mubr.f32.gmra.mrb[0].mxu0 %v1710
    %v4482 = vpop.f32.mrb[0].mxu0
    %v4483 = vadd.f32 %v4098, %v4482
    %v4484 = vpop.f32.mrb[0].mxu0
    %4485 = vmatprep.mubr.f32.mxu0 %v1205
    %4486 = vmatmul.mubr.f32.gmra.mrb[0].mxu0 %v1711
    %v4487 = vpop.f32.mrb[0].mxu0
    %v4488 = vadd.f32 %v4103, %v4487
    %v4489 = vpop.f32.mrb[0].mxu0
    %4490 = vmatprep.mubr.f32.mxu0 %v1206
    %4491 = vmatmul.mubr.f32.gmra.mrb[0].mxu0 %v1712
    %v4492 = vpop.f32.mrb[0].mxu0
    %v4493 = vadd.f32 %v4108, %v4492
    %v4494 = vpop.f32.mrb[0].mxu0
    %4495 = vmatprep.mubr.f32.mxu0 %v1207
    %4496 = vmatmul.mubr.f32.gmra.mrb[0].mxu0 %v1713
    %v4497 = vpop.f32.mrb[0].mxu0
    %v4498 = vadd.f32 %v4113, %v4497
    %v4499 = vpop.f32.mrb[0].mxu0
    %4500 = vmatprep.mubr.f32.mxu0 %v1208
    %4501 = vmatmul.mubr.f32.gmra.mrb[0].mxu0 %v1714
    %v4502 = vpop.f32.mrb[0].mxu0
    %v4503 = vadd.f32 %v4118, %v4502
    %v4504 = vpop.f32.mrb[0].mxu0
    %4505 = vmatprep.mubr.f32.mxu0 %v1209
    %4506 = vmatmul.mubr.f32.gmra.mrb[0].mxu0 %v1715
    %v4507 = vpop.f32.mrb[0].mxu0
    %v4508 = vadd.f32 %v4123, %v4507
    %v4509 = vpop.f32.mrb[0].mxu0
    %4510 = vmatprep.mubr.f32.mxu0 %v1210
    %4511 = vmatmul.mubr.f32.gmra.mrb[0].mxu0 %v1716
    %v4512 = vpop.f32.mrb[0].mxu0
    %v4513 = vadd.f32 %v4128, %v4512
    %v4514 = vpop.f32.mrb[0].mxu0
    %4515 = vmatprep.mubr.f32.mxu0 %v1211
    %4516 = vmatmul.mubr.f32.gmra.mrb[0].mxu0 %v1717
    %v4517 = vpop.f32.mrb[0].mxu0
    %v4518 = vadd.f32 %v4133, %v4517
    %v4519 = vpop.f32.mrb[0].mxu0
    %4520 = vmatprep.mubr.f32.mxu0 %v1212
    %4521 = vmatmul.mubr.f32.gmra.mrb[0].mxu0 %v1718
    %v4522 = vpop.f32.mrb[0].mxu0
    %v4523 = vadd.f32 %v4138, %v4522
    %v4524 = vpop.f32.mrb[0].mxu0
    %4525 = vmatprep.mubr.f32.mxu0 %v1213
    %4526 = vmatmul.mubr.f32.gmra.mrb[0].mxu0 %v1719
    %v4527 = vpop.f32.mrb[0].mxu0
    %v4528 = vadd.f32 %v4143, %v4527
    %v4529 = vpop.f32.mrb[0].mxu0
    %4530 = vmatprep.mubr.f32.mxu0 %v1214
    %4531 = vmatmul.mubr.f32.gmra.mrb[0].mxu0 %v1720
    %v4532 = vpop.f32.mrb[0].mxu0
    %v4533 = vadd.f32 %v4148, %v4532
    %v4534 = vpop.f32.mrb[0].mxu0
    %4535 = vmatprep.mubr.f32.mxu0 %v1215
    %4536 = vmatmul.mubr.f32.gmra.mrb[0].mxu0 %v1721
    %v4537 = vpop.f32.mrb[0].mxu0
    %v4538 = vadd.f32 %v4153, %v4537
    %v4539 = vpop.f32.mrb[0].mxu0
    %4540 = vmatprep.mubr.f32.mxu0 %v1216
    %4541 = vmatmul.mubr.f32.gmra.mrb[0].mxu0 %v1722
    %v4542 = vpop.f32.mrb[0].mxu0
    %v4543 = vadd.f32 %v4158, %v4542
    %v4544 = vpop.f32.mrb[0].mxu0
    %4545 = vmatprep.mubr.f32.mxu0 %v1221
    %4546 = vmatmul.mubr.f32.gmra.mrb[0].mxu0 %v1727
    %v4547 = vpop.f32.mrb[0].mxu0
    %v4548 = vadd.f32 %v4163, %v4547
    %v4549 = vpop.f32.mrb[0].mxu0
    %4550 = vmatprep.mubr.f32.mxu0 %v1222
    %4551 = vmatmul.mubr.f32.gmra.mrb[0].mxu0 %v1728
    %v4552 = vpop.f32.mrb[0].mxu0
    %v4553 = vadd.f32 %v4168, %v4552
    %v4554 = vpop.f32.mrb[0].mxu0
    %4555 = vmatprep.mubr.f32.mxu0 %v1223
    %4556 = vmatmul.mubr.f32.gmra.mrb[0].mxu0 %v1729
    %v4557 = vpop.f32.mrb[0].mxu0
    %v4558 = vadd.f32 %v4173, %v4557
    %v4559 = vpop.f32.mrb[0].mxu0
    %4560 = vmatprep.mubr.f32.mxu0 %v1224
    %4561 = vmatmul.mubr.f32.gmra.mrb[0].mxu0 %v1730
    %v4562 = vpop.f32.mrb[0].mxu0
    %v4563 = vadd.f32 %v4178, %v4562
    %v4564 = vpop.f32.mrb[0].mxu0
    %4565 = vmatprep.mubr.f32.mxu0 %v1225
    %4566 = vmatmul.mubr.f32.gmra.mrb[0].mxu0 %v1731
    %v4567 = vpop.f32.mrb[0].mxu0
    %v4568 = vadd.f32 %v4183, %v4567
    %v4569 = vpop.f32.mrb[0].mxu0
    %4570 = vmatprep.mubr.f32.mxu0 %v1226
    %4571 = vmatmul.mubr.f32.gmra.mrb[0].mxu0 %v1732
    %v4572 = vpop.f32.mrb[0].mxu0
    %v4573 = vadd.f32 %v4188, %v4572
    %v4574 = vpop.f32.mrb[0].mxu0
    %4575 = vmatprep.mubr.f32.mxu0 %v1227
    %4576 = vmatmul.mubr.f32.gmra.mrb[0].mxu0 %v1733
    %v4577 = vpop.f32.mrb[0].mxu0
    %v4578 = vadd.f32 %v4193, %v4577
    %v4579 = vpop.f32.mrb[0].mxu0
    %4580 = vmatprep.mubr.f32.mxu0 %v1228
    %4581 = vmatmul.mubr.f32.gmra.mrb[0].mxu0 %v1734
    %v4582 = vpop.f32.mrb[0].mxu0
    %v4583 = vadd.f32 %v4198, %v4582
    %v4584 = vpop.f32.mrb[0].mxu0
    %4585 = vmatprep.mubr.f32.mxu0 %v1229
    %4586 = vmatmul.mubr.f32.gmra.mrb[0].mxu0 %v1735
    %v4587 = vpop.f32.mrb[0].mxu0
    %v4588 = vadd.f32 %v4203, %v4587
    %v4589 = vpop.f32.mrb[0].mxu0
    %4590 = vmatprep.mubr.f32.mxu0 %v1230
    %4591 = vmatmul.mubr.f32.gmra.mrb[0].mxu0 %v1736
    %v4592 = vpop.f32.mrb[0].mxu0
    %v4593 = vadd.f32 %v4208, %v4592
    %v4594 = vpop.f32.mrb[0].mxu0
    %4595 = vmatprep.mubr.f32.mxu0 %v1231
    %4596 = vmatmul.mubr.f32.gmra.mrb[0].mxu0 %v1737
    %v4597 = vpop.f32.mrb[0].mxu0
    %v4598 = vadd.f32 %v4213, %v4597
    %v4599 = vpop.f32.mrb[0].mxu0
    %4600 = vmatprep.mubr.f32.mxu0 %v1232
    %4601 = vmatmul.mubr.f32.gmra.mrb[0].mxu0 %v1738
    %v4602 = vpop.f32.mrb[0].mxu0
    %v4603 = vadd.f32 %v4218, %v4602
    %v4604 = vpop.f32.mrb[0].mxu0
    %4605 = vmatprep.mubr.f32.mxu0 %v1233
    %4606 = vmatmul.mubr.f32.gmra.mrb[0].mxu0 %v1739
    %v4607 = vpop.f32.mrb[0].mxu0
    %v4608 = vadd.f32 %v4223, %v4607
    %v4609 = vpop.f32.mrb[0].mxu0
    %4610 = vmatprep.mubr.f32.mxu0 %v1234
    %4611 = vmatmul.mubr.f32.gmra.mrb[0].mxu0 %v1740
    %v4612 = vpop.f32.mrb[0].mxu0
    %v4613 = vadd.f32 %v4228, %v4612
    %v4614 = vpop.f32.mrb[0].mxu0
    %4615 = vmatprep.mubr.f32.mxu0 %v1235
    %4616 = vmatmul.mubr.f32.gmra.mrb[0].mxu0 %v1741
    %v4617 = vpop.f32.mrb[0].mxu0
    %v4618 = vadd.f32 %v4233, %v4617
    %v4619 = vpop.f32.mrb[0].mxu0
    %4620 = vmatprep.mubr.f32.mxu0 %v1236
    %4621 = vmatmul.mubr.f32.gmra.mrb[0].mxu0 %v1742
    %v4622 = vpop.f32.mrb[0].mxu0
    %v4623 = vadd.f32 %v4238, %v4622
    %v4624 = vpop.f32.mrb[0].mxu0
    %4625 = vmatprep.mubr.f32.mxu0 %v1237
    %4626 = vmatmul.mubr.f32.gmra.mrb[0].mxu0 %v1743
    %v4627 = vpop.f32.mrb[0].mxu0
    %v4628 = vadd.f32 %v4243, %v4627
    %v4629 = vpop.f32.mrb[0].mxu0
    %4630 = vmatprep.mubr.f32.mxu0 %v1238
    %4631 = vmatmul.mubr.f32.gmra.mrb[0].mxu0 %v1744
    %v4632 = vpop.f32.mrb[0].mxu0
    %v4633 = vadd.f32 %v4248, %v4632
    %v4634 = vpop.f32.mrb[0].mxu0
    %4635 = vmatprep.mubr.f32.mxu0 %v1239
    %4636 = vmatmul.mubr.f32.gmra.mrb[0].mxu0 %v1745
    %v4637 = vpop.f32.mrb[0].mxu0
    %v4638 = vadd.f32 %v4253, %v4637
    %v4639 = vpop.f32.mrb[0].mxu0
    %4640 = vmatprep.mubr.f32.mxu0 %v1240
    %4641 = vmatmul.mubr.f32.gmra.mrb[0].mxu0 %v1746
    %v4642 = vpop.f32.mrb[0].mxu0
    %v4643 = vadd.f32 %v4258, %v4642
    %v4644 = vpop.f32.mrb[0].mxu0
    %4645 = vmatprep.mubr.f32.mxu0 %v1241
    %4646 = vmatmul.mubr.f32.gmra.mrb[0].mxu0 %v1747
    %v4647 = vpop.f32.mrb[0].mxu0
    %v4648 = vadd.f32 %v4263, %v4647
    %v4649 = vpop.f32.mrb[0].mxu0
    %4650 = vmatprep.mubr.f32.mxu0 %v1242
    %4651 = vmatmul.mubr.f32.gmra.mrb[0].mxu0 %v1748
    %v4652 = vpop.f32.mrb[0].mxu0
    %v4653 = vadd.f32 %v4268, %v4652
    %v4654 = vpop.f32.mrb[0].mxu0
    %4655 = vmatprep.mubr.f32.mxu0 %v1243
    %4656 = vmatmul.mubr.f32.gmra.mrb[0].mxu0 %v1749
    %v4657 = vpop.f32.mrb[0].mxu0
    %v4658 = vadd.f32 %v4273, %v4657
    %v4659 = vpop.f32.mrb[0].mxu0
    %4660 = vmatprep.mubr.f32.mxu0 %v1244
    %4661 = vmatmul.mubr.f32.gmra.mrb[0].mxu0 %v1750
    %v4662 = vpop.f32.mrb[0].mxu0
    %v4663 = vadd.f32 %v4278, %v4662
    %v4664 = vpop.f32.mrb[0].mxu0
    %4665 = vmatprep.mubr.f32.mxu0 %v1245
    %4666 = vmatmul.mubr.f32.gmra.mrb[0].mxu0 %v1751
    %v4667 = vpop.f32.mrb[0].mxu0
    %v4668 = vadd.f32 %v4283, %v4667
    %v4669 = vpop.f32.mrb[0].mxu0
    %4670 = vmatprep.mubr.f32.mxu0 %v1246
    %4671 = vmatmul.mubr.f32.gmra.mrb[0].mxu0 %v1752
    %v4672 = vpop.f32.mrb[0].mxu0
    %v4673 = vadd.f32 %v4288, %v4672
    %v4674 = vpop.f32.mrb[0].mxu0
    %4675 = vmatprep.mubr.f32.mxu0 %v1247
    %4676 = vmatmul.mubr.f32.gmra.mrb[0].mxu0 %v1753
    %v4677 = vpop.f32.mrb[0].mxu0
    %v4678 = vadd.f32 %v4293, %v4677
    %v4679 = vpop.f32.mrb[0].mxu0
    %4680 = vmatprep.mubr.f32.mxu0 %v1248
    %4681 = vmatmul.mubr.f32.gmra.mrb[0].mxu0 %v1754
    %v4682 = vpop.f32.mrb[0].mxu0
    %v4683 = vadd.f32 %v4298, %v4682
    %v4684 = vpop.f32.mrb[0].mxu0
    %4685 = vmatprep.mubr.f32.mxu0 %v1249
    %4686 = vmatmul.mubr.f32.gmra.mrb[0].mxu0 %v1755
    %v4687 = vpop.f32.mrb[0].mxu0
    %v4688 = vadd.f32 %v4303, %v4687
    %v4689 = vpop.f32.mrb[0].mxu0
    %4690 = vmatprep.mubr.f32.mxu0 %v1250
    %4691 = vmatmul.mubr.f32.gmra.mrb[0].mxu0 %v1756
    %v4692 = vpop.f32.mrb[0].mxu0
    %v4693 = vadd.f32 %v4308, %v4692
    %v4694 = vpop.f32.mrb[0].mxu0
    %4695 = vmatprep.mubr.f32.mxu0 %v1251
    %4696 = vmatmul.mubr.f32.gmra.mrb[0].mxu0 %v1757
    %v4697 = vpop.f32.mrb[0].mxu0
    %v4698 = vadd.f32 %v4313, %v4697
    %v4699 = vpop.f32.mrb[0].mxu0
    %4700 = vmatprep.mubr.f32.mxu0 %v1252
    %4701 = vmatmul.mubr.f32.gmra.mrb[0].mxu0 %v1758
    %v4702 = vpop.f32.mrb[0].mxu0
    %v4703 = vadd.f32 %v4318, %v4702
    %v4704 = vpop.f32.mrb[0].mxu0
    %4705 = vdwg.mxu0
    %4706 = vmatprep.subr.mxu0 0.0
    %4707 = vmatpush1.msra.mxu0 %v3143
    %4708 = vmatprep.subr.mxu0 0.0
    %4709 = vmatpush1.msra.mxu0 %v3144
    %4710 = vmatprep.subr.mxu0 0.0
    %4711 = vmatpush1.msra.mxu0 %v3145
    %4712 = vmatprep.subr.mxu0 0.0
    %4713 = vmatpush1.msra.mxu0 %v3146
    %4714 = vmatprep.subr.mxu0 0.0
    %4715 = vmatpush1.msra.mxu0 %v3147
    %4716 = vmatprep.subr.mxu0 0.0
    %4717 = vmatpush1.msra.mxu0 %v3148
    %4718 = vmatprep.subr.mxu0 0.0
    %4719 = vmatpush1.msra.mxu0 %v3149
    %4720 = vmatprep.subr.mxu0 0.0
    %4721 = vmatpush1.msra.mxu0 %v3150
    %4722 = vmatprep.subr.mxu0 0.0
    %4723 = vmatpush1.msra.mxu0 %v3151
    %4724 = vmatprep.subr.mxu0 0.0
    %4725 = vmatpush1.msra.mxu0 %v3152
    %4726 = vmatprep.subr.mxu0 0.0
    %4727 = vmatpush1.msra.mxu0 %v3153
    %4728 = vmatprep.subr.mxu0 0.0
    %4729 = vmatpush1.msra.mxu0 %v3154
    %4730 = vmatprep.subr.mxu0 0.0
    %4731 = vmatpush1.msra.mxu0 %v3155
    %4732 = vmatprep.subr.mxu0 0.0
    %4733 = vmatpush1.msra.mxu0 %v3156
    %4734 = vmatprep.subr.mxu0 0.0
    %4735 = vmatpush1.msra.mxu0 %v3157
    %4736 = vmatprep.subr.mxu0 0.0
    %4737 = vmatpush1.msra.mxu0 %v3158
    %4738 = vmatprep.subr.mxu0 0.0
    %4739 = vmatpush1.msra.mxu0 0.0
    %4740 = vmatprep.subr.mxu0 0.0
    %4741 = vmatpush1.msra.mxu0 0.0
    %4742 = vmatprep.subr.mxu0 0.0
    %4743 = vmatpush1.msra.mxu0 0.0
    %4744 = vmatprep.subr.mxu0 0.0
    %4745 = vmatpush1.msra.mxu0 0.0
    %4746 = vmatprep.subr.mxu0 0.0
    %4747 = vmatpush1.msra.mxu0 0.0
    %4748 = vmatprep.subr.mxu0 0.0
    %4749 = vmatpush1.msra.mxu0 0.0
    %4750 = vmatprep.subr.mxu0 0.0
    %4751 = vmatpush1.msra.mxu0 0.0
    %4752 = vmatprep.subr.mxu0 0.0
    %4753 = vmatpush1.msra.mxu0 0.0
    %4754 = vmatprep.subr.mxu0 0.0
    %4755 = vmatpush1.msra.mxu0 0.0
    %4756 = vmatprep.subr.mxu0 0.0
    %4757 = vmatpush1.msra.mxu0 0.0
    %4758 = vmatprep.subr.mxu0 0.0
    %4759 = vmatpush1.msra.mxu0 0.0
    %4760 = vmatprep.subr.mxu0 0.0
    %4761 = vmatpush1.msra.mxu0 0.0
    %4762 = vmatprep.subr.mxu0 0.0
    %4763 = vmatpush1.msra.mxu0 0.0
    %4764 = vmatprep.subr.mxu0 0.0
    %4765 = vmatpush1.msra.mxu0 0.0
    %4766 = vmatprep.subr.mxu0 0.0
    %4767 = vmatpush1.msra.mxu0 0.0
    %4768 = vmatprep.subr.mxu0 0.0
    %4769 = vmatpush1.msra.mxu0 0.0
    %4770 = vmatprep.mubr.f32.mxu0 0.0
    %4771 = vmatmul.mubr.f32.gmra.mrb[0].mxu0 %v2125
    %v4772 = vpop.f32.mrb[0].mxu0
    %v4773 = vadd.f32 %v4388, %v4772
    %v4774 = vpop.f32.mrb[0].mxu0
    %4775 = vmatprep.mubr.f32.mxu0 0.0
    %4776 = vmatmul.mubr.f32.gmra.mrb[0].mxu0 %v2126
    %v4777 = vpop.f32.mrb[0].mxu0
    %v4778 = vadd.f32 %v4393, %v4777
    %v4779 = vpop.f32.mrb[0].mxu0
    %4780 = vmatprep.mubr.f32.mxu0 0.0
    %4781 = vmatmul.mubr.f32.gmra.mrb[0].mxu0 %v2127
    %v4782 = vpop.f32.mrb[0].mxu0
    %v4783 = vadd.f32 %v4398, %v4782
    %v4784 = vpop.f32.mrb[0].mxu0
    %4785 = vmatprep.mubr.f32.mxu0 0.0
    %4786 = vmatmul.mubr.f32.gmra.mrb[0].mxu0 %v2128
    %v4787 = vpop.f32.mrb[0].mxu0
    %v4788 = vadd.f32 %v4403, %v4787
    %v4789 = vpop.f32.mrb[0].mxu0
    %4790 = vmatprep.mubr.f32.mxu0 0.0
    %4791 = vmatmul.mubr.f32.gmra.mrb[0].mxu0 %v2129
    %v4792 = vpop.f32.mrb[0].mxu0
    %v4793 = vadd.f32 %v4408, %v4792
    %v4794 = vpop.f32.mrb[0].mxu0
    %4795 = vmatprep.mubr.f32.mxu0 0.0
    %4796 = vmatmul.mubr.f32.gmra.mrb[0].mxu0 %v2130
    %v4797 = vpop.f32.mrb[0].mxu0
    %v4798 = vadd.f32 %v4413, %v4797
    %v4799 = vpop.f32.mrb[0].mxu0
    %4800 = vmatprep.mubr.f32.mxu0 0.0
    %4801 = vmatmul.mubr.f32.gmra.mrb[0].mxu0 %v2131
    %v4802 = vpop.f32.mrb[0].mxu0
    %v4803 = vadd.f32 %v4418, %v4802
    %v4804 = vpop.f32.mrb[0].mxu0
    %4805 = vmatprep.mubr.f32.mxu0 0.0
    %4806 = vmatmul.mubr.f32.gmra.mrb[0].mxu0 %v2132
    %v4807 = vpop.f32.mrb[0].mxu0
    %v4808 = vadd.f32 %v4423, %v4807
    %v4809 = vpop.f32.mrb[0].mxu0
    %4810 = vmatprep.mubr.f32.mxu0 0.0
    %4811 = vmatmul.mubr.f32.gmra.mrb[0].mxu0 %v2133
    %v4812 = vpop.f32.mrb[0].mxu0
    %v4813 = vadd.f32 %v4428, %v4812
    %v4814 = vpop.f32.mrb[0].mxu0
    %4815 = vmatprep.mubr.f32.mxu0 0.0
    %4816 = vmatmul.mubr.f32.gmra.mrb[0].mxu0 %v2134
    %v4817 = vpop.f32.mrb[0].mxu0
    %v4818 = vadd.f32 %v4433, %v4817
    %v4819 = vpop.f32.mrb[0].mxu0
    %4820 = vmatprep.mubr.f32.mxu0 0.0
    %4821 = vmatmul.mubr.f32.gmra.mrb[0].mxu0 %v2135
    %v4822 = vpop.f32.mrb[0].mxu0
    %v4823 = vadd.f32 %v4438, %v4822
    %v4824 = vpop.f32.mrb[0].mxu0
    %4825 = vmatprep.mubr.f32.mxu0 0.0
    %4826 = vmatmul.mubr.f32.gmra.mrb[0].mxu0 %v2136
    %v4827 = vpop.f32.mrb[0].mxu0
    %v4828 = vadd.f32 %v4443, %v4827
    %v4829 = vpop.f32.mrb[0].mxu0
    %4830 = vmatprep.mubr.f32.mxu0 0.0
    %4831 = vmatmul.mubr.f32.gmra.mrb[0].mxu0 %v2137
    %v4832 = vpop.f32.mrb[0].mxu0
    %v4833 = vadd.f32 %v4448, %v4832
    %v4834 = vpop.f32.mrb[0].mxu0
    %4835 = vmatprep.mubr.f32.mxu0 0.0
    %4836 = vmatmul.mubr.f32.gmra.mrb[0].mxu0 %v2138
    %v4837 = vpop.f32.mrb[0].mxu0
    %v4838 = vadd.f32 %v4453, %v4837
    %v4839 = vpop.f32.mrb[0].mxu0
    %4840 = vmatprep.mubr.f32.mxu0 0.0
    %4841 = vmatmul.mubr.f32.gmra.mrb[0].mxu0 %v2139
    %v4842 = vpop.f32.mrb[0].mxu0
    %v4843 = vadd.f32 %v4458, %v4842
    %v4844 = vpop.f32.mrb[0].mxu0
    %4845 = vmatprep.mubr.f32.mxu0 0.0
    %4846 = vmatmul.mubr.f32.gmra.mrb[0].mxu0 %v2140
    %v4847 = vpop.f32.mrb[0].mxu0
    %v4848 = vadd.f32 %v4463, %v4847
    %v4849 = vpop.f32.mrb[0].mxu0
    %4850 = vmatprep.mubr.f32.mxu0 0.0
    %4851 = vmatmul.mubr.f32.gmra.mrb[0].mxu0 %v2141
    %v4852 = vpop.f32.mrb[0].mxu0
    %v4853 = vadd.f32 %v4468, %v4852
    %v4854 = vpop.f32.mrb[0].mxu0
    %4855 = vmatprep.mubr.f32.mxu0 0.0
    %4856 = vmatmul.mubr.f32.gmra.mrb[0].mxu0 %v2142
    %v4857 = vpop.f32.mrb[0].mxu0
    %v4858 = vadd.f32 %v4473, %v4857
    %v4859 = vpop.f32.mrb[0].mxu0
    %4860 = vmatprep.mubr.f32.mxu0 0.0
    %4861 = vmatmul.mubr.f32.gmra.mrb[0].mxu0 %v2143
    %v4862 = vpop.f32.mrb[0].mxu0
    %v4863 = vadd.f32 %v4478, %v4862
    %v4864 = vpop.f32.mrb[0].mxu0
    %4865 = vmatprep.mubr.f32.mxu0 0.0
    %4866 = vmatmul.mubr.f32.gmra.mrb[0].mxu0 %v2144
    %v4867 = vpop.f32.mrb[0].mxu0
    %v4868 = vadd.f32 %v4483, %v4867
    %v4869 = vpop.f32.mrb[0].mxu0
    %4870 = vmatprep.mubr.f32.mxu0 0.0
    %4871 = vmatmul.mubr.f32.gmra.mrb[0].mxu0 %v2145
    %v4872 = vpop.f32.mrb[0].mxu0
    %v4873 = vadd.f32 %v4488, %v4872
    %v4874 = vpop.f32.mrb[0].mxu0
    %4875 = vmatprep.mubr.f32.mxu0 0.0
    %4876 = vmatmul.mubr.f32.gmra.mrb[0].mxu0 %v2146
    %v4877 = vpop.f32.mrb[0].mxu0
    %v4878 = vadd.f32 %v4493, %v4877
    %v4879 = vpop.f32.mrb[0].mxu0
    %4880 = vmatprep.mubr.f32.mxu0 0.0
    %4881 = vmatmul.mubr.f32.gmra.mrb[0].mxu0 %v2147
    %v4882 = vpop.f32.mrb[0].mxu0
    %v4883 = vadd.f32 %v4498, %v4882
    %v4884 = vpop.f32.mrb[0].mxu0
    %4885 = vmatprep.mubr.f32.mxu0 0.0
    %4886 = vmatmul.mubr.f32.gmra.mrb[0].mxu0 %v2148
    %v4887 = vpop.f32.mrb[0].mxu0
    %v4888 = vadd.f32 %v4503, %v4887
    %v4889 = vpop.f32.mrb[0].mxu0
    %4890 = vmatprep.mubr.f32.mxu0 0.0
    %4891 = vmatmul.mubr.f32.gmra.mrb[0].mxu0 %v2149
    %v4892 = vpop.f32.mrb[0].mxu0
    %v4893 = vadd.f32 %v4508, %v4892
    %v4894 = vpop.f32.mrb[0].mxu0
    %4895 = vmatprep.mubr.f32.mxu0 0.0
    %4896 = vmatmul.mubr.f32.gmra.mrb[0].mxu0 %v2150
    %v4897 = vpop.f32.mrb[0].mxu0
    %v4898 = vadd.f32 %v4513, %v4897
    %v4899 = vpop.f32.mrb[0].mxu0
    %4900 = vmatprep.mubr.f32.mxu0 0.0
    %4901 = vmatmul.mubr.f32.gmra.mrb[0].mxu0 %v2151
    %v4902 = vpop.f32.mrb[0].mxu0
    %v4903 = vadd.f32 %v4518, %v4902
    %v4904 = vpop.f32.mrb[0].mxu0
    %4905 = vmatprep.mubr.f32.mxu0 0.0
    %4906 = vmatmul.mubr.f32.gmra.mrb[0].mxu0 %v2152
    %v4907 = vpop.f32.mrb[0].mxu0
    %v4908 = vadd.f32 %v4523, %v4907
    %v4909 = vpop.f32.mrb[0].mxu0
    %4910 = vmatprep.mubr.f32.mxu0 0.0
    %4911 = vmatmul.mubr.f32.gmra.mrb[0].mxu0 %v2153
    %v4912 = vpop.f32.mrb[0].mxu0
    %v4913 = vadd.f32 %v4528, %v4912
    %v4914 = vpop.f32.mrb[0].mxu0
    %4915 = vmatprep.mubr.f32.mxu0 0.0
    %4916 = vmatmul.mubr.f32.gmra.mrb[0].mxu0 %v2154
    %v4917 = vpop.f32.mrb[0].mxu0
    %v4918 = vadd.f32 %v4533, %v4917
    %v4919 = vpop.f32.mrb[0].mxu0
    %4920 = vmatprep.mubr.f32.mxu0 0.0
    %4921 = vmatmul.mubr.f32.gmra.mrb[0].mxu0 %v2155
    %v4922 = vpop.f32.mrb[0].mxu0
    %v4923 = vadd.f32 %v4538, %v4922
    %v4924 = vpop.f32.mrb[0].mxu0
    %4925 = vmatprep.mubr.f32.mxu0 0.0
    %4926 = vmatmul.mubr.f32.gmra.mrb[0].mxu0 %v2156
    %v4927 = vpop.f32.mrb[0].mxu0
    %v4928 = vadd.f32 %v4543, %v4927
    %v4929 = vpop.f32.mrb[0].mxu0
    %4930 = vmatprep.mubr.f32.mxu0 0.0
    %4931 = vmatmul.mubr.f32.gmra.mrb[0].mxu0 %v2161
    %v4932 = vpop.f32.mrb[0].mxu0
    %v4933 = vadd.f32 %v4548, %v4932
    %v4934 = vpop.f32.mrb[0].mxu0
    %4935 = vmatprep.mubr.f32.mxu0 0.0
    %4936 = vmatmul.mubr.f32.gmra.mrb[0].mxu0 %v2162
    %v4937 = vpop.f32.mrb[0].mxu0
    %v4938 = vadd.f32 %v4553, %v4937
    %v4939 = vpop.f32.mrb[0].mxu0
    %4940 = vmatprep.mubr.f32.mxu0 0.0
    %4941 = vmatmul.mubr.f32.gmra.mrb[0].mxu0 %v2163
    %v4942 = vpop.f32.mrb[0].mxu0
    %v4943 = vadd.f32 %v4558, %v4942
    %v4944 = vpop.f32.mrb[0].mxu0
    %4945 = vmatprep.mubr.f32.mxu0 0.0
    %4946 = vmatmul.mubr.f32.gmra.mrb[0].mxu0 %v2164
    %v4947 = vpop.f32.mrb[0].mxu0
    %v4948 = vadd.f32 %v4563, %v4947
    %v4949 = vpop.f32.mrb[0].mxu0
    %4950 = vmatprep.mubr.f32.mxu0 0.0
    %4951 = vmatmul.mubr.f32.gmra.mrb[0].mxu0 %v2165
    %v4952 = vpop.f32.mrb[0].mxu0
    %v4953 = vadd.f32 %v4568, %v4952
    %v4954 = vpop.f32.mrb[0].mxu0
    %4955 = vmatprep.mubr.f32.mxu0 0.0
    %4956 = vmatmul.mubr.f32.gmra.mrb[0].mxu0 %v2166
    %v4957 = vpop.f32.mrb[0].mxu0
    %v4958 = vadd.f32 %v4573, %v4957
    %v4959 = vpop.f32.mrb[0].mxu0
    %4960 = vmatprep.mubr.f32.mxu0 0.0
    %4961 = vmatmul.mubr.f32.gmra.mrb[0].mxu0 %v2167
    %v4962 = vpop.f32.mrb[0].mxu0
    %v4963 = vadd.f32 %v4578, %v4962
    %v4964 = vpop.f32.mrb[0].mxu0
    %4965 = vmatprep.mubr.f32.mxu0 0.0
    %4966 = vmatmul.mubr.f32.gmra.mrb[0].mxu0 %v2168
    %v4967 = vpop.f32.mrb[0].mxu0
    %v4968 = vadd.f32 %v4583, %v4967
    %v4969 = vpop.f32.mrb[0].mxu0
    %4970 = vmatprep.mubr.f32.mxu0 0.0
    %4971 = vmatmul.mubr.f32.gmra.mrb[0].mxu0 %v2169
    %v4972 = vpop.f32.mrb[0].mxu0
    %v4973 = vadd.f32 %v4588, %v4972
    %v4974 = vpop.f32.mrb[0].mxu0
    %4975 = vmatprep.mubr.f32.mxu0 0.0
    %4976 = vmatmul.mubr.f32.gmra.mrb[0].mxu0 %v2170
    %v4977 = vpop.f32.mrb[0].mxu0
    %v4978 = vadd.f32 %v4593, %v4977
    %v4979 = vpop.f32.mrb[0].mxu0
    %4980 = vmatprep.mubr.f32.mxu0 0.0
    %4981 = vmatmul.mubr.f32.gmra.mrb[0].mxu0 %v2171
    %v4982 = vpop.f32.mrb[0].mxu0
    %v4983 = vadd.f32 %v4598, %v4982
    %v4984 = vpop.f32.mrb[0].mxu0
    %4985 = vmatprep.mubr.f32.mxu0 0.0
    %4986 = vmatmul.mubr.f32.gmra.mrb[0].mxu0 %v2172
    %v4987 = vpop.f32.mrb[0].mxu0
    %v4988 = vadd.f32 %v4603, %v4987
    %v4989 = vpop.f32.mrb[0].mxu0
    %4990 = vmatprep.mubr.f32.mxu0 0.0
    %4991 = vmatmul.mubr.f32.gmra.mrb[0].mxu0 %v2173
    %v4992 = vpop.f32.mrb[0].mxu0
    %v4993 = vadd.f32 %v4608, %v4992
    %v4994 = vpop.f32.mrb[0].mxu0
    %4995 = vmatprep.mubr.f32.mxu0 0.0
    %4996 = vmatmul.mubr.f32.gmra.mrb[0].mxu0 %v2174
    %v4997 = vpop.f32.mrb[0].mxu0
    %v4998 = vadd.f32 %v4613, %v4997
    %v4999 = vpop.f32.mrb[0].mxu0
    %5000 = vmatprep.mubr.f32.mxu0 0.0
    %5001 = vmatmul.mubr.f32.gmra.mrb[0].mxu0 %v2175
    %v5002 = vpop.f32.mrb[0].mxu0
    %v5003 = vadd.f32 %v4618, %v5002
    %v5004 = vpop.f32.mrb[0].mxu0
    %5005 = vmatprep.mubr.f32.mxu0 0.0
    %5006 = vmatmul.mubr.f32.gmra.mrb[0].mxu0 %v2176
    %v5007 = vpop.f32.mrb[0].mxu0
    %v5008 = vadd.f32 %v4623, %v5007
    %v5009 = vpop.f32.mrb[0].mxu0
    %5010 = vmatprep.mubr.f32.mxu0 0.0
    %5011 = vmatmul.mubr.f32.gmra.mrb[0].mxu0 %v2177
    %v5012 = vpop.f32.mrb[0].mxu0
    %v5013 = vadd.f32 %v4628, %v5012
    %v5014 = vpop.f32.mrb[0].mxu0
    %5015 = vmatprep.mubr.f32.mxu0 0.0
    %5016 = vmatmul.mubr.f32.gmra.mrb[0].mxu0 %v2178
    %v5017 = vpop.f32.mrb[0].mxu0
    %v5018 = vadd.f32 %v4633, %v5017
    %v5019 = vpop.f32.mrb[0].mxu0
    %5020 = vmatprep.mubr.f32.mxu0 0.0
    %5021 = vmatmul.mubr.f32.gmra.mrb[0].mxu0 %v2179
    %v5022 = vpop.f32.mrb[0].mxu0
    %v5023 = vadd.f32 %v4638, %v5022
    %v5024 = vpop.f32.mrb[0].mxu0
    %5025 = vmatprep.mubr.f32.mxu0 0.0
    %5026 = vmatmul.mubr.f32.gmra.mrb[0].mxu0 %v2180
    %v5027 = vpop.f32.mrb[0].mxu0
    %v5028 = vadd.f32 %v4643, %v5027
    %v5029 = vpop.f32.mrb[0].mxu0
    %5030 = vmatprep.mubr.f32.mxu0 0.0
    %5031 = vmatmul.mubr.f32.gmra.mrb[0].mxu0 %v2181
    %v5032 = vpop.f32.mrb[0].mxu0
    %v5033 = vadd.f32 %v4648, %v5032
    %v5034 = vpop.f32.mrb[0].mxu0
    %5035 = vmatprep.mubr.f32.mxu0 0.0
    %5036 = vmatmul.mubr.f32.gmra.mrb[0].mxu0 %v2182
    %v5037 = vpop.f32.mrb[0].mxu0
    %v5038 = vadd.f32 %v4653, %v5037
    %v5039 = vpop.f32.mrb[0].mxu0
    %5040 = vmatprep.mubr.f32.mxu0 0.0
    %5041 = vmatmul.mubr.f32.gmra.mrb[0].mxu0 %v2183
    %v5042 = vpop.f32.mrb[0].mxu0
    %v5043 = vadd.f32 %v4658, %v5042
    %v5044 = vpop.f32.mrb[0].mxu0
    %5045 = vmatprep.mubr.f32.mxu0 0.0
    %5046 = vmatmul.mubr.f32.gmra.mrb[0].mxu0 %v2184
    %v5047 = vpop.f32.mrb[0].mxu0
    %v5048 = vadd.f32 %v4663, %v5047
    %v5049 = vpop.f32.mrb[0].mxu0
    %5050 = vmatprep.mubr.f32.mxu0 0.0
    %5051 = vmatmul.mubr.f32.gmra.mrb[0].mxu0 %v2185
    %v5052 = vpop.f32.mrb[0].mxu0
    %v5053 = vadd.f32 %v4668, %v5052
    %v5054 = vpop.f32.mrb[0].mxu0
    %5055 = vmatprep.mubr.f32.mxu0 0.0
    %5056 = vmatmul.mubr.f32.gmra.mrb[0].mxu0 %v2186
    %v5057 = vpop.f32.mrb[0].mxu0
    %v5058 = vadd.f32 %v4673, %v5057
    %v5059 = vpop.f32.mrb[0].mxu0
    %5060 = vmatprep.mubr.f32.mxu0 0.0
    %5061 = vmatmul.mubr.f32.gmra.mrb[0].mxu0 %v2187
    %v5062 = vpop.f32.mrb[0].mxu0
    %v5063 = vadd.f32 %v4678, %v5062
    %v5064 = vpop.f32.mrb[0].mxu0
    %5065 = vmatprep.mubr.f32.mxu0 0.0
    %5066 = vmatmul.mubr.f32.gmra.mrb[0].mxu0 %v2188
    %v5067 = vpop.f32.mrb[0].mxu0
    %v5068 = vadd.f32 %v4683, %v5067
    %v5069 = vpop.f32.mrb[0].mxu0
    %5070 = vmatprep.mubr.f32.mxu0 0.0
    %5071 = vmatmul.mubr.f32.gmra.mrb[0].mxu0 %v2189
    %v5072 = vpop.f32.mrb[0].mxu0
    %v5073 = vadd.f32 %v4688, %v5072
    %v5074 = vpop.f32.mrb[0].mxu0
    %5075 = vmatprep.mubr.f32.mxu0 0.0
    %5076 = vmatmul.mubr.f32.gmra.mrb[0].mxu0 %v2190
    %v5077 = vpop.f32.mrb[0].mxu0
    %v5078 = vadd.f32 %v4693, %v5077
    %v5079 = vpop.f32.mrb[0].mxu0
    %5080 = vmatprep.mubr.f32.mxu0 0.0
    %5081 = vmatmul.mubr.f32.gmra.mrb[0].mxu0 %v2191
    %v5082 = vpop.f32.mrb[0].mxu0
    %v5083 = vadd.f32 %v4698, %v5082
    %v5084 = vpop.f32.mrb[0].mxu0
    %5085 = vmatprep.mubr.f32.mxu0 0.0
    %5086 = vmatmul.mubr.f32.gmra.mrb[0].mxu0 %v2192
    %v5087 = vpop.f32.mrb[0].mxu0
    %v5088 = vadd.f32 %v4703, %v5087
    %v5089 = vpop.f32.mrb[0].mxu0
    %5090 = vdwg.mxu0
    %v5091 = vadd.f32 %v4773, %v4778
    %v5092 = vadd.f32 %v5091, %v4783
    %v5093 = vadd.f32 %v5092, %v4788
    %v5094 = vadd.f32 %v5093, %v4793
    %v5095 = vadd.f32 %v5094, %v4798
    %v5096 = vadd.f32 %v5095, %v4803
    %v5097 = vadd.f32 %v5096, %v4808
    %v5098 = vadd.f32 %v5097, %v4813
    %v5099 = vadd.f32 %v5098, %v4818
    %v5100 = vadd.f32 %v5099, %v4823
    %v5101 = vadd.f32 %v5100, %v4828
    %v5102 = vadd.f32 %v5101, %v4833
    %v5103 = vadd.f32 %v5102, %v4838
    %v5104 = vadd.f32 %v5103, %v4843
    %v5105 = vadd.f32 %v5104, %v4848
    %v5106 = vadd.f32 %v5105, %v4853
    %v5107 = vadd.f32 %v5106, %v4858
    %v5108 = vadd.f32 %v5107, %v4863
    %v5109 = vadd.f32 %v5108, %v4868
    %v5110 = vadd.f32 %v5109, %v4873
    %v5111 = vadd.f32 %v5110, %v4878
    %v5112 = vadd.f32 %v5111, %v4883
    %v5113 = vadd.f32 %v5112, %v4888
    %v5114 = vadd.f32 %v5113, %v4893
    %v5115 = vadd.f32 %v5114, %v4898
    %v5116 = vadd.f32 %v5115, %v4903
    %v5117 = vadd.f32 %v5116, %v4908
    %v5118 = vadd.f32 %v5117, %v4913
    %v5119 = vadd.f32 %v5118, %v4918
    %v5120 = vadd.f32 %v5119, %v4923
    %v5121 = vadd.f32 %v5120, %v4928
    %v5122 = vadd.f32 %v5121, %v4933
    %v5123 = vadd.f32 %v5122, %v4938
    %v5124 = vadd.f32 %v5123, %v4943
    %v5125 = vadd.f32 %v5124, %v4948
    %v5126 = vadd.f32 %v5125, %v4953
    %v5127 = vadd.f32 %v5126, %v4958
    %v5128 = vadd.f32 %v5127, %v4963
    %v5129 = vadd.f32 %v5128, %v4968
    %v5130 = vadd.f32 %v5129, %v4973
    %v5131 = vadd.f32 %v5130, %v4978
    %v5132 = vadd.f32 %v5131, %v4983
    %v5133 = vadd.f32 %v5132, %v4988
    %v5134 = vadd.f32 %v5133, %v4993
    %v5135 = vadd.f32 %v5134, %v4998
    %v5136 = vadd.f32 %v5135, %v5003
    %v5137 = vadd.f32 %v5136, %v5008
    %v5138 = vadd.f32 %v5137, %v5013
    %v5139 = vadd.f32 %v5138, %v5018
    %v5140 = vadd.f32 %v5139, %v5023
    %v5141 = vadd.f32 %v5140, %v5028
    %v5142 = vadd.f32 %v5141, %v5033
    %v5143 = vadd.f32 %v5142, %v5038
    %v5144 = vadd.f32 %v5143, %v5043
    %v5145 = vadd.f32 %v5144, %v5048
    %v5146 = vadd.f32 %v5145, %v5053
    %v5147 = vadd.f32 %v5146, %v5058
    %v5148 = vadd.f32 %v5147, %v5063
    %v5149 = vadd.f32 %v5148, %v5068
    %v5150 = vadd.f32 %v5149, %v5073
    %v5151 = vadd.f32 %v5150, %v5078
    %v5152 = vadd.f32 %v5151, %v5083
    %v5153 = vadd.f32 %v5152, %v5088
    %v5154 = vrot.slane %v5153, 4
    %v5155 = vadd.f32 %v5153, %v5154
    %v5156 = vrot.slane %v5155, 2
    %v5157 = vadd.f32 %v5155, %v5156
    %v5158 = vrot.slane %v5157, 1
    %v5159 = vadd.f32 %v5157, %v5158
    %v5160 = vmul.f32 %v4773, %v4773
    %v5161 = vmul.f32 %v4778, %v4778
    %v5162 = vmul.f32 %v4783, %v4783
    %v5163 = vmul.f32 %v4788, %v4788
    %v5164 = vmul.f32 %v4793, %v4793
    %v5165 = vmul.f32 %v4798, %v4798
    %v5166 = vmul.f32 %v4803, %v4803
    %v5167 = vmul.f32 %v4808, %v4808
    %v5168 = vmul.f32 %v4813, %v4813
    %v5169 = vmul.f32 %v4818, %v4818
    %v5170 = vmul.f32 %v4823, %v4823
    %v5171 = vmul.f32 %v4828, %v4828
    %v5172 = vmul.f32 %v4833, %v4833
    %v5173 = vmul.f32 %v4838, %v4838
    %v5174 = vmul.f32 %v4843, %v4843
    %v5175 = vmul.f32 %v4848, %v4848
    %v5176 = vmul.f32 %v4853, %v4853
    %v5177 = vmul.f32 %v4858, %v4858
    %v5178 = vmul.f32 %v4863, %v4863
    %v5179 = vmul.f32 %v4868, %v4868
    %v5180 = vmul.f32 %v4873, %v4873
    %v5181 = vmul.f32 %v4878, %v4878
    %v5182 = vmul.f32 %v4883, %v4883
    %v5183 = vmul.f32 %v4888, %v4888
    %v5184 = vmul.f32 %v4893, %v4893
    %v5185 = vmul.f32 %v4898, %v4898
    %v5186 = vmul.f32 %v4903, %v4903
    %v5187 = vmul.f32 %v4908, %v4908
    %v5188 = vmul.f32 %v4913, %v4913
    %v5189 = vmul.f32 %v4918, %v4918
    %v5190 = vmul.f32 %v4923, %v4923
    %v5191 = vmul.f32 %v4928, %v4928
    %v5192 = vmul.f32 %v4933, %v4933
    %v5193 = vmul.f32 %v4938, %v4938
    %v5194 = vmul.f32 %v4943, %v4943
    %v5195 = vmul.f32 %v4948, %v4948
    %v5196 = vmul.f32 %v4953, %v4953
    %v5197 = vmul.f32 %v4958, %v4958
    %v5198 = vmul.f32 %v4963, %v4963
    %v5199 = vmul.f32 %v4968, %v4968
    %v5200 = vmul.f32 %v4973, %v4973
    %v5201 = vmul.f32 %v4978, %v4978
    %v5202 = vmul.f32 %v4983, %v4983
    %v5203 = vmul.f32 %v4988, %v4988
    %v5204 = vmul.f32 %v4993, %v4993
    %v5205 = vmul.f32 %v4998, %v4998
    %v5206 = vmul.f32 %v5003, %v5003
    %v5207 = vmul.f32 %v5008, %v5008
    %v5208 = vmul.f32 %v5013, %v5013
    %v5209 = vmul.f32 %v5018, %v5018
    %v5210 = vmul.f32 %v5023, %v5023
    %v5211 = vmul.f32 %v5028, %v5028
    %v5212 = vmul.f32 %v5033, %v5033
    %v5213 = vmul.f32 %v5038, %v5038
    %v5214 = vmul.f32 %v5043, %v5043
    %v5215 = vmul.f32 %v5048, %v5048
    %v5216 = vmul.f32 %v5053, %v5053
    %v5217 = vmul.f32 %v5058, %v5058
    %v5218 = vmul.f32 %v5063, %v5063
    %v5219 = vmul.f32 %v5068, %v5068
    %v5220 = vmul.f32 %v5073, %v5073
    %v5221 = vmul.f32 %v5078, %v5078
    %v5222 = vmul.f32 %v5083, %v5083
    %v5223 = vmul.f32 %v5088, %v5088
    %v5224 = vadd.f32 %v5160, %v5161
    %v5225 = vadd.f32 %v5224, %v5162
    %v5226 = vadd.f32 %v5225, %v5163
    %v5227 = vadd.f32 %v5226, %v5164
    %v5228 = vadd.f32 %v5227, %v5165
    %v5229 = vadd.f32 %v5228, %v5166
    %v5230 = vadd.f32 %v5229, %v5167
    %v5231 = vadd.f32 %v5230, %v5168
    %v5232 = vadd.f32 %v5231, %v5169
    %v5233 = vadd.f32 %v5232, %v5170
    %v5234 = vadd.f32 %v5233, %v5171
    %v5235 = vadd.f32 %v5234, %v5172
    %v5236 = vadd.f32 %v5235, %v5173
    %v5237 = vadd.f32 %v5236, %v5174
    %v5238 = vadd.f32 %v5237, %v5175
    %v5239 = vadd.f32 %v5238, %v5176
    %v5240 = vadd.f32 %v5239, %v5177
    %v5241 = vadd.f32 %v5240, %v5178
    %v5242 = vadd.f32 %v5241, %v5179
    %v5243 = vadd.f32 %v5242, %v5180
    %v5244 = vadd.f32 %v5243, %v5181
    %v5245 = vadd.f32 %v5244, %v5182
    %v5246 = vadd.f32 %v5245, %v5183
    %v5247 = vadd.f32 %v5246, %v5184
    %v5248 = vadd.f32 %v5247, %v5185
    %v5249 = vadd.f32 %v5248, %v5186
    %v5250 = vadd.f32 %v5249, %v5187
    %v5251 = vadd.f32 %v5250, %v5188
    %v5252 = vadd.f32 %v5251, %v5189
    %v5253 = vadd.f32 %v5252, %v5190
    %v5254 = vadd.f32 %v5253, %v5191
    %v5255 = vadd.f32 %v5254, %v5192
    %v5256 = vadd.f32 %v5255, %v5193
    %v5257 = vadd.f32 %v5256, %v5194
    %v5258 = vadd.f32 %v5257, %v5195
    %v5259 = vadd.f32 %v5258, %v5196
    %v5260 = vadd.f32 %v5259, %v5197
    %v5261 = vadd.f32 %v5260, %v5198
    %v5262 = vadd.f32 %v5261, %v5199
    %v5263 = vadd.f32 %v5262, %v5200
    %v5264 = vadd.f32 %v5263, %v5201
    %v5265 = vadd.f32 %v5264, %v5202
    %v5266 = vadd.f32 %v5265, %v5203
    %v5267 = vadd.f32 %v5266, %v5204
    %v5268 = vadd.f32 %v5267, %v5205
    %v5269 = vadd.f32 %v5268, %v5206
    %v5270 = vadd.f32 %v5269, %v5207
    %v5271 = vadd.f32 %v5270, %v5208
    %v5272 = vadd.f32 %v5271, %v5209
    %v5273 = vadd.f32 %v5272, %v5210
    %v5274 = vadd.f32 %v5273, %v5211
    %v5275 = vadd.f32 %v5274, %v5212
    %v5276 = vadd.f32 %v5275, %v5213
    %v5277 = vadd.f32 %v5276, %v5214
    %v5278 = vadd.f32 %v5277, %v5215
    %v5279 = vadd.f32 %v5278, %v5216
    %v5280 = vadd.f32 %v5279, %v5217
    %v5281 = vadd.f32 %v5280, %v5218
    %v5282 = vadd.f32 %v5281, %v5219
    %v5283 = vadd.f32 %v5282, %v5220
    %v5284 = vadd.f32 %v5283, %v5221
    %v5285 = vadd.f32 %v5284, %v5222
    %v5286 = vadd.f32 %v5285, %v5223
    %v5287 = vrot.slane %v5286, 4
    %v5288 = vadd.f32 %v5286, %v5287
    %v5289 = vrot.slane %v5288, 2
    %v5290 = vadd.f32 %v5288, %v5289
    %v5291 = vrot.slane %v5290, 1
    %v5292 = vadd.f32 %v5290, %v5291
    %v5293 = vmul.f32 %v5159, 0.001953125
    %v5294 = vmul.f32 %v5292, 0.001953125
    %v5295 = vmul.f32 %v5293, %v5293
    %v5296 = vsub.f32 %v5294, %v5295
    %v5297 = vmax.f32 %v5296, 0.0
    %v5298 = vadd.f32 %v5297, 1e-05
    %v5299 = vrsqrt.pop %v5298
    %v5300 = vld [vmem:[%s3] sm:$0x1]
    %v5301 = vmul.f32 %v5299, %v5300
    %v5302 = vsub.f32 %v4773, %v5293
    %v5303 = vsub.f32 %v4778, %v5293
    %v5304 = vsub.f32 %v4783, %v5293
    %v5305 = vsub.f32 %v4788, %v5293
    %v5306 = vsub.f32 %v4793, %v5293
    %v5307 = vsub.f32 %v4798, %v5293
    %v5308 = vsub.f32 %v4803, %v5293
    %v5309 = vsub.f32 %v4808, %v5293
    %v5310 = vsub.f32 %v4813, %v5293
    %v5311 = vsub.f32 %v4818, %v5293
    %v5312 = vsub.f32 %v4823, %v5293
    %v5313 = vsub.f32 %v4828, %v5293
    %v5314 = vsub.f32 %v4833, %v5293
    %v5315 = vsub.f32 %v4838, %v5293
    %v5316 = vsub.f32 %v4843, %v5293
    %v5317 = vsub.f32 %v4848, %v5293
    %v5318 = vsub.f32 %v4853, %v5293
    %v5319 = vsub.f32 %v4858, %v5293
    %v5320 = vsub.f32 %v4863, %v5293
    %v5321 = vsub.f32 %v4868, %v5293
    %v5322 = vsub.f32 %v4873, %v5293
    %v5323 = vsub.f32 %v4878, %v5293
    %v5324 = vsub.f32 %v4883, %v5293
    %v5325 = vsub.f32 %v4888, %v5293
    %v5326 = vsub.f32 %v4893, %v5293
    %v5327 = vsub.f32 %v4898, %v5293
    %v5328 = vsub.f32 %v4903, %v5293
    %v5329 = vsub.f32 %v4908, %v5293
    %v5330 = vsub.f32 %v4913, %v5293
    %v5331 = vsub.f32 %v4918, %v5293
    %v5332 = vsub.f32 %v4923, %v5293
    %v5333 = vsub.f32 %v4928, %v5293
    %v5334 = vsub.f32 %v4933, %v5293
    %v5335 = vsub.f32 %v4938, %v5293
    %v5336 = vsub.f32 %v4943, %v5293
    %v5337 = vsub.f32 %v4948, %v5293
    %v5338 = vsub.f32 %v4953, %v5293
    %v5339 = vsub.f32 %v4958, %v5293
    %v5340 = vsub.f32 %v4963, %v5293
    %v5341 = vsub.f32 %v4968, %v5293
    %v5342 = vsub.f32 %v4973, %v5293
    %v5343 = vsub.f32 %v4978, %v5293
    %v5344 = vsub.f32 %v4983, %v5293
    %v5345 = vsub.f32 %v4988, %v5293
    %v5346 = vsub.f32 %v4993, %v5293
    %v5347 = vsub.f32 %v4998, %v5293
    %v5348 = vsub.f32 %v5003, %v5293
    %v5349 = vsub.f32 %v5008, %v5293
    %v5350 = vsub.f32 %v5013, %v5293
    %v5351 = vsub.f32 %v5018, %v5293
    %v5352 = vsub.f32 %v5023, %v5293
    %v5353 = vsub.f32 %v5028, %v5293
    %v5354 = vsub.f32 %v5033, %v5293
    %v5355 = vsub.f32 %v5038, %v5293
    %v5356 = vsub.f32 %v5043, %v5293
    %v5357 = vsub.f32 %v5048, %v5293
    %v5358 = vsub.f32 %v5053, %v5293
    %v5359 = vsub.f32 %v5058, %v5293
    %v5360 = vsub.f32 %v5063, %v5293
    %v5361 = vsub.f32 %v5068, %v5293
    %v5362 = vsub.f32 %v5073, %v5293
    %v5363 = vsub.f32 %v5078, %v5293
    %v5364 = vsub.f32 %v5083, %v5293
    %v5365 = vsub.f32 %v5088, %v5293
    %v5366 = vlaneseq
    %v5367 = vshrl.u32 %v5366, 7
    %v5368 = vsub.s32 0, %v5367
    %v5369 = vrot.slane %v5301, %v5368
    %v5370 = vmul.f32 %v5302, %v5369
    %v5371 = vmul.f32 %v5303, %v5369
    %v5372 = vmul.f32 %v5304, %v5369
    %v5373 = vmul.f32 %v5305, %v5369
    %v5374 = vmul.f32 %v5306, %v5369
    %v5375 = vmul.f32 %v5307, %v5369
    %v5376 = vmul.f32 %v5308, %v5369
    %v5377 = vmul.f32 %v5309, %v5369
    %v5378 = vmul.f32 %v5310, %v5369
    %v5379 = vmul.f32 %v5311, %v5369
    %v5380 = vmul.f32 %v5312, %v5369
    %v5381 = vmul.f32 %v5313, %v5369
    %v5382 = vmul.f32 %v5314, %v5369
    %v5383 = vmul.f32 %v5315, %v5369
    %v5384 = vmul.f32 %v5316, %v5369
    %v5385 = vmul.f32 %v5317, %v5369
    %v5386 = vmul.f32 %v5318, %v5369
    %v5387 = vmul.f32 %v5319, %v5369
    %v5388 = vmul.f32 %v5320, %v5369
    %v5389 = vmul.f32 %v5321, %v5369
    %v5390 = vmul.f32 %v5322, %v5369
    %v5391 = vmul.f32 %v5323, %v5369
    %v5392 = vmul.f32 %v5324, %v5369
    %v5393 = vmul.f32 %v5325, %v5369
    %v5394 = vmul.f32 %v5326, %v5369
    %v5395 = vmul.f32 %v5327, %v5369
    %v5396 = vmul.f32 %v5328, %v5369
    %v5397 = vmul.f32 %v5329, %v5369
    %v5398 = vmul.f32 %v5330, %v5369
    %v5399 = vmul.f32 %v5331, %v5369
    %v5400 = vmul.f32 %v5332, %v5369
    %v5401 = vmul.f32 %v5333, %v5369
    %v5402 = vmul.f32 %v5334, %v5369
    %v5403 = vmul.f32 %v5335, %v5369
    %v5404 = vmul.f32 %v5336, %v5369
    %v5405 = vmul.f32 %v5337, %v5369
    %v5406 = vmul.f32 %v5338, %v5369
    %v5407 = vmul.f32 %v5339, %v5369
    %v5408 = vmul.f32 %v5340, %v5369
    %v5409 = vmul.f32 %v5341, %v5369
    %v5410 = vmul.f32 %v5342, %v5369
    %v5411 = vmul.f32 %v5343, %v5369
    %v5412 = vmul.f32 %v5344, %v5369
    %v5413 = vmul.f32 %v5345, %v5369
    %v5414 = vmul.f32 %v5346, %v5369
    %v5415 = vmul.f32 %v5347, %v5369
    %v5416 = vmul.f32 %v5348, %v5369
    %v5417 = vmul.f32 %v5349, %v5369
    %v5418 = vmul.f32 %v5350, %v5369
    %v5419 = vmul.f32 %v5351, %v5369
    %v5420 = vmul.f32 %v5352, %v5369
    %v5421 = vmul.f32 %v5353, %v5369
    %v5422 = vmul.f32 %v5354, %v5369
    %v5423 = vmul.f32 %v5355, %v5369
    %v5424 = vmul.f32 %v5356, %v5369
    %v5425 = vmul.f32 %v5357, %v5369
    %v5426 = vmul.f32 %v5358, %v5369
    %v5427 = vmul.f32 %v5359, %v5369
    %v5428 = vmul.f32 %v5360, %v5369
    %v5429 = vmul.f32 %v5361, %v5369
    %v5430 = vmul.f32 %v5362, %v5369
    %v5431 = vmul.f32 %v5363, %v5369
    %v5432 = vmul.f32 %v5364, %v5369
    %v5433 = vmul.f32 %v5365, %v5369
    %v5434 = vld [vmem:[%s4] sm:$0x1]
    %v5436 = vlaneseq
    %v5437 = vshrl.u32 %v5436, 7
    %v5438 = vsub.s32 0, %v5437
    %v5439 = vrot.slane %v5434, %v5438
    %v5441 = vadd.f32 %v5370, %v5439
    %v5442 = vadd.f32 %v5371, %v5439
    %v5443 = vadd.f32 %v5372, %v5439
    %v5444 = vadd.f32 %v5373, %v5439
    %v5445 = vadd.f32 %v5374, %v5439
    %v5446 = vadd.f32 %v5375, %v5439
    %v5447 = vadd.f32 %v5376, %v5439
    %v5448 = vadd.f32 %v5377, %v5439
    %v5449 = vadd.f32 %v5378, %v5439
    %v5450 = vadd.f32 %v5379, %v5439
    %v5451 = vadd.f32 %v5380, %v5439
    %v5452 = vadd.f32 %v5381, %v5439
    %v5453 = vadd.f32 %v5382, %v5439
    %v5454 = vadd.f32 %v5383, %v5439
    %v5455 = vadd.f32 %v5384, %v5439
    %v5456 = vadd.f32 %v5385, %v5439
    %v5457 = vadd.f32 %v5386, %v5439
    %v5458 = vadd.f32 %v5387, %v5439
    %v5459 = vadd.f32 %v5388, %v5439
    %v5460 = vadd.f32 %v5389, %v5439
    %v5461 = vadd.f32 %v5390, %v5439
    %v5462 = vadd.f32 %v5391, %v5439
    %v5463 = vadd.f32 %v5392, %v5439
    %v5464 = vadd.f32 %v5393, %v5439
    %v5465 = vadd.f32 %v5394, %v5439
    %v5466 = vadd.f32 %v5395, %v5439
    %v5467 = vadd.f32 %v5396, %v5439
    %v5468 = vadd.f32 %v5397, %v5439
    %v5469 = vadd.f32 %v5398, %v5439
    %v5470 = vadd.f32 %v5399, %v5439
    %v5471 = vadd.f32 %v5400, %v5439
    %v5472 = vadd.f32 %v5401, %v5439
    %v5473 = vadd.f32 %v5402, %v5439
    %v5474 = vadd.f32 %v5403, %v5439
    %v5475 = vadd.f32 %v5404, %v5439
    %v5476 = vadd.f32 %v5405, %v5439
    %v5477 = vadd.f32 %v5406, %v5439
    %v5478 = vadd.f32 %v5407, %v5439
    %v5479 = vadd.f32 %v5408, %v5439
    %v5480 = vadd.f32 %v5409, %v5439
    %v5481 = vadd.f32 %v5410, %v5439
    %v5482 = vadd.f32 %v5411, %v5439
    %v5483 = vadd.f32 %v5412, %v5439
    %v5484 = vadd.f32 %v5413, %v5439
    %v5485 = vadd.f32 %v5414, %v5439
    %v5486 = vadd.f32 %v5415, %v5439
    %v5487 = vadd.f32 %v5416, %v5439
    %v5488 = vadd.f32 %v5417, %v5439
    %v5489 = vadd.f32 %v5418, %v5439
    %v5490 = vadd.f32 %v5419, %v5439
    %v5491 = vadd.f32 %v5420, %v5439
    %v5492 = vadd.f32 %v5421, %v5439
    %v5493 = vadd.f32 %v5422, %v5439
    %v5494 = vadd.f32 %v5423, %v5439
    %v5495 = vadd.f32 %v5424, %v5439
    %v5496 = vadd.f32 %v5425, %v5439
    %v5497 = vadd.f32 %v5426, %v5439
    %v5498 = vadd.f32 %v5427, %v5439
    %v5499 = vadd.f32 %v5428, %v5439
    %v5500 = vadd.f32 %v5429, %v5439
    %v5501 = vadd.f32 %v5430, %v5439
    %v5502 = vadd.f32 %v5431, %v5439
    %v5503 = vadd.f32 %v5432, %v5439
    %v5504 = vadd.f32 %v5433, %v5439
    %v5505 = vmax.f32 %v5441, 0.0
    %v5506 = vmax.f32 %v5442, 0.0
    %v5507 = vmax.f32 %v5443, 0.0
    %v5508 = vmax.f32 %v5444, 0.0
    %v5509 = vmax.f32 %v5445, 0.0
    %v5510 = vmax.f32 %v5446, 0.0
    %v5511 = vmax.f32 %v5447, 0.0
    %v5512 = vmax.f32 %v5448, 0.0
    %v5513 = vmax.f32 %v5449, 0.0
    %v5514 = vmax.f32 %v5450, 0.0
    %v5515 = vmax.f32 %v5451, 0.0
    %v5516 = vmax.f32 %v5452, 0.0
    %v5517 = vmax.f32 %v5453, 0.0
    %v5518 = vmax.f32 %v5454, 0.0
    %v5519 = vmax.f32 %v5455, 0.0
    %v5520 = vmax.f32 %v5456, 0.0
    %v5521 = vmax.f32 %v5457, 0.0
    %v5522 = vmax.f32 %v5458, 0.0
    %v5523 = vmax.f32 %v5459, 0.0
    %v5524 = vmax.f32 %v5460, 0.0
    %v5525 = vmax.f32 %v5461, 0.0
    %v5526 = vmax.f32 %v5462, 0.0
    %v5527 = vmax.f32 %v5463, 0.0
    %v5528 = vmax.f32 %v5464, 0.0
    %v5529 = vmax.f32 %v5465, 0.0
    %v5530 = vmax.f32 %v5466, 0.0
    %v5531 = vmax.f32 %v5467, 0.0
    %v5532 = vmax.f32 %v5468, 0.0
    %v5533 = vmax.f32 %v5469, 0.0
    %v5534 = vmax.f32 %v5470, 0.0
    %v5535 = vmax.f32 %v5471, 0.0
    %v5536 = vmax.f32 %v5472, 0.0
    %v5537 = vmax.f32 %v5473, 0.0
    %v5538 = vmax.f32 %v5474, 0.0
    %v5539 = vmax.f32 %v5475, 0.0
    %v5540 = vmax.f32 %v5476, 0.0
    %v5541 = vmax.f32 %v5477, 0.0
    %v5542 = vmax.f32 %v5478, 0.0
    %v5543 = vmax.f32 %v5479, 0.0
    %v5544 = vmax.f32 %v5480, 0.0
    %v5545 = vmax.f32 %v5481, 0.0
    %v5546 = vmax.f32 %v5482, 0.0
    %v5547 = vmax.f32 %v5483, 0.0
    %v5548 = vmax.f32 %v5484, 0.0
    %v5549 = vmax.f32 %v5485, 0.0
    %v5550 = vmax.f32 %v5486, 0.0
    %v5551 = vmax.f32 %v5487, 0.0
    %v5552 = vmax.f32 %v5488, 0.0
    %v5553 = vmax.f32 %v5489, 0.0
    %v5554 = vmax.f32 %v5490, 0.0
    %v5555 = vmax.f32 %v5491, 0.0
    %v5556 = vmax.f32 %v5492, 0.0
    %v5557 = vmax.f32 %v5493, 0.0
    %v5558 = vmax.f32 %v5494, 0.0
    %v5559 = vmax.f32 %v5495, 0.0
    %v5560 = vmax.f32 %v5496, 0.0
    %v5561 = vmax.f32 %v5497, 0.0
    %v5562 = vmax.f32 %v5498, 0.0
    %v5563 = vmax.f32 %v5499, 0.0
    %v5564 = vmax.f32 %v5500, 0.0
    %v5565 = vmax.f32 %v5501, 0.0
    %v5566 = vmax.f32 %v5502, 0.0
    %v5567 = vmax.f32 %v5503, 0.0
    %v5568 = vmax.f32 %v5504, 0.0
    %5569 = vst [vmem:[#allocation2] sm:$0xff] 0.0
    %5570 = vst [vmem:[#allocation2 + $0x8] sm:$0xff] 0.0
    %5571 = vst [vmem:[#allocation2 + $0x120] sm:$0xff] 0.0
    %5572 = vst [vmem:[#allocation2 + $0x128] sm:$0xff] 0.0
    %s5573 = scalar_lea.vmem [#allocation2], 272
    %5574 = vst [vmem:[%s5573] sm:$0xff] 0.0
    %5575 = vst [vmem:[%s5573 + $0x8] sm:$0xff] 0.0
    %5576 = vst [vmem:[%s5573 + $0x120] sm:$0xff] 0.0
    %5577 = vst [vmem:[%s5573 + $0x128] sm:$0xff] 0.0
    %s5578 = scalar_lea.vmem [#allocation2], 16
    %5579 = vst [vmem:[%s5578] sm:$0xff] %v5505
    %5580 = vst [vmem:[%s5578 + $0x8] sm:$0xff] %v5506
    %5581 = vst [vmem:[%s5578 + $0x10] sm:$0xff] %v5507
    %5582 = vst [vmem:[%s5578 + $0x18] sm:$0xff] %v5508
    %5583 = vst [vmem:[%s5578 + $0x20] sm:$0xff] %v5509
    %5584 = vst [vmem:[%s5578 + $0x28] sm:$0xff] %v5510
    %5585 = vst [vmem:[%s5578 + $0x30] sm:$0xff] %v5511
    %5586 = vst [vmem:[%s5578 + $0x38] sm:$0xff] %v5512
    %5587 = vst [vmem:[%s5578 + $0x40] sm:$0xff] %v5513
    %5588 = vst [vmem:[%s5578 + $0x48] sm:$0xff] %v5514
    %5589 = vst [vmem:[%s5578 + $0x50] sm:$0xff] %v5515
    %5590 = vst [vmem:[%s5578 + $0x58] sm:$0xff] %v5516
    %5591 = vst [vmem:[%s5578 + $0x60] sm:$0xff] %v5517
    %5592 = vst [vmem:[%s5578 + $0x68] sm:$0xff] %v5518
    %5593 = vst [vmem:[%s5578 + $0x70] sm:$0xff] %v5519
    %5594 = vst [vmem:[%s5578 + $0x78] sm:$0xff] %v5520
    %5595 = vst [vmem:[%s5578 + $0x80] sm:$0xff] %v5521
    %5596 = vst [vmem:[%s5578 + $0x88] sm:$0xff] %v5522
    %5597 = vst [vmem:[%s5578 + $0x90] sm:$0xff] %v5523
    %5598 = vst [vmem:[%s5578 + $0x98] sm:$0xff] %v5524
    %5599 = vst [vmem:[%s5578 + $0xa0] sm:$0xff] %v5525
    %5600 = vst [vmem:[%s5578 + $0xa8] sm:$0xff] %v5526
    %5601 = vst [vmem:[%s5578 + $0xb0] sm:$0xff] %v5527
    %5602 = vst [vmem:[%s5578 + $0xb8] sm:$0xff] %v5528
    %5603 = vst [vmem:[%s5578 + $0xc0] sm:$0xff] %v5529
    %5604 = vst [vmem:[%s5578 + $0xc8] sm:$0xff] %v5530
    %5605 = vst [vmem:[%s5578 + $0xd0] sm:$0xff] %v5531
    %5606 = vst [vmem:[%s5578 + $0xd8] sm:$0xff] %v5532
    %5607 = vst [vmem:[%s5578 + $0xe0] sm:$0xff] %v5533
    %5608 = vst [vmem:[%s5578 + $0xe8] sm:$0xff] %v5534
    %5609 = vst [vmem:[%s5578 + $0xf0] sm:$0xff] %v5535
    %5610 = vst [vmem:[%s5578 + $0xf8] sm:$0xff] %v5536
    %5611 = vst [vmem:[%s5578 + $0x120] sm:$0xff] %v5537
    %5612 = vst [vmem:[%s5578 + $0x128] sm:$0xff] %v5538
    %5613 = vst [vmem:[%s5578 + $0x130] sm:$0xff] %v5539
    %5614 = vst [vmem:[%s5578 + $0x138] sm:$0xff] %v5540
    %5615 = vst [vmem:[%s5578 + $0x140] sm:$0xff] %v5541
    %5616 = vst [vmem:[%s5578 + $0x148] sm:$0xff] %v5542
    %5617 = vst [vmem:[%s5578 + $0x150] sm:$0xff] %v5543
    %5618 = vst [vmem:[%s5578 + $0x158] sm:$0xff] %v5544
    %5619 = vst [vmem:[%s5578 + $0x160] sm:$0xff] %v5545
    %5620 = vst [vmem:[%s5578 + $0x168] sm:$0xff] %v5546
    %5621 = vst [vmem:[%s5578 + $0x170] sm:$0xff] %v5547
    %5622 = vst [vmem:[%s5578 + $0x178] sm:$0xff] %v5548
    %5623 = vst [vmem:[%s5578 + $0x180] sm:$0xff] %v5549
    %5624 = vst [vmem:[%s5578 + $0x188] sm:$0xff] %v5550
    %5625 = vst [vmem:[%s5578 + $0x190] sm:$0xff] %v5551
    %5626 = vst [vmem:[%s5578 + $0x198] sm:$0xff] %v5552
    %5627 = vst [vmem:[%s5578 + $0x1a0] sm:$0xff] %v5553
    %5628 = vst [vmem:[%s5578 + $0x1a8] sm:$0xff] %v5554
    %5629 = vst [vmem:[%s5578 + $0x1b0] sm:$0xff] %v5555
    %5630 = vst [vmem:[%s5578 + $0x1b8] sm:$0xff] %v5556
    %5631 = vst [vmem:[%s5578 + $0x1c0] sm:$0xff] %v5557
    %5632 = vst [vmem:[%s5578 + $0x1c8] sm:$0xff] %v5558
    %5633 = vst [vmem:[%s5578 + $0x1d0] sm:$0xff] %v5559
    %5634 = vst [vmem:[%s5578 + $0x1d8] sm:$0xff] %v5560
    %5635 = vst [vmem:[%s5578 + $0x1e0] sm:$0xff] %v5561
    %5636 = vst [vmem:[%s5578 + $0x1e8] sm:$0xff] %v5562
    %5637 = vst [vmem:[%s5578 + $0x1f0] sm:$0xff] %v5563
    %5638 = vst [vmem:[%s5578 + $0x1f8] sm:$0xff] %v5564
    %5639 = vst [vmem:[%s5578 + $0x200] sm:$0xff] %v5565
    %5640 = vst [vmem:[%s5578 + $0x208] sm:$0xff] %v5566
    %5641 = vst [vmem:[%s5578 + $0x210] sm:$0xff] %v5567
    %5642 = vst [vmem:[%s5578 + $0x218] sm:$0xff] %v5568
    %v5643 = vld [vmem:[#allocation2] sm:$0xff]
    %v5644 = vld [vmem:[#allocation2 + $0x8] sm:$0xff]
    %v5645 = vld [vmem:[#allocation2 + $0x10] sm:$0xff]
    %v5646 = vld [vmem:[#allocation2 + $0x18] sm:$0xff]
    %v5647 = vld [vmem:[#allocation2 + $0x20] sm:$0xff]
    %v5648 = vld [vmem:[#allocation2 + $0x28] sm:$0xff]
    %v5649 = vld [vmem:[#allocation2 + $0x30] sm:$0xff]
    %v5650 = vld [vmem:[#allocation2 + $0x38] sm:$0xff]
    %v5651 = vld [vmem:[#allocation2 + $0x40] sm:$0xff]
    %v5652 = vld [vmem:[#allocation2 + $0x48] sm:$0xff]
    %v5653 = vld [vmem:[#allocation2 + $0x50] sm:$0xff]
    %v5654 = vld [vmem:[#allocation2 + $0x58] sm:$0xff]
    %v5655 = vld [vmem:[#allocation2 + $0x60] sm:$0xff]
    %v5656 = vld [vmem:[#allocation2 + $0x68] sm:$0xff]
    %v5657 = vld [vmem:[#allocation2 + $0x70] sm:$0xff]
    %v5658 = vld [vmem:[#allocation2 + $0x78] sm:$0xff]
    %v5659 = vld [vmem:[#allocation2 + $0x80] sm:$0xff]
    %v5660 = vld [vmem:[#allocation2 + $0x88] sm:$0xff]
    %v5661 = vld [vmem:[#allocation2 + $0x90] sm:$0xff]
    %v5662 = vld [vmem:[#allocation2 + $0x98] sm:$0xff]
    %v5663 = vld [vmem:[#allocation2 + $0xa0] sm:$0xff]
    %v5664 = vld [vmem:[#allocation2 + $0xa8] sm:$0xff]
    %v5665 = vld [vmem:[#allocation2 + $0xb0] sm:$0xff]
    %v5666 = vld [vmem:[#allocation2 + $0xb8] sm:$0xff]
    %v5667 = vld [vmem:[#allocation2 + $0xc0] sm:$0xff]
    %v5668 = vld [vmem:[#allocation2 + $0xc8] sm:$0xff]
    %v5669 = vld [vmem:[#allocation2 + $0xd0] sm:$0xff]
    %v5670 = vld [vmem:[#allocation2 + $0xd8] sm:$0xff]
    %v5671 = vld [vmem:[#allocation2 + $0xe0] sm:$0xff]
    %v5672 = vld [vmem:[#allocation2 + $0xe8] sm:$0xff]
    %v5673 = vld [vmem:[#allocation2 + $0xf0] sm:$0xff]
    %v5674 = vld [vmem:[#allocation2 + $0xf8] sm:$0xff]
    %v5675 = vld [vmem:[#allocation2 + $0x100] sm:$0xff]
    %v5676 = vld [vmem:[#allocation2 + $0x108] sm:$0xff]
    %v5677 = vld [vmem:[#allocation2 + $0x110] sm:$0xff]
    %v5678 = vld [vmem:[#allocation2 + $0x118] sm:$0xff]
    %v5679 = vld [vmem:[#allocation2 + $0x120] sm:$0xff]
    %v5680 = vld [vmem:[#allocation2 + $0x128] sm:$0xff]
    %v5681 = vld [vmem:[#allocation2 + $0x130] sm:$0xff]
    %v5682 = vld [vmem:[#allocation2 + $0x138] sm:$0xff]
    %v5683 = vld [vmem:[#allocation2 + $0x140] sm:$0xff]
    %v5684 = vld [vmem:[#allocation2 + $0x148] sm:$0xff]
    %v5685 = vld [vmem:[#allocation2 + $0x150] sm:$0xff]
    %v5686 = vld [vmem:[#allocation2 + $0x158] sm:$0xff]
    %v5687 = vld [vmem:[#allocation2 + $0x160] sm:$0xff]
    %v5688 = vld [vmem:[#allocation2 + $0x168] sm:$0xff]
    %v5689 = vld [vmem:[#allocation2 + $0x170] sm:$0xff]
    %v5690 = vld [vmem:[#allocation2 + $0x178] sm:$0xff]
    %v5691 = vld [vmem:[#allocation2 + $0x180] sm:$0xff]
    %v5692 = vld [vmem:[#allocation2 + $0x188] sm:$0xff]
    %v5693 = vld [vmem:[#allocation2 + $0x190] sm:$0xff]
    %v5694 = vld [vmem:[#allocation2 + $0x198] sm:$0xff]
    %v5695 = vld [vmem:[#allocation2 + $0x1a0] sm:$0xff]
    %v5696 = vld [vmem:[#allocation2 + $0x1a8] sm:$0xff]
    %v5697 = vld [vmem:[#allocation2 + $0x1b0] sm:$0xff]
    %v5698 = vld [vmem:[#allocation2 + $0x1b8] sm:$0xff]
    %v5699 = vld [vmem:[#allocation2 + $0x1c0] sm:$0xff]
    %v5700 = vld [vmem:[#allocation2 + $0x1c8] sm:$0xff]
    %v5701 = vld [vmem:[#allocation2 + $0x1d0] sm:$0xff]
    %v5702 = vld [vmem:[#allocation2 + $0x1d8] sm:$0xff]
    %v5703 = vld [vmem:[#allocation2 + $0x1e0] sm:$0xff]
    %v5704 = vld [vmem:[#allocation2 + $0x1e8] sm:$0xff]
    %v5705 = vld [vmem:[#allocation2 + $0x1f0] sm:$0xff]
    %v5706 = vld [vmem:[#allocation2 + $0x1f8] sm:$0xff]
    %v5707 = vld [vmem:[#allocation2 + $0x200] sm:$0xff]
    %v5708 = vld [vmem:[#allocation2 + $0x208] sm:$0xff]
    %v5709 = vld [vmem:[#allocation2 + $0x210] sm:$0xff]
    %v5710 = vld [vmem:[#allocation2 + $0x218] sm:$0xff]
    %v5711 = vld [vmem:[#allocation2 + $0x220] sm:$0xff]
    %v5712 = vld [vmem:[#allocation2 + $0x228] sm:$0xff]
    %v5713 = vld [vmem:[#allocation2 + $0x230] sm:$0xff]
    %v5714 = vld [vmem:[#allocation2 + $0x238] sm:$0xff]
    %v5716 = vrot.slane %v5714, 7
    %v5789 = vrot.slane %v5643, 7
    %v5790 = vrot.slane %v5644, 7
    %v5791 = vsel %vm1327, %v5789, %v5790
    %v5792 = vrot.slane %v5645, 7
    %v5793 = vsel %vm1327, %v5790, %v5792
    %v5794 = vrot.slane %v5646, 7
    %v5795 = vsel %vm1327, %v5792, %v5794
    %v5796 = vrot.slane %v5647, 7
    %v5797 = vsel %vm1327, %v5794, %v5796
    %v5798 = vrot.slane %v5648, 7
    %v5799 = vsel %vm1327, %v5796, %v5798
    %v5800 = vrot.slane %v5649, 7
    %v5801 = vsel %vm1327, %v5798, %v5800
    %v5802 = vrot.slane %v5650, 7
    %v5803 = vsel %vm1327, %v5800, %v5802
    %v5804 = vrot.slane %v5651, 7
    %v5805 = vsel %vm1327, %v5802, %v5804
    %v5806 = vrot.slane %v5652, 7
    %v5807 = vsel %vm1327, %v5804, %v5806
    %v5808 = vrot.slane %v5653, 7
    %v5809 = vsel %vm1327, %v5806, %v5808
    %v5810 = vrot.slane %v5654, 7
    %v5811 = vsel %vm1327, %v5808, %v5810
    %v5812 = vrot.slane %v5655, 7
    %v5813 = vsel %vm1327, %v5810, %v5812
    %v5814 = vrot.slane %v5656, 7
    %v5815 = vsel %vm1327, %v5812, %v5814
    %v5816 = vrot.slane %v5657, 7
    %v5817 = vsel %vm1327, %v5814, %v5816
    %v5818 = vrot.slane %v5658, 7
    %v5819 = vsel %vm1327, %v5816, %v5818
    %v5820 = vrot.slane %v5659, 7
    %v5821 = vsel %vm1327, %v5818, %v5820
    %v5822 = vrot.slane %v5660, 7
    %v5823 = vsel %vm1327, %v5820, %v5822
    %v5824 = vrot.slane %v5661, 7
    %v5825 = vsel %vm1327, %v5822, %v5824
    %v5826 = vrot.slane %v5662, 7
    %v5827 = vsel %vm1327, %v5824, %v5826
    %v5828 = vrot.slane %v5663, 7
    %v5829 = vsel %vm1327, %v5826, %v5828
    %v5830 = vrot.slane %v5664, 7
    %v5831 = vsel %vm1327, %v5828, %v5830
    %v5832 = vrot.slane %v5665, 7
    %v5833 = vsel %vm1327, %v5830, %v5832
    %v5834 = vrot.slane %v5666, 7
    %v5835 = vsel %vm1327, %v5832, %v5834
    %v5836 = vrot.slane %v5667, 7
    %v5837 = vsel %vm1327, %v5834, %v5836
    %v5838 = vrot.slane %v5668, 7
    %v5839 = vsel %vm1327, %v5836, %v5838
    %v5840 = vrot.slane %v5669, 7
    %v5841 = vsel %vm1327, %v5838, %v5840
    %v5842 = vrot.slane %v5670, 7
    %v5843 = vsel %vm1327, %v5840, %v5842
    %v5844 = vrot.slane %v5671, 7
    %v5845 = vsel %vm1327, %v5842, %v5844
    %v5846 = vrot.slane %v5672, 7
    %v5847 = vsel %vm1327, %v5844, %v5846
    %v5848 = vrot.slane %v5673, 7
    %v5849 = vsel %vm1327, %v5846, %v5848
    %v5850 = vrot.slane %v5674, 7
    %v5851 = vsel %vm1327, %v5848, %v5850
    %v5852 = vrot.slane %v5675, 7
    %v5853 = vsel %vm1327, %v5850, %v5852
    %v5854 = vrot.slane %v5676, 7
    %v5855 = vsel %vm1327, %v5852, %v5854
    %v5856 = vrot.slane %v5677, 7
    %v5857 = vsel %vm1327, %v5854, %v5856
    %v5858 = vrot.slane %v5678, 7
    %v5859 = vsel %vm1327, %v5856, %v5858
    %v5860 = vrot.slane %v5679, 7
    %v5861 = vsel %vm1327, %v5858, %v5860
    %v5862 = vrot.slane %v5680, 7
    %v5863 = vsel %vm1327, %v5860, %v5862
    %v5864 = vrot.slane %v5681, 7
    %v5865 = vsel %vm1327, %v5862, %v5864
    %v5866 = vrot.slane %v5682, 7
    %v5867 = vsel %vm1327, %v5864, %v5866
    %v5868 = vrot.slane %v5683, 7
    %v5869 = vsel %vm1327, %v5866, %v5868
    %v5870 = vrot.slane %v5684, 7
    %v5871 = vsel %vm1327, %v5868, %v5870
    %v5872 = vrot.slane %v5685, 7
    %v5873 = vsel %vm1327, %v5870, %v5872
    %v5874 = vrot.slane %v5686, 7
    %v5875 = vsel %vm1327, %v5872, %v5874
    %v5876 = vrot.slane %v5687, 7
    %v5877 = vsel %vm1327, %v5874, %v5876
    %v5878 = vrot.slane %v5688, 7
    %v5879 = vsel %vm1327, %v5876, %v5878
    %v5880 = vrot.slane %v5689, 7
    %v5881 = vsel %vm1327, %v5878, %v5880
    %v5882 = vrot.slane %v5690, 7
    %v5883 = vsel %vm1327, %v5880, %v5882
    %v5884 = vrot.slane %v5691, 7
    %v5885 = vsel %vm1327, %v5882, %v5884
    %v5886 = vrot.slane %v5692, 7
    %v5887 = vsel %vm1327, %v5884, %v5886
    %v5888 = vrot.slane %v5693, 7
    %v5889 = vsel %vm1327, %v5886, %v5888
    %v5890 = vrot.slane %v5694, 7
    %v5891 = vsel %vm1327, %v5888, %v5890
    %v5892 = vrot.slane %v5695, 7
    %v5893 = vsel %vm1327, %v5890, %v5892
    %v5894 = vrot.slane %v5696, 7
    %v5895 = vsel %vm1327, %v5892, %v5894
    %v5896 = vrot.slane %v5697, 7
    %v5897 = vsel %vm1327, %v5894, %v5896
    %v5898 = vrot.slane %v5698, 7
    %v5899 = vsel %vm1327, %v5896, %v5898
    %v5900 = vrot.slane %v5699, 7
    %v5901 = vsel %vm1327, %v5898, %v5900
    %v5902 = vrot.slane %v5700, 7
    %v5903 = vsel %vm1327, %v5900, %v5902
    %v5904 = vrot.slane %v5701, 7
    %v5905 = vsel %vm1327, %v5902, %v5904
    %v5906 = vrot.slane %v5702, 7
    %v5907 = vsel %vm1327, %v5904, %v5906
    %v5908 = vrot.slane %v5703, 7
    %v5909 = vsel %vm1327, %v5906, %v5908
    %v5910 = vrot.slane %v5704, 7
    %v5911 = vsel %vm1327, %v5908, %v5910
    %v5912 = vrot.slane %v5705, 7
    %v5913 = vsel %vm1327, %v5910, %v5912
    %v5914 = vrot.slane %v5706, 7
    %v5915 = vsel %vm1327, %v5912, %v5914
    %v5916 = vrot.slane %v5707, 7
    %v5917 = vsel %vm1327, %v5914, %v5916
    %v5918 = vrot.slane %v5708, 7
    %v5919 = vsel %vm1327, %v5916, %v5918
    %v5920 = vrot.slane %v5709, 7
    %v5921 = vsel %vm1327, %v5918, %v5920
    %v5922 = vrot.slane %v5710, 7
    %v5923 = vsel %vm1327, %v5920, %v5922
    %v5924 = vrot.slane %v5711, 7
    %v5925 = vsel %vm1327, %v5922, %v5924
    %v5926 = vrot.slane %v5712, 7
    %v5927 = vsel %vm1327, %v5924, %v5926
    %v5928 = vrot.slane %v5713, 7
    %v5929 = vsel %vm1327, %v5926, %v5928
    %v5930 = vsel %vm1327, %v5928, %v5716
    %v6003 = vsel %vm1327, %v5716, %v5789
    %v6004 = vsel %vm1615, %v6003, 0.0
    %v6005 = vsel %vm1616, %v5791, 0.0
    %v6006 = vsel %vm1617, %v5793, 0.0
    %v6007 = vsel %vm1618, %v5795, 0.0
    %v6008 = vsel %vm1619, %v5797, 0.0
    %v6009 = vsel %vm1620, %v5799, 0.0
    %v6010 = vsel %vm1621, %v5801, 0.0
    %v6011 = vsel %vm1622, %v5803, 0.0
    %v6012 = vsel %vm1623, %v5805, 0.0
    %v6013 = vsel %vm1624, %v5807, 0.0
    %v6014 = vsel %vm1625, %v5809, 0.0
    %v6015 = vsel %vm1626, %v5811, 0.0
    %v6016 = vsel %vm1627, %v5813, 0.0
    %v6017 = vsel %vm1628, %v5815, 0.0
    %v6018 = vsel %vm1629, %v5817, 0.0
    %v6019 = vsel %vm1630, %v5819, 0.0
    %v6020 = vsel %vm1631, %v5821, 0.0
    %v6021 = vsel %vm1632, %v5823, 0.0
    %v6022 = vsel %vm1633, %v5825, 0.0
    %v6023 = vsel %vm1634, %v5827, 0.0
    %v6024 = vsel %vm1635, %v5829, 0.0
    %v6025 = vsel %vm1636, %v5831, 0.0
    %v6026 = vsel %vm1637, %v5833, 0.0
    %v6027 = vsel %vm1638, %v5835, 0.0
    %v6028 = vsel %vm1639, %v5837, 0.0
    %v6029 = vsel %vm1640, %v5839, 0.0
    %v6030 = vsel %vm1641, %v5841, 0.0
    %v6031 = vsel %vm1642, %v5843, 0.0
    %v6032 = vsel %vm1643, %v5845, 0.0
    %v6033 = vsel %vm1644, %v5847, 0.0
    %v6034 = vsel %vm1645, %v5849, 0.0
    %v6035 = vsel %vm1646, %v5851, 0.0
    %v6036 = vsel %vm1647, %v5853, 0.0
    %v6037 = vsel %vm1648, %v5855, 0.0
    %v6038 = vsel %vm1649, %v5857, 0.0
    %v6039 = vsel %vm1650, %v5859, 0.0
    %v6040 = vsel %vm1651, %v5861, 0.0
    %v6041 = vsel %vm1652, %v5863, 0.0
    %v6042 = vsel %vm1653, %v5865, 0.0
    %v6043 = vsel %vm1654, %v5867, 0.0
    %v6044 = vsel %vm1655, %v5869, 0.0
    %v6045 = vsel %vm1656, %v5871, 0.0
    %v6046 = vsel %vm1657, %v5873, 0.0
    %v6047 = vsel %vm1658, %v5875, 0.0
    %v6048 = vsel %vm1659, %v5877, 0.0
    %v6049 = vsel %vm1660, %v5879, 0.0
    %v6050 = vsel %vm1661, %v5881, 0.0
    %v6051 = vsel %vm1662, %v5883, 0.0
    %v6052 = vsel %vm1663, %v5885, 0.0
    %v6053 = vsel %vm1664, %v5887, 0.0
    %v6054 = vsel %vm1665, %v5889, 0.0
    %v6055 = vsel %vm1666, %v5891, 0.0
    %v6056 = vsel %vm1667, %v5893, 0.0
    %v6057 = vsel %vm1668, %v5895, 0.0
    %v6058 = vsel %vm1669, %v5897, 0.0
    %v6059 = vsel %vm1670, %v5899, 0.0
    %v6060 = vsel %vm1671, %v5901, 0.0
    %v6061 = vsel %vm1672, %v5903, 0.0
    %v6062 = vsel %vm1673, %v5905, 0.0
    %v6063 = vsel %vm1674, %v5907, 0.0
    %v6064 = vsel %vm1675, %v5909, 0.0
    %v6065 = vsel %vm1676, %v5911, 0.0
    %v6066 = vsel %vm1677, %v5913, 0.0
    %v6067 = vsel %vm1678, %v5915, 0.0
    %v6068 = vsel %vm1679, %v5917, 0.0
    %v6069 = vsel %vm1680, %v5919, 0.0
    %v6070 = vsel %vm1681, %v5921, 0.0
    %v6071 = vsel %vm1682, %v5923, 0.0
    %v6072 = vsel %vm1683, %v5925, 0.0
    %v6073 = vsel %vm1684, %v5927, 0.0
    %v6074 = vsel %vm1685, %v5929, 0.0
    %v6075 = vsel %vm1686, %v5930, 0.0
    %v6076 = vrot.slane %v5643, 1
    %v6077 = vrot.slane %v5644, 1
    %v6078 = vsel %vm1759, %v6076, %v6077
    %v6079 = vrot.slane %v5645, 1
    %v6080 = vsel %vm1759, %v6077, %v6079
    %v6081 = vrot.slane %v5646, 1
    %v6082 = vsel %vm1759, %v6079, %v6081
    %v6083 = vrot.slane %v5647, 1
    %v6084 = vsel %vm1759, %v6081, %v6083
    %v6085 = vrot.slane %v5648, 1
    %v6086 = vsel %vm1759, %v6083, %v6085
    %v6087 = vrot.slane %v5649, 1
    %v6088 = vsel %vm1759, %v6085, %v6087
    %v6089 = vrot.slane %v5650, 1
    %v6090 = vsel %vm1759, %v6087, %v6089
    %v6091 = vrot.slane %v5651, 1
    %v6092 = vsel %vm1759, %v6089, %v6091
    %v6093 = vrot.slane %v5652, 1
    %v6094 = vsel %vm1759, %v6091, %v6093
    %v6095 = vrot.slane %v5653, 1
    %v6096 = vsel %vm1759, %v6093, %v6095
    %v6097 = vrot.slane %v5654, 1
    %v6098 = vsel %vm1759, %v6095, %v6097
    %v6099 = vrot.slane %v5655, 1
    %v6100 = vsel %vm1759, %v6097, %v6099
    %v6101 = vrot.slane %v5656, 1
    %v6102 = vsel %vm1759, %v6099, %v6101
    %v6103 = vrot.slane %v5657, 1
    %v6104 = vsel %vm1759, %v6101, %v6103
    %v6105 = vrot.slane %v5658, 1
    %v6106 = vsel %vm1759, %v6103, %v6105
    %v6107 = vrot.slane %v5659, 1
    %v6108 = vsel %vm1759, %v6105, %v6107
    %v6109 = vrot.slane %v5660, 1
    %v6110 = vsel %vm1759, %v6107, %v6109
    %v6111 = vrot.slane %v5661, 1
    %v6112 = vsel %vm1759, %v6109, %v6111
    %v6113 = vrot.slane %v5662, 1
    %v6114 = vsel %vm1759, %v6111, %v6113
    %v6115 = vrot.slane %v5663, 1
    %v6116 = vsel %vm1759, %v6113, %v6115
    %v6117 = vrot.slane %v5664, 1
    %v6118 = vsel %vm1759, %v6115, %v6117
    %v6119 = vrot.slane %v5665, 1
    %v6120 = vsel %vm1759, %v6117, %v6119
    %v6121 = vrot.slane %v5666, 1
    %v6122 = vsel %vm1759, %v6119, %v6121
    %v6123 = vrot.slane %v5667, 1
    %v6124 = vsel %vm1759, %v6121, %v6123
    %v6125 = vrot.slane %v5668, 1
    %v6126 = vsel %vm1759, %v6123, %v6125
    %v6127 = vrot.slane %v5669, 1
    %v6128 = vsel %vm1759, %v6125, %v6127
    %v6129 = vrot.slane %v5670, 1
    %v6130 = vsel %vm1759, %v6127, %v6129
    %v6131 = vrot.slane %v5671, 1
    %v6132 = vsel %vm1759, %v6129, %v6131
    %v6133 = vrot.slane %v5672, 1
    %v6134 = vsel %vm1759, %v6131, %v6133
    %v6135 = vrot.slane %v5673, 1
    %v6136 = vsel %vm1759, %v6133, %v6135
    %v6137 = vrot.slane %v5674, 1
    %v6138 = vsel %vm1759, %v6135, %v6137
    %v6139 = vrot.slane %v5675, 1
    %v6140 = vsel %vm1759, %v6137, %v6139
    %v6141 = vrot.slane %v5676, 1
    %v6142 = vsel %vm1759, %v6139, %v6141
    %v6143 = vrot.slane %v5677, 1
    %v6144 = vsel %vm1759, %v6141, %v6143
    %v6145 = vrot.slane %v5678, 1
    %v6146 = vsel %vm1759, %v6143, %v6145
    %v6147 = vrot.slane %v5679, 1
    %v6148 = vsel %vm1759, %v6145, %v6147
    %v6149 = vrot.slane %v5680, 1
    %v6150 = vsel %vm1759, %v6147, %v6149
    %v6151 = vrot.slane %v5681, 1
    %v6152 = vsel %vm1759, %v6149, %v6151
    %v6153 = vrot.slane %v5682, 1
    %v6154 = vsel %vm1759, %v6151, %v6153
    %v6155 = vrot.slane %v5683, 1
    %v6156 = vsel %vm1759, %v6153, %v6155
    %v6157 = vrot.slane %v5684, 1
    %v6158 = vsel %vm1759, %v6155, %v6157
    %v6159 = vrot.slane %v5685, 1
    %v6160 = vsel %vm1759, %v6157, %v6159
    %v6161 = vrot.slane %v5686, 1
    %v6162 = vsel %vm1759, %v6159, %v6161
    %v6163 = vrot.slane %v5687, 1
    %v6164 = vsel %vm1759, %v6161, %v6163
    %v6165 = vrot.slane %v5688, 1
    %v6166 = vsel %vm1759, %v6163, %v6165
    %v6167 = vrot.slane %v5689, 1
    %v6168 = vsel %vm1759, %v6165, %v6167
    %v6169 = vrot.slane %v5690, 1
    %v6170 = vsel %vm1759, %v6167, %v6169
    %v6171 = vrot.slane %v5691, 1
    %v6172 = vsel %vm1759, %v6169, %v6171
    %v6173 = vrot.slane %v5692, 1
    %v6174 = vsel %vm1759, %v6171, %v6173
    %v6175 = vrot.slane %v5693, 1
    %v6176 = vsel %vm1759, %v6173, %v6175
    %v6177 = vrot.slane %v5694, 1
    %v6178 = vsel %vm1759, %v6175, %v6177
    %v6179 = vrot.slane %v5695, 1
    %v6180 = vsel %vm1759, %v6177, %v6179
    %v6181 = vrot.slane %v5696, 1
    %v6182 = vsel %vm1759, %v6179, %v6181
    %v6183 = vrot.slane %v5697, 1
    %v6184 = vsel %vm1759, %v6181, %v6183
    %v6185 = vrot.slane %v5698, 1
    %v6186 = vsel %vm1759, %v6183, %v6185
    %v6187 = vrot.slane %v5699, 1
    %v6188 = vsel %vm1759, %v6185, %v6187
    %v6189 = vrot.slane %v5700, 1
    %v6190 = vsel %vm1759, %v6187, %v6189
    %v6191 = vrot.slane %v5701, 1
    %v6192 = vsel %vm1759, %v6189, %v6191
    %v6193 = vrot.slane %v5702, 1
    %v6194 = vsel %vm1759, %v6191, %v6193
    %v6195 = vrot.slane %v5703, 1
    %v6196 = vsel %vm1759, %v6193, %v6195
    %v6197 = vrot.slane %v5704, 1
    %v6198 = vsel %vm1759, %v6195, %v6197
    %v6199 = vrot.slane %v5705, 1
    %v6200 = vsel %vm1759, %v6197, %v6199
    %v6201 = vrot.slane %v5706, 1
    %v6202 = vsel %vm1759, %v6199, %v6201
    %v6203 = vrot.slane %v5707, 1
    %v6204 = vsel %vm1759, %v6201, %v6203
    %v6205 = vrot.slane %v5708, 1
    %v6206 = vsel %vm1759, %v6203, %v6205
    %v6207 = vrot.slane %v5709, 1
    %v6208 = vsel %vm1759, %v6205, %v6207
    %v6209 = vrot.slane %v5710, 1
    %v6210 = vsel %vm1759, %v6207, %v6209
    %v6211 = vrot.slane %v5711, 1
    %v6212 = vsel %vm1759, %v6209, %v6211
    %v6213 = vrot.slane %v5712, 1
    %v6214 = vsel %vm1759, %v6211, %v6213
    %v6215 = vrot.slane %v5713, 1
    %v6216 = vsel %vm1759, %v6213, %v6215
    %v6217 = vrot.slane %v5714, 1
    %v6218 = vsel %vm1759, %v6215, %v6217
    %v6292 = vsel %vm1759, %v6217, %v6076
    %v6293 = vsel %vm2049, %v6078, 0.0
    %v6294 = vsel %vm2050, %v6080, 0.0
    %v6295 = vsel %vm2051, %v6082, 0.0
    %v6296 = vsel %vm2052, %v6084, 0.0
    %v6297 = vsel %vm2053, %v6086, 0.0
    %v6298 = vsel %vm2054, %v6088, 0.0
    %v6299 = vsel %vm2055, %v6090, 0.0
    %v6300 = vsel %vm2056, %v6092, 0.0
    %v6301 = vsel %vm2057, %v6094, 0.0
    %v6302 = vsel %vm2058, %v6096, 0.0
    %v6303 = vsel %vm2059, %v6098, 0.0
    %v6304 = vsel %vm2060, %v6100, 0.0
    %v6305 = vsel %vm2061, %v6102, 0.0
    %v6306 = vsel %vm2062, %v6104, 0.0
    %v6307 = vsel %vm2063, %v6106, 0.0
    %v6308 = vsel %vm2064, %v6108, 0.0
    %v6309 = vsel %vm2065, %v6110, 0.0
    %v6310 = vsel %vm2066, %v6112, 0.0
    %v6311 = vsel %vm2067, %v6114, 0.0
    %v6312 = vsel %vm2068, %v6116, 0.0
    %v6313 = vsel %vm2069, %v6118, 0.0
    %v6314 = vsel %vm2070, %v6120, 0.0
    %v6315 = vsel %vm2071, %v6122, 0.0
    %v6316 = vsel %vm2072, %v6124, 0.0
    %v6317 = vsel %vm2073, %v6126, 0.0
    %v6318 = vsel %vm2074, %v6128, 0.0
    %v6319 = vsel %vm2075, %v6130, 0.0
    %v6320 = vsel %vm2076, %v6132, 0.0
    %v6321 = vsel %vm2077, %v6134, 0.0
    %v6322 = vsel %vm2078, %v6136, 0.0
    %v6323 = vsel %vm2079, %v6138, 0.0
    %v6324 = vsel %vm2080, %v6140, 0.0
    %v6325 = vsel %vm2081, %v6142, 0.0
    %v6326 = vsel %vm2082, %v6144, 0.0
    %v6327 = vsel %vm2083, %v6146, 0.0
    %v6328 = vsel %vm2084, %v6148, 0.0
    %v6329 = vsel %vm2085, %v6150, 0.0
    %v6330 = vsel %vm2086, %v6152, 0.0
    %v6331 = vsel %vm2087, %v6154, 0.0
    %v6332 = vsel %vm2088, %v6156, 0.0
    %v6333 = vsel %vm2089, %v6158, 0.0
    %v6334 = vsel %vm2090, %v6160, 0.0
    %v6335 = vsel %vm2091, %v6162, 0.0
    %v6336 = vsel %vm2092, %v6164, 0.0
    %v6337 = vsel %vm2093, %v6166, 0.0
    %v6338 = vsel %vm2094, %v6168, 0.0
    %v6339 = vsel %vm2095, %v6170, 0.0
    %v6340 = vsel %vm2096, %v6172, 0.0
    %v6341 = vsel %vm2097, %v6174, 0.0
    %v6342 = vsel %vm2098, %v6176, 0.0
    %v6343 = vsel %vm2099, %v6178, 0.0
    %v6344 = vsel %vm2100, %v6180, 0.0
    %v6345 = vsel %vm2101, %v6182, 0.0
    %v6346 = vsel %vm2102, %v6184, 0.0
    %v6347 = vsel %vm2103, %v6186, 0.0
    %v6348 = vsel %vm2104, %v6188, 0.0
    %v6349 = vsel %vm2105, %v6190, 0.0
    %v6350 = vsel %vm2106, %v6192, 0.0
    %v6351 = vsel %vm2107, %v6194, 0.0
    %v6352 = vsel %vm2108, %v6196, 0.0
    %v6353 = vsel %vm2109, %v6198, 0.0
    %v6354 = vsel %vm2110, %v6200, 0.0
    %v6355 = vsel %vm2111, %v6202, 0.0
    %v6356 = vsel %vm2112, %v6204, 0.0
    %v6357 = vsel %vm2113, %v6206, 0.0
    %v6358 = vsel %vm2114, %v6208, 0.0
    %v6359 = vsel %vm2115, %v6210, 0.0
    %v6360 = vsel %vm2116, %v6212, 0.0
    %v6361 = vsel %vm2117, %v6214, 0.0
    %v6362 = vsel %vm2118, %v6216, 0.0
    %v6363 = vsel %vm2119, %v6218, 0.0
    %v6364 = vsel %vm2120, %v6292, 0.0
    %v6365 = vld [vmem:[#allocation8] sm:$0xff]
    %v6366 = vld [vmem:[#allocation8 + $0x8] sm:$0xff]
    %v6367 = vld [vmem:[#allocation8 + $0x10] sm:$0xff]
    %v6368 = vld [vmem:[#allocation8 + $0x18] sm:$0xff]
    %v6369 = vld [vmem:[#allocation8 + $0x20] sm:$0xff]
    %v6370 = vld [vmem:[#allocation8 + $0x28] sm:$0xff]
    %v6371 = vld [vmem:[#allocation8 + $0x30] sm:$0xff]
    %v6372 = vld [vmem:[#allocation8 + $0x38] sm:$0xff]
    %v6373 = vld [vmem:[#allocation8 + $0x40] sm:$0xff]
    %v6374 = vld [vmem:[#allocation8 + $0x48] sm:$0xff]
    %v6375 = vld [vmem:[#allocation8 + $0x50] sm:$0xff]
    %v6376 = vld [vmem:[#allocation8 + $0x58] sm:$0xff]
    %v6377 = vld [vmem:[#allocation8 + $0x60] sm:$0xff]
    %v6378 = vld [vmem:[#allocation8 + $0x68] sm:$0xff]
    %v6379 = vld [vmem:[#allocation8 + $0x70] sm:$0xff]
    %v6380 = vld [vmem:[#allocation8 + $0x78] sm:$0xff]
    %v6381 = vld [vmem:[#allocation8 + $0x80] sm:$0xff]
    %v6382 = vld [vmem:[#allocation8 + $0x88] sm:$0xff]
    %v6383 = vld [vmem:[#allocation8 + $0x90] sm:$0xff]
    %v6384 = vld [vmem:[#allocation8 + $0x98] sm:$0xff]
    %v6385 = vld [vmem:[#allocation8 + $0xa0] sm:$0xff]
    %v6386 = vld [vmem:[#allocation8 + $0xa8] sm:$0xff]
    %v6387 = vld [vmem:[#allocation8 + $0xb0] sm:$0xff]
    %v6388 = vld [vmem:[#allocation8 + $0xb8] sm:$0xff]
    %v6389 = vld [vmem:[#allocation8 + $0xc0] sm:$0xff]
    %v6390 = vld [vmem:[#allocation8 + $0xc8] sm:$0xff]
    %v6391 = vld [vmem:[#allocation8 + $0xd0] sm:$0xff]
    %v6392 = vld [vmem:[#allocation8 + $0xd8] sm:$0xff]
    %v6393 = vld [vmem:[#allocation8 + $0xe0] sm:$0xff]
    %v6394 = vld [vmem:[#allocation8 + $0xe8] sm:$0xff]
    %v6395 = vld [vmem:[#allocation8 + $0xf0] sm:$0xff]
    %v6396 = vld [vmem:[#allocation8 + $0xf8] sm:$0xff]
    %v6397 = vld [vmem:[#allocation8 + $0x100] sm:$0xff]
    %v6398 = vld [vmem:[#allocation8 + $0x108] sm:$0xff]
    %v6399 = vld [vmem:[#allocation8 + $0x110] sm:$0xff]
    %v6400 = vld [vmem:[#allocation8 + $0x118] sm:$0xff]
    %v6401 = vld [vmem:[#allocation8 + $0x120] sm:$0xff]
    %v6402 = vld [vmem:[#allocation8 + $0x128] sm:$0xff]
    %v6403 = vld [vmem:[#allocation8 + $0x130] sm:$0xff]
    %v6404 = vld [vmem:[#allocation8 + $0x138] sm:$0xff]
    %v6405 = vld [vmem:[#allocation8 + $0x140] sm:$0xff]
    %v6406 = vld [vmem:[#allocation8 + $0x148] sm:$0xff]
    %v6407 = vld [vmem:[#allocation8 + $0x150] sm:$0xff]
    %v6408 = vld [vmem:[#allocation8 + $0x158] sm:$0xff]
    %v6409 = vld [vmem:[#allocation8 + $0x160] sm:$0xff]
    %v6410 = vld [vmem:[#allocation8 + $0x168] sm:$0xff]
    %v6411 = vld [vmem:[#allocation8 + $0x170] sm:$0xff]
    %v6412 = vld [vmem:[#allocation8 + $0x178] sm:$0xff]
    %v6413 = vld [vmem:[#allocation8 + $0x180] sm:$0xff]
    %v6414 = vld [vmem:[#allocation8 + $0x188] sm:$0xff]
    %v6415 = vld [vmem:[#allocation8 + $0x190] sm:$0xff]
    %v6416 = vld [vmem:[#allocation8 + $0x198] sm:$0xff]
    %v6417 = vld [vmem:[#allocation8 + $0x1a0] sm:$0xff]
    %v6418 = vld [vmem:[#allocation8 + $0x1a8] sm:$0xff]
    %v6419 = vld [vmem:[#allocation8 + $0x1b0] sm:$0xff]
    %v6420 = vld [vmem:[#allocation8 + $0x1b8] sm:$0xff]
    %v6421 = vld [vmem:[#allocation8 + $0x1c0] sm:$0xff]
    %v6422 = vld [vmem:[#allocation8 + $0x1c8] sm:$0xff]
    %v6423 = vld [vmem:[#allocation8 + $0x1d0] sm:$0xff]
    %v6424 = vld [vmem:[#allocation8 + $0x1d8] sm:$0xff]
    %v6425 = vld [vmem:[#allocation8 + $0x1e0] sm:$0xff]
    %v6426 = vld [vmem:[#allocation8 + $0x1e8] sm:$0xff]
    %v6427 = vld [vmem:[#allocation8 + $0x1f0] sm:$0xff]
    %v6428 = vld [vmem:[#allocation8 + $0x1f8] sm:$0xff]
    %v6429 = vld [vmem:[#allocation8 + $0x200] sm:$0xff]
    %v6430 = vld [vmem:[#allocation8 + $0x208] sm:$0xff]
    %v6431 = vld [vmem:[#allocation8 + $0x210] sm:$0xff]
    %v6432 = vld [vmem:[#allocation8 + $0x218] sm:$0xff]
    %v6433 = vld [vmem:[#allocation8 + $0x220] sm:$0xff]
    %v6434 = vld [vmem:[#allocation8 + $0x228] sm:$0xff]
    %v6435 = vld [vmem:[#allocation8 + $0x230] sm:$0xff]
    %v6436 = vld [vmem:[#allocation8 + $0x238] sm:$0xff]
    %v6437 = vld [vmem:[#allocation8 + $0x240] sm:$0xff]
    %v6438 = vld [vmem:[#allocation8 + $0x248] sm:$0xff]
    %v6439 = vld [vmem:[#allocation8 + $0x250] sm:$0xff]
    %v6440 = vld [vmem:[#allocation8 + $0x258] sm:$0xff]
    %v6441 = vld [vmem:[#allocation8 + $0x260] sm:$0xff]
    %v6442 = vld [vmem:[#allocation8 + $0x268] sm:$0xff]
    %v6443 = vld [vmem:[#allocation8 + $0x270] sm:$0xff]
    %v6444 = vld [vmem:[#allocation8 + $0x278] sm:$0xff]
    %v6445 = vld [vmem:[#allocation8 + $0x280] sm:$0xff]
    %v6446 = vld [vmem:[#allocation8 + $0x288] sm:$0xff]
    %v6447 = vld [vmem:[#allocation8 + $0x290] sm:$0xff]
    %v6448 = vld [vmem:[#allocation8 + $0x298] sm:$0xff]
    %v6449 = vld [vmem:[#allocation8 + $0x2a0] sm:$0xff]
    %v6450 = vld [vmem:[#allocation8 + $0x2a8] sm:$0xff]
    %v6451 = vld [vmem:[#allocation8 + $0x2b0] sm:$0xff]
    %v6452 = vld [vmem:[#allocation8 + $0x2b8] sm:$0xff]
    %v6453 = vld [vmem:[#allocation8 + $0x2c0] sm:$0xff]
    %v6454 = vld [vmem:[#allocation8 + $0x2c8] sm:$0xff]
    %v6455 = vld [vmem:[#allocation8 + $0x2d0] sm:$0xff]
    %v6456 = vld [vmem:[#allocation8 + $0x2d8] sm:$0xff]
    %v6457 = vld [vmem:[#allocation8 + $0x2e0] sm:$0xff]
    %v6458 = vld [vmem:[#allocation8 + $0x2e8] sm:$0xff]
    %v6459 = vld [vmem:[#allocation8 + $0x2f0] sm:$0xff]
    %v6460 = vld [vmem:[#allocation8 + $0x2f8] sm:$0xff]
    %v6461 = vld [vmem:[#allocation8 + $0x300] sm:$0xff]
    %v6462 = vld [vmem:[#allocation8 + $0x308] sm:$0xff]
    %v6463 = vld [vmem:[#allocation8 + $0x310] sm:$0xff]
    %v6464 = vld [vmem:[#allocation8 + $0x318] sm:$0xff]
    %v6465 = vld [vmem:[#allocation8 + $0x320] sm:$0xff]
    %v6466 = vld [vmem:[#allocation8 + $0x328] sm:$0xff]
    %v6467 = vld [vmem:[#allocation8 + $0x330] sm:$0xff]
    %v6468 = vld [vmem:[#allocation8 + $0x338] sm:$0xff]
    %v6469 = vld [vmem:[#allocation8 + $0x340] sm:$0xff]
    %v6470 = vld [vmem:[#allocation8 + $0x348] sm:$0xff]
    %v6471 = vld [vmem:[#allocation8 + $0x350] sm:$0xff]
    %v6472 = vld [vmem:[#allocation8 + $0x358] sm:$0xff]
    %v6473 = vld [vmem:[#allocation8 + $0x360] sm:$0xff]
    %v6474 = vld [vmem:[#allocation8 + $0x368] sm:$0xff]
    %v6475 = vld [vmem:[#allocation8 + $0x370] sm:$0xff]
    %v6476 = vld [vmem:[#allocation8 + $0x378] sm:$0xff]
    %v6477 = vld [vmem:[#allocation8 + $0x380] sm:$0xff]
    %v6478 = vld [vmem:[#allocation8 + $0x388] sm:$0xff]
    %v6479 = vld [vmem:[#allocation8 + $0x390] sm:$0xff]
    %v6480 = vld [vmem:[#allocation8 + $0x398] sm:$0xff]
    %v6481 = vld [vmem:[#allocation8 + $0x3a0] sm:$0xff]
    %v6482 = vld [vmem:[#allocation8 + $0x3a8] sm:$0xff]
    %v6483 = vld [vmem:[#allocation8 + $0x3b0] sm:$0xff]
    %v6484 = vld [vmem:[#allocation8 + $0x3b8] sm:$0xff]
    %v6485 = vld [vmem:[#allocation8 + $0x3c0] sm:$0xff]
    %v6486 = vld [vmem:[#allocation8 + $0x3c8] sm:$0xff]
    %v6487 = vld [vmem:[#allocation8 + $0x3d0] sm:$0xff]
    %v6488 = vld [vmem:[#allocation8 + $0x3d8] sm:$0xff]
    %v6489 = vld [vmem:[#allocation8 + $0x3e0] sm:$0xff]
    %v6490 = vld [vmem:[#allocation8 + $0x3e8] sm:$0xff]
    %v6491 = vld [vmem:[#allocation8 + $0x3f0] sm:$0xff]
    %v6492 = vld [vmem:[#allocation8 + $0x3f8] sm:$0xff]
    %v6493 = vld [vmem:[#allocation8 + $0x400] sm:$0xff]
    %v6494 = vld [vmem:[#allocation8 + $0x408] sm:$0xff]
    %v6495 = vld [vmem:[#allocation8 + $0x410] sm:$0xff]
    %v6496 = vld [vmem:[#allocation8 + $0x418] sm:$0xff]
    %v6497 = vld [vmem:[#allocation8 + $0x420] sm:$0xff]
    %v6498 = vld [vmem:[#allocation8 + $0x428] sm:$0xff]
    %v6499 = vld [vmem:[#allocation8 + $0x430] sm:$0xff]
    %v6500 = vld [vmem:[#allocation8 + $0x438] sm:$0xff]
    %v6501 = vld [vmem:[#allocation8 + $0x440] sm:$0xff]
    %v6502 = vld [vmem:[#allocation8 + $0x448] sm:$0xff]
    %v6503 = vld [vmem:[#allocation8 + $0x450] sm:$0xff]
    %v6504 = vld [vmem:[#allocation8 + $0x458] sm:$0xff]
    %v6505 = vld [vmem:[#allocation8 + $0x460] sm:$0xff]
    %v6506 = vld [vmem:[#allocation8 + $0x468] sm:$0xff]
    %v6507 = vld [vmem:[#allocation8 + $0x470] sm:$0xff]
    %v6508 = vld [vmem:[#allocation8 + $0x478] sm:$0xff]
    %v6509 = vld [vmem:[%s6] sm:$0x1]
    %v6511 = vlaneseq
    %v6512 = vshrl.u32 %v6511, 7
    %v6513 = vsub.s32 0, %v6512
    %v6514 = vrot.slane %v6509, %v6513
    %6516 = vmatprep.subr.mxu0 0.0
    %6517 = vmatpush1.msra.mxu0 %v6365
    %6518 = vmatprep.subr.mxu0 0.0
    %6519 = vmatpush1.msra.mxu0 %v6366
    %6520 = vmatprep.subr.mxu0 0.0
    %6521 = vmatpush1.msra.mxu0 %v6367
    %6522 = vmatprep.subr.mxu0 0.0
    %6523 = vmatpush1.msra.mxu0 %v6368
    %6524 = vmatprep.subr.mxu0 0.0
    %6525 = vmatpush1.msra.mxu0 %v6369
    %6526 = vmatprep.subr.mxu0 0.0
    %6527 = vmatpush1.msra.mxu0 %v6370
    %6528 = vmatprep.subr.mxu0 0.0
    %6529 = vmatpush1.msra.mxu0 %v6371
    %6530 = vmatprep.subr.mxu0 0.0
    %6531 = vmatpush1.msra.mxu0 %v6372
    %6532 = vmatprep.subr.mxu0 0.0
    %6533 = vmatpush1.msra.mxu0 %v6373
    %6534 = vmatprep.subr.mxu0 0.0
    %6535 = vmatpush1.msra.mxu0 %v6374
    %6536 = vmatprep.subr.mxu0 0.0
    %6537 = vmatpush1.msra.mxu0 %v6375
    %6538 = vmatprep.subr.mxu0 0.0
    %6539 = vmatpush1.msra.mxu0 %v6376
    %6540 = vmatprep.subr.mxu0 0.0
    %6541 = vmatpush1.msra.mxu0 %v6377
    %6542 = vmatprep.subr.mxu0 0.0
    %6543 = vmatpush1.msra.mxu0 %v6378
    %6544 = vmatprep.subr.mxu0 0.0
    %6545 = vmatpush1.msra.mxu0 %v6379
    %6546 = vmatprep.subr.mxu0 0.0
    %6547 = vmatpush1.msra.mxu0 %v6380
    %6548 = vmatprep.subr.mxu0 0.0
    %6549 = vmatpush1.msra.mxu0 %v6381
    %6550 = vmatprep.subr.mxu0 0.0
    %6551 = vmatpush1.msra.mxu0 %v6382
    %6552 = vmatprep.subr.mxu0 0.0
    %6553 = vmatpush1.msra.mxu0 %v6383
    %6554 = vmatprep.subr.mxu0 0.0
    %6555 = vmatpush1.msra.mxu0 %v6384
    %6556 = vmatprep.subr.mxu0 0.0
    %6557 = vmatpush1.msra.mxu0 %v6385
    %6558 = vmatprep.subr.mxu0 0.0
    %6559 = vmatpush1.msra.mxu0 %v6386
    %6560 = vmatprep.subr.mxu0 0.0
    %6561 = vmatpush1.msra.mxu0 %v6387
    %6562 = vmatprep.subr.mxu0 0.0
    %6563 = vmatpush1.msra.mxu0 %v6388
    %6564 = vmatprep.subr.mxu0 0.0
    %6565 = vmatpush1.msra.mxu0 %v6389
    %6566 = vmatprep.subr.mxu0 0.0
    %6567 = vmatpush1.msra.mxu0 %v6390
    %6568 = vmatprep.subr.mxu0 0.0
    %6569 = vmatpush1.msra.mxu0 %v6391
    %6570 = vmatprep.subr.mxu0 0.0
    %6571 = vmatpush1.msra.mxu0 %v6392
    %6572 = vmatprep.subr.mxu0 0.0
    %6573 = vmatpush1.msra.mxu0 %v6393
    %6574 = vmatprep.subr.mxu0 0.0
    %6575 = vmatpush1.msra.mxu0 %v6394
    %6576 = vmatprep.subr.mxu0 0.0
    %6577 = vmatpush1.msra.mxu0 %v6395
    %6578 = vmatprep.subr.mxu0 0.0
    %6579 = vmatpush1.msra.mxu0 %v6396
    %6580 = vmatprep.mubr.f32.mxu0 %v5643
    %6581 = vmatmul.mubr.f32.gmra.mrb[0].mxu0 %v6004
    %v6582 = vpop.f32.mrb[0].mxu0
    %v6583 = vadd.f32 %v6514, %v6582
    %v6584 = vpop.f32.mrb[0].mxu0
    %6585 = vmatprep.mubr.f32.mxu0 %v5644
    %6586 = vmatmul.mubr.f32.gmra.mrb[0].mxu0 %v6005
    %v6587 = vpop.f32.mrb[0].mxu0
    %v6588 = vadd.f32 %v6514, %v6587
    %v6589 = vpop.f32.mrb[0].mxu0
    %6590 = vmatprep.mubr.f32.mxu0 %v5645
    %6591 = vmatmul.mubr.f32.gmra.mrb[0].mxu0 %v6006
    %v6592 = vpop.f32.mrb[0].mxu0
    %v6593 = vadd.f32 %v6514, %v6592
    %v6594 = vpop.f32.mrb[0].mxu0
    %6595 = vmatprep.mubr.f32.mxu0 %v5646
    %6596 = vmatmul.mubr.f32.gmra.mrb[0].mxu0 %v6007
    %v6597 = vpop.f32.mrb[0].mxu0
    %v6598 = vadd.f32 %v6514, %v6597
    %v6599 = vpop.f32.mrb[0].mxu0
    %6600 = vmatprep.mubr.f32.mxu0 %v5647
    %6601 = vmatmul.mubr.f32.gmra.mrb[0].mxu0 %v6008
    %v6602 = vpop.f32.mrb[0].mxu0
    %v6603 = vadd.f32 %v6514, %v6602
    %v6604 = vpop.f32.mrb[0].mxu0
    %6605 = vmatprep.mubr.f32.mxu0 %v5648
    %6606 = vmatmul.mubr.f32.gmra.mrb[0].mxu0 %v6009
    %v6607 = vpop.f32.mrb[0].mxu0
    %v6608 = vadd.f32 %v6514, %v6607
    %v6609 = vpop.f32.mrb[0].mxu0
    %6610 = vmatprep.mubr.f32.mxu0 %v5649
    %6611 = vmatmul.mubr.f32.gmra.mrb[0].mxu0 %v6010
    %v6612 = vpop.f32.mrb[0].mxu0
    %v6613 = vadd.f32 %v6514, %v6612
    %v6614 = vpop.f32.mrb[0].mxu0
    %6615 = vmatprep.mubr.f32.mxu0 %v5650
    %6616 = vmatmul.mubr.f32.gmra.mrb[0].mxu0 %v6011
    %v6617 = vpop.f32.mrb[0].mxu0
    %v6618 = vadd.f32 %v6514, %v6617
    %v6619 = vpop.f32.mrb[0].mxu0
    %6620 = vmatprep.mubr.f32.mxu0 %v5651
    %6621 = vmatmul.mubr.f32.gmra.mrb[0].mxu0 %v6012
    %v6622 = vpop.f32.mrb[0].mxu0
    %v6623 = vadd.f32 %v6514, %v6622
    %v6624 = vpop.f32.mrb[0].mxu0
    %6625 = vmatprep.mubr.f32.mxu0 %v5652
    %6626 = vmatmul.mubr.f32.gmra.mrb[0].mxu0 %v6013
    %v6627 = vpop.f32.mrb[0].mxu0
    %v6628 = vadd.f32 %v6514, %v6627
    %v6629 = vpop.f32.mrb[0].mxu0
    %6630 = vmatprep.mubr.f32.mxu0 %v5653
    %6631 = vmatmul.mubr.f32.gmra.mrb[0].mxu0 %v6014
    %v6632 = vpop.f32.mrb[0].mxu0
    %v6633 = vadd.f32 %v6514, %v6632
    %v6634 = vpop.f32.mrb[0].mxu0
    %6635 = vmatprep.mubr.f32.mxu0 %v5654
    %6636 = vmatmul.mubr.f32.gmra.mrb[0].mxu0 %v6015
    %v6637 = vpop.f32.mrb[0].mxu0
    %v6638 = vadd.f32 %v6514, %v6637
    %v6639 = vpop.f32.mrb[0].mxu0
    %6640 = vmatprep.mubr.f32.mxu0 %v5655
    %6641 = vmatmul.mubr.f32.gmra.mrb[0].mxu0 %v6016
    %v6642 = vpop.f32.mrb[0].mxu0
    %v6643 = vadd.f32 %v6514, %v6642
    %v6644 = vpop.f32.mrb[0].mxu0
    %6645 = vmatprep.mubr.f32.mxu0 %v5656
    %6646 = vmatmul.mubr.f32.gmra.mrb[0].mxu0 %v6017
    %v6647 = vpop.f32.mrb[0].mxu0
    %v6648 = vadd.f32 %v6514, %v6647
    %v6649 = vpop.f32.mrb[0].mxu0
    %6650 = vmatprep.mubr.f32.mxu0 %v5657
    %6651 = vmatmul.mubr.f32.gmra.mrb[0].mxu0 %v6018
    %v6652 = vpop.f32.mrb[0].mxu0
    %v6653 = vadd.f32 %v6514, %v6652
    %v6654 = vpop.f32.mrb[0].mxu0
    %6655 = vmatprep.mubr.f32.mxu0 %v5658
    %6656 = vmatmul.mubr.f32.gmra.mrb[0].mxu0 %v6019
    %v6657 = vpop.f32.mrb[0].mxu0
    %v6658 = vadd.f32 %v6514, %v6657
    %v6659 = vpop.f32.mrb[0].mxu0
    %6660 = vmatprep.mubr.f32.mxu0 %v5659
    %6661 = vmatmul.mubr.f32.gmra.mrb[0].mxu0 %v6020
    %v6662 = vpop.f32.mrb[0].mxu0
    %v6663 = vadd.f32 %v6514, %v6662
    %v6664 = vpop.f32.mrb[0].mxu0
    %6665 = vmatprep.mubr.f32.mxu0 %v5660
    %6666 = vmatmul.mubr.f32.gmra.mrb[0].mxu0 %v6021
    %v6667 = vpop.f32.mrb[0].mxu0
    %v6668 = vadd.f32 %v6514, %v6667
    %v6669 = vpop.f32.mrb[0].mxu0
    %6670 = vmatprep.mubr.f32.mxu0 %v5661
    %6671 = vmatmul.mubr.f32.gmra.mrb[0].mxu0 %v6022
    %v6672 = vpop.f32.mrb[0].mxu0
    %v6673 = vadd.f32 %v6514, %v6672
    %v6674 = vpop.f32.mrb[0].mxu0
    %6675 = vmatprep.mubr.f32.mxu0 %v5662
    %6676 = vmatmul.mubr.f32.gmra.mrb[0].mxu0 %v6023
    %v6677 = vpop.f32.mrb[0].mxu0
    %v6678 = vadd.f32 %v6514, %v6677
    %v6679 = vpop.f32.mrb[0].mxu0
    %6680 = vmatprep.mubr.f32.mxu0 %v5663
    %6681 = vmatmul.mubr.f32.gmra.mrb[0].mxu0 %v6024
    %v6682 = vpop.f32.mrb[0].mxu0
    %v6683 = vadd.f32 %v6514, %v6682
    %v6684 = vpop.f32.mrb[0].mxu0
    %6685 = vmatprep.mubr.f32.mxu0 %v5664
    %6686 = vmatmul.mubr.f32.gmra.mrb[0].mxu0 %v6025
    %v6687 = vpop.f32.mrb[0].mxu0
    %v6688 = vadd.f32 %v6514, %v6687
    %v6689 = vpop.f32.mrb[0].mxu0
    %6690 = vmatprep.mubr.f32.mxu0 %v5665
    %6691 = vmatmul.mubr.f32.gmra.mrb[0].mxu0 %v6026
    %v6692 = vpop.f32.mrb[0].mxu0
    %v6693 = vadd.f32 %v6514, %v6692
    %v6694 = vpop.f32.mrb[0].mxu0
    %6695 = vmatprep.mubr.f32.mxu0 %v5666
    %6696 = vmatmul.mubr.f32.gmra.mrb[0].mxu0 %v6027
    %v6697 = vpop.f32.mrb[0].mxu0
    %v6698 = vadd.f32 %v6514, %v6697
    %v6699 = vpop.f32.mrb[0].mxu0
    %6700 = vmatprep.mubr.f32.mxu0 %v5667
    %6701 = vmatmul.mubr.f32.gmra.mrb[0].mxu0 %v6028
    %v6702 = vpop.f32.mrb[0].mxu0
    %v6703 = vadd.f32 %v6514, %v6702
    %v6704 = vpop.f32.mrb[0].mxu0
    %6705 = vmatprep.mubr.f32.mxu0 %v5668
    %6706 = vmatmul.mubr.f32.gmra.mrb[0].mxu0 %v6029
    %v6707 = vpop.f32.mrb[0].mxu0
    %v6708 = vadd.f32 %v6514, %v6707
    %v6709 = vpop.f32.mrb[0].mxu0
    %6710 = vmatprep.mubr.f32.mxu0 %v5669
    %6711 = vmatmul.mubr.f32.gmra.mrb[0].mxu0 %v6030
    %v6712 = vpop.f32.mrb[0].mxu0
    %v6713 = vadd.f32 %v6514, %v6712
    %v6714 = vpop.f32.mrb[0].mxu0
    %6715 = vmatprep.mubr.f32.mxu0 %v5670
    %6716 = vmatmul.mubr.f32.gmra.mrb[0].mxu0 %v6031
    %v6717 = vpop.f32.mrb[0].mxu0
    %v6718 = vadd.f32 %v6514, %v6717
    %v6719 = vpop.f32.mrb[0].mxu0
    %6720 = vmatprep.mubr.f32.mxu0 %v5671
    %6721 = vmatmul.mubr.f32.gmra.mrb[0].mxu0 %v6032
    %v6722 = vpop.f32.mrb[0].mxu0
    %v6723 = vadd.f32 %v6514, %v6722
    %v6724 = vpop.f32.mrb[0].mxu0
    %6725 = vmatprep.mubr.f32.mxu0 %v5672
    %6726 = vmatmul.mubr.f32.gmra.mrb[0].mxu0 %v6033
    %v6727 = vpop.f32.mrb[0].mxu0
    %v6728 = vadd.f32 %v6514, %v6727
    %v6729 = vpop.f32.mrb[0].mxu0
    %6730 = vmatprep.mubr.f32.mxu0 %v5673
    %6731 = vmatmul.mubr.f32.gmra.mrb[0].mxu0 %v6034
    %v6732 = vpop.f32.mrb[0].mxu0
    %v6733 = vadd.f32 %v6514, %v6732
    %v6734 = vpop.f32.mrb[0].mxu0
    %6735 = vmatprep.mubr.f32.mxu0 %v5674
    %6736 = vmatmul.mubr.f32.gmra.mrb[0].mxu0 %v6035
    %v6737 = vpop.f32.mrb[0].mxu0
    %v6738 = vadd.f32 %v6514, %v6737
    %v6739 = vpop.f32.mrb[0].mxu0
    %6740 = vmatprep.mubr.f32.mxu0 %v5679
    %6741 = vmatmul.mubr.f32.gmra.mrb[0].mxu0 %v6040
    %v6742 = vpop.f32.mrb[0].mxu0
    %v6743 = vadd.f32 %v6514, %v6742
    %v6744 = vpop.f32.mrb[0].mxu0
    %6745 = vmatprep.mubr.f32.mxu0 %v5680
    %6746 = vmatmul.mubr.f32.gmra.mrb[0].mxu0 %v6041
    %v6747 = vpop.f32.mrb[0].mxu0
    %v6748 = vadd.f32 %v6514, %v6747
    %v6749 = vpop.f32.mrb[0].mxu0
    %6750 = vmatprep.mubr.f32.mxu0 %v5681
    %6751 = vmatmul.mubr.f32.gmra.mrb[0].mxu0 %v6042
    %v6752 = vpop.f32.mrb[0].mxu0
    %v6753 = vadd.f32 %v6514, %v6752
    %v6754 = vpop.f32.mrb[0].mxu0
    %6755 = vmatprep.mubr.f32.mxu0 %v5682
    %6756 = vmatmul.mubr.f32.gmra.mrb[0].mxu0 %v6043
    %v6757 = vpop.f32.mrb[0].mxu0
    %v6758 = vadd.f32 %v6514, %v6757
    %v6759 = vpop.f32.mrb[0].mxu0
    %6760 = vmatprep.mubr.f32.mxu0 %v5683
    %6761 = vmatmul.mubr.f32.gmra.mrb[0].mxu0 %v6044
    %v6762 = vpop.f32.mrb[0].mxu0
    %v6763 = vadd.f32 %v6514, %v6762
    %v6764 = vpop.f32.mrb[0].mxu0
    %6765 = vmatprep.mubr.f32.mxu0 %v5684
    %6766 = vmatmul.mubr.f32.gmra.mrb[0].mxu0 %v6045
    %v6767 = vpop.f32.mrb[0].mxu0
    %v6768 = vadd.f32 %v6514, %v6767
    %v6769 = vpop.f32.mrb[0].mxu0
    %6770 = vmatprep.mubr.f32.mxu0 %v5685
    %6771 = vmatmul.mubr.f32.gmra.mrb[0].mxu0 %v6046
    %v6772 = vpop.f32.mrb[0].mxu0
    %v6773 = vadd.f32 %v6514, %v6772
    %v6774 = vpop.f32.mrb[0].mxu0
    %6775 = vmatprep.mubr.f32.mxu0 %v5686
    %6776 = vmatmul.mubr.f32.gmra.mrb[0].mxu0 %v6047
    %v6777 = vpop.f32.mrb[0].mxu0
    %v6778 = vadd.f32 %v6514, %v6777
    %v6779 = vpop.f32.mrb[0].mxu0
    %6780 = vmatprep.mubr.f32.mxu0 %v5687
    %6781 = vmatmul.mubr.f32.gmra.mrb[0].mxu0 %v6048
    %v6782 = vpop.f32.mrb[0].mxu0
    %v6783 = vadd.f32 %v6514, %v6782
    %v6784 = vpop.f32.mrb[0].mxu0
    %6785 = vmatprep.mubr.f32.mxu0 %v5688
    %6786 = vmatmul.mubr.f32.gmra.mrb[0].mxu0 %v6049
    %v6787 = vpop.f32.mrb[0].mxu0
    %v6788 = vadd.f32 %v6514, %v6787
    %v6789 = vpop.f32.mrb[0].mxu0
    %6790 = vmatprep.mubr.f32.mxu0 %v5689
    %6791 = vmatmul.mubr.f32.gmra.mrb[0].mxu0 %v6050
    %v6792 = vpop.f32.mrb[0].mxu0
    %v6793 = vadd.f32 %v6514, %v6792
    %v6794 = vpop.f32.mrb[0].mxu0
    %6795 = vmatprep.mubr.f32.mxu0 %v5690
    %6796 = vmatmul.mubr.f32.gmra.mrb[0].mxu0 %v6051
    %v6797 = vpop.f32.mrb[0].mxu0
    %v6798 = vadd.f32 %v6514, %v6797
    %v6799 = vpop.f32.mrb[0].mxu0
    %6800 = vmatprep.mubr.f32.mxu0 %v5691
    %6801 = vmatmul.mubr.f32.gmra.mrb[0].mxu0 %v6052
    %v6802 = vpop.f32.mrb[0].mxu0
    %v6803 = vadd.f32 %v6514, %v6802
    %v6804 = vpop.f32.mrb[0].mxu0
    %6805 = vmatprep.mubr.f32.mxu0 %v5692
    %6806 = vmatmul.mubr.f32.gmra.mrb[0].mxu0 %v6053
    %v6807 = vpop.f32.mrb[0].mxu0
    %v6808 = vadd.f32 %v6514, %v6807
    %v6809 = vpop.f32.mrb[0].mxu0
    %6810 = vmatprep.mubr.f32.mxu0 %v5693
    %6811 = vmatmul.mubr.f32.gmra.mrb[0].mxu0 %v6054
    %v6812 = vpop.f32.mrb[0].mxu0
    %v6813 = vadd.f32 %v6514, %v6812
    %v6814 = vpop.f32.mrb[0].mxu0
    %6815 = vmatprep.mubr.f32.mxu0 %v5694
    %6816 = vmatmul.mubr.f32.gmra.mrb[0].mxu0 %v6055
    %v6817 = vpop.f32.mrb[0].mxu0
    %v6818 = vadd.f32 %v6514, %v6817
    %v6819 = vpop.f32.mrb[0].mxu0
    %6820 = vmatprep.mubr.f32.mxu0 %v5695
    %6821 = vmatmul.mubr.f32.gmra.mrb[0].mxu0 %v6056
    %v6822 = vpop.f32.mrb[0].mxu0
    %v6823 = vadd.f32 %v6514, %v6822
    %v6824 = vpop.f32.mrb[0].mxu0
    %6825 = vmatprep.mubr.f32.mxu0 %v5696
    %6826 = vmatmul.mubr.f32.gmra.mrb[0].mxu0 %v6057
    %v6827 = vpop.f32.mrb[0].mxu0
    %v6828 = vadd.f32 %v6514, %v6827
    %v6829 = vpop.f32.mrb[0].mxu0
    %6830 = vmatprep.mubr.f32.mxu0 %v5697
    %6831 = vmatmul.mubr.f32.gmra.mrb[0].mxu0 %v6058
    %v6832 = vpop.f32.mrb[0].mxu0
    %v6833 = vadd.f32 %v6514, %v6832
    %v6834 = vpop.f32.mrb[0].mxu0
    %6835 = vmatprep.mubr.f32.mxu0 %v5698
    %6836 = vmatmul.mubr.f32.gmra.mrb[0].mxu0 %v6059
    %v6837 = vpop.f32.mrb[0].mxu0
    %v6838 = vadd.f32 %v6514, %v6837
    %v6839 = vpop.f32.mrb[0].mxu0
    %6840 = vmatprep.mubr.f32.mxu0 %v5699
    %6841 = vmatmul.mubr.f32.gmra.mrb[0].mxu0 %v6060
    %v6842 = vpop.f32.mrb[0].mxu0
    %v6843 = vadd.f32 %v6514, %v6842
    %v6844 = vpop.f32.mrb[0].mxu0
    %6845 = vmatprep.mubr.f32.mxu0 %v5700
    %6846 = vmatmul.mubr.f32.gmra.mrb[0].mxu0 %v6061
    %v6847 = vpop.f32.mrb[0].mxu0
    %v6848 = vadd.f32 %v6514, %v6847
    %v6849 = vpop.f32.mrb[0].mxu0
    %6850 = vmatprep.mubr.f32.mxu0 %v5701
    %6851 = vmatmul.mubr.f32.gmra.mrb[0].mxu0 %v6062
    %v6852 = vpop.f32.mrb[0].mxu0
    %v6853 = vadd.f32 %v6514, %v6852
    %v6854 = vpop.f32.mrb[0].mxu0
    %6855 = vmatprep.mubr.f32.mxu0 %v5702
    %6856 = vmatmul.mubr.f32.gmra.mrb[0].mxu0 %v6063
    %v6857 = vpop.f32.mrb[0].mxu0
    %v6858 = vadd.f32 %v6514, %v6857
    %v6859 = vpop.f32.mrb[0].mxu0
    %6860 = vmatprep.mubr.f32.mxu0 %v5703
    %6861 = vmatmul.mubr.f32.gmra.mrb[0].mxu0 %v6064
    %v6862 = vpop.f32.mrb[0].mxu0
    %v6863 = vadd.f32 %v6514, %v6862
    %v6864 = vpop.f32.mrb[0].mxu0
    %6865 = vmatprep.mubr.f32.mxu0 %v5704
    %6866 = vmatmul.mubr.f32.gmra.mrb[0].mxu0 %v6065
    %v6867 = vpop.f32.mrb[0].mxu0
    %v6868 = vadd.f32 %v6514, %v6867
    %v6869 = vpop.f32.mrb[0].mxu0
    %6870 = vmatprep.mubr.f32.mxu0 %v5705
    %6871 = vmatmul.mubr.f32.gmra.mrb[0].mxu0 %v6066
    %v6872 = vpop.f32.mrb[0].mxu0
    %v6873 = vadd.f32 %v6514, %v6872
    %v6874 = vpop.f32.mrb[0].mxu0
    %6875 = vmatprep.mubr.f32.mxu0 %v5706
    %6876 = vmatmul.mubr.f32.gmra.mrb[0].mxu0 %v6067
    %v6877 = vpop.f32.mrb[0].mxu0
    %v6878 = vadd.f32 %v6514, %v6877
    %v6879 = vpop.f32.mrb[0].mxu0
    %6880 = vmatprep.mubr.f32.mxu0 %v5707
    %6881 = vmatmul.mubr.f32.gmra.mrb[0].mxu0 %v6068
    %v6882 = vpop.f32.mrb[0].mxu0
    %v6883 = vadd.f32 %v6514, %v6882
    %v6884 = vpop.f32.mrb[0].mxu0
    %6885 = vmatprep.mubr.f32.mxu0 %v5708
    %6886 = vmatmul.mubr.f32.gmra.mrb[0].mxu0 %v6069
    %v6887 = vpop.f32.mrb[0].mxu0
    %v6888 = vadd.f32 %v6514, %v6887
    %v6889 = vpop.f32.mrb[0].mxu0
    %6890 = vmatprep.mubr.f32.mxu0 %v5709
    %6891 = vmatmul.mubr.f32.gmra.mrb[0].mxu0 %v6070
    %v6892 = vpop.f32.mrb[0].mxu0
    %v6893 = vadd.f32 %v6514, %v6892
    %v6894 = vpop.f32.mrb[0].mxu0
    %6895 = vmatprep.mubr.f32.mxu0 %v5710
    %6896 = vmatmul.mubr.f32.gmra.mrb[0].mxu0 %v6071
    %v6897 = vpop.f32.mrb[0].mxu0
    %v6898 = vadd.f32 %v6514, %v6897
    %v6899 = vpop.f32.mrb[0].mxu0
    %6900 = vdwg.mxu0
    %6901 = vmatprep.subr.mxu0 0.0
    %6902 = vmatpush1.msra.mxu0 %v6397
    %6903 = vmatprep.subr.mxu0 0.0
    %6904 = vmatpush1.msra.mxu0 %v6398
    %6905 = vmatprep.subr.mxu0 0.0
    %6906 = vmatpush1.msra.mxu0 %v6399
    %6907 = vmatprep.subr.mxu0 0.0
    %6908 = vmatpush1.msra.mxu0 %v6400
    %6909 = vmatprep.subr.mxu0 0.0
    %6910 = vmatpush1.msra.mxu0 %v6401
    %6911 = vmatprep.subr.mxu0 0.0
    %6912 = vmatpush1.msra.mxu0 %v6402
    %6913 = vmatprep.subr.mxu0 0.0
    %6914 = vmatpush1.msra.mxu0 %v6403
    %6915 = vmatprep.subr.mxu0 0.0
    %6916 = vmatpush1.msra.mxu0 %v6404
    %6917 = vmatprep.subr.mxu0 0.0
    %6918 = vmatpush1.msra.mxu0 %v6405
    %6919 = vmatprep.subr.mxu0 0.0
    %6920 = vmatpush1.msra.mxu0 %v6406
    %6921 = vmatprep.subr.mxu0 0.0
    %6922 = vmatpush1.msra.mxu0 %v6407
    %6923 = vmatprep.subr.mxu0 0.0
    %6924 = vmatpush1.msra.mxu0 %v6408
    %6925 = vmatprep.subr.mxu0 0.0
    %6926 = vmatpush1.msra.mxu0 %v6409
    %6927 = vmatprep.subr.mxu0 0.0
    %6928 = vmatpush1.msra.mxu0 %v6410
    %6929 = vmatprep.subr.mxu0 0.0
    %6930 = vmatpush1.msra.mxu0 %v6411
    %6931 = vmatprep.subr.mxu0 0.0
    %6932 = vmatpush1.msra.mxu0 %v6412
    %6933 = vmatprep.subr.mxu0 0.0
    %6934 = vmatpush1.msra.mxu0 %v6413
    %6935 = vmatprep.subr.mxu0 0.0
    %6936 = vmatpush1.msra.mxu0 %v6414
    %6937 = vmatprep.subr.mxu0 0.0
    %6938 = vmatpush1.msra.mxu0 %v6415
    %6939 = vmatprep.subr.mxu0 0.0
    %6940 = vmatpush1.msra.mxu0 %v6416
    %6941 = vmatprep.subr.mxu0 0.0
    %6942 = vmatpush1.msra.mxu0 %v6417
    %6943 = vmatprep.subr.mxu0 0.0
    %6944 = vmatpush1.msra.mxu0 %v6418
    %6945 = vmatprep.subr.mxu0 0.0
    %6946 = vmatpush1.msra.mxu0 %v6419
    %6947 = vmatprep.subr.mxu0 0.0
    %6948 = vmatpush1.msra.mxu0 %v6420
    %6949 = vmatprep.subr.mxu0 0.0
    %6950 = vmatpush1.msra.mxu0 %v6421
    %6951 = vmatprep.subr.mxu0 0.0
    %6952 = vmatpush1.msra.mxu0 %v6422
    %6953 = vmatprep.subr.mxu0 0.0
    %6954 = vmatpush1.msra.mxu0 %v6423
    %6955 = vmatprep.subr.mxu0 0.0
    %6956 = vmatpush1.msra.mxu0 %v6424
    %6957 = vmatprep.subr.mxu0 0.0
    %6958 = vmatpush1.msra.mxu0 %v6425
    %6959 = vmatprep.subr.mxu0 0.0
    %6960 = vmatpush1.msra.mxu0 %v6426
    %6961 = vmatprep.subr.mxu0 0.0
    %6962 = vmatpush1.msra.mxu0 %v6427
    %6963 = vmatprep.subr.mxu0 0.0
    %6964 = vmatpush1.msra.mxu0 %v6428
    %6965 = vmatprep.mubr.f32.mxu0 %v6006
    %6966 = vmatmul.mubr.f32.gmra.mrb[0].mxu0 %v6293
    %v6967 = vpop.f32.mrb[0].mxu0
    %v6968 = vadd.f32 %v6583, %v6967
    %v6969 = vpop.f32.mrb[0].mxu0
    %6970 = vmatprep.mubr.f32.mxu0 %v6007
    %6971 = vmatmul.mubr.f32.gmra.mrb[0].mxu0 %v6294
    %v6972 = vpop.f32.mrb[0].mxu0
    %v6973 = vadd.f32 %v6588, %v6972
    %v6974 = vpop.f32.mrb[0].mxu0
    %6975 = vmatprep.mubr.f32.mxu0 %v6008
    %6976 = vmatmul.mubr.f32.gmra.mrb[0].mxu0 %v6295
    %v6977 = vpop.f32.mrb[0].mxu0
    %v6978 = vadd.f32 %v6593, %v6977
    %v6979 = vpop.f32.mrb[0].mxu0
    %6980 = vmatprep.mubr.f32.mxu0 %v6009
    %6981 = vmatmul.mubr.f32.gmra.mrb[0].mxu0 %v6296
    %v6982 = vpop.f32.mrb[0].mxu0
    %v6983 = vadd.f32 %v6598, %v6982
    %v6984 = vpop.f32.mrb[0].mxu0
    %6985 = vmatprep.mubr.f32.mxu0 %v6010
    %6986 = vmatmul.mubr.f32.gmra.mrb[0].mxu0 %v6297
    %v6987 = vpop.f32.mrb[0].mxu0
    %v6988 = vadd.f32 %v6603, %v6987
    %v6989 = vpop.f32.mrb[0].mxu0
    %6990 = vmatprep.mubr.f32.mxu0 %v6011
    %6991 = vmatmul.mubr.f32.gmra.mrb[0].mxu0 %v6298
    %v6992 = vpop.f32.mrb[0].mxu0
    %v6993 = vadd.f32 %v6608, %v6992
    %v6994 = vpop.f32.mrb[0].mxu0
    %6995 = vmatprep.mubr.f32.mxu0 %v6012
    %6996 = vmatmul.mubr.f32.gmra.mrb[0].mxu0 %v6299
    %v6997 = vpop.f32.mrb[0].mxu0
    %v6998 = vadd.f32 %v6613, %v6997
    %v6999 = vpop.f32.mrb[0].mxu0
    %7000 = vmatprep.mubr.f32.mxu0 %v6013
    %7001 = vmatmul.mubr.f32.gmra.mrb[0].mxu0 %v6300
    %v7002 = vpop.f32.mrb[0].mxu0
    %v7003 = vadd.f32 %v6618, %v7002
    %v7004 = vpop.f32.mrb[0].mxu0
    %7005 = vmatprep.mubr.f32.mxu0 %v6014
    %7006 = vmatmul.mubr.f32.gmra.mrb[0].mxu0 %v6301
    %v7007 = vpop.f32.mrb[0].mxu0
    %v7008 = vadd.f32 %v6623, %v7007
    %v7009 = vpop.f32.mrb[0].mxu0
    %7010 = vmatprep.mubr.f32.mxu0 %v6015
    %7011 = vmatmul.mubr.f32.gmra.mrb[0].mxu0 %v6302
    %v7012 = vpop.f32.mrb[0].mxu0
    %v7013 = vadd.f32 %v6628, %v7012
    %v7014 = vpop.f32.mrb[0].mxu0
    %7015 = vmatprep.mubr.f32.mxu0 %v6016
    %7016 = vmatmul.mubr.f32.gmra.mrb[0].mxu0 %v6303
    %v7017 = vpop.f32.mrb[0].mxu0
    %v7018 = vadd.f32 %v6633, %v7017
    %v7019 = vpop.f32.mrb[0].mxu0
    %7020 = vmatprep.mubr.f32.mxu0 %v6017
    %7021 = vmatmul.mubr.f32.gmra.mrb[0].mxu0 %v6304
    %v7022 = vpop.f32.mrb[0].mxu0
    %v7023 = vadd.f32 %v6638, %v7022
    %v7024 = vpop.f32.mrb[0].mxu0
    %7025 = vmatprep.mubr.f32.mxu0 %v6018
    %7026 = vmatmul.mubr.f32.gmra.mrb[0].mxu0 %v6305
    %v7027 = vpop.f32.mrb[0].mxu0
    %v7028 = vadd.f32 %v6643, %v7027
    %v7029 = vpop.f32.mrb[0].mxu0
    %7030 = vmatprep.mubr.f32.mxu0 %v6019
    %7031 = vmatmul.mubr.f32.gmra.mrb[0].mxu0 %v6306
    %v7032 = vpop.f32.mrb[0].mxu0
    %v7033 = vadd.f32 %v6648, %v7032
    %v7034 = vpop.f32.mrb[0].mxu0
    %7035 = vmatprep.mubr.f32.mxu0 %v6020
    %7036 = vmatmul.mubr.f32.gmra.mrb[0].mxu0 %v6307
    %v7037 = vpop.f32.mrb[0].mxu0
    %v7038 = vadd.f32 %v6653, %v7037
    %v7039 = vpop.f32.mrb[0].mxu0
    %7040 = vmatprep.mubr.f32.mxu0 %v6021
    %7041 = vmatmul.mubr.f32.gmra.mrb[0].mxu0 %v6308
    %v7042 = vpop.f32.mrb[0].mxu0
    %v7043 = vadd.f32 %v6658, %v7042
    %v7044 = vpop.f32.mrb[0].mxu0
    %7045 = vmatprep.mubr.f32.mxu0 %v6022
    %7046 = vmatmul.mubr.f32.gmra.mrb[0].mxu0 %v6309
    %v7047 = vpop.f32.mrb[0].mxu0
    %v7048 = vadd.f32 %v6663, %v7047
    %v7049 = vpop.f32.mrb[0].mxu0
    %7050 = vmatprep.mubr.f32.mxu0 %v6023
    %7051 = vmatmul.mubr.f32.gmra.mrb[0].mxu0 %v6310
    %v7052 = vpop.f32.mrb[0].mxu0
    %v7053 = vadd.f32 %v6668, %v7052
    %v7054 = vpop.f32.mrb[0].mxu0
    %7055 = vmatprep.mubr.f32.mxu0 %v6024
    %7056 = vmatmul.mubr.f32.gmra.mrb[0].mxu0 %v6311
    %v7057 = vpop.f32.mrb[0].mxu0
    %v7058 = vadd.f32 %v6673, %v7057
    %v7059 = vpop.f32.mrb[0].mxu0
    %7060 = vmatprep.mubr.f32.mxu0 %v6025
    %7061 = vmatmul.mubr.f32.gmra.mrb[0].mxu0 %v6312
    %v7062 = vpop.f32.mrb[0].mxu0
    %v7063 = vadd.f32 %v6678, %v7062
    %v7064 = vpop.f32.mrb[0].mxu0
    %7065 = vmatprep.mubr.f32.mxu0 %v6026
    %7066 = vmatmul.mubr.f32.gmra.mrb[0].mxu0 %v6313
    %v7067 = vpop.f32.mrb[0].mxu0
    %v7068 = vadd.f32 %v6683, %v7067
    %v7069 = vpop.f32.mrb[0].mxu0
    %7070 = vmatprep.mubr.f32.mxu0 %v6027
    %7071 = vmatmul.mubr.f32.gmra.mrb[0].mxu0 %v6314
    %v7072 = vpop.f32.mrb[0].mxu0
    %v7073 = vadd.f32 %v6688, %v7072
    %v7074 = vpop.f32.mrb[0].mxu0
    %7075 = vmatprep.mubr.f32.mxu0 %v6028
    %7076 = vmatmul.mubr.f32.gmra.mrb[0].mxu0 %v6315
    %v7077 = vpop.f32.mrb[0].mxu0
    %v7078 = vadd.f32 %v6693, %v7077
    %v7079 = vpop.f32.mrb[0].mxu0
    %7080 = vmatprep.mubr.f32.mxu0 %v6029
    %7081 = vmatmul.mubr.f32.gmra.mrb[0].mxu0 %v6316
    %v7082 = vpop.f32.mrb[0].mxu0
    %v7083 = vadd.f32 %v6698, %v7082
    %v7084 = vpop.f32.mrb[0].mxu0
    %7085 = vmatprep.mubr.f32.mxu0 %v6030
    %7086 = vmatmul.mubr.f32.gmra.mrb[0].mxu0 %v6317
    %v7087 = vpop.f32.mrb[0].mxu0
    %v7088 = vadd.f32 %v6703, %v7087
    %v7089 = vpop.f32.mrb[0].mxu0
    %7090 = vmatprep.mubr.f32.mxu0 %v6031
    %7091 = vmatmul.mubr.f32.gmra.mrb[0].mxu0 %v6318
    %v7092 = vpop.f32.mrb[0].mxu0
    %v7093 = vadd.f32 %v6708, %v7092
    %v7094 = vpop.f32.mrb[0].mxu0
    %7095 = vmatprep.mubr.f32.mxu0 %v6032
    %7096 = vmatmul.mubr.f32.gmra.mrb[0].mxu0 %v6319
    %v7097 = vpop.f32.mrb[0].mxu0
    %v7098 = vadd.f32 %v6713, %v7097
    %v7099 = vpop.f32.mrb[0].mxu0
    %7100 = vmatprep.mubr.f32.mxu0 %v6033
    %7101 = vmatmul.mubr.f32.gmra.mrb[0].mxu0 %v6320
    %v7102 = vpop.f32.mrb[0].mxu0
    %v7103 = vadd.f32 %v6718, %v7102
    %v7104 = vpop.f32.mrb[0].mxu0
    %7105 = vmatprep.mubr.f32.mxu0 %v6034
    %7106 = vmatmul.mubr.f32.gmra.mrb[0].mxu0 %v6321
    %v7107 = vpop.f32.mrb[0].mxu0
    %v7108 = vadd.f32 %v6723, %v7107
    %v7109 = vpop.f32.mrb[0].mxu0
    %7110 = vmatprep.mubr.f32.mxu0 %v6035
    %7111 = vmatmul.mubr.f32.gmra.mrb[0].mxu0 %v6322
    %v7112 = vpop.f32.mrb[0].mxu0
    %v7113 = vadd.f32 %v6728, %v7112
    %v7114 = vpop.f32.mrb[0].mxu0
    %7115 = vmatprep.mubr.f32.mxu0 %v6036
    %7116 = vmatmul.mubr.f32.gmra.mrb[0].mxu0 %v6323
    %v7117 = vpop.f32.mrb[0].mxu0
    %v7118 = vadd.f32 %v6733, %v7117
    %v7119 = vpop.f32.mrb[0].mxu0
    %7120 = vmatprep.mubr.f32.mxu0 %v6037
    %7121 = vmatmul.mubr.f32.gmra.mrb[0].mxu0 %v6324
    %v7122 = vpop.f32.mrb[0].mxu0
    %v7123 = vadd.f32 %v6738, %v7122
    %v7124 = vpop.f32.mrb[0].mxu0
    %7125 = vmatprep.mubr.f32.mxu0 %v6042
    %7126 = vmatmul.mubr.f32.gmra.mrb[0].mxu0 %v6329
    %v7127 = vpop.f32.mrb[0].mxu0
    %v7128 = vadd.f32 %v6743, %v7127
    %v7129 = vpop.f32.mrb[0].mxu0
    %7130 = vmatprep.mubr.f32.mxu0 %v6043
    %7131 = vmatmul.mubr.f32.gmra.mrb[0].mxu0 %v6330
    %v7132 = vpop.f32.mrb[0].mxu0
    %v7133 = vadd.f32 %v6748, %v7132
    %v7134 = vpop.f32.mrb[0].mxu0
    %7135 = vmatprep.mubr.f32.mxu0 %v6044
    %7136 = vmatmul.mubr.f32.gmra.mrb[0].mxu0 %v6331
    %v7137 = vpop.f32.mrb[0].mxu0
    %v7138 = vadd.f32 %v6753, %v7137
    %v7139 = vpop.f32.mrb[0].mxu0
    %7140 = vmatprep.mubr.f32.mxu0 %v6045
    %7141 = vmatmul.mubr.f32.gmra.mrb[0].mxu0 %v6332
    %v7142 = vpop.f32.mrb[0].mxu0
    %v7143 = vadd.f32 %v6758, %v7142
    %v7144 = vpop.f32.mrb[0].mxu0
    %7145 = vmatprep.mubr.f32.mxu0 %v6046
    %7146 = vmatmul.mubr.f32.gmra.mrb[0].mxu0 %v6333
    %v7147 = vpop.f32.mrb[0].mxu0
    %v7148 = vadd.f32 %v6763, %v7147
    %v7149 = vpop.f32.mrb[0].mxu0
    %7150 = vmatprep.mubr.f32.mxu0 %v6047
    %7151 = vmatmul.mubr.f32.gmra.mrb[0].mxu0 %v6334
    %v7152 = vpop.f32.mrb[0].mxu0
    %v7153 = vadd.f32 %v6768, %v7152
    %v7154 = vpop.f32.mrb[0].mxu0
    %7155 = vmatprep.mubr.f32.mxu0 %v6048
    %7156 = vmatmul.mubr.f32.gmra.mrb[0].mxu0 %v6335
    %v7157 = vpop.f32.mrb[0].mxu0
    %v7158 = vadd.f32 %v6773, %v7157
    %v7159 = vpop.f32.mrb[0].mxu0
    %7160 = vmatprep.mubr.f32.mxu0 %v6049
    %7161 = vmatmul.mubr.f32.gmra.mrb[0].mxu0 %v6336
    %v7162 = vpop.f32.mrb[0].mxu0
    %v7163 = vadd.f32 %v6778, %v7162
    %v7164 = vpop.f32.mrb[0].mxu0
    %7165 = vmatprep.mubr.f32.mxu0 %v6050
    %7166 = vmatmul.mubr.f32.gmra.mrb[0].mxu0 %v6337
    %v7167 = vpop.f32.mrb[0].mxu0
    %v7168 = vadd.f32 %v6783, %v7167
    %v7169 = vpop.f32.mrb[0].mxu0
    %7170 = vmatprep.mubr.f32.mxu0 %v6051
    %7171 = vmatmul.mubr.f32.gmra.mrb[0].mxu0 %v6338
    %v7172 = vpop.f32.mrb[0].mxu0
    %v7173 = vadd.f32 %v6788, %v7172
    %v7174 = vpop.f32.mrb[0].mxu0
    %7175 = vmatprep.mubr.f32.mxu0 %v6052
    %7176 = vmatmul.mubr.f32.gmra.mrb[0].mxu0 %v6339
    %v7177 = vpop.f32.mrb[0].mxu0
    %v7178 = vadd.f32 %v6793, %v7177
    %v7179 = vpop.f32.mrb[0].mxu0
    %7180 = vmatprep.mubr.f32.mxu0 %v6053
    %7181 = vmatmul.mubr.f32.gmra.mrb[0].mxu0 %v6340
    %v7182 = vpop.f32.mrb[0].mxu0
    %v7183 = vadd.f32 %v6798, %v7182
    %v7184 = vpop.f32.mrb[0].mxu0
    %7185 = vmatprep.mubr.f32.mxu0 %v6054
    %7186 = vmatmul.mubr.f32.gmra.mrb[0].mxu0 %v6341
    %v7187 = vpop.f32.mrb[0].mxu0
    %v7188 = vadd.f32 %v6803, %v7187
    %v7189 = vpop.f32.mrb[0].mxu0
    %7190 = vmatprep.mubr.f32.mxu0 %v6055
    %7191 = vmatmul.mubr.f32.gmra.mrb[0].mxu0 %v6342
    %v7192 = vpop.f32.mrb[0].mxu0
    %v7193 = vadd.f32 %v6808, %v7192
    %v7194 = vpop.f32.mrb[0].mxu0
    %7195 = vmatprep.mubr.f32.mxu0 %v6056
    %7196 = vmatmul.mubr.f32.gmra.mrb[0].mxu0 %v6343
    %v7197 = vpop.f32.mrb[0].mxu0
    %v7198 = vadd.f32 %v6813, %v7197
    %v7199 = vpop.f32.mrb[0].mxu0
    %7200 = vmatprep.mubr.f32.mxu0 %v6057
    %7201 = vmatmul.mubr.f32.gmra.mrb[0].mxu0 %v6344
    %v7202 = vpop.f32.mrb[0].mxu0
    %v7203 = vadd.f32 %v6818, %v7202
    %v7204 = vpop.f32.mrb[0].mxu0
    %7205 = vmatprep.mubr.f32.mxu0 %v6058
    %7206 = vmatmul.mubr.f32.gmra.mrb[0].mxu0 %v6345
    %v7207 = vpop.f32.mrb[0].mxu0
    %v7208 = vadd.f32 %v6823, %v7207
    %v7209 = vpop.f32.mrb[0].mxu0
    %7210 = vmatprep.mubr.f32.mxu0 %v6059
    %7211 = vmatmul.mubr.f32.gmra.mrb[0].mxu0 %v6346
    %v7212 = vpop.f32.mrb[0].mxu0
    %v7213 = vadd.f32 %v6828, %v7212
    %v7214 = vpop.f32.mrb[0].mxu0
    %7215 = vmatprep.mubr.f32.mxu0 %v6060
    %7216 = vmatmul.mubr.f32.gmra.mrb[0].mxu0 %v6347
    %v7217 = vpop.f32.mrb[0].mxu0
    %v7218 = vadd.f32 %v6833, %v7217
    %v7219 = vpop.f32.mrb[0].mxu0
    %7220 = vmatprep.mubr.f32.mxu0 %v6061
    %7221 = vmatmul.mubr.f32.gmra.mrb[0].mxu0 %v6348
    %v7222 = vpop.f32.mrb[0].mxu0
    %v7223 = vadd.f32 %v6838, %v7222
    %v7224 = vpop.f32.mrb[0].mxu0
    %7225 = vmatprep.mubr.f32.mxu0 %v6062
    %7226 = vmatmul.mubr.f32.gmra.mrb[0].mxu0 %v6349
    %v7227 = vpop.f32.mrb[0].mxu0
    %v7228 = vadd.f32 %v6843, %v7227
    %v7229 = vpop.f32.mrb[0].mxu0
    %7230 = vmatprep.mubr.f32.mxu0 %v6063
    %7231 = vmatmul.mubr.f32.gmra.mrb[0].mxu0 %v6350
    %v7232 = vpop.f32.mrb[0].mxu0
    %v7233 = vadd.f32 %v6848, %v7232
    %v7234 = vpop.f32.mrb[0].mxu0
    %7235 = vmatprep.mubr.f32.mxu0 %v6064
    %7236 = vmatmul.mubr.f32.gmra.mrb[0].mxu0 %v6351
    %v7237 = vpop.f32.mrb[0].mxu0
    %v7238 = vadd.f32 %v6853, %v7237
    %v7239 = vpop.f32.mrb[0].mxu0
    %7240 = vmatprep.mubr.f32.mxu0 %v6065
    %7241 = vmatmul.mubr.f32.gmra.mrb[0].mxu0 %v6352
    %v7242 = vpop.f32.mrb[0].mxu0
    %v7243 = vadd.f32 %v6858, %v7242
    %v7244 = vpop.f32.mrb[0].mxu0
    %7245 = vmatprep.mubr.f32.mxu0 %v6066
    %7246 = vmatmul.mubr.f32.gmra.mrb[0].mxu0 %v6353
    %v7247 = vpop.f32.mrb[0].mxu0
    %v7248 = vadd.f32 %v6863, %v7247
    %v7249 = vpop.f32.mrb[0].mxu0
    %7250 = vmatprep.mubr.f32.mxu0 %v6067
    %7251 = vmatmul.mubr.f32.gmra.mrb[0].mxu0 %v6354
    %v7252 = vpop.f32.mrb[0].mxu0
    %v7253 = vadd.f32 %v6868, %v7252
    %v7254 = vpop.f32.mrb[0].mxu0
    %7255 = vmatprep.mubr.f32.mxu0 %v6068
    %7256 = vmatmul.mubr.f32.gmra.mrb[0].mxu0 %v6355
    %v7257 = vpop.f32.mrb[0].mxu0
    %v7258 = vadd.f32 %v6873, %v7257
    %v7259 = vpop.f32.mrb[0].mxu0
    %7260 = vmatprep.mubr.f32.mxu0 %v6069
    %7261 = vmatmul.mubr.f32.gmra.mrb[0].mxu0 %v6356
    %v7262 = vpop.f32.mrb[0].mxu0
    %v7263 = vadd.f32 %v6878, %v7262
    %v7264 = vpop.f32.mrb[0].mxu0
    %7265 = vmatprep.mubr.f32.mxu0 %v6070
    %7266 = vmatmul.mubr.f32.gmra.mrb[0].mxu0 %v6357
    %v7267 = vpop.f32.mrb[0].mxu0
    %v7268 = vadd.f32 %v6883, %v7267
    %v7269 = vpop.f32.mrb[0].mxu0
    %7270 = vmatprep.mubr.f32.mxu0 %v6071
    %7271 = vmatmul.mubr.f32.gmra.mrb[0].mxu0 %v6358
    %v7272 = vpop.f32.mrb[0].mxu0
    %v7273 = vadd.f32 %v6888, %v7272
    %v7274 = vpop.f32.mrb[0].mxu0
    %7275 = vmatprep.mubr.f32.mxu0 %v6072
    %7276 = vmatmul.mubr.f32.gmra.mrb[0].mxu0 %v6359
    %v7277 = vpop.f32.mrb[0].mxu0
    %v7278 = vadd.f32 %v6893, %v7277
    %v7279 = vpop.f32.mrb[0].mxu0
    %7280 = vmatprep.mubr.f32.mxu0 %v6073
    %7281 = vmatmul.mubr.f32.gmra.mrb[0].mxu0 %v6360
    %v7282 = vpop.f32.mrb[0].mxu0
    %v7283 = vadd.f32 %v6898, %v7282
    %v7284 = vpop.f32.mrb[0].mxu0
    %7285 = vdwg.mxu0
    %7286 = vmatprep.subr.mxu0 0.0
    %7287 = vmatpush1.msra.mxu0 %v6429
    %7288 = vmatprep.subr.mxu0 0.0
    %7289 = vmatpush1.msra.mxu0 %v6430
    %7290 = vmatprep.subr.mxu0 0.0
    %7291 = vmatpush1.msra.mxu0 %v6431
    %7292 = vmatprep.subr.mxu0 0.0
    %7293 = vmatpush1.msra.mxu0 %v6432
    %7294 = vmatprep.subr.mxu0 0.0
    %7295 = vmatpush1.msra.mxu0 %v6433
    %7296 = vmatprep.subr.mxu0 0.0
    %7297 = vmatpush1.msra.mxu0 %v6434
    %7298 = vmatprep.subr.mxu0 0.0
    %7299 = vmatpush1.msra.mxu0 %v6435
    %7300 = vmatprep.subr.mxu0 0.0
    %7301 = vmatpush1.msra.mxu0 %v6436
    %7302 = vmatprep.subr.mxu0 0.0
    %7303 = vmatpush1.msra.mxu0 %v6437
    %7304 = vmatprep.subr.mxu0 0.0
    %7305 = vmatpush1.msra.mxu0 %v6438
    %7306 = vmatprep.subr.mxu0 0.0
    %7307 = vmatpush1.msra.mxu0 %v6439
    %7308 = vmatprep.subr.mxu0 0.0
    %7309 = vmatpush1.msra.mxu0 %v6440
    %7310 = vmatprep.subr.mxu0 0.0
    %7311 = vmatpush1.msra.mxu0 %v6441
    %7312 = vmatprep.subr.mxu0 0.0
    %7313 = vmatpush1.msra.mxu0 %v6442
    %7314 = vmatprep.subr.mxu0 0.0
    %7315 = vmatpush1.msra.mxu0 %v6443
    %7316 = vmatprep.subr.mxu0 0.0
    %7317 = vmatpush1.msra.mxu0 %v6444
    %7318 = vmatprep.subr.mxu0 0.0
    %7319 = vmatpush1.msra.mxu0 %v6445
    %7320 = vmatprep.subr.mxu0 0.0
    %7321 = vmatpush1.msra.mxu0 %v6446
    %7322 = vmatprep.subr.mxu0 0.0
    %7323 = vmatpush1.msra.mxu0 %v6447
    %7324 = vmatprep.subr.mxu0 0.0
    %7325 = vmatpush1.msra.mxu0 %v6448
    %7326 = vmatprep.subr.mxu0 0.0
    %7327 = vmatpush1.msra.mxu0 %v6449
    %7328 = vmatprep.subr.mxu0 0.0
    %7329 = vmatpush1.msra.mxu0 %v6450
    %7330 = vmatprep.subr.mxu0 0.0
    %7331 = vmatpush1.msra.mxu0 %v6451
    %7332 = vmatprep.subr.mxu0 0.0
    %7333 = vmatpush1.msra.mxu0 %v6452
    %7334 = vmatprep.subr.mxu0 0.0
    %7335 = vmatpush1.msra.mxu0 %v6453
    %7336 = vmatprep.subr.mxu0 0.0
    %7337 = vmatpush1.msra.mxu0 %v6454
    %7338 = vmatprep.subr.mxu0 0.0
    %7339 = vmatpush1.msra.mxu0 %v6455
    %7340 = vmatprep.subr.mxu0 0.0
    %7341 = vmatpush1.msra.mxu0 %v6456
    %7342 = vmatprep.subr.mxu0 0.0
    %7343 = vmatpush1.msra.mxu0 %v6457
    %7344 = vmatprep.subr.mxu0 0.0
    %7345 = vmatpush1.msra.mxu0 %v6458
    %7346 = vmatprep.subr.mxu0 0.0
    %7347 = vmatpush1.msra.mxu0 %v6459
    %7348 = vmatprep.subr.mxu0 0.0
    %7349 = vmatpush1.msra.mxu0 %v6460
    %7350 = vmatprep.mubr.f32.mxu0 %v6295
    %7351 = vmatmul.mubr.f32.gmra.mrb[0].mxu0 %v5645
    %v7352 = vpop.f32.mrb[0].mxu0
    %v7353 = vadd.f32 %v6968, %v7352
    %v7354 = vpop.f32.mrb[0].mxu0
    %7355 = vmatprep.mubr.f32.mxu0 %v6296
    %7356 = vmatmul.mubr.f32.gmra.mrb[0].mxu0 %v5646
    %v7357 = vpop.f32.mrb[0].mxu0
    %v7358 = vadd.f32 %v6973, %v7357
    %v7359 = vpop.f32.mrb[0].mxu0
    %7360 = vmatprep.mubr.f32.mxu0 %v6297
    %7361 = vmatmul.mubr.f32.gmra.mrb[0].mxu0 %v5647
    %v7362 = vpop.f32.mrb[0].mxu0
    %v7363 = vadd.f32 %v6978, %v7362
    %v7364 = vpop.f32.mrb[0].mxu0
    %7365 = vmatprep.mubr.f32.mxu0 %v6298
    %7366 = vmatmul.mubr.f32.gmra.mrb[0].mxu0 %v5648
    %v7367 = vpop.f32.mrb[0].mxu0
    %v7368 = vadd.f32 %v6983, %v7367
    %v7369 = vpop.f32.mrb[0].mxu0
    %7370 = vmatprep.mubr.f32.mxu0 %v6299
    %7371 = vmatmul.mubr.f32.gmra.mrb[0].mxu0 %v5649
    %v7372 = vpop.f32.mrb[0].mxu0
    %v7373 = vadd.f32 %v6988, %v7372
    %v7374 = vpop.f32.mrb[0].mxu0
    %7375 = vmatprep.mubr.f32.mxu0 %v6300
    %7376 = vmatmul.mubr.f32.gmra.mrb[0].mxu0 %v5650
    %v7377 = vpop.f32.mrb[0].mxu0
    %v7378 = vadd.f32 %v6993, %v7377
    %v7379 = vpop.f32.mrb[0].mxu0
    %7380 = vmatprep.mubr.f32.mxu0 %v6301
    %7381 = vmatmul.mubr.f32.gmra.mrb[0].mxu0 %v5651
    %v7382 = vpop.f32.mrb[0].mxu0
    %v7383 = vadd.f32 %v6998, %v7382
    %v7384 = vpop.f32.mrb[0].mxu0
    %7385 = vmatprep.mubr.f32.mxu0 %v6302
    %7386 = vmatmul.mubr.f32.gmra.mrb[0].mxu0 %v5652
    %v7387 = vpop.f32.mrb[0].mxu0
    %v7388 = vadd.f32 %v7003, %v7387
    %v7389 = vpop.f32.mrb[0].mxu0
    %7390 = vmatprep.mubr.f32.mxu0 %v6303
    %7391 = vmatmul.mubr.f32.gmra.mrb[0].mxu0 %v5653
    %v7392 = vpop.f32.mrb[0].mxu0
    %v7393 = vadd.f32 %v7008, %v7392
    %v7394 = vpop.f32.mrb[0].mxu0
    %7395 = vmatprep.mubr.f32.mxu0 %v6304
    %7396 = vmatmul.mubr.f32.gmra.mrb[0].mxu0 %v5654
    %v7397 = vpop.f32.mrb[0].mxu0
    %v7398 = vadd.f32 %v7013, %v7397
    %v7399 = vpop.f32.mrb[0].mxu0
    %7400 = vmatprep.mubr.f32.mxu0 %v6305
    %7401 = vmatmul.mubr.f32.gmra.mrb[0].mxu0 %v5655
    %v7402 = vpop.f32.mrb[0].mxu0
    %v7403 = vadd.f32 %v7018, %v7402
    %v7404 = vpop.f32.mrb[0].mxu0
    %7405 = vmatprep.mubr.f32.mxu0 %v6306
    %7406 = vmatmul.mubr.f32.gmra.mrb[0].mxu0 %v5656
    %v7407 = vpop.f32.mrb[0].mxu0
    %v7408 = vadd.f32 %v7023, %v7407
    %v7409 = vpop.f32.mrb[0].mxu0
    %7410 = vmatprep.mubr.f32.mxu0 %v6307
    %7411 = vmatmul.mubr.f32.gmra.mrb[0].mxu0 %v5657
    %v7412 = vpop.f32.mrb[0].mxu0
    %v7413 = vadd.f32 %v7028, %v7412
    %v7414 = vpop.f32.mrb[0].mxu0
    %7415 = vmatprep.mubr.f32.mxu0 %v6308
    %7416 = vmatmul.mubr.f32.gmra.mrb[0].mxu0 %v5658
    %v7417 = vpop.f32.mrb[0].mxu0
    %v7418 = vadd.f32 %v7033, %v7417
    %v7419 = vpop.f32.mrb[0].mxu0
    %7420 = vmatprep.mubr.f32.mxu0 %v6309
    %7421 = vmatmul.mubr.f32.gmra.mrb[0].mxu0 %v5659
    %v7422 = vpop.f32.mrb[0].mxu0
    %v7423 = vadd.f32 %v7038, %v7422
    %v7424 = vpop.f32.mrb[0].mxu0
    %7425 = vmatprep.mubr.f32.mxu0 %v6310
    %7426 = vmatmul.mubr.f32.gmra.mrb[0].mxu0 %v5660
    %v7427 = vpop.f32.mrb[0].mxu0
    %v7428 = vadd.f32 %v7043, %v7427
    %v7429 = vpop.f32.mrb[0].mxu0
    %7430 = vmatprep.mubr.f32.mxu0 %v6311
    %7431 = vmatmul.mubr.f32.gmra.mrb[0].mxu0 %v5661
    %v7432 = vpop.f32.mrb[0].mxu0
    %v7433 = vadd.f32 %v7048, %v7432
    %v7434 = vpop.f32.mrb[0].mxu0
    %7435 = vmatprep.mubr.f32.mxu0 %v6312
    %7436 = vmatmul.mubr.f32.gmra.mrb[0].mxu0 %v5662
    %v7437 = vpop.f32.mrb[0].mxu0
    %v7438 = vadd.f32 %v7053, %v7437
    %v7439 = vpop.f32.mrb[0].mxu0
    %7440 = vmatprep.mubr.f32.mxu0 %v6313
    %7441 = vmatmul.mubr.f32.gmra.mrb[0].mxu0 %v5663
    %v7442 = vpop.f32.mrb[0].mxu0
    %v7443 = vadd.f32 %v7058, %v7442
    %v7444 = vpop.f32.mrb[0].mxu0
    %7445 = vmatprep.mubr.f32.mxu0 %v6314
    %7446 = vmatmul.mubr.f32.gmra.mrb[0].mxu0 %v5664
    %v7447 = vpop.f32.mrb[0].mxu0
    %v7448 = vadd.f32 %v7063, %v7447
    %v7449 = vpop.f32.mrb[0].mxu0
    %7450 = vmatprep.mubr.f32.mxu0 %v6315
    %7451 = vmatmul.mubr.f32.gmra.mrb[0].mxu0 %v5665
    %v7452 = vpop.f32.mrb[0].mxu0
    %v7453 = vadd.f32 %v7068, %v7452
    %v7454 = vpop.f32.mrb[0].mxu0
    %7455 = vmatprep.mubr.f32.mxu0 %v6316
    %7456 = vmatmul.mubr.f32.gmra.mrb[0].mxu0 %v5666
    %v7457 = vpop.f32.mrb[0].mxu0
    %v7458 = vadd.f32 %v7073, %v7457
    %v7459 = vpop.f32.mrb[0].mxu0
    %7460 = vmatprep.mubr.f32.mxu0 %v6317
    %7461 = vmatmul.mubr.f32.gmra.mrb[0].mxu0 %v5667
    %v7462 = vpop.f32.mrb[0].mxu0
    %v7463 = vadd.f32 %v7078, %v7462
    %v7464 = vpop.f32.mrb[0].mxu0
    %7465 = vmatprep.mubr.f32.mxu0 %v6318
    %7466 = vmatmul.mubr.f32.gmra.mrb[0].mxu0 %v5668
    %v7467 = vpop.f32.mrb[0].mxu0
    %v7468 = vadd.f32 %v7083, %v7467
    %v7469 = vpop.f32.mrb[0].mxu0
    %7470 = vmatprep.mubr.f32.mxu0 %v6319
    %7471 = vmatmul.mubr.f32.gmra.mrb[0].mxu0 %v5669
    %v7472 = vpop.f32.mrb[0].mxu0
    %v7473 = vadd.f32 %v7088, %v7472
    %v7474 = vpop.f32.mrb[0].mxu0
    %7475 = vmatprep.mubr.f32.mxu0 %v6320
    %7476 = vmatmul.mubr.f32.gmra.mrb[0].mxu0 %v5670
    %v7477 = vpop.f32.mrb[0].mxu0
    %v7478 = vadd.f32 %v7093, %v7477
    %v7479 = vpop.f32.mrb[0].mxu0
    %7480 = vmatprep.mubr.f32.mxu0 %v6321
    %7481 = vmatmul.mubr.f32.gmra.mrb[0].mxu0 %v5671
    %v7482 = vpop.f32.mrb[0].mxu0
    %v7483 = vadd.f32 %v7098, %v7482
    %v7484 = vpop.f32.mrb[0].mxu0
    %7485 = vmatprep.mubr.f32.mxu0 %v6322
    %7486 = vmatmul.mubr.f32.gmra.mrb[0].mxu0 %v5672
    %v7487 = vpop.f32.mrb[0].mxu0
    %v7488 = vadd.f32 %v7103, %v7487
    %v7489 = vpop.f32.mrb[0].mxu0
    %7490 = vmatprep.mubr.f32.mxu0 %v6323
    %7491 = vmatmul.mubr.f32.gmra.mrb[0].mxu0 %v5673
    %v7492 = vpop.f32.mrb[0].mxu0
    %v7493 = vadd.f32 %v7108, %v7492
    %v7494 = vpop.f32.mrb[0].mxu0
    %7495 = vmatprep.mubr.f32.mxu0 %v6324
    %7496 = vmatmul.mubr.f32.gmra.mrb[0].mxu0 %v5674
    %v7497 = vpop.f32.mrb[0].mxu0
    %v7498 = vadd.f32 %v7113, %v7497
    %v7499 = vpop.f32.mrb[0].mxu0
    %7500 = vmatprep.mubr.f32.mxu0 %v6325
    %7501 = vmatmul.mubr.f32.gmra.mrb[0].mxu0 %v5675
    %v7502 = vpop.f32.mrb[0].mxu0
    %v7503 = vadd.f32 %v7118, %v7502
    %v7504 = vpop.f32.mrb[0].mxu0
    %7505 = vmatprep.mubr.f32.mxu0 %v6326
    %7506 = vmatmul.mubr.f32.gmra.mrb[0].mxu0 %v5676
    %v7507 = vpop.f32.mrb[0].mxu0
    %v7508 = vadd.f32 %v7123, %v7507
    %v7509 = vpop.f32.mrb[0].mxu0
    %7510 = vmatprep.mubr.f32.mxu0 %v6331
    %7511 = vmatmul.mubr.f32.gmra.mrb[0].mxu0 %v5681
    %v7512 = vpop.f32.mrb[0].mxu0
    %v7513 = vadd.f32 %v7128, %v7512
    %v7514 = vpop.f32.mrb[0].mxu0
    %7515 = vmatprep.mubr.f32.mxu0 %v6332
    %7516 = vmatmul.mubr.f32.gmra.mrb[0].mxu0 %v5682
    %v7517 = vpop.f32.mrb[0].mxu0
    %v7518 = vadd.f32 %v7133, %v7517
    %v7519 = vpop.f32.mrb[0].mxu0
    %7520 = vmatprep.mubr.f32.mxu0 %v6333
    %7521 = vmatmul.mubr.f32.gmra.mrb[0].mxu0 %v5683
    %v7522 = vpop.f32.mrb[0].mxu0
    %v7523 = vadd.f32 %v7138, %v7522
    %v7524 = vpop.f32.mrb[0].mxu0
    %7525 = vmatprep.mubr.f32.mxu0 %v6334
    %7526 = vmatmul.mubr.f32.gmra.mrb[0].mxu0 %v5684
    %v7527 = vpop.f32.mrb[0].mxu0
    %v7528 = vadd.f32 %v7143, %v7527
    %v7529 = vpop.f32.mrb[0].mxu0
    %7530 = vmatprep.mubr.f32.mxu0 %v6335
    %7531 = vmatmul.mubr.f32.gmra.mrb[0].mxu0 %v5685
    %v7532 = vpop.f32.mrb[0].mxu0
    %v7533 = vadd.f32 %v7148, %v7532
    %v7534 = vpop.f32.mrb[0].mxu0
    %7535 = vmatprep.mubr.f32.mxu0 %v6336
    %7536 = vmatmul.mubr.f32.gmra.mrb[0].mxu0 %v5686
    %v7537 = vpop.f32.mrb[0].mxu0
    %v7538 = vadd.f32 %v7153, %v7537
    %v7539 = vpop.f32.mrb[0].mxu0
    %7540 = vmatprep.mubr.f32.mxu0 %v6337
    %7541 = vmatmul.mubr.f32.gmra.mrb[0].mxu0 %v5687
    %v7542 = vpop.f32.mrb[0].mxu0
    %v7543 = vadd.f32 %v7158, %v7542
    %v7544 = vpop.f32.mrb[0].mxu0
    %7545 = vmatprep.mubr.f32.mxu0 %v6338
    %7546 = vmatmul.mubr.f32.gmra.mrb[0].mxu0 %v5688
    %v7547 = vpop.f32.mrb[0].mxu0
    %v7548 = vadd.f32 %v7163, %v7547
    %v7549 = vpop.f32.mrb[0].mxu0
    %7550 = vmatprep.mubr.f32.mxu0 %v6339
    %7551 = vmatmul.mubr.f32.gmra.mrb[0].mxu0 %v5689
    %v7552 = vpop.f32.mrb[0].mxu0
    %v7553 = vadd.f32 %v7168, %v7552
    %v7554 = vpop.f32.mrb[0].mxu0
    %7555 = vmatprep.mubr.f32.mxu0 %v6340
    %7556 = vmatmul.mubr.f32.gmra.mrb[0].mxu0 %v5690
    %v7557 = vpop.f32.mrb[0].mxu0
    %v7558 = vadd.f32 %v7173, %v7557
    %v7559 = vpop.f32.mrb[0].mxu0
    %7560 = vmatprep.mubr.f32.mxu0 %v6341
    %7561 = vmatmul.mubr.f32.gmra.mrb[0].mxu0 %v5691
    %v7562 = vpop.f32.mrb[0].mxu0
    %v7563 = vadd.f32 %v7178, %v7562
    %v7564 = vpop.f32.mrb[0].mxu0
    %7565 = vmatprep.mubr.f32.mxu0 %v6342
    %7566 = vmatmul.mubr.f32.gmra.mrb[0].mxu0 %v5692
    %v7567 = vpop.f32.mrb[0].mxu0
    %v7568 = vadd.f32 %v7183, %v7567
    %v7569 = vpop.f32.mrb[0].mxu0
    %7570 = vmatprep.mubr.f32.mxu0 %v6343
    %7571 = vmatmul.mubr.f32.gmra.mrb[0].mxu0 %v5693
    %v7572 = vpop.f32.mrb[0].mxu0
    %v7573 = vadd.f32 %v7188, %v7572
    %v7574 = vpop.f32.mrb[0].mxu0
    %7575 = vmatprep.mubr.f32.mxu0 %v6344
    %7576 = vmatmul.mubr.f32.gmra.mrb[0].mxu0 %v5694
    %v7577 = vpop.f32.mrb[0].mxu0
    %v7578 = vadd.f32 %v7193, %v7577
    %v7579 = vpop.f32.mrb[0].mxu0
    %7580 = vmatprep.mubr.f32.mxu0 %v6345
    %7581 = vmatmul.mubr.f32.gmra.mrb[0].mxu0 %v5695
    %v7582 = vpop.f32.mrb[0].mxu0
    %v7583 = vadd.f32 %v7198, %v7582
    %v7584 = vpop.f32.mrb[0].mxu0
    %7585 = vmatprep.mubr.f32.mxu0 %v6346
    %7586 = vmatmul.mubr.f32.gmra.mrb[0].mxu0 %v5696
    %v7587 = vpop.f32.mrb[0].mxu0
    %v7588 = vadd.f32 %v7203, %v7587
    %v7589 = vpop.f32.mrb[0].mxu0
    %7590 = vmatprep.mubr.f32.mxu0 %v6347
    %7591 = vmatmul.mubr.f32.gmra.mrb[0].mxu0 %v5697
    %v7592 = vpop.f32.mrb[0].mxu0
    %v7593 = vadd.f32 %v7208, %v7592
    %v7594 = vpop.f32.mrb[0].mxu0
    %7595 = vmatprep.mubr.f32.mxu0 %v6348
    %7596 = vmatmul.mubr.f32.gmra.mrb[0].mxu0 %v5698
    %v7597 = vpop.f32.mrb[0].mxu0
    %v7598 = vadd.f32 %v7213, %v7597
    %v7599 = vpop.f32.mrb[0].mxu0
    %7600 = vmatprep.mubr.f32.mxu0 %v6349
    %7601 = vmatmul.mubr.f32.gmra.mrb[0].mxu0 %v5699
    %v7602 = vpop.f32.mrb[0].mxu0
    %v7603 = vadd.f32 %v7218, %v7602
    %v7604 = vpop.f32.mrb[0].mxu0
    %7605 = vmatprep.mubr.f32.mxu0 %v6350
    %7606 = vmatmul.mubr.f32.gmra.mrb[0].mxu0 %v5700
    %v7607 = vpop.f32.mrb[0].mxu0
    %v7608 = vadd.f32 %v7223, %v7607
    %v7609 = vpop.f32.mrb[0].mxu0
    %7610 = vmatprep.mubr.f32.mxu0 %v6351
    %7611 = vmatmul.mubr.f32.gmra.mrb[0].mxu0 %v5701
    %v7612 = vpop.f32.mrb[0].mxu0
    %v7613 = vadd.f32 %v7228, %v7612
    %v7614 = vpop.f32.mrb[0].mxu0
    %7615 = vmatprep.mubr.f32.mxu0 %v6352
    %7616 = vmatmul.mubr.f32.gmra.mrb[0].mxu0 %v5702
    %v7617 = vpop.f32.mrb[0].mxu0
    %v7618 = vadd.f32 %v7233, %v7617
    %v7619 = vpop.f32.mrb[0].mxu0
    %7620 = vmatprep.mubr.f32.mxu0 %v6353
    %7621 = vmatmul.mubr.f32.gmra.mrb[0].mxu0 %v5703
    %v7622 = vpop.f32.mrb[0].mxu0
    %v7623 = vadd.f32 %v7238, %v7622
    %v7624 = vpop.f32.mrb[0].mxu0
    %7625 = vmatprep.mubr.f32.mxu0 %v6354
    %7626 = vmatmul.mubr.f32.gmra.mrb[0].mxu0 %v5704
    %v7627 = vpop.f32.mrb[0].mxu0
    %v7628 = vadd.f32 %v7243, %v7627
    %v7629 = vpop.f32.mrb[0].mxu0
    %7630 = vmatprep.mubr.f32.mxu0 %v6355
    %7631 = vmatmul.mubr.f32.gmra.mrb[0].mxu0 %v5705
    %v7632 = vpop.f32.mrb[0].mxu0
    %v7633 = vadd.f32 %v7248, %v7632
    %v7634 = vpop.f32.mrb[0].mxu0
    %7635 = vmatprep.mubr.f32.mxu0 %v6356
    %7636 = vmatmul.mubr.f32.gmra.mrb[0].mxu0 %v5706
    %v7637 = vpop.f32.mrb[0].mxu0
    %v7638 = vadd.f32 %v7253, %v7637
    %v7639 = vpop.f32.mrb[0].mxu0
    %7640 = vmatprep.mubr.f32.mxu0 %v6357
    %7641 = vmatmul.mubr.f32.gmra.mrb[0].mxu0 %v5707
    %v7642 = vpop.f32.mrb[0].mxu0
    %v7643 = vadd.f32 %v7258, %v7642
    %v7644 = vpop.f32.mrb[0].mxu0
    %7645 = vmatprep.mubr.f32.mxu0 %v6358
    %7646 = vmatmul.mubr.f32.gmra.mrb[0].mxu0 %v5708
    %v7647 = vpop.f32.mrb[0].mxu0
    %v7648 = vadd.f32 %v7263, %v7647
    %v7649 = vpop.f32.mrb[0].mxu0
    %7650 = vmatprep.mubr.f32.mxu0 %v6359
    %7651 = vmatmul.mubr.f32.gmra.mrb[0].mxu0 %v5709
    %v7652 = vpop.f32.mrb[0].mxu0
    %v7653 = vadd.f32 %v7268, %v7652
    %v7654 = vpop.f32.mrb[0].mxu0
    %7655 = vmatprep.mubr.f32.mxu0 %v6360
    %7656 = vmatmul.mubr.f32.gmra.mrb[0].mxu0 %v5710
    %v7657 = vpop.f32.mrb[0].mxu0
    %v7658 = vadd.f32 %v7273, %v7657
    %v7659 = vpop.f32.mrb[0].mxu0
    %7660 = vmatprep.mubr.f32.mxu0 %v6361
    %7661 = vmatmul.mubr.f32.gmra.mrb[0].mxu0 %v5711
    %v7662 = vpop.f32.mrb[0].mxu0
    %v7663 = vadd.f32 %v7278, %v7662
    %v7664 = vpop.f32.mrb[0].mxu0
    %7665 = vmatprep.mubr.f32.mxu0 %v6362
    %7666 = vmatmul.mubr.f32.gmra.mrb[0].mxu0 %v5712
    %v7667 = vpop.f32.mrb[0].mxu0
    %v7668 = vadd.f32 %v7283, %v7667
    %v7669 = vpop.f32.mrb[0].mxu0
    %7670 = vdwg.mxu0
    %7671 = vmatprep.subr.mxu0 0.0
    %7672 = vmatpush1.msra.mxu0 %v6461
    %7673 = vmatprep.subr.mxu0 0.0
    %7674 = vmatpush1.msra.mxu0 %v6462
    %7675 = vmatprep.subr.mxu0 0.0
    %7676 = vmatpush1.msra.mxu0 %v6463
    %7677 = vmatprep.subr.mxu0 0.0
    %7678 = vmatpush1.msra.mxu0 %v6464
    %7679 = vmatprep.subr.mxu0 0.0
    %7680 = vmatpush1.msra.mxu0 %v6465
    %7681 = vmatprep.subr.mxu0 0.0
    %7682 = vmatpush1.msra.mxu0 %v6466
    %7683 = vmatprep.subr.mxu0 0.0
    %7684 = vmatpush1.msra.mxu0 %v6467
    %7685 = vmatprep.subr.mxu0 0.0
    %7686 = vmatpush1.msra.mxu0 %v6468
    %7687 = vmatprep.subr.mxu0 0.0
    %7688 = vmatpush1.msra.mxu0 %v6469
    %7689 = vmatprep.subr.mxu0 0.0
    %7690 = vmatpush1.msra.mxu0 %v6470
    %7691 = vmatprep.subr.mxu0 0.0
    %7692 = vmatpush1.msra.mxu0 %v6471
    %7693 = vmatprep.subr.mxu0 0.0
    %7694 = vmatpush1.msra.mxu0 %v6472
    %7695 = vmatprep.subr.mxu0 0.0
    %7696 = vmatpush1.msra.mxu0 %v6473
    %7697 = vmatprep.subr.mxu0 0.0
    %7698 = vmatpush1.msra.mxu0 %v6474
    %7699 = vmatprep.subr.mxu0 0.0
    %7700 = vmatpush1.msra.mxu0 %v6475
    %7701 = vmatprep.subr.mxu0 0.0
    %7702 = vmatpush1.msra.mxu0 %v6476
    %7703 = vmatprep.subr.mxu0 0.0
    %7704 = vmatpush1.msra.mxu0 %v6477
    %7705 = vmatprep.subr.mxu0 0.0
    %7706 = vmatpush1.msra.mxu0 %v6478
    %7707 = vmatprep.subr.mxu0 0.0
    %7708 = vmatpush1.msra.mxu0 %v6479
    %7709 = vmatprep.subr.mxu0 0.0
    %7710 = vmatpush1.msra.mxu0 %v6480
    %7711 = vmatprep.subr.mxu0 0.0
    %7712 = vmatpush1.msra.mxu0 %v6481
    %7713 = vmatprep.subr.mxu0 0.0
    %7714 = vmatpush1.msra.mxu0 %v6482
    %7715 = vmatprep.subr.mxu0 0.0
    %7716 = vmatpush1.msra.mxu0 %v6483
    %7717 = vmatprep.subr.mxu0 0.0
    %7718 = vmatpush1.msra.mxu0 %v6484
    %7719 = vmatprep.subr.mxu0 0.0
    %7720 = vmatpush1.msra.mxu0 %v6485
    %7721 = vmatprep.subr.mxu0 0.0
    %7722 = vmatpush1.msra.mxu0 %v6486
    %7723 = vmatprep.subr.mxu0 0.0
    %7724 = vmatpush1.msra.mxu0 %v6487
    %7725 = vmatprep.subr.mxu0 0.0
    %7726 = vmatpush1.msra.mxu0 %v6488
    %7727 = vmatprep.subr.mxu0 0.0
    %7728 = vmatpush1.msra.mxu0 %v6489
    %7729 = vmatprep.subr.mxu0 0.0
    %7730 = vmatpush1.msra.mxu0 %v6490
    %7731 = vmatprep.subr.mxu0 0.0
    %7732 = vmatpush1.msra.mxu0 %v6491
    %7733 = vmatprep.subr.mxu0 0.0
    %7734 = vmatpush1.msra.mxu0 %v6492
    %7735 = vmatprep.mubr.f32.mxu0 %v5647
    %7736 = vmatmul.mubr.f32.gmra.mrb[0].mxu0 %v6008
    %v7737 = vpop.f32.mrb[0].mxu0
    %v7738 = vadd.f32 %v7353, %v7737
    %v7739 = vpop.f32.mrb[0].mxu0
    %7740 = vmatprep.mubr.f32.mxu0 %v5648
    %7741 = vmatmul.mubr.f32.gmra.mrb[0].mxu0 %v6009
    %v7742 = vpop.f32.mrb[0].mxu0
    %v7743 = vadd.f32 %v7358, %v7742
    %v7744 = vpop.f32.mrb[0].mxu0
    %7745 = vmatprep.mubr.f32.mxu0 %v5649
    %7746 = vmatmul.mubr.f32.gmra.mrb[0].mxu0 %v6010
    %v7747 = vpop.f32.mrb[0].mxu0
    %v7748 = vadd.f32 %v7363, %v7747
    %v7749 = vpop.f32.mrb[0].mxu0
    %7750 = vmatprep.mubr.f32.mxu0 %v5650
    %7751 = vmatmul.mubr.f32.gmra.mrb[0].mxu0 %v6011
    %v7752 = vpop.f32.mrb[0].mxu0
    %v7753 = vadd.f32 %v7368, %v7752
    %v7754 = vpop.f32.mrb[0].mxu0
    %7755 = vmatprep.mubr.f32.mxu0 %v5651
    %7756 = vmatmul.mubr.f32.gmra.mrb[0].mxu0 %v6012
    %v7757 = vpop.f32.mrb[0].mxu0
    %v7758 = vadd.f32 %v7373, %v7757
    %v7759 = vpop.f32.mrb[0].mxu0
    %7760 = vmatprep.mubr.f32.mxu0 %v5652
    %7761 = vmatmul.mubr.f32.gmra.mrb[0].mxu0 %v6013
    %v7762 = vpop.f32.mrb[0].mxu0
    %v7763 = vadd.f32 %v7378, %v7762
    %v7764 = vpop.f32.mrb[0].mxu0
    %7765 = vmatprep.mubr.f32.mxu0 %v5653
    %7766 = vmatmul.mubr.f32.gmra.mrb[0].mxu0 %v6014
    %v7767 = vpop.f32.mrb[0].mxu0
    %v7768 = vadd.f32 %v7383, %v7767
    %v7769 = vpop.f32.mrb[0].mxu0
    %7770 = vmatprep.mubr.f32.mxu0 %v5654
    %7771 = vmatmul.mubr.f32.gmra.mrb[0].mxu0 %v6015
    %v7772 = vpop.f32.mrb[0].mxu0
    %v7773 = vadd.f32 %v7388, %v7772
    %v7774 = vpop.f32.mrb[0].mxu0
    %7775 = vmatprep.mubr.f32.mxu0 %v5655
    %7776 = vmatmul.mubr.f32.gmra.mrb[0].mxu0 %v6016
    %v7777 = vpop.f32.mrb[0].mxu0
    %v7778 = vadd.f32 %v7393, %v7777
    %v7779 = vpop.f32.mrb[0].mxu0
    %7780 = vmatprep.mubr.f32.mxu0 %v5656
    %7781 = vmatmul.mubr.f32.gmra.mrb[0].mxu0 %v6017
    %v7782 = vpop.f32.mrb[0].mxu0
    %v7783 = vadd.f32 %v7398, %v7782
    %v7784 = vpop.f32.mrb[0].mxu0
    %7785 = vmatprep.mubr.f32.mxu0 %v5657
    %7786 = vmatmul.mubr.f32.gmra.mrb[0].mxu0 %v6018
    %v7787 = vpop.f32.mrb[0].mxu0
    %v7788 = vadd.f32 %v7403, %v7787
    %v7789 = vpop.f32.mrb[0].mxu0
    %7790 = vmatprep.mubr.f32.mxu0 %v5658
    %7791 = vmatmul.mubr.f32.gmra.mrb[0].mxu0 %v6019
    %v7792 = vpop.f32.mrb[0].mxu0
    %v7793 = vadd.f32 %v7408, %v7792
    %v7794 = vpop.f32.mrb[0].mxu0
    %7795 = vmatprep.mubr.f32.mxu0 %v5659
    %7796 = vmatmul.mubr.f32.gmra.mrb[0].mxu0 %v6020
    %v7797 = vpop.f32.mrb[0].mxu0
    %v7798 = vadd.f32 %v7413, %v7797
    %v7799 = vpop.f32.mrb[0].mxu0
    %7800 = vmatprep.mubr.f32.mxu0 %v5660
    %7801 = vmatmul.mubr.f32.gmra.mrb[0].mxu0 %v6021
    %v7802 = vpop.f32.mrb[0].mxu0
    %v7803 = vadd.f32 %v7418, %v7802
    %v7804 = vpop.f32.mrb[0].mxu0
    %7805 = vmatprep.mubr.f32.mxu0 %v5661
    %7806 = vmatmul.mubr.f32.gmra.mrb[0].mxu0 %v6022
    %v7807 = vpop.f32.mrb[0].mxu0
    %v7808 = vadd.f32 %v7423, %v7807
    %v7809 = vpop.f32.mrb[0].mxu0
    %7810 = vmatprep.mubr.f32.mxu0 %v5662
    %7811 = vmatmul.mubr.f32.gmra.mrb[0].mxu0 %v6023
    %v7812 = vpop.f32.mrb[0].mxu0
    %v7813 = vadd.f32 %v7428, %v7812
    %v7814 = vpop.f32.mrb[0].mxu0
    %7815 = vmatprep.mubr.f32.mxu0 %v5663
    %7816 = vmatmul.mubr.f32.gmra.mrb[0].mxu0 %v6024
    %v7817 = vpop.f32.mrb[0].mxu0
    %v7818 = vadd.f32 %v7433, %v7817
    %v7819 = vpop.f32.mrb[0].mxu0
    %7820 = vmatprep.mubr.f32.mxu0 %v5664
    %7821 = vmatmul.mubr.f32.gmra.mrb[0].mxu0 %v6025
    %v7822 = vpop.f32.mrb[0].mxu0
    %v7823 = vadd.f32 %v7438, %v7822
    %v7824 = vpop.f32.mrb[0].mxu0
    %7825 = vmatprep.mubr.f32.mxu0 %v5665
    %7826 = vmatmul.mubr.f32.gmra.mrb[0].mxu0 %v6026
    %v7827 = vpop.f32.mrb[0].mxu0
    %v7828 = vadd.f32 %v7443, %v7827
    %v7829 = vpop.f32.mrb[0].mxu0
    %7830 = vmatprep.mubr.f32.mxu0 %v5666
    %7831 = vmatmul.mubr.f32.gmra.mrb[0].mxu0 %v6027
    %v7832 = vpop.f32.mrb[0].mxu0
    %v7833 = vadd.f32 %v7448, %v7832
    %v7834 = vpop.f32.mrb[0].mxu0
    %7835 = vmatprep.mubr.f32.mxu0 %v5667
    %7836 = vmatmul.mubr.f32.gmra.mrb[0].mxu0 %v6028
    %v7837 = vpop.f32.mrb[0].mxu0
    %v7838 = vadd.f32 %v7453, %v7837
    %v7839 = vpop.f32.mrb[0].mxu0
    %7840 = vmatprep.mubr.f32.mxu0 %v5668
    %7841 = vmatmul.mubr.f32.gmra.mrb[0].mxu0 %v6029
    %v7842 = vpop.f32.mrb[0].mxu0
    %v7843 = vadd.f32 %v7458, %v7842
    %v7844 = vpop.f32.mrb[0].mxu0
    %7845 = vmatprep.mubr.f32.mxu0 %v5669
    %7846 = vmatmul.mubr.f32.gmra.mrb[0].mxu0 %v6030
    %v7847 = vpop.f32.mrb[0].mxu0
    %v7848 = vadd.f32 %v7463, %v7847
    %v7849 = vpop.f32.mrb[0].mxu0
    %7850 = vmatprep.mubr.f32.mxu0 %v5670
    %7851 = vmatmul.mubr.f32.gmra.mrb[0].mxu0 %v6031
    %v7852 = vpop.f32.mrb[0].mxu0
    %v7853 = vadd.f32 %v7468, %v7852
    %v7854 = vpop.f32.mrb[0].mxu0
    %7855 = vmatprep.mubr.f32.mxu0 %v5671
    %7856 = vmatmul.mubr.f32.gmra.mrb[0].mxu0 %v6032
    %v7857 = vpop.f32.mrb[0].mxu0
    %v7858 = vadd.f32 %v7473, %v7857
    %v7859 = vpop.f32.mrb[0].mxu0
    %7860 = vmatprep.mubr.f32.mxu0 %v5672
    %7861 = vmatmul.mubr.f32.gmra.mrb[0].mxu0 %v6033
    %v7862 = vpop.f32.mrb[0].mxu0
    %v7863 = vadd.f32 %v7478, %v7862
    %v7864 = vpop.f32.mrb[0].mxu0
    %7865 = vmatprep.mubr.f32.mxu0 %v5673
    %7866 = vmatmul.mubr.f32.gmra.mrb[0].mxu0 %v6034
    %v7867 = vpop.f32.mrb[0].mxu0
    %v7868 = vadd.f32 %v7483, %v7867
    %v7869 = vpop.f32.mrb[0].mxu0
    %7870 = vmatprep.mubr.f32.mxu0 %v5674
    %7871 = vmatmul.mubr.f32.gmra.mrb[0].mxu0 %v6035
    %v7872 = vpop.f32.mrb[0].mxu0
    %v7873 = vadd.f32 %v7488, %v7872
    %v7874 = vpop.f32.mrb[0].mxu0
    %7875 = vmatprep.mubr.f32.mxu0 %v5675
    %7876 = vmatmul.mubr.f32.gmra.mrb[0].mxu0 %v6036
    %v7877 = vpop.f32.mrb[0].mxu0
    %v7878 = vadd.f32 %v7493, %v7877
    %v7879 = vpop.f32.mrb[0].mxu0
    %7880 = vmatprep.mubr.f32.mxu0 %v5676
    %7881 = vmatmul.mubr.f32.gmra.mrb[0].mxu0 %v6037
    %v7882 = vpop.f32.mrb[0].mxu0
    %v7883 = vadd.f32 %v7498, %v7882
    %v7884 = vpop.f32.mrb[0].mxu0
    %7885 = vmatprep.mubr.f32.mxu0 %v5677
    %7886 = vmatmul.mubr.f32.gmra.mrb[0].mxu0 %v6038
    %v7887 = vpop.f32.mrb[0].mxu0
    %v7888 = vadd.f32 %v7503, %v7887
    %v7889 = vpop.f32.mrb[0].mxu0
    %7890 = vmatprep.mubr.f32.mxu0 %v5678
    %7891 = vmatmul.mubr.f32.gmra.mrb[0].mxu0 %v6039
    %v7892 = vpop.f32.mrb[0].mxu0
    %v7893 = vadd.f32 %v7508, %v7892
    %v7894 = vpop.f32.mrb[0].mxu0
    %7895 = vmatprep.mubr.f32.mxu0 %v5683
    %7896 = vmatmul.mubr.f32.gmra.mrb[0].mxu0 %v6044
    %v7897 = vpop.f32.mrb[0].mxu0
    %v7898 = vadd.f32 %v7513, %v7897
    %v7899 = vpop.f32.mrb[0].mxu0
    %7900 = vmatprep.mubr.f32.mxu0 %v5684
    %7901 = vmatmul.mubr.f32.gmra.mrb[0].mxu0 %v6045
    %v7902 = vpop.f32.mrb[0].mxu0
    %v7903 = vadd.f32 %v7518, %v7902
    %v7904 = vpop.f32.mrb[0].mxu0
    %7905 = vmatprep.mubr.f32.mxu0 %v5685
    %7906 = vmatmul.mubr.f32.gmra.mrb[0].mxu0 %v6046
    %v7907 = vpop.f32.mrb[0].mxu0
    %v7908 = vadd.f32 %v7523, %v7907
    %v7909 = vpop.f32.mrb[0].mxu0
    %7910 = vmatprep.mubr.f32.mxu0 %v5686
    %7911 = vmatmul.mubr.f32.gmra.mrb[0].mxu0 %v6047
    %v7912 = vpop.f32.mrb[0].mxu0
    %v7913 = vadd.f32 %v7528, %v7912
    %v7914 = vpop.f32.mrb[0].mxu0
    %7915 = vmatprep.mubr.f32.mxu0 %v5687
    %7916 = vmatmul.mubr.f32.gmra.mrb[0].mxu0 %v6048
    %v7917 = vpop.f32.mrb[0].mxu0
    %v7918 = vadd.f32 %v7533, %v7917
    %v7919 = vpop.f32.mrb[0].mxu0
    %7920 = vmatprep.mubr.f32.mxu0 %v5688
    %7921 = vmatmul.mubr.f32.gmra.mrb[0].mxu0 %v6049
    %v7922 = vpop.f32.mrb[0].mxu0
    %v7923 = vadd.f32 %v7538, %v7922
    %v7924 = vpop.f32.mrb[0].mxu0
    %7925 = vmatprep.mubr.f32.mxu0 %v5689
    %7926 = vmatmul.mubr.f32.gmra.mrb[0].mxu0 %v6050
    %v7927 = vpop.f32.mrb[0].mxu0
    %v7928 = vadd.f32 %v7543, %v7927
    %v7929 = vpop.f32.mrb[0].mxu0
    %7930 = vmatprep.mubr.f32.mxu0 %v5690
    %7931 = vmatmul.mubr.f32.gmra.mrb[0].mxu0 %v6051
    %v7932 = vpop.f32.mrb[0].mxu0
    %v7933 = vadd.f32 %v7548, %v7932
    %v7934 = vpop.f32.mrb[0].mxu0
    %7935 = vmatprep.mubr.f32.mxu0 %v5691
    %7936 = vmatmul.mubr.f32.gmra.mrb[0].mxu0 %v6052
    %v7937 = vpop.f32.mrb[0].mxu0
    %v7938 = vadd.f32 %v7553, %v7937
    %v7939 = vpop.f32.mrb[0].mxu0
    %7940 = vmatprep.mubr.f32.mxu0 %v5692
    %7941 = vmatmul.mubr.f32.gmra.mrb[0].mxu0 %v6053
    %v7942 = vpop.f32.mrb[0].mxu0
    %v7943 = vadd.f32 %v7558, %v7942
    %v7944 = vpop.f32.mrb[0].mxu0
    %7945 = vmatprep.mubr.f32.mxu0 %v5693
    %7946 = vmatmul.mubr.f32.gmra.mrb[0].mxu0 %v6054
    %v7947 = vpop.f32.mrb[0].mxu0
    %v7948 = vadd.f32 %v7563, %v7947
    %v7949 = vpop.f32.mrb[0].mxu0
    %7950 = vmatprep.mubr.f32.mxu0 %v5694
    %7951 = vmatmul.mubr.f32.gmra.mrb[0].mxu0 %v6055
    %v7952 = vpop.f32.mrb[0].mxu0
    %v7953 = vadd.f32 %v7568, %v7952
    %v7954 = vpop.f32.mrb[0].mxu0
    %7955 = vmatprep.mubr.f32.mxu0 %v5695
    %7956 = vmatmul.mubr.f32.gmra.mrb[0].mxu0 %v6056
    %v7957 = vpop.f32.mrb[0].mxu0
    %v7958 = vadd.f32 %v7573, %v7957
    %v7959 = vpop.f32.mrb[0].mxu0
    %7960 = vmatprep.mubr.f32.mxu0 %v5696
    %7961 = vmatmul.mubr.f32.gmra.mrb[0].mxu0 %v6057
    %v7962 = vpop.f32.mrb[0].mxu0
    %v7963 = vadd.f32 %v7578, %v7962
    %v7964 = vpop.f32.mrb[0].mxu0
    %7965 = vmatprep.mubr.f32.mxu0 %v5697
    %7966 = vmatmul.mubr.f32.gmra.mrb[0].mxu0 %v6058
    %v7967 = vpop.f32.mrb[0].mxu0
    %v7968 = vadd.f32 %v7583, %v7967
    %v7969 = vpop.f32.mrb[0].mxu0
    %7970 = vmatprep.mubr.f32.mxu0 %v5698
    %7971 = vmatmul.mubr.f32.gmra.mrb[0].mxu0 %v6059
    %v7972 = vpop.f32.mrb[0].mxu0
    %v7973 = vadd.f32 %v7588, %v7972
    %v7974 = vpop.f32.mrb[0].mxu0
    %7975 = vmatprep.mubr.f32.mxu0 %v5699
    %7976 = vmatmul.mubr.f32.gmra.mrb[0].mxu0 %v6060
    %v7977 = vpop.f32.mrb[0].mxu0
    %v7978 = vadd.f32 %v7593, %v7977
    %v7979 = vpop.f32.mrb[0].mxu0
    %7980 = vmatprep.mubr.f32.mxu0 %v5700
    %7981 = vmatmul.mubr.f32.gmra.mrb[0].mxu0 %v6061
    %v7982 = vpop.f32.mrb[0].mxu0
    %v7983 = vadd.f32 %v7598, %v7982
    %v7984 = vpop.f32.mrb[0].mxu0
    %7985 = vmatprep.mubr.f32.mxu0 %v5701
    %7986 = vmatmul.mubr.f32.gmra.mrb[0].mxu0 %v6062
    %v7987 = vpop.f32.mrb[0].mxu0
    %v7988 = vadd.f32 %v7603, %v7987
    %v7989 = vpop.f32.mrb[0].mxu0
    %7990 = vmatprep.mubr.f32.mxu0 %v5702
    %7991 = vmatmul.mubr.f32.gmra.mrb[0].mxu0 %v6063
    %v7992 = vpop.f32.mrb[0].mxu0
    %v7993 = vadd.f32 %v7608, %v7992
    %v7994 = vpop.f32.mrb[0].mxu0
    %7995 = vmatprep.mubr.f32.mxu0 %v5703
    %7996 = vmatmul.mubr.f32.gmra.mrb[0].mxu0 %v6064
    %v7997 = vpop.f32.mrb[0].mxu0
    %v7998 = vadd.f32 %v7613, %v7997
    %v7999 = vpop.f32.mrb[0].mxu0
    %8000 = vmatprep.mubr.f32.mxu0 %v5704
    %8001 = vmatmul.mubr.f32.gmra.mrb[0].mxu0 %v6065
    %v8002 = vpop.f32.mrb[0].mxu0
    %v8003 = vadd.f32 %v7618, %v8002
    %v8004 = vpop.f32.mrb[0].mxu0
    %8005 = vmatprep.mubr.f32.mxu0 %v5705
    %8006 = vmatmul.mubr.f32.gmra.mrb[0].mxu0 %v6066
    %v8007 = vpop.f32.mrb[0].mxu0
    %v8008 = vadd.f32 %v7623, %v8007
    %v8009 = vpop.f32.mrb[0].mxu0
    %8010 = vmatprep.mubr.f32.mxu0 %v5706
    %8011 = vmatmul.mubr.f32.gmra.mrb[0].mxu0 %v6067
    %v8012 = vpop.f32.mrb[0].mxu0
    %v8013 = vadd.f32 %v7628, %v8012
    %v8014 = vpop.f32.mrb[0].mxu0
    %8015 = vmatprep.mubr.f32.mxu0 %v5707
    %8016 = vmatmul.mubr.f32.gmra.mrb[0].mxu0 %v6068
    %v8017 = vpop.f32.mrb[0].mxu0
    %v8018 = vadd.f32 %v7633, %v8017
    %v8019 = vpop.f32.mrb[0].mxu0
    %8020 = vmatprep.mubr.f32.mxu0 %v5708
    %8021 = vmatmul.mubr.f32.gmra.mrb[0].mxu0 %v6069
    %v8022 = vpop.f32.mrb[0].mxu0
    %v8023 = vadd.f32 %v7638, %v8022
    %v8024 = vpop.f32.mrb[0].mxu0
    %8025 = vmatprep.mubr.f32.mxu0 %v5709
    %8026 = vmatmul.mubr.f32.gmra.mrb[0].mxu0 %v6070
    %v8027 = vpop.f32.mrb[0].mxu0
    %v8028 = vadd.f32 %v7643, %v8027
    %v8029 = vpop.f32.mrb[0].mxu0
    %8030 = vmatprep.mubr.f32.mxu0 %v5710
    %8031 = vmatmul.mubr.f32.gmra.mrb[0].mxu0 %v6071
    %v8032 = vpop.f32.mrb[0].mxu0
    %v8033 = vadd.f32 %v7648, %v8032
    %v8034 = vpop.f32.mrb[0].mxu0
    %8035 = vmatprep.mubr.f32.mxu0 %v5711
    %8036 = vmatmul.mubr.f32.gmra.mrb[0].mxu0 %v6072
    %v8037 = vpop.f32.mrb[0].mxu0
    %v8038 = vadd.f32 %v7653, %v8037
    %v8039 = vpop.f32.mrb[0].mxu0
    %8040 = vmatprep.mubr.f32.mxu0 %v5712
    %8041 = vmatmul.mubr.f32.gmra.mrb[0].mxu0 %v6073
    %v8042 = vpop.f32.mrb[0].mxu0
    %v8043 = vadd.f32 %v7658, %v8042
    %v8044 = vpop.f32.mrb[0].mxu0
    %8045 = vmatprep.mubr.f32.mxu0 %v5713
    %8046 = vmatmul.mubr.f32.gmra.mrb[0].mxu0 %v6074
    %v8047 = vpop.f32.mrb[0].mxu0
    %v8048 = vadd.f32 %v7663, %v8047
    %v8049 = vpop.f32.mrb[0].mxu0
    %8050 = vmatprep.mubr.f32.mxu0 %v5714
    %8051 = vmatmul.mubr.f32.gmra.mrb[0].mxu0 %v6075
    %v8052 = vpop.f32.mrb[0].mxu0
    %v8053 = vadd.f32 %v7668, %v8052
    %v8054 = vpop.f32.mrb[0].mxu0
    %8055 = vdwg.mxu0
    %8056 = vmatprep.subr.mxu0 0.0
    %8057 = vmatpush1.msra.mxu0 %v6493
    %8058 = vmatprep.subr.mxu0 0.0
    %8059 = vmatpush1.msra.mxu0 %v6494
    %8060 = vmatprep.subr.mxu0 0.0
    %8061 = vmatpush1.msra.mxu0 %v6495
    %8062 = vmatprep.subr.mxu0 0.0
    %8063 = vmatpush1.msra.mxu0 %v6496
    %8064 = vmatprep.subr.mxu0 0.0
    %8065 = vmatpush1.msra.mxu0 %v6497
    %8066 = vmatprep.subr.mxu0 0.0
    %8067 = vmatpush1.msra.mxu0 %v6498
    %8068 = vmatprep.subr.mxu0 0.0
    %8069 = vmatpush1.msra.mxu0 %v6499
    %8070 = vmatprep.subr.mxu0 0.0
    %8071 = vmatpush1.msra.mxu0 %v6500
    %8072 = vmatprep.subr.mxu0 0.0
    %8073 = vmatpush1.msra.mxu0 %v6501
    %8074 = vmatprep.subr.mxu0 0.0
    %8075 = vmatpush1.msra.mxu0 %v6502
    %8076 = vmatprep.subr.mxu0 0.0
    %8077 = vmatpush1.msra.mxu0 %v6503
    %8078 = vmatprep.subr.mxu0 0.0
    %8079 = vmatpush1.msra.mxu0 %v6504
    %8080 = vmatprep.subr.mxu0 0.0
    %8081 = vmatpush1.msra.mxu0 %v6505
    %8082 = vmatprep.subr.mxu0 0.0
    %8083 = vmatpush1.msra.mxu0 %v6506
    %8084 = vmatprep.subr.mxu0 0.0
    %8085 = vmatpush1.msra.mxu0 %v6507
    %8086 = vmatprep.subr.mxu0 0.0
    %8087 = vmatpush1.msra.mxu0 %v6508
    %8088 = vmatprep.subr.mxu0 0.0
    %8089 = vmatpush1.msra.mxu0 0.0
    %8090 = vmatprep.subr.mxu0 0.0
    %8091 = vmatpush1.msra.mxu0 0.0
    %8092 = vmatprep.subr.mxu0 0.0
    %8093 = vmatpush1.msra.mxu0 0.0
    %8094 = vmatprep.subr.mxu0 0.0
    %8095 = vmatpush1.msra.mxu0 0.0
    %8096 = vmatprep.subr.mxu0 0.0
    %8097 = vmatpush1.msra.mxu0 0.0
    %8098 = vmatprep.subr.mxu0 0.0
    %8099 = vmatpush1.msra.mxu0 0.0
    %8100 = vmatprep.subr.mxu0 0.0
    %8101 = vmatpush1.msra.mxu0 0.0
    %8102 = vmatprep.subr.mxu0 0.0
    %8103 = vmatpush1.msra.mxu0 0.0
    %8104 = vmatprep.subr.mxu0 0.0
    %8105 = vmatpush1.msra.mxu0 0.0
    %8106 = vmatprep.subr.mxu0 0.0
    %8107 = vmatpush1.msra.mxu0 0.0
    %8108 = vmatprep.subr.mxu0 0.0
    %8109 = vmatpush1.msra.mxu0 0.0
    %8110 = vmatprep.subr.mxu0 0.0
    %8111 = vmatpush1.msra.mxu0 0.0
    %8112 = vmatprep.subr.mxu0 0.0
    %8113 = vmatpush1.msra.mxu0 0.0
    %8114 = vmatprep.subr.mxu0 0.0
    %8115 = vmatpush1.msra.mxu0 0.0
    %8116 = vmatprep.subr.mxu0 0.0
    %8117 = vmatpush1.msra.mxu0 0.0
    %8118 = vmatprep.subr.mxu0 0.0
    %8119 = vmatpush1.msra.mxu0 0.0
    %8120 = vmatprep.mubr.f32.mxu0 0.0
    %8121 = vmatmul.mubr.f32.gmra.mrb[0].mxu0 %v6297
    %v8122 = vpop.f32.mrb[0].mxu0
    %v8123 = vadd.f32 %v7738, %v8122
    %v8124 = vpop.f32.mrb[0].mxu0
    %8125 = vmatprep.mubr.f32.mxu0 0.0
    %8126 = vmatmul.mubr.f32.gmra.mrb[0].mxu0 %v6298
    %v8127 = vpop.f32.mrb[0].mxu0
    %v8128 = vadd.f32 %v7743, %v8127
    %v8129 = vpop.f32.mrb[0].mxu0
    %8130 = vmatprep.mubr.f32.mxu0 0.0
    %8131 = vmatmul.mubr.f32.gmra.mrb[0].mxu0 %v6299
    %v8132 = vpop.f32.mrb[0].mxu0
    %v8133 = vadd.f32 %v7748, %v8132
    %v8134 = vpop.f32.mrb[0].mxu0
    %8135 = vmatprep.mubr.f32.mxu0 0.0
    %8136 = vmatmul.mubr.f32.gmra.mrb[0].mxu0 %v6300
    %v8137 = vpop.f32.mrb[0].mxu0
    %v8138 = vadd.f32 %v7753, %v8137
    %v8139 = vpop.f32.mrb[0].mxu0
    %8140 = vmatprep.mubr.f32.mxu0 0.0
    %8141 = vmatmul.mubr.f32.gmra.mrb[0].mxu0 %v6301
    %v8142 = vpop.f32.mrb[0].mxu0
    %v8143 = vadd.f32 %v7758, %v8142
    %v8144 = vpop.f32.mrb[0].mxu0
    %8145 = vmatprep.mubr.f32.mxu0 0.0
    %8146 = vmatmul.mubr.f32.gmra.mrb[0].mxu0 %v6302
    %v8147 = vpop.f32.mrb[0].mxu0
    %v8148 = vadd.f32 %v7763, %v8147
    %v8149 = vpop.f32.mrb[0].mxu0
    %8150 = vmatprep.mubr.f32.mxu0 0.0
    %8151 = vmatmul.mubr.f32.gmra.mrb[0].mxu0 %v6303
    %v8152 = vpop.f32.mrb[0].mxu0
    %v8153 = vadd.f32 %v7768, %v8152
    %v8154 = vpop.f32.mrb[0].mxu0
    %8155 = vmatprep.mubr.f32.mxu0 0.0
    %8156 = vmatmul.mubr.f32.gmra.mrb[0].mxu0 %v6304
    %v8157 = vpop.f32.mrb[0].mxu0
    %v8158 = vadd.f32 %v7773, %v8157
    %v8159 = vpop.f32.mrb[0].mxu0
    %8160 = vmatprep.mubr.f32.mxu0 0.0
    %8161 = vmatmul.mubr.f32.gmra.mrb[0].mxu0 %v6305
    %v8162 = vpop.f32.mrb[0].mxu0
    %v8163 = vadd.f32 %v7778, %v8162
    %v8164 = vpop.f32.mrb[0].mxu0
    %8165 = vmatprep.mubr.f32.mxu0 0.0
    %8166 = vmatmul.mubr.f32.gmra.mrb[0].mxu0 %v6306
    %v8167 = vpop.f32.mrb[0].mxu0
    %v8168 = vadd.f32 %v7783, %v8167
    %v8169 = vpop.f32.mrb[0].mxu0
    %8170 = vmatprep.mubr.f32.mxu0 0.0
    %8171 = vmatmul.mubr.f32.gmra.mrb[0].mxu0 %v6307
    %v8172 = vpop.f32.mrb[0].mxu0
    %v8173 = vadd.f32 %v7788, %v8172
    %v8174 = vpop.f32.mrb[0].mxu0
    %8175 = vmatprep.mubr.f32.mxu0 0.0
    %8176 = vmatmul.mubr.f32.gmra.mrb[0].mxu0 %v6308
    %v8177 = vpop.f32.mrb[0].mxu0
    %v8178 = vadd.f32 %v7793, %v8177
    %v8179 = vpop.f32.mrb[0].mxu0
    %8180 = vmatprep.mubr.f32.mxu0 0.0
    %8181 = vmatmul.mubr.f32.gmra.mrb[0].mxu0 %v6309
    %v8182 = vpop.f32.mrb[0].mxu0
    %v8183 = vadd.f32 %v7798, %v8182
    %v8184 = vpop.f32.mrb[0].mxu0
    %8185 = vmatprep.mubr.f32.mxu0 0.0
    %8186 = vmatmul.mubr.f32.gmra.mrb[0].mxu0 %v6310
    %v8187 = vpop.f32.mrb[0].mxu0
    %v8188 = vadd.f32 %v7803, %v8187
    %v8189 = vpop.f32.mrb[0].mxu0
    %8190 = vmatprep.mubr.f32.mxu0 0.0
    %8191 = vmatmul.mubr.f32.gmra.mrb[0].mxu0 %v6311
    %v8192 = vpop.f32.mrb[0].mxu0
    %v8193 = vadd.f32 %v7808, %v8192
    %v8194 = vpop.f32.mrb[0].mxu0
    %8195 = vmatprep.mubr.f32.mxu0 0.0
    %8196 = vmatmul.mubr.f32.gmra.mrb[0].mxu0 %v6312
    %v8197 = vpop.f32.mrb[0].mxu0
    %v8198 = vadd.f32 %v7813, %v8197
    %v8199 = vpop.f32.mrb[0].mxu0
    %8200 = vmatprep.mubr.f32.mxu0 0.0
    %8201 = vmatmul.mubr.f32.gmra.mrb[0].mxu0 %v6313
    %v8202 = vpop.f32.mrb[0].mxu0
    %v8203 = vadd.f32 %v7818, %v8202
    %v8204 = vpop.f32.mrb[0].mxu0
    %8205 = vmatprep.mubr.f32.mxu0 0.0
    %8206 = vmatmul.mubr.f32.gmra.mrb[0].mxu0 %v6314
    %v8207 = vpop.f32.mrb[0].mxu0
    %v8208 = vadd.f32 %v7823, %v8207
    %v8209 = vpop.f32.mrb[0].mxu0
    %8210 = vmatprep.mubr.f32.mxu0 0.0
    %8211 = vmatmul.mubr.f32.gmra.mrb[0].mxu0 %v6315
    %v8212 = vpop.f32.mrb[0].mxu0
    %v8213 = vadd.f32 %v7828, %v8212
    %v8214 = vpop.f32.mrb[0].mxu0
    %8215 = vmatprep.mubr.f32.mxu0 0.0
    %8216 = vmatmul.mubr.f32.gmra.mrb[0].mxu0 %v6316
    %v8217 = vpop.f32.mrb[0].mxu0
    %v8218 = vadd.f32 %v7833, %v8217
    %v8219 = vpop.f32.mrb[0].mxu0
    %8220 = vmatprep.mubr.f32.mxu0 0.0
    %8221 = vmatmul.mubr.f32.gmra.mrb[0].mxu0 %v6317
    %v8222 = vpop.f32.mrb[0].mxu0
    %v8223 = vadd.f32 %v7838, %v8222
    %v8224 = vpop.f32.mrb[0].mxu0
    %8225 = vmatprep.mubr.f32.mxu0 0.0
    %8226 = vmatmul.mubr.f32.gmra.mrb[0].mxu0 %v6318
    %v8227 = vpop.f32.mrb[0].mxu0
    %v8228 = vadd.f32 %v7843, %v8227
    %v8229 = vpop.f32.mrb[0].mxu0
    %8230 = vmatprep.mubr.f32.mxu0 0.0
    %8231 = vmatmul.mubr.f32.gmra.mrb[0].mxu0 %v6319
    %v8232 = vpop.f32.mrb[0].mxu0
    %v8233 = vadd.f32 %v7848, %v8232
    %v8234 = vpop.f32.mrb[0].mxu0
    %8235 = vmatprep.mubr.f32.mxu0 0.0
    %8236 = vmatmul.mubr.f32.gmra.mrb[0].mxu0 %v6320
    %v8237 = vpop.f32.mrb[0].mxu0
    %v8238 = vadd.f32 %v7853, %v8237
    %v8239 = vpop.f32.mrb[0].mxu0
    %8240 = vmatprep.mubr.f32.mxu0 0.0
    %8241 = vmatmul.mubr.f32.gmra.mrb[0].mxu0 %v6321
    %v8242 = vpop.f32.mrb[0].mxu0
    %v8243 = vadd.f32 %v7858, %v8242
    %v8244 = vpop.f32.mrb[0].mxu0
    %8245 = vmatprep.mubr.f32.mxu0 0.0
    %8246 = vmatmul.mubr.f32.gmra.mrb[0].mxu0 %v6322
    %v8247 = vpop.f32.mrb[0].mxu0
    %v8248 = vadd.f32 %v7863, %v8247
    %v8249 = vpop.f32.mrb[0].mxu0
    %8250 = vmatprep.mubr.f32.mxu0 0.0
    %8251 = vmatmul.mubr.f32.gmra.mrb[0].mxu0 %v6323
    %v8252 = vpop.f32.mrb[0].mxu0
    %v8253 = vadd.f32 %v7868, %v8252
    %v8254 = vpop.f32.mrb[0].mxu0
    %8255 = vmatprep.mubr.f32.mxu0 0.0
    %8256 = vmatmul.mubr.f32.gmra.mrb[0].mxu0 %v6324
    %v8257 = vpop.f32.mrb[0].mxu0
    %v8258 = vadd.f32 %v7873, %v8257
    %v8259 = vpop.f32.mrb[0].mxu0
    %8260 = vmatprep.mubr.f32.mxu0 0.0
    %8261 = vmatmul.mubr.f32.gmra.mrb[0].mxu0 %v6325
    %v8262 = vpop.f32.mrb[0].mxu0
    %v8263 = vadd.f32 %v7878, %v8262
    %v8264 = vpop.f32.mrb[0].mxu0
    %8265 = vmatprep.mubr.f32.mxu0 0.0
    %8266 = vmatmul.mubr.f32.gmra.mrb[0].mxu0 %v6326
    %v8267 = vpop.f32.mrb[0].mxu0
    %v8268 = vadd.f32 %v7883, %v8267
    %v8269 = vpop.f32.mrb[0].mxu0
    %8270 = vmatprep.mubr.f32.mxu0 0.0
    %8271 = vmatmul.mubr.f32.gmra.mrb[0].mxu0 %v6327
    %v8272 = vpop.f32.mrb[0].mxu0
    %v8273 = vadd.f32 %v7888, %v8272
    %v8274 = vpop.f32.mrb[0].mxu0
    %8275 = vmatprep.mubr.f32.mxu0 0.0
    %8276 = vmatmul.mubr.f32.gmra.mrb[0].mxu0 %v6328
    %v8277 = vpop.f32.mrb[0].mxu0
    %v8278 = vadd.f32 %v7893, %v8277
    %v8279 = vpop.f32.mrb[0].mxu0
    %8280 = vmatprep.mubr.f32.mxu0 0.0
    %8281 = vmatmul.mubr.f32.gmra.mrb[0].mxu0 %v6333
    %v8282 = vpop.f32.mrb[0].mxu0
    %v8283 = vadd.f32 %v7898, %v8282
    %v8284 = vpop.f32.mrb[0].mxu0
    %8285 = vmatprep.mubr.f32.mxu0 0.0
    %8286 = vmatmul.mubr.f32.gmra.mrb[0].mxu0 %v6334
    %v8287 = vpop.f32.mrb[0].mxu0
    %v8288 = vadd.f32 %v7903, %v8287
    %v8289 = vpop.f32.mrb[0].mxu0
    %8290 = vmatprep.mubr.f32.mxu0 0.0
    %8291 = vmatmul.mubr.f32.gmra.mrb[0].mxu0 %v6335
    %v8292 = vpop.f32.mrb[0].mxu0
    %v8293 = vadd.f32 %v7908, %v8292
    %v8294 = vpop.f32.mrb[0].mxu0
    %8295 = vmatprep.mubr.f32.mxu0 0.0
    %8296 = vmatmul.mubr.f32.gmra.mrb[0].mxu0 %v6336
    %v8297 = vpop.f32.mrb[0].mxu0
    %v8298 = vadd.f32 %v7913, %v8297
    %v8299 = vpop.f32.mrb[0].mxu0
    %8300 = vmatprep.mubr.f32.mxu0 0.0
    %8301 = vmatmul.mubr.f32.gmra.mrb[0].mxu0 %v6337
    %v8302 = vpop.f32.mrb[0].mxu0
    %v8303 = vadd.f32 %v7918, %v8302
    %v8304 = vpop.f32.mrb[0].mxu0
    %8305 = vmatprep.mubr.f32.mxu0 0.0
    %8306 = vmatmul.mubr.f32.gmra.mrb[0].mxu0 %v6338
    %v8307 = vpop.f32.mrb[0].mxu0
    %v8308 = vadd.f32 %v7923, %v8307
    %v8309 = vpop.f32.mrb[0].mxu0
    %8310 = vmatprep.mubr.f32.mxu0 0.0
    %8311 = vmatmul.mubr.f32.gmra.mrb[0].mxu0 %v6339
    %v8312 = vpop.f32.mrb[0].mxu0
    %v8313 = vadd.f32 %v7928, %v8312
    %v8314 = vpop.f32.mrb[0].mxu0
    %8315 = vmatprep.mubr.f32.mxu0 0.0
    %8316 = vmatmul.mubr.f32.gmra.mrb[0].mxu0 %v6340
    %v8317 = vpop.f32.mrb[0].mxu0
    %v8318 = vadd.f32 %v7933, %v8317
    %v8319 = vpop.f32.mrb[0].mxu0
    %8320 = vmatprep.mubr.f32.mxu0 0.0
    %8321 = vmatmul.mubr.f32.gmra.mrb[0].mxu0 %v6341
    %v8322 = vpop.f32.mrb[0].mxu0
    %v8323 = vadd.f32 %v7938, %v8322
    %v8324 = vpop.f32.mrb[0].mxu0
    %8325 = vmatprep.mubr.f32.mxu0 0.0
    %8326 = vmatmul.mubr.f32.gmra.mrb[0].mxu0 %v6342
    %v8327 = vpop.f32.mrb[0].mxu0
    %v8328 = vadd.f32 %v7943, %v8327
    %v8329 = vpop.f32.mrb[0].mxu0
    %8330 = vmatprep.mubr.f32.mxu0 0.0
    %8331 = vmatmul.mubr.f32.gmra.mrb[0].mxu0 %v6343
    %v8332 = vpop.f32.mrb[0].mxu0
    %v8333 = vadd.f32 %v7948, %v8332
    %v8334 = vpop.f32.mrb[0].mxu0
    %8335 = vmatprep.mubr.f32.mxu0 0.0
    %8336 = vmatmul.mubr.f32.gmra.mrb[0].mxu0 %v6344
    %v8337 = vpop.f32.mrb[0].mxu0
    %v8338 = vadd.f32 %v7953, %v8337
    %v8339 = vpop.f32.mrb[0].mxu0
    %8340 = vmatprep.mubr.f32.mxu0 0.0
    %8341 = vmatmul.mubr.f32.gmra.mrb[0].mxu0 %v6345
    %v8342 = vpop.f32.mrb[0].mxu0
    %v8343 = vadd.f32 %v7958, %v8342
    %v8344 = vpop.f32.mrb[0].mxu0
    %8345 = vmatprep.mubr.f32.mxu0 0.0
    %8346 = vmatmul.mubr.f32.gmra.mrb[0].mxu0 %v6346
    %v8347 = vpop.f32.mrb[0].mxu0
    %v8348 = vadd.f32 %v7963, %v8347
    %v8349 = vpop.f32.mrb[0].mxu0
    %8350 = vmatprep.mubr.f32.mxu0 0.0
    %8351 = vmatmul.mubr.f32.gmra.mrb[0].mxu0 %v6347
    %v8352 = vpop.f32.mrb[0].mxu0
    %v8353 = vadd.f32 %v7968, %v8352
    %v8354 = vpop.f32.mrb[0].mxu0
    %8355 = vmatprep.mubr.f32.mxu0 0.0
    %8356 = vmatmul.mubr.f32.gmra.mrb[0].mxu0 %v6348
    %v8357 = vpop.f32.mrb[0].mxu0
    %v8358 = vadd.f32 %v7973, %v8357
    %v8359 = vpop.f32.mrb[0].mxu0
    %8360 = vmatprep.mubr.f32.mxu0 0.0
    %8361 = vmatmul.mubr.f32.gmra.mrb[0].mxu0 %v6349
    %v8362 = vpop.f32.mrb[0].mxu0
    %v8363 = vadd.f32 %v7978, %v8362
    %v8364 = vpop.f32.mrb[0].mxu0
    %8365 = vmatprep.mubr.f32.mxu0 0.0
    %8366 = vmatmul.mubr.f32.gmra.mrb[0].mxu0 %v6350
    %v8367 = vpop.f32.mrb[0].mxu0
    %v8368 = vadd.f32 %v7983, %v8367
    %v8369 = vpop.f32.mrb[0].mxu0
    %8370 = vmatprep.mubr.f32.mxu0 0.0
    %8371 = vmatmul.mubr.f32.gmra.mrb[0].mxu0 %v6351
    %v8372 = vpop.f32.mrb[0].mxu0
    %v8373 = vadd.f32 %v7988, %v8372
    %v8374 = vpop.f32.mrb[0].mxu0
    %8375 = vmatprep.mubr.f32.mxu0 0.0
    %8376 = vmatmul.mubr.f32.gmra.mrb[0].mxu0 %v6352
    %v8377 = vpop.f32.mrb[0].mxu0
    %v8378 = vadd.f32 %v7993, %v8377
    %v8379 = vpop.f32.mrb[0].mxu0
    %8380 = vmatprep.mubr.f32.mxu0 0.0
    %8381 = vmatmul.mubr.f32.gmra.mrb[0].mxu0 %v6353
    %v8382 = vpop.f32.mrb[0].mxu0
    %v8383 = vadd.f32 %v7998, %v8382
    %v8384 = vpop.f32.mrb[0].mxu0
    %8385 = vmatprep.mubr.f32.mxu0 0.0
    %8386 = vmatmul.mubr.f32.gmra.mrb[0].mxu0 %v6354
    %v8387 = vpop.f32.mrb[0].mxu0
    %v8388 = vadd.f32 %v8003, %v8387
    %v8389 = vpop.f32.mrb[0].mxu0
    %8390 = vmatprep.mubr.f32.mxu0 0.0
    %8391 = vmatmul.mubr.f32.gmra.mrb[0].mxu0 %v6355
    %v8392 = vpop.f32.mrb[0].mxu0
    %v8393 = vadd.f32 %v8008, %v8392
    %v8394 = vpop.f32.mrb[0].mxu0
    %8395 = vmatprep.mubr.f32.mxu0 0.0
    %8396 = vmatmul.mubr.f32.gmra.mrb[0].mxu0 %v6356
    %v8397 = vpop.f32.mrb[0].mxu0
    %v8398 = vadd.f32 %v8013, %v8397
    %v8399 = vpop.f32.mrb[0].mxu0
    %8400 = vmatprep.mubr.f32.mxu0 0.0
    %8401 = vmatmul.mubr.f32.gmra.mrb[0].mxu0 %v6357
    %v8402 = vpop.f32.mrb[0].mxu0
    %v8403 = vadd.f32 %v8018, %v8402
    %v8404 = vpop.f32.mrb[0].mxu0
    %8405 = vmatprep.mubr.f32.mxu0 0.0
    %8406 = vmatmul.mubr.f32.gmra.mrb[0].mxu0 %v6358
    %v8407 = vpop.f32.mrb[0].mxu0
    %v8408 = vadd.f32 %v8023, %v8407
    %v8409 = vpop.f32.mrb[0].mxu0
    %8410 = vmatprep.mubr.f32.mxu0 0.0
    %8411 = vmatmul.mubr.f32.gmra.mrb[0].mxu0 %v6359
    %v8412 = vpop.f32.mrb[0].mxu0
    %v8413 = vadd.f32 %v8028, %v8412
    %v8414 = vpop.f32.mrb[0].mxu0
    %8415 = vmatprep.mubr.f32.mxu0 0.0
    %8416 = vmatmul.mubr.f32.gmra.mrb[0].mxu0 %v6360
    %v8417 = vpop.f32.mrb[0].mxu0
    %v8418 = vadd.f32 %v8033, %v8417
    %v8419 = vpop.f32.mrb[0].mxu0
    %8420 = vmatprep.mubr.f32.mxu0 0.0
    %8421 = vmatmul.mubr.f32.gmra.mrb[0].mxu0 %v6361
    %v8422 = vpop.f32.mrb[0].mxu0
    %v8423 = vadd.f32 %v8038, %v8422
    %v8424 = vpop.f32.mrb[0].mxu0
    %8425 = vmatprep.mubr.f32.mxu0 0.0
    %8426 = vmatmul.mubr.f32.gmra.mrb[0].mxu0 %v6362
    %v8427 = vpop.f32.mrb[0].mxu0
    %v8428 = vadd.f32 %v8043, %v8427
    %v8429 = vpop.f32.mrb[0].mxu0
    %8430 = vmatprep.mubr.f32.mxu0 0.0
    %8431 = vmatmul.mubr.f32.gmra.mrb[0].mxu0 %v6363
    %v8432 = vpop.f32.mrb[0].mxu0
    %v8433 = vadd.f32 %v8048, %v8432
    %v8434 = vpop.f32.mrb[0].mxu0
    %8435 = vmatprep.mubr.f32.mxu0 0.0
    %8436 = vmatmul.mubr.f32.gmra.mrb[0].mxu0 %v6364
    %v8437 = vpop.f32.mrb[0].mxu0
    %v8438 = vadd.f32 %v8053, %v8437
    %v8439 = vpop.f32.mrb[0].mxu0
    %8440 = vdwg.mxu0
    %v8441 = vadd.f32 %v8123, %v8128
    %v8442 = vadd.f32 %v8441, %v8133
    %v8443 = vadd.f32 %v8442, %v8138
    %v8444 = vadd.f32 %v8443, %v8143
    %v8445 = vadd.f32 %v8444, %v8148
    %v8446 = vadd.f32 %v8445, %v8153
    %v8447 = vadd.f32 %v8446, %v8158
    %v8448 = vadd.f32 %v8447, %v8163
    %v8449 = vadd.f32 %v8448, %v8168
    %v8450 = vadd.f32 %v8449, %v8173
    %v8451 = vadd.f32 %v8450, %v8178
    %v8452 = vadd.f32 %v8451, %v8183
    %v8453 = vadd.f32 %v8452, %v8188
    %v8454 = vadd.f32 %v8453, %v8193
    %v8455 = vadd.f32 %v8454, %v8198
    %v8456 = vadd.f32 %v8455, %v8203
    %v8457 = vadd.f32 %v8456, %v8208
    %v8458 = vadd.f32 %v8457, %v8213
    %v8459 = vadd.f32 %v8458, %v8218
    %v8460 = vadd.f32 %v8459, %v8223
    %v8461 = vadd.f32 %v8460, %v8228
    %v8462 = vadd.f32 %v8461, %v8233
    %v8463 = vadd.f32 %v8462, %v8238
    %v8464 = vadd.f32 %v8463, %v8243
    %v8465 = vadd.f32 %v8464, %v8248
    %v8466 = vadd.f32 %v8465, %v8253
    %v8467 = vadd.f32 %v8466, %v8258
    %v8468 = vadd.f32 %v8467, %v8263
    %v8469 = vadd.f32 %v8468, %v8268
    %v8470 = vadd.f32 %v8469, %v8273
    %v8471 = vadd.f32 %v8470, %v8278
    %v8472 = vadd.f32 %v8471, %v8283
    %v8473 = vadd.f32 %v8472, %v8288
    %v8474 = vadd.f32 %v8473, %v8293
    %v8475 = vadd.f32 %v8474, %v8298
    %v8476 = vadd.f32 %v8475, %v8303
    %v8477 = vadd.f32 %v8476, %v8308
    %v8478 = vadd.f32 %v8477, %v8313
    %v8479 = vadd.f32 %v8478, %v8318
    %v8480 = vadd.f32 %v8479, %v8323
    %v8481 = vadd.f32 %v8480, %v8328
    %v8482 = vadd.f32 %v8481, %v8333
    %v8483 = vadd.f32 %v8482, %v8338
    %v8484 = vadd.f32 %v8483, %v8343
    %v8485 = vadd.f32 %v8484, %v8348
    %v8486 = vadd.f32 %v8485, %v8353
    %v8487 = vadd.f32 %v8486, %v8358
    %v8488 = vadd.f32 %v8487, %v8363
    %v8489 = vadd.f32 %v8488, %v8368
    %v8490 = vadd.f32 %v8489, %v8373
    %v8491 = vadd.f32 %v8490, %v8378
    %v8492 = vadd.f32 %v8491, %v8383
    %v8493 = vadd.f32 %v8492, %v8388
    %v8494 = vadd.f32 %v8493, %v8393
    %v8495 = vadd.f32 %v8494, %v8398
    %v8496 = vadd.f32 %v8495, %v8403
    %v8497 = vadd.f32 %v8496, %v8408
    %v8498 = vadd.f32 %v8497, %v8413
    %v8499 = vadd.f32 %v8498, %v8418
    %v8500 = vadd.f32 %v8499, %v8423
    %v8501 = vadd.f32 %v8500, %v8428
    %v8502 = vadd.f32 %v8501, %v8433
    %v8503 = vadd.f32 %v8502, %v8438
    %v8504 = vrot.slane %v8503, 4
    %v8505 = vadd.f32 %v8503, %v8504
    %v8506 = vrot.slane %v8505, 2
    %v8507 = vadd.f32 %v8505, %v8506
    %v8508 = vrot.slane %v8507, 1
    %v8509 = vadd.f32 %v8507, %v8508
    %v8510 = vmul.f32 %v8123, %v8123
    %v8511 = vmul.f32 %v8128, %v8128
    %v8512 = vmul.f32 %v8133, %v8133
    %v8513 = vmul.f32 %v8138, %v8138
    %v8514 = vmul.f32 %v8143, %v8143
    %v8515 = vmul.f32 %v8148, %v8148
    %v8516 = vmul.f32 %v8153, %v8153
    %v8517 = vmul.f32 %v8158, %v8158
    %v8518 = vmul.f32 %v8163, %v8163
    %v8519 = vmul.f32 %v8168, %v8168
    %v8520 = vmul.f32 %v8173, %v8173
    %v8521 = vmul.f32 %v8178, %v8178
    %v8522 = vmul.f32 %v8183, %v8183
    %v8523 = vmul.f32 %v8188, %v8188
    %v8524 = vmul.f32 %v8193, %v8193
    %v8525 = vmul.f32 %v8198, %v8198
    %v8526 = vmul.f32 %v8203, %v8203
    %v8527 = vmul.f32 %v8208, %v8208
    %v8528 = vmul.f32 %v8213, %v8213
    %v8529 = vmul.f32 %v8218, %v8218
    %v8530 = vmul.f32 %v8223, %v8223
    %v8531 = vmul.f32 %v8228, %v8228
    %v8532 = vmul.f32 %v8233, %v8233
    %v8533 = vmul.f32 %v8238, %v8238
    %v8534 = vmul.f32 %v8243, %v8243
    %v8535 = vmul.f32 %v8248, %v8248
    %v8536 = vmul.f32 %v8253, %v8253
    %v8537 = vmul.f32 %v8258, %v8258
    %v8538 = vmul.f32 %v8263, %v8263
    %v8539 = vmul.f32 %v8268, %v8268
    %v8540 = vmul.f32 %v8273, %v8273
    %v8541 = vmul.f32 %v8278, %v8278
    %v8542 = vmul.f32 %v8283, %v8283
    %v8543 = vmul.f32 %v8288, %v8288
    %v8544 = vmul.f32 %v8293, %v8293
    %v8545 = vmul.f32 %v8298, %v8298
    %v8546 = vmul.f32 %v8303, %v8303
    %v8547 = vmul.f32 %v8308, %v8308
    %v8548 = vmul.f32 %v8313, %v8313
    %v8549 = vmul.f32 %v8318, %v8318
    %v8550 = vmul.f32 %v8323, %v8323
    %v8551 = vmul.f32 %v8328, %v8328
    %v8552 = vmul.f32 %v8333, %v8333
    %v8553 = vmul.f32 %v8338, %v8338
    %v8554 = vmul.f32 %v8343, %v8343
    %v8555 = vmul.f32 %v8348, %v8348
    %v8556 = vmul.f32 %v8353, %v8353
    %v8557 = vmul.f32 %v8358, %v8358
    %v8558 = vmul.f32 %v8363, %v8363
    %v8559 = vmul.f32 %v8368, %v8368
    %v8560 = vmul.f32 %v8373, %v8373
    %v8561 = vmul.f32 %v8378, %v8378
    %v8562 = vmul.f32 %v8383, %v8383
    %v8563 = vmul.f32 %v8388, %v8388
    %v8564 = vmul.f32 %v8393, %v8393
    %v8565 = vmul.f32 %v8398, %v8398
    %v8566 = vmul.f32 %v8403, %v8403
    %v8567 = vmul.f32 %v8408, %v8408
    %v8568 = vmul.f32 %v8413, %v8413
    %v8569 = vmul.f32 %v8418, %v8418
    %v8570 = vmul.f32 %v8423, %v8423
    %v8571 = vmul.f32 %v8428, %v8428
    %v8572 = vmul.f32 %v8433, %v8433
    %v8573 = vmul.f32 %v8438, %v8438
    %v8574 = vadd.f32 %v8510, %v8511
    %v8575 = vadd.f32 %v8574, %v8512
    %v8576 = vadd.f32 %v8575, %v8513
    %v8577 = vadd.f32 %v8576, %v8514
    %v8578 = vadd.f32 %v8577, %v8515
    %v8579 = vadd.f32 %v8578, %v8516
    %v8580 = vadd.f32 %v8579, %v8517
    %v8581 = vadd.f32 %v8580, %v8518
    %v8582 = vadd.f32 %v8581, %v8519
    %v8583 = vadd.f32 %v8582, %v8520
    %v8584 = vadd.f32 %v8583, %v8521
    %v8585 = vadd.f32 %v8584, %v8522
    %v8586 = vadd.f32 %v8585, %v8523
    %v8587 = vadd.f32 %v8586, %v8524
    %v8588 = vadd.f32 %v8587, %v8525
    %v8589 = vadd.f32 %v8588, %v8526
    %v8590 = vadd.f32 %v8589, %v8527
    %v8591 = vadd.f32 %v8590, %v8528
    %v8592 = vadd.f32 %v8591, %v8529
    %v8593 = vadd.f32 %v8592, %v8530
    %v8594 = vadd.f32 %v8593, %v8531
    %v8595 = vadd.f32 %v8594, %v8532
    %v8596 = vadd.f32 %v8595, %v8533
    %v8597 = vadd.f32 %v8596, %v8534
    %v8598 = vadd.f32 %v8597, %v8535
    %v8599 = vadd.f32 %v8598, %v8536
    %v8600 = vadd.f32 %v8599, %v8537
    %v8601 = vadd.f32 %v8600, %v8538
    %v8602 = vadd.f32 %v8601, %v8539
    %v8603 = vadd.f32 %v8602, %v8540
    %v8604 = vadd.f32 %v8603, %v8541
    %v8605 = vadd.f32 %v8604, %v8542
    %v8606 = vadd.f32 %v8605, %v8543
    %v8607 = vadd.f32 %v8606, %v8544
    %v8608 = vadd.f32 %v8607, %v8545
    %v8609 = vadd.f32 %v8608, %v8546
    %v8610 = vadd.f32 %v8609, %v8547
    %v8611 = vadd.f32 %v8610, %v8548
    %v8612 = vadd.f32 %v8611, %v8549
    %v8613 = vadd.f32 %v8612, %v8550
    %v8614 = vadd.f32 %v8613, %v8551
    %v8615 = vadd.f32 %v8614, %v8552
    %v8616 = vadd.f32 %v8615, %v8553
    %v8617 = vadd.f32 %v8616, %v8554
    %v8618 = vadd.f32 %v8617, %v8555
    %v8619 = vadd.f32 %v8618, %v8556
    %v8620 = vadd.f32 %v8619, %v8557
    %v8621 = vadd.f32 %v8620, %v8558
    %v8622 = vadd.f32 %v8621, %v8559
    %v8623 = vadd.f32 %v8622, %v8560
    %v8624 = vadd.f32 %v8623, %v8561
    %v8625 = vadd.f32 %v8624, %v8562
    %v8626 = vadd.f32 %v8625, %v8563
    %v8627 = vadd.f32 %v8626, %v8564
    %v8628 = vadd.f32 %v8627, %v8565
    %v8629 = vadd.f32 %v8628, %v8566
    %v8630 = vadd.f32 %v8629, %v8567
    %v8631 = vadd.f32 %v8630, %v8568
    %v8632 = vadd.f32 %v8631, %v8569
    %v8633 = vadd.f32 %v8632, %v8570
    %v8634 = vadd.f32 %v8633, %v8571
    %v8635 = vadd.f32 %v8634, %v8572
    %v8636 = vadd.f32 %v8635, %v8573
    %v8637 = vrot.slane %v8636, 4
    %v8638 = vadd.f32 %v8636, %v8637
    %v8639 = vrot.slane %v8638, 2
    %v8640 = vadd.f32 %v8638, %v8639
    %v8641 = vrot.slane %v8640, 1
    %v8642 = vadd.f32 %v8640, %v8641
    %v8643 = vmul.f32 %v8509, 0.001953125
    %v8644 = vmul.f32 %v8642, 0.001953125
    %v8645 = vmul.f32 %v8643, %v8643
    %v8646 = vsub.f32 %v8644, %v8645
    %v8647 = vmax.f32 %v8646, 0.0
    %v8648 = vadd.f32 %v8647, 1e-05
    %v8649 = vrsqrt.pop %v8648
    %v8650 = vld [vmem:[%s7] sm:$0x1]
    %v8651 = vmul.f32 %v8649, %v8650
    %v8652 = vsub.f32 %v8123, %v8643
    %v8653 = vsub.f32 %v8128, %v8643
    %v8654 = vsub.f32 %v8133, %v8643
    %v8655 = vsub.f32 %v8138, %v8643
    %v8656 = vsub.f32 %v8143, %v8643
    %v8657 = vsub.f32 %v8148, %v8643
    %v8658 = vsub.f32 %v8153, %v8643
    %v8659 = vsub.f32 %v8158, %v8643
    %v8660 = vsub.f32 %v8163, %v8643
    %v8661 = vsub.f32 %v8168, %v8643
    %v8662 = vsub.f32 %v8173, %v8643
    %v8663 = vsub.f32 %v8178, %v8643
    %v8664 = vsub.f32 %v8183, %v8643
    %v8665 = vsub.f32 %v8188, %v8643
    %v8666 = vsub.f32 %v8193, %v8643
    %v8667 = vsub.f32 %v8198, %v8643
    %v8668 = vsub.f32 %v8203, %v8643
    %v8669 = vsub.f32 %v8208, %v8643
    %v8670 = vsub.f32 %v8213, %v8643
    %v8671 = vsub.f32 %v8218, %v8643
    %v8672 = vsub.f32 %v8223, %v8643
    %v8673 = vsub.f32 %v8228, %v8643
    %v8674 = vsub.f32 %v8233, %v8643
    %v8675 = vsub.f32 %v8238, %v8643
    %v8676 = vsub.f32 %v8243, %v8643
    %v8677 = vsub.f32 %v8248, %v8643
    %v8678 = vsub.f32 %v8253, %v8643
    %v8679 = vsub.f32 %v8258, %v8643
    %v8680 = vsub.f32 %v8263, %v8643
    %v8681 = vsub.f32 %v8268, %v8643
    %v8682 = vsub.f32 %v8273, %v8643
    %v8683 = vsub.f32 %v8278, %v8643
    %v8684 = vsub.f32 %v8283, %v8643
    %v8685 = vsub.f32 %v8288, %v8643
    %v8686 = vsub.f32 %v8293, %v8643
    %v8687 = vsub.f32 %v8298, %v8643
    %v8688 = vsub.f32 %v8303, %v8643
    %v8689 = vsub.f32 %v8308, %v8643
    %v8690 = vsub.f32 %v8313, %v8643
    %v8691 = vsub.f32 %v8318, %v8643
    %v8692 = vsub.f32 %v8323, %v8643
    %v8693 = vsub.f32 %v8328, %v8643
    %v8694 = vsub.f32 %v8333, %v8643
    %v8695 = vsub.f32 %v8338, %v8643
    %v8696 = vsub.f32 %v8343, %v8643
    %v8697 = vsub.f32 %v8348, %v8643
    %v8698 = vsub.f32 %v8353, %v8643
    %v8699 = vsub.f32 %v8358, %v8643
    %v8700 = vsub.f32 %v8363, %v8643
    %v8701 = vsub.f32 %v8368, %v8643
    %v8702 = vsub.f32 %v8373, %v8643
    %v8703 = vsub.f32 %v8378, %v8643
    %v8704 = vsub.f32 %v8383, %v8643
    %v8705 = vsub.f32 %v8388, %v8643
    %v8706 = vsub.f32 %v8393, %v8643
    %v8707 = vsub.f32 %v8398, %v8643
    %v8708 = vsub.f32 %v8403, %v8643
    %v8709 = vsub.f32 %v8408, %v8643
    %v8710 = vsub.f32 %v8413, %v8643
    %v8711 = vsub.f32 %v8418, %v8643
    %v8712 = vsub.f32 %v8423, %v8643
    %v8713 = vsub.f32 %v8428, %v8643
    %v8714 = vsub.f32 %v8433, %v8643
    %v8715 = vsub.f32 %v8438, %v8643
    %v8716 = vlaneseq
    %v8717 = vshrl.u32 %v8716, 7
    %v8718 = vsub.s32 0, %v8717
    %v8719 = vrot.slane %v8651, %v8718
    %v8720 = vmul.f32 %v8652, %v8719
    %v8721 = vmul.f32 %v8653, %v8719
    %v8722 = vmul.f32 %v8654, %v8719
    %v8723 = vmul.f32 %v8655, %v8719
    %v8724 = vmul.f32 %v8656, %v8719
    %v8725 = vmul.f32 %v8657, %v8719
    %v8726 = vmul.f32 %v8658, %v8719
    %v8727 = vmul.f32 %v8659, %v8719
    %v8728 = vmul.f32 %v8660, %v8719
    %v8729 = vmul.f32 %v8661, %v8719
    %v8730 = vmul.f32 %v8662, %v8719
    %v8731 = vmul.f32 %v8663, %v8719
    %v8732 = vmul.f32 %v8664, %v8719
    %v8733 = vmul.f32 %v8665, %v8719
    %v8734 = vmul.f32 %v8666, %v8719
    %v8735 = vmul.f32 %v8667, %v8719
    %v8736 = vmul.f32 %v8668, %v8719
    %v8737 = vmul.f32 %v8669, %v8719
    %v8738 = vmul.f32 %v8670, %v8719
    %v8739 = vmul.f32 %v8671, %v8719
    %v8740 = vmul.f32 %v8672, %v8719
    %v8741 = vmul.f32 %v8673, %v8719
    %v8742 = vmul.f32 %v8674, %v8719
    %v8743 = vmul.f32 %v8675, %v8719
    %v8744 = vmul.f32 %v8676, %v8719
    %v8745 = vmul.f32 %v8677, %v8719
    %v8746 = vmul.f32 %v8678, %v8719
    %v8747 = vmul.f32 %v8679, %v8719
    %v8748 = vmul.f32 %v8680, %v8719
    %v8749 = vmul.f32 %v8681, %v8719
    %v8750 = vmul.f32 %v8682, %v8719
    %v8751 = vmul.f32 %v8683, %v8719
    %v8752 = vmul.f32 %v8684, %v8719
    %v8753 = vmul.f32 %v8685, %v8719
    %v8754 = vmul.f32 %v8686, %v8719
    %v8755 = vmul.f32 %v8687, %v8719
    %v8756 = vmul.f32 %v8688, %v8719
    %v8757 = vmul.f32 %v8689, %v8719
    %v8758 = vmul.f32 %v8690, %v8719
    %v8759 = vmul.f32 %v8691, %v8719
    %v8760 = vmul.f32 %v8692, %v8719
    %v8761 = vmul.f32 %v8693, %v8719
    %v8762 = vmul.f32 %v8694, %v8719
    %v8763 = vmul.f32 %v8695, %v8719
    %v8764 = vmul.f32 %v8696, %v8719
    %v8765 = vmul.f32 %v8697, %v8719
    %v8766 = vmul.f32 %v8698, %v8719
    %v8767 = vmul.f32 %v8699, %v8719
    %v8768 = vmul.f32 %v8700, %v8719
    %v8769 = vmul.f32 %v8701, %v8719
    %v8770 = vmul.f32 %v8702, %v8719
    %v8771 = vmul.f32 %v8703, %v8719
    %v8772 = vmul.f32 %v8704, %v8719
    %v8773 = vmul.f32 %v8705, %v8719
    %v8774 = vmul.f32 %v8706, %v8719
    %v8775 = vmul.f32 %v8707, %v8719
    %v8776 = vmul.f32 %v8708, %v8719
    %v8777 = vmul.f32 %v8709, %v8719
    %v8778 = vmul.f32 %v8710, %v8719
    %v8779 = vmul.f32 %v8711, %v8719
    %v8780 = vmul.f32 %v8712, %v8719
    %v8781 = vmul.f32 %v8713, %v8719
    %v8782 = vmul.f32 %v8714, %v8719
    %v8783 = vmul.f32 %v8715, %v8719
    %v8784 = vld [vmem:[%s8] sm:$0x1]
    %v8786 = vlaneseq
    %v8787 = vshrl.u32 %v8786, 7
    %v8788 = vsub.s32 0, %v8787
    %v8789 = vrot.slane %v8784, %v8788
    %v8791 = vadd.f32 %v8720, %v8789
    %v8792 = vadd.f32 %v8721, %v8789
    %v8793 = vadd.f32 %v8722, %v8789
    %v8794 = vadd.f32 %v8723, %v8789
    %v8795 = vadd.f32 %v8724, %v8789
    %v8796 = vadd.f32 %v8725, %v8789
    %v8797 = vadd.f32 %v8726, %v8789
    %v8798 = vadd.f32 %v8727, %v8789
    %v8799 = vadd.f32 %v8728, %v8789
    %v8800 = vadd.f32 %v8729, %v8789
    %v8801 = vadd.f32 %v8730, %v8789
    %v8802 = vadd.f32 %v8731, %v8789
    %v8803 = vadd.f32 %v8732, %v8789
    %v8804 = vadd.f32 %v8733, %v8789
    %v8805 = vadd.f32 %v8734, %v8789
    %v8806 = vadd.f32 %v8735, %v8789
    %v8807 = vadd.f32 %v8736, %v8789
    %v8808 = vadd.f32 %v8737, %v8789
    %v8809 = vadd.f32 %v8738, %v8789
    %v8810 = vadd.f32 %v8739, %v8789
    %v8811 = vadd.f32 %v8740, %v8789
    %v8812 = vadd.f32 %v8741, %v8789
    %v8813 = vadd.f32 %v8742, %v8789
    %v8814 = vadd.f32 %v8743, %v8789
    %v8815 = vadd.f32 %v8744, %v8789
    %v8816 = vadd.f32 %v8745, %v8789
    %v8817 = vadd.f32 %v8746, %v8789
    %v8818 = vadd.f32 %v8747, %v8789
    %v8819 = vadd.f32 %v8748, %v8789
    %v8820 = vadd.f32 %v8749, %v8789
    %v8821 = vadd.f32 %v8750, %v8789
    %v8822 = vadd.f32 %v8751, %v8789
    %v8823 = vadd.f32 %v8752, %v8789
    %v8824 = vadd.f32 %v8753, %v8789
    %v8825 = vadd.f32 %v8754, %v8789
    %v8826 = vadd.f32 %v8755, %v8789
    %v8827 = vadd.f32 %v8756, %v8789
    %v8828 = vadd.f32 %v8757, %v8789
    %v8829 = vadd.f32 %v8758, %v8789
    %v8830 = vadd.f32 %v8759, %v8789
    %v8831 = vadd.f32 %v8760, %v8789
    %v8832 = vadd.f32 %v8761, %v8789
    %v8833 = vadd.f32 %v8762, %v8789
    %v8834 = vadd.f32 %v8763, %v8789
    %v8835 = vadd.f32 %v8764, %v8789
    %v8836 = vadd.f32 %v8765, %v8789
    %v8837 = vadd.f32 %v8766, %v8789
    %v8838 = vadd.f32 %v8767, %v8789
    %v8839 = vadd.f32 %v8768, %v8789
    %v8840 = vadd.f32 %v8769, %v8789
    %v8841 = vadd.f32 %v8770, %v8789
    %v8842 = vadd.f32 %v8771, %v8789
    %v8843 = vadd.f32 %v8772, %v8789
    %v8844 = vadd.f32 %v8773, %v8789
    %v8845 = vadd.f32 %v8774, %v8789
    %v8846 = vadd.f32 %v8775, %v8789
    %v8847 = vadd.f32 %v8776, %v8789
    %v8848 = vadd.f32 %v8777, %v8789
    %v8849 = vadd.f32 %v8778, %v8789
    %v8850 = vadd.f32 %v8779, %v8789
    %v8851 = vadd.f32 %v8780, %v8789
    %v8852 = vadd.f32 %v8781, %v8789
    %v8853 = vadd.f32 %v8782, %v8789
    %v8854 = vadd.f32 %v8783, %v8789
    %v8855 = vadd.f32 %v8791, %v2951
    %v8856 = vadd.f32 %v8792, %v2952
    %v8857 = vadd.f32 %v8793, %v2953
    %v8858 = vadd.f32 %v8794, %v2954
    %v8859 = vadd.f32 %v8795, %v2955
    %v8860 = vadd.f32 %v8796, %v2956
    %v8861 = vadd.f32 %v8797, %v2957
    %v8862 = vadd.f32 %v8798, %v2958
    %v8863 = vadd.f32 %v8799, %v2959
    %v8864 = vadd.f32 %v8800, %v2960
    %v8865 = vadd.f32 %v8801, %v2961
    %v8866 = vadd.f32 %v8802, %v2962
    %v8867 = vadd.f32 %v8803, %v2963
    %v8868 = vadd.f32 %v8804, %v2964
    %v8869 = vadd.f32 %v8805, %v2965
    %v8870 = vadd.f32 %v8806, %v2966
    %v8871 = vadd.f32 %v8807, %v2967
    %v8872 = vadd.f32 %v8808, %v2968
    %v8873 = vadd.f32 %v8809, %v2969
    %v8874 = vadd.f32 %v8810, %v2970
    %v8875 = vadd.f32 %v8811, %v2971
    %v8876 = vadd.f32 %v8812, %v2972
    %v8877 = vadd.f32 %v8813, %v2973
    %v8878 = vadd.f32 %v8814, %v2974
    %v8879 = vadd.f32 %v8815, %v2975
    %v8880 = vadd.f32 %v8816, %v2976
    %v8881 = vadd.f32 %v8817, %v2977
    %v8882 = vadd.f32 %v8818, %v2978
    %v8883 = vadd.f32 %v8819, %v2979
    %v8884 = vadd.f32 %v8820, %v2980
    %v8885 = vadd.f32 %v8821, %v2981
    %v8886 = vadd.f32 %v8822, %v2982
    %v8887 = vadd.f32 %v8823, %v2983
    %v8888 = vadd.f32 %v8824, %v2984
    %v8889 = vadd.f32 %v8825, %v2985
    %v8890 = vadd.f32 %v8826, %v2986
    %v8891 = vadd.f32 %v8827, %v2987
    %v8892 = vadd.f32 %v8828, %v2988
    %v8893 = vadd.f32 %v8829, %v2989
    %v8894 = vadd.f32 %v8830, %v2990
    %v8895 = vadd.f32 %v8831, %v2991
    %v8896 = vadd.f32 %v8832, %v2992
    %v8897 = vadd.f32 %v8833, %v2993
    %v8898 = vadd.f32 %v8834, %v2994
    %v8899 = vadd.f32 %v8835, %v2995
    %v8900 = vadd.f32 %v8836, %v2996
    %v8901 = vadd.f32 %v8837, %v2997
    %v8902 = vadd.f32 %v8838, %v2998
    %v8903 = vadd.f32 %v8839, %v2999
    %v8904 = vadd.f32 %v8840, %v3000
    %v8905 = vadd.f32 %v8841, %v3001
    %v8906 = vadd.f32 %v8842, %v3002
    %v8907 = vadd.f32 %v8843, %v3003
    %v8908 = vadd.f32 %v8844, %v3004
    %v8909 = vadd.f32 %v8845, %v3005
    %v8910 = vadd.f32 %v8846, %v3006
    %v8911 = vadd.f32 %v8847, %v3007
    %v8912 = vadd.f32 %v8848, %v3008
    %v8913 = vadd.f32 %v8849, %v3009
    %v8914 = vadd.f32 %v8850, %v3010
    %v8915 = vadd.f32 %v8851, %v3011
    %v8916 = vadd.f32 %v8852, %v3012
    %v8917 = vadd.f32 %v8853, %v3013
    %v8918 = vadd.f32 %v8854, %v3014
    %v8919 = vmax.f32 %v8855, 0.0
    %v8920 = vmax.f32 %v8856, 0.0
    %v8921 = vmax.f32 %v8857, 0.0
    %v8922 = vmax.f32 %v8858, 0.0
    %v8923 = vmax.f32 %v8859, 0.0
    %v8924 = vmax.f32 %v8860, 0.0
    %v8925 = vmax.f32 %v8861, 0.0
    %v8926 = vmax.f32 %v8862, 0.0
    %v8927 = vmax.f32 %v8863, 0.0
    %v8928 = vmax.f32 %v8864, 0.0
    %v8929 = vmax.f32 %v8865, 0.0
    %v8930 = vmax.f32 %v8866, 0.0
    %v8931 = vmax.f32 %v8867, 0.0
    %v8932 = vmax.f32 %v8868, 0.0
    %v8933 = vmax.f32 %v8869, 0.0
    %v8934 = vmax.f32 %v8870, 0.0
    %v8935 = vmax.f32 %v8871, 0.0
    %v8936 = vmax.f32 %v8872, 0.0
    %v8937 = vmax.f32 %v8873, 0.0
    %v8938 = vmax.f32 %v8874, 0.0
    %v8939 = vmax.f32 %v8875, 0.0
    %v8940 = vmax.f32 %v8876, 0.0
    %v8941 = vmax.f32 %v8877, 0.0
    %v8942 = vmax.f32 %v8878, 0.0
    %v8943 = vmax.f32 %v8879, 0.0
    %v8944 = vmax.f32 %v8880, 0.0
    %v8945 = vmax.f32 %v8881, 0.0
    %v8946 = vmax.f32 %v8882, 0.0
    %v8947 = vmax.f32 %v8883, 0.0
    %v8948 = vmax.f32 %v8884, 0.0
    %v8949 = vmax.f32 %v8885, 0.0
    %v8950 = vmax.f32 %v8886, 0.0
    %v8951 = vmax.f32 %v8887, 0.0
    %v8952 = vmax.f32 %v8888, 0.0
    %v8953 = vmax.f32 %v8889, 0.0
    %v8954 = vmax.f32 %v8890, 0.0
    %v8955 = vmax.f32 %v8891, 0.0
    %v8956 = vmax.f32 %v8892, 0.0
    %v8957 = vmax.f32 %v8893, 0.0
    %v8958 = vmax.f32 %v8894, 0.0
    %v8959 = vmax.f32 %v8895, 0.0
    %v8960 = vmax.f32 %v8896, 0.0
    %v8961 = vmax.f32 %v8897, 0.0
    %v8962 = vmax.f32 %v8898, 0.0
    %v8963 = vmax.f32 %v8899, 0.0
    %v8964 = vmax.f32 %v8900, 0.0
    %v8965 = vmax.f32 %v8901, 0.0
    %v8966 = vmax.f32 %v8902, 0.0
    %v8967 = vmax.f32 %v8903, 0.0
    %v8968 = vmax.f32 %v8904, 0.0
    %v8969 = vmax.f32 %v8905, 0.0
    %v8970 = vmax.f32 %v8906, 0.0
    %v8971 = vmax.f32 %v8907, 0.0
    %v8972 = vmax.f32 %v8908, 0.0
    %v8973 = vmax.f32 %v8909, 0.0
    %v8974 = vmax.f32 %v8910, 0.0
    %v8975 = vmax.f32 %v8911, 0.0
    %v8976 = vmax.f32 %v8912, 0.0
    %v8977 = vmax.f32 %v8913, 0.0
    %v8978 = vmax.f32 %v8914, 0.0
    %v8979 = vmax.f32 %v8915, 0.0
    %v8980 = vmax.f32 %v8916, 0.0
    %v8981 = vmax.f32 %v8917, 0.0
    %v8982 = vmax.f32 %v8918, 0.0
    %8983 = vst [vmem:[#allocation11] sm:$0xff] %v8919
    %8984 = vst [vmem:[#allocation11 + $0x8] sm:$0xff] %v8920
    %8985 = vst [vmem:[#allocation11 + $0x10] sm:$0xff] %v8921
    %8986 = vst [vmem:[#allocation11 + $0x18] sm:$0xff] %v8922
    %8987 = vst [vmem:[#allocation11 + $0x20] sm:$0xff] %v8923
    %8988 = vst [vmem:[#allocation11 + $0x28] sm:$0xff] %v8924
    %8989 = vst [vmem:[#allocation11 + $0x30] sm:$0xff] %v8925
    %8990 = vst [vmem:[#allocation11 + $0x38] sm:$0xff] %v8926
    %8991 = vst [vmem:[#allocation11 + $0x40] sm:$0xff] %v8927
    %8992 = vst [vmem:[#allocation11 + $0x48] sm:$0xff] %v8928
    %8993 = vst [vmem:[#allocation11 + $0x50] sm:$0xff] %v8929
    %8994 = vst [vmem:[#allocation11 + $0x58] sm:$0xff] %v8930
    %8995 = vst [vmem:[#allocation11 + $0x60] sm:$0xff] %v8931
    %8996 = vst [vmem:[#allocation11 + $0x68] sm:$0xff] %v8932
    %8997 = vst [vmem:[#allocation11 + $0x70] sm:$0xff] %v8933
    %8998 = vst [vmem:[#allocation11 + $0x78] sm:$0xff] %v8934
    %8999 = vst [vmem:[#allocation11 + $0x80] sm:$0xff] %v8935
    %9000 = vst [vmem:[#allocation11 + $0x88] sm:$0xff] %v8936
    %9001 = vst [vmem:[#allocation11 + $0x90] sm:$0xff] %v8937
    %9002 = vst [vmem:[#allocation11 + $0x98] sm:$0xff] %v8938
    %9003 = vst [vmem:[#allocation11 + $0xa0] sm:$0xff] %v8939
    %9004 = vst [vmem:[#allocation11 + $0xa8] sm:$0xff] %v8940
    %9005 = vst [vmem:[#allocation11 + $0xb0] sm:$0xff] %v8941
    %9006 = vst [vmem:[#allocation11 + $0xb8] sm:$0xff] %v8942
    %9007 = vst [vmem:[#allocation11 + $0xc0] sm:$0xff] %v8943
    %9008 = vst [vmem:[#allocation11 + $0xc8] sm:$0xff] %v8944
    %9009 = vst [vmem:[#allocation11 + $0xd0] sm:$0xff] %v8945
    %9010 = vst [vmem:[#allocation11 + $0xd8] sm:$0xff] %v8946
    %9011 = vst [vmem:[#allocation11 + $0xe0] sm:$0xff] %v8947
    %9012 = vst [vmem:[#allocation11 + $0xe8] sm:$0xff] %v8948
    %9013 = vst [vmem:[#allocation11 + $0xf0] sm:$0xff] %v8949
    %9014 = vst [vmem:[#allocation11 + $0xf8] sm:$0xff] %v8950
    %9015 = vst [vmem:[#allocation11 + $0x100] sm:$0xff] %v8951
    %9016 = vst [vmem:[#allocation11 + $0x108] sm:$0xff] %v8952
    %9017 = vst [vmem:[#allocation11 + $0x110] sm:$0xff] %v8953
    %9018 = vst [vmem:[#allocation11 + $0x118] sm:$0xff] %v8954
    %9019 = vst [vmem:[#allocation11 + $0x120] sm:$0xff] %v8955
    %9020 = vst [vmem:[#allocation11 + $0x128] sm:$0xff] %v8956
    %9021 = vst [vmem:[#allocation11 + $0x130] sm:$0xff] %v8957
    %9022 = vst [vmem:[#allocation11 + $0x138] sm:$0xff] %v8958
    %9023 = vst [vmem:[#allocation11 + $0x140] sm:$0xff] %v8959
    %9024 = vst [vmem:[#allocation11 + $0x148] sm:$0xff] %v8960
    %9025 = vst [vmem:[#allocation11 + $0x150] sm:$0xff] %v8961
    %9026 = vst [vmem:[#allocation11 + $0x158] sm:$0xff] %v8962
    %9027 = vst [vmem:[#allocation11 + $0x160] sm:$0xff] %v8963
    %9028 = vst [vmem:[#allocation11 + $0x168] sm:$0xff] %v8964
    %9029 = vst [vmem:[#allocation11 + $0x170] sm:$0xff] %v8965
    %9030 = vst [vmem:[#allocation11 + $0x178] sm:$0xff] %v8966
    %9031 = vst [vmem:[#allocation11 + $0x180] sm:$0xff] %v8967
    %9032 = vst [vmem:[#allocation11 + $0x188] sm:$0xff] %v8968
    %9033 = vst [vmem:[#allocation11 + $0x190] sm:$0xff] %v8969
    %9034 = vst [vmem:[#allocation11 + $0x198] sm:$0xff] %v8970
    %9035 = vst [vmem:[#allocation11 + $0x1a0] sm:$0xff] %v8971
    %9036 = vst [vmem:[#allocation11 + $0x1a8] sm:$0xff] %v8972
    %9037 = vst [vmem:[#allocation11 + $0x1b0] sm:$0xff] %v8973
    %9038 = vst [vmem:[#allocation11 + $0x1b8] sm:$0xff] %v8974
    %9039 = vst [vmem:[#allocation11 + $0x1c0] sm:$0xff] %v8975
    %9040 = vst [vmem:[#allocation11 + $0x1c8] sm:$0xff] %v8976
    %9041 = vst [vmem:[#allocation11 + $0x1d0] sm:$0xff] %v8977
    %9042 = vst [vmem:[#allocation11 + $0x1d8] sm:$0xff] %v8978
    %9043 = vst [vmem:[#allocation11 + $0x1e0] sm:$0xff] %v8979
    %9044 = vst [vmem:[#allocation11 + $0x1e8] sm:$0xff] %v8980
    %9045 = vst [vmem:[#allocation11 + $0x1f0] sm:$0xff] %v8981
    %9046 = vst [vmem:[#allocation11 + $0x1f8] sm:$0xff] %v8982
    // Predicated region
    $region70: #{tpu_custom_call.1} parent=1 // pred_check
      _
    $region71: #{tpu_custom_call.1} parent=1 // pred_check_branch
      %9048 = sbr.rel (0) target = $region73
    $region72: #{tpu_custom_call.1} parent=1 // pred_region
      %s9050 = ssub.s32 8192, 8192
      %9051 = vsyncadd [#allocation5], %s9050
      %s9052 = sshll.u32 [#allocation11], 4
      %s9053 = int_to_ptr.vmem [resolvable:$true] %s9052
      %9058 = dma.vmem_to_hbm [thread:$0]  %s9053, 8192, %s13, [#allocation5], 128, 128, 8
    $region73: #{tpu_custom_call.1} parent=1 // pred_fallthru
      _
    // Predicated region
    $region74: #{tpu_custom_call.1} parent=1 // pred_check
      _
    $region75: #{tpu_custom_call.1} parent=1 // pred_check_branch
      %9060 = sbr.rel (0) target = $region77
    $region76: #{tpu_custom_call.1} parent=1 // pred_region
      %9061 = dma.done [#allocation5], 8192
    $region77: #{tpu_custom_call.1} parent=1 // pred_fallthru
      _
    %9062 = vsyncpa [#allocation4], 1
    %9063 = vsyncpa [#allocation7], 1
    %9064 = vsyncpa [#allocation10], 1
    %9065 = vsyncpa [#allocation5], 1

</llo_original>
